<compile_context>
chip_gen: v5e
topology: v5e:2x2
jax: 0.10.0
libtpu: 0.0.40
codegen_flags: <defaults>
</compile_context>

<pallas_src>
import math
import numpy as np
import jax
import jax.numpy as jnp
from jax.experimental import pallas as pl
from jax.experimental.pallas import tpu as pltpu

EPS = 1e-5
TILE_B_MAX = 32     # 7*32 = 224 LHS rows for the conv1 dots -> fills the MXU M dim


def _pick_tile_b(n):
    """Images per grid step.

    Multiple of 16 (bf16 sublane tile -> all in-kernel reshapes are
    layout-trivial), capped at TILE_B_MAX; shrink so the grid has >=2 steps
    whenever the batch allows it (v7x has 2 TensorCores)."""
    tb = min(TILE_B_MAX, ((n + 15) // 16) * 16)
    if n > 16 and -(-n // tb) < 2:
        tb = max(16, ((-(-n // 2) + 15) // 16) * 16)
    return tb


# ---------------------------------------------------------------------------
# Static placement tensors (numpy, built once).
#   P[kw, dw, j, q] = 1  iff  j == 2*q + dw + kw
# They turn "conv along width + 2x2 max-pool column offset dw" into a plain
# matmul along the width axis (a banded/Toeplitz weight matrix), so the kernel
# only needs contiguous row slices + MXU dots -- no im2col, no strided views.
# ---------------------------------------------------------------------------
def _pool_placement(width_in, q_out, k=5):
    P = np.zeros((k, 2, width_in, q_out), dtype=np.float32)
    for kw in range(k):
        for dw in range(2):
            for q in range(q_out):
                j = 2 * q + dw + kw
                if j < width_in:
                    P[kw, dw, j, q] = 1.0
    return P


_P1 = _pool_placement(32, 14)     # conv1: padded width 32 -> 14 pooled columns
_P2 = _pool_placement(14, 5)      # conv2: width 14 -> 5 pooled columns

# fc1 row permutation: kernel feature order (h, w, c) -> torch flatten order (c, h, w)
_FC1_PERM = np.zeros((5, 5, 16), dtype=np.int32)
for _h in range(5):
    for _w in range(5):
        for _c in range(16):
            _FC1_PERM[_h, _w, _c] = _c * 25 + _h * 5 + _w
_FC1_PERM = _FC1_PERM.reshape(-1)


# ---------------------------------------------------------------------------
# Fused kernel: one grid step == TB images, whole network, batched MXU dots.
# ---------------------------------------------------------------------------
def lenet5_fused_kernel(x_ref, t1_ref, b1_ref, t2_ref, b2_ref,
                        fw1_ref, fb1_ref, fw2_ref, fb2_ref, fw3_ref, fb3_ref,
                        o_ref, h1_scr, feat_scr):
    """LeNet5Curve forward for one tile of TB images.

    x_ref   : (4, 8, TB, 32) bf16  zero-padded 32x32 inputs, rows split by (row % 4)
    t1_ref  : (10, 32, 84)   bf16  conv1 pooled-Toeplitz weights, index = kh*2 + dw
    b1_ref  : (1, 84)        f32   conv1 bias (BN folded), tiled over 14 pooled cols
    t2_ref  : (10, 84, 80)   bf16  conv2 pooled-Toeplitz weights
    b2_ref  : (1, 80)        f32
    fw1_ref : (5, 80, 128)   bf16  fc1 (row-permuted, out 120 -> 128 zero-padded)
    fw2_ref : (128, 128)     bf16  fc2 (120x84 zero-padded to 128x128)
    fw3_ref : (128, OUTP)    bf16  fc3 (rows 84 -> 128, cols nc -> OUTP zero-padded)
    fb3_ref : (1, OUTP)      f32   padded lanes are -1e30 so softmax ignores them
    o_ref   : (TB, OUTP)     f32   softmax probabilities (first nc lanes are real)
    h1_scr  : (2, 7, TB, 84) bf16  pooled conv1 output, split by pooled-row parity
    feat_scr: (5, TB, 80)    bf16  pooled conv2 output
    """
    TB = x_ref.shape[2]
    f32 = jnp.float32
    bf16 = jnp.bfloat16

    # ---- conv1 (1->6, k=5, pad=2) + folded BN + ReLU + 2x2 max-pool ---------
    # Pooled rows computed split by parity so every input access is a contiguous
    # slice of the (row % 4)-split input planes.  LHS rows = 7 pooled rows x TB.
    for par in (0, 1):
        pooled = None
        for dh in (0, 1):
            for dw in (0, 1):
                acc = None
                for kh in range(5):
                    cc = 2 * par + dh + kh                         # input row offset
                    rows = x_ref[cc % 4, pl.ds(cc // 4, 7), :, :]  # (7, TB, 32) bf16
                    rows = rows.reshape(7 * TB, 32)
                    term = jnp.dot(rows, t1_ref[kh * 2 + dw, :, :],
                                   preferred_element_type=f32)     # (7*TB, 84)
                    acc = term if acc is None else acc + term
                pooled = acc if pooled is None else jnp.maximum(pooled, acc)
        # bias shift commutes with max; relu(max) == max(relu)
        act1 = jnp.maximum(pooled + b1_ref[...], 0.0)              # f32
        h1_scr[par, :, :, :] = act1.reshape(7, TB, 84).astype(bf16)

    # ---- conv2 (6->16, k=5, pad=0) + folded BN + ReLU + 2x2 max-pool --------
    pooled = None
    for dh in (0, 1):
        for dw in (0, 1):
            acc = None
            for kh in range(5):
                c2 = dh + kh                                       # conv1-row offset
                rows = h1_scr[c2 % 2, pl.ds(c2 // 2, 5), :, :]     # (5, TB, 84) bf16
                rows = rows.reshape(5 * TB, 84)
                term = jnp.dot(rows, t2_ref[kh * 2 + dw, :, :],
                               preferred_element_type=f32)          # (5*TB, 80)
                acc = term if acc is None else acc + term
            pooled = acc if pooled is None else jnp.maximum(pooled, acc)
    act2 = jnp.maximum(pooled + b2_ref[...], 0.0)
    feat_scr[...] = act2.reshape(5, TB, 80).astype(bf16)

    # ---- MLP head, batched over the whole tile (dropout p=0.0 == identity) --
    a = None
    for hh in range(5):
        term = jnp.dot(feat_scr[hh, :, :], fw1_ref[hh, :, :],
                       preferred_element_type=f32)                  # (TB, 128)
        a = term if a is None else a + term
    a = jnp.maximum(a + fb1_ref[...], 0.0)
    a = jnp.maximum(jnp.dot(a.astype(bf16), fw2_ref[...],
                            preferred_element_type=f32) + fb2_ref[...], 0.0)
    logits = jnp.dot(a.astype(bf16), fw3_ref[...],
                     preferred_element_type=f32) + fb3_ref[...]     # pad lanes = -1e30
    m = jnp.max(logits, axis=-1, keepdims=True)
    e = jnp.exp(logits - m)                                         # pad lanes -> 0
    denom = jnp.sum(e, axis=-1, keepdims=True)
    o_ref[...] = e * pl.reciprocal(denom, approx=True)


# ---------------------------------------------------------------------------
# Glue: parameter folding / weight-table construction (one-time, plain JAX)
# ---------------------------------------------------------------------------
def combine(coeffs, param_bends):
    # effective curve parameter = sum_i coeffs_t[i] * param_i
    return jnp.tensordot(coeffs, param_bends, axes=((0,), (0,)))


def _fold_bn(w, b, gamma, beta, mean, var):
    # eval-mode BN folded into conv weight/bias
    s = gamma * jax.lax.rsqrt(var + EPS)
    return w * s[:, None, None, None], (b - mean) * s + beta


def _conv1_tables(w1f, b1f):
    # w1f: (6,1,5,5) -> T1[kh*2+dw] of shape (32, 84);  col index = pw*6 + c
    w_khkwc = jnp.transpose(w1f[:, 0, :, :], (1, 2, 0))                  # (5,5,6)
    t1 = jnp.einsum('kdjq,hkc->hdjqc', jnp.asarray(_P1), w_khkwc)        # (5,2,32,14,6)
    return t1.reshape(10, 32, 84), jnp.tile(b1f, 14).reshape(1, 84)


def _conv2_tables(w2f, b2f):
    # w2f: (16,6,5,5) -> T2[kh*2+dw] of shape (84, 80)
    #   row index = wi*6 + ci  (matches conv1 output column layout)
    #   col index = pw2*16 + c2
    t2 = jnp.einsum('kdwq,oihk->hdwiqo', jnp.asarray(_P2), w2f)          # (5,2,14,6,5,16)
    return t2.reshape(10, 84, 80), jnp.tile(b2f, 5).reshape(1, 80)


def lenet5_curve_forward(x, coeffs_t, p):
    """x: (N, 1, 28, 28) -> (N, num_classes) softmax probabilities."""
    N = x.shape[0]

    # --- curve-combined effective parameters ----------------------------------
    w1 = combine(coeffs_t, p["conv1_w"]); b1 = combine(coeffs_t, p["conv1_b"])
    g1 = combine(coeffs_t, p["bn1_g"]);   be1 = combine(coeffs_t, p["bn1_b"])
    w2 = combine(coeffs_t, p["conv2_w"]); b2 = combine(coeffs_t, p["conv2_b"])
    g2 = combine(coeffs_t, p["bn2_g"]);   be2 = combine(coeffs_t, p["bn2_b"])
    fw1 = combine(coeffs_t, p["fc1_w"]);  fb1 = combine(coeffs_t, p["fc1_b"])
    fw2 = combine(coeffs_t, p["fc2_w"]);  fb2 = combine(coeffs_t, p["fc2_b"])
    fw3 = combine(coeffs_t, p["fc3_w"]);  fb3 = combine(coeffs_t, p["fc3_b"])
    num_classes = fw3.shape[1]
    OUT_PAD = ((num_classes + 127) // 128) * 128       # lane-dense output width

    # --- fold eval-mode BatchNorm into the conv weights / biases ---------------
    w1f, b1f = _fold_bn(w1, b1, g1, be1, p["bn1_mean"], p["bn1_var"])
    w2f, b2f = _fold_bn(w2, b2, g2, be2, p["bn2_mean"], p["bn2_var"])

    # --- conv -> pooled-Toeplitz matmul tables ----------------------------------
    t1, b1row = _conv1_tables(w1f, b1f)
    t2, b2row = _conv2_tables(w2f, b2f)

    # --- FC weights: permute fc1 rows to the kernel feature order, zero-pad
    #     widths to 128 lanes (exact: padded activations are 0); fc3 padded
    #     logits masked via -1e30 bias lanes ------------------------------------
    fw1p = jnp.pad(fw1[jnp.asarray(_FC1_PERM)].reshape(5, 80, 120),
                   ((0, 0), (0, 0), (0, 8)))
    fb1p = jnp.pad(fb1, (0, 8)).reshape(1, 128)
    fw2p = jnp.pad(fw2, ((0, 8), (0, 44)))
    fb2p = jnp.pad(fb2, (0, 44)).reshape(1, 128)
    fw3p = jnp.pad(fw3, ((0, 44), (0, OUT_PAD - num_classes)))
    fb3p = jnp.concatenate(
        [fb3.astype(jnp.float32),
         jnp.full((OUT_PAD - num_classes,), -1e30, jnp.float32)]).reshape(1, OUT_PAD)

    # --- tile sizing & input relayout -------------------------------------------
    tile_b = _pick_tile_b(N)
    npad = pl.cdiv(N, tile_b) * tile_b

    # spatial pad (conv1 padding=2), batch pad to tile, split rows by (row % 4)
    # so the kernel's shifted/pooled row reads are contiguous; batch goes to the
    # sublane axis so the conv dots batch over the whole tile.
    xs = jnp.pad(x[:, 0, :, :].astype(jnp.float32),
                 ((0, npad - N), (2, 2), (2, 2)))                       # (npad, 32, 32)
    xr = xs.reshape(npad, 8, 4, 32).transpose(2, 1, 0, 3)               # (4, 8, npad, 32)
    xr = xr.astype(jnp.bfloat16)

    bf16 = jnp.bfloat16
    f32 = jnp.float32
    consts = (t1.astype(bf16), b1row.astype(f32),
              t2.astype(bf16), b2row.astype(f32),
              fw1p.astype(bf16), fb1p.astype(f32),
              fw2p.astype(bf16), fb2p.astype(f32),
              fw3p.astype(bf16), fb3p.astype(f32))

    def _rep(a):  # whole-array block, re-used at every grid step
        zeros = (0,) * a.ndim
        return pl.BlockSpec(a.shape, lambda i, _z=zeros: _z)

    out = pl.pallas_call(
        lenet5_fused_kernel,
        out_shape=jax.ShapeDtypeStruct((npad, OUT_PAD), jnp.float32),
        grid=(npad // tile_b,),
        in_specs=[pl.BlockSpec((4, 8, tile_b, 32), lambda i: (0, 0, i, 0))]
                 + [_rep(c) for c in consts],
        out_specs=pl.BlockSpec((tile_b, OUT_PAD), lambda i: (i, 0)),
        scratch_shapes=[pltpu.VMEM((2, 7, tile_b, 84), jnp.bfloat16),   # pooled conv1
                        pltpu.VMEM((5, tile_b, 80), jnp.bfloat16)],     # pooled conv2
        compiler_params=pltpu.CompilerParams(
            dimension_semantics=("parallel",)),
    )(xr, *consts)
    return out[:N, :num_classes]


# ---------------------------------------------------------------------------
# Pure-JAX reference (same math, straightforward im2col), used for validation.
# ---------------------------------------------------------------------------
def _ref_im2col(x, k, pad):
    if pad:
        x = jnp.pad(x, ((0, 0), (0, 0), (pad, pad), (pad, pad)))
    N, C, Hp, Wp = x.shape
    Ho, Wo = Hp - k + 1, Wp - k + 1
    slabs = [x[:, :, i:i + Ho, j:j + Wo] for i in range(k) for j in range(k)]
    p = jnp.stack(slabs, axis=2)
    p = p.transpose(0, 3, 4, 1, 2).reshape(N * Ho * Wo, C * k * k)
    return p, Ho, Wo


def lenet5_curve_reference(x, coeffs_t, p):
    N = x.shape[0]
    w1 = combine(coeffs_t, p["conv1_w"]); b1 = combine(coeffs_t, p["conv1_b"])
    g1 = combine(coeffs_t, p["bn1_g"]);   be1 = combine(coeffs_t, p["bn1_b"])
    w2 = combine(coeffs_t, p["conv2_w"]); b2 = combine(coeffs_t, p["conv2_b"])
    g2 = combine(coeffs_t, p["bn2_g"]);   be2 = combine(coeffs_t, p["bn2_b"])
    fw1 = combine(coeffs_t, p["fc1_w"]);  fb1 = combine(coeffs_t, p["fc1_b"])
    fw2 = combine(coeffs_t, p["fc2_w"]);  fb2 = combine(coeffs_t, p["fc2_b"])
    fw3 = combine(coeffs_t, p["fc3_w"]);  fb3 = combine(coeffs_t, p["fc3_b"])

    def block(z, w, b, g, be, mean, var, k, pad):
        pat, Ho, Wo = _ref_im2col(z, k, pad)
        y = pat @ w.reshape(w.shape[0], -1).T + b
        y = (y - mean) * jax.lax.rsqrt(var + EPS) * g + be
        y = jnp.maximum(y, 0.0)
        y = y.reshape(z.shape[0], Ho, Wo, -1).transpose(0, 3, 1, 2)
        return jnp.max(y.reshape(y.shape[0], y.shape[1], Ho // 2, 2, Wo // 2, 2),
                       axis=(3, 5))

    z = block(x, w1, b1, g1, be1, p["bn1_mean"], p["bn1_var"], 5, 2)
    z = block(z, w2, b2, g2, be2, p["bn2_mean"], p["bn2_var"], 5, 0)
    z = z.reshape(N, -1)
    z = jnp.maximum(z @ fw1 + fb1, 0.0)
    z = jnp.maximum(z @ fw2 + fb2, 0.0)
    return jax.nn.softmax(z @ fw3 + fb3, axis=-1)


# ---------------------------------------------------------------------------
# Parameter construction (deterministic, mirrors LeNet5Curve.__init__)
# ---------------------------------------------------------------------------
def init_params(key, num_classes=10, num_bends=3):
    ks = jax.random.split(key, 16)
    p = {}
    n1 = 5 * 5 * 6
    p["conv1_w"] = jax.random.normal(ks[0], (num_bends, 6, 1, 5, 5)) * math.sqrt(2.0 / n1)
    p["conv1_b"] = jnp.zeros((num_bends, 6))
    n2 = 5 * 5 * 16
    p["conv2_w"] = jax.random.normal(ks[1], (num_bends, 16, 6, 5, 5)) * math.sqrt(2.0 / n2)
    p["conv2_b"] = jnp.zeros((num_bends, 16))
    p["bn1_g"] = 1.0 + 0.1 * jax.random.normal(ks[2], (num_bends, 6))
    p["bn1_b"] = 0.1 * jax.random.normal(ks[3], (num_bends, 6))
    p["bn2_g"] = 1.0 + 0.1 * jax.random.normal(ks[4], (num_bends, 16))
    p["bn2_b"] = 0.1 * jax.random.normal(ks[5], (num_bends, 16))
    p["bn1_mean"], p["bn1_var"] = jnp.zeros((6,)), jnp.ones((6,))
    p["bn2_mean"], p["bn2_var"] = jnp.zeros((16,)), jnp.ones((16,))
    # PyTorch Linear weight is (out, in); stored transposed (in, out)
    p["fc1_w"] = jax.random.normal(ks[6], (num_bends, 400, 120)) * (1.0 / math.sqrt(400))
    p["fc1_b"] = 0.01 * jax.random.normal(ks[7], (num_bends, 120))
    p["fc2_w"] = jax.random.normal(ks[8], (num_bends, 120, 84)) * (1.0 / math.sqrt(120))
    p["fc2_b"] = 0.01 * jax.random.normal(ks[9], (num_bends, 84))
    p["fc3_w"] = jax.random.normal(ks[10], (num_bends, 84, num_classes)) * (1.0 / math.sqrt(84))
    p["fc3_b"] = 0.01 * jax.random.normal(ks[11], (num_bends, num_classes))
    return jax.tree_util.tree_map(lambda a: a.astype(jnp.float32), p)


# ---------------------------------------------------------------------------
if __name__ == "__main__":
    key = jax.random.PRNGKey(0)
    k_x, k_p = jax.random.split(key)

    num_classes = 10
    num_bends = 3
    batch = 2

    # input: (n, 1, 28, 28) as required by the module docstring
    x = jax.random.normal(k_x, (batch, 1, 28, 28), dtype=jnp.float32)

    # Bezier curve coefficients at t=0.25: [(1-t)^2, 2t(1-t), t^2]
    t = 0.25
    coeffs_t = jnp.array([(1 - t) ** 2, 2 * t * (1 - t), t ** 2], dtype=jnp.float32)

    params = init_params(k_p, num_classes=num_classes, num_bends=num_bends)

    out = jax.jit(lenet5_curve_forward)(x, coeffs_t, params)
    out = jax.block_until_ready(out)

    assert out.shape == (batch, num_classes)
    assert bool(jnp.all(jnp.isfinite(out)))
    # softmax rows sum to ~1 (approx reciprocal + bf16 MXU operands)
    assert bool(jnp.allclose(jnp.sum(out, axis=-1), 1.0, atol=2e-2))

    # cross-check against the plain-JAX f32 reference (bf16 operands -> loose tol)
    ref = jax.jit(lenet5_curve_reference)(x, coeffs_t, params)
    ref = jax.block_until_ready(ref)
    max_err = float(jnp.max(jnp.abs(out - ref)))
    assert max_err < 5e-2, f"mismatch vs reference: {max_err}"

    print("KERNEL_OK")
</pallas_src>

<mosaic_0001>
module attributes {stable_mosaic.version = 11 : i64} {
  func.func @lenet5_fused_kernel(%arg0: i32, %arg1: memref<4x8x16x32xbf16, #tpu.memory_space<vmem>>, %arg2: memref<10x32x84xbf16, #tpu.memory_space<vmem>>, %arg3: memref<1x84xf32, #tpu.memory_space<vmem>>, %arg4: memref<10x84x80xbf16, #tpu.memory_space<vmem>>, %arg5: memref<1x80xf32, #tpu.memory_space<vmem>>, %arg6: memref<5x80x128xbf16, #tpu.memory_space<vmem>>, %arg7: memref<1x128xf32, #tpu.memory_space<vmem>>, %arg8: memref<128x128xbf16, #tpu.memory_space<vmem>>, %arg9: memref<1x128xf32, #tpu.memory_space<vmem>>, %arg10: memref<128x128xbf16, #tpu.memory_space<vmem>>, %arg11: memref<1x128xf32, #tpu.memory_space<vmem>>, %arg12: memref<16x128xf32, #tpu.memory_space<vmem>>, %arg13: memref<2x7x16x84xbf16, #tpu.memory_space<vmem>>, %arg14: memref<5x16x80xbf16, #tpu.memory_space<vmem>>) attributes {dimension_semantics = [#tpu.dimension_semantics<parallel>], iteration_bounds = array<i64: 1>, scalar_prefetch = 0 : i64, scratch_operands = 2 : i64, tpu.core_type = #tpu.core_type<tc>, window_params = [{transform_indices = @transform_0, window_bounds = array<i64: 4, 8, 16, 32>}, {pipeline_mode = #tpu.pipeline_mode<synchronous>, transform_indices = @transform_1, window_bounds = array<i64: 10, 32, 84>}, {pipeline_mode = #tpu.pipeline_mode<synchronous>, transform_indices = @transform_2, window_bounds = array<i64: 1, 84>}, {pipeline_mode = #tpu.pipeline_mode<synchronous>, transform_indices = @transform_3, window_bounds = array<i64: 10, 84, 80>}, {pipeline_mode = #tpu.pipeline_mode<synchronous>, transform_indices = @transform_4, window_bounds = array<i64: 1, 80>}, {pipeline_mode = #tpu.pipeline_mode<synchronous>, transform_indices = @transform_5, window_bounds = array<i64: 5, 80, 128>}, {pipeline_mode = #tpu.pipeline_mode<synchronous>, transform_indices = @transform_6, window_bounds = array<i64: 1, 128>}, {pipeline_mode = #tpu.pipeline_mode<synchronous>, transform_indices = @transform_7, window_bounds = array<i64: 128, 128>}, {pipeline_mode = #tpu.pipeline_mode<synchronous>, transform_indices = @transform_8, window_bounds = array<i64: 1, 128>}, {pipeline_mode = #tpu.pipeline_mode<synchronous>, transform_indices = @transform_9, window_bounds = array<i64: 128, 128>}, {pipeline_mode = #tpu.pipeline_mode<synchronous>, transform_indices = @transform_10, window_bounds = array<i64: 1, 128>}, {transform_indices = @transform_11, window_bounds = array<i64: 16, 128>}]} {
    %c0 = arith.constant 0 : index
    %c0_0 = arith.constant 0 : index
    %c0_1 = arith.constant 0 : index
    %c0_2 = arith.constant 0 : index
    %0 = vector.load %arg1[%c0, %c0_0, %c0_1, %c0_2] : memref<4x8x16x32xbf16, #tpu.memory_space<vmem>>, vector<1x7x16x32xbf16>
    %1 = vector.shape_cast %0 : vector<1x7x16x32xbf16> to vector<7x16x32xbf16>
    %2 = vector.shape_cast %1 : vector<7x16x32xbf16> to vector<112x32xbf16>
    %c0_3 = arith.constant 0 : index
    %c0_4 = arith.constant 0 : index
    %c0_5 = arith.constant 0 : index
    %3 = vector.load %arg2[%c0_3, %c0_4, %c0_5] : memref<10x32x84xbf16, #tpu.memory_space<vmem>>, vector<1x32x84xbf16>
    %4 = vector.shape_cast %3 : vector<1x32x84xbf16> to vector<32x84xbf16>
    %cst = arith.constant dense<0.000000e+00> : vector<112x84xf32>
    %5 = tpu.matmul %2, %4, %cst {dimension_numbers = #tpu.dot_dimension_numbers<[1], [0], [0], [1], [0, 0, 1, 1], [], []>} : vector<112x32xbf16>, vector<32x84xbf16>, vector<112x84xf32> -> vector<112x84xf32>
    %c1 = arith.constant 1 : index
    %c0_6 = arith.constant 0 : index
    %c0_7 = arith.constant 0 : index
    %c0_8 = arith.constant 0 : index
    %6 = vector.load %arg1[%c1, %c0_6, %c0_7, %c0_8] : memref<4x8x16x32xbf16, #tpu.memory_space<vmem>>, vector<1x7x16x32xbf16>
    %7 = vector.shape_cast %6 : vector<1x7x16x32xbf16> to vector<7x16x32xbf16>
    %8 = vector.shape_cast %7 : vector<7x16x32xbf16> to vector<112x32xbf16>
    %c2 = arith.constant 2 : index
    %c0_9 = arith.constant 0 : index
    %c0_10 = arith.constant 0 : index
    %9 = vector.load %arg2[%c2, %c0_9, %c0_10] : memref<10x32x84xbf16, #tpu.memory_space<vmem>>, vector<1x32x84xbf16>
    %10 = vector.shape_cast %9 : vector<1x32x84xbf16> to vector<32x84xbf16>
    %cst_11 = arith.constant dense<0.000000e+00> : vector<112x84xf32>
    %11 = tpu.matmul %8, %10, %cst_11 {dimension_numbers = #tpu.dot_dimension_numbers<[1], [0], [0], [1], [0, 0, 1, 1], [], []>} : vector<112x32xbf16>, vector<32x84xbf16>, vector<112x84xf32> -> vector<112x84xf32>
    %12 = arith.addf %5, %11 : vector<112x84xf32>
    %c2_12 = arith.constant 2 : index
    %c0_13 = arith.constant 0 : index
    %c0_14 = arith.constant 0 : index
    %c0_15 = arith.constant 0 : index
    %13 = vector.load %arg1[%c2_12, %c0_13, %c0_14, %c0_15] : memref<4x8x16x32xbf16, #tpu.memory_space<vmem>>, vector<1x7x16x32xbf16>
    %14 = vector.shape_cast %13 : vector<1x7x16x32xbf16> to vector<7x16x32xbf16>
    %15 = vector.shape_cast %14 : vector<7x16x32xbf16> to vector<112x32xbf16>
    %c4 = arith.constant 4 : index
    %c0_16 = arith.constant 0 : index
    %c0_17 = arith.constant 0 : index
    %16 = vector.load %arg2[%c4, %c0_16, %c0_17] : memref<10x32x84xbf16, #tpu.memory_space<vmem>>, vector<1x32x84xbf16>
    %17 = vector.shape_cast %16 : vector<1x32x84xbf16> to vector<32x84xbf16>
    %cst_18 = arith.constant dense<0.000000e+00> : vector<112x84xf32>
    %18 = tpu.matmul %15, %17, %cst_18 {dimension_numbers = #tpu.dot_dimension_numbers<[1], [0], [0], [1], [0, 0, 1, 1], [], []>} : vector<112x32xbf16>, vector<32x84xbf16>, vector<112x84xf32> -> vector<112x84xf32>
    %19 = arith.addf %12, %18 : vector<112x84xf32>
    %c3 = arith.constant 3 : index
    %c0_19 = arith.constant 0 : index
    %c0_20 = arith.constant 0 : index
    %c0_21 = arith.constant 0 : index
    %20 = vector.load %arg1[%c3, %c0_19, %c0_20, %c0_21] : memref<4x8x16x32xbf16, #tpu.memory_space<vmem>>, vector<1x7x16x32xbf16>
    %21 = vector.shape_cast %20 : vector<1x7x16x32xbf16> to vector<7x16x32xbf16>
    %22 = vector.shape_cast %21 : vector<7x16x32xbf16> to vector<112x32xbf16>
    %c6 = arith.constant 6 : index
    %c0_22 = arith.constant 0 : index
    %c0_23 = arith.constant 0 : index
    %23 = vector.load %arg2[%c6, %c0_22, %c0_23] : memref<10x32x84xbf16, #tpu.memory_space<vmem>>, vector<1x32x84xbf16>
    %24 = vector.shape_cast %23 : vector<1x32x84xbf16> to vector<32x84xbf16>
    %cst_24 = arith.constant dense<0.000000e+00> : vector<112x84xf32>
    %25 = tpu.matmul %22, %24, %cst_24 {dimension_numbers = #tpu.dot_dimension_numbers<[1], [0], [0], [1], [0, 0, 1, 1], [], []>} : vector<112x32xbf16>, vector<32x84xbf16>, vector<112x84xf32> -> vector<112x84xf32>
    %26 = arith.addf %19, %25 : vector<112x84xf32>
    %c0_25 = arith.constant 0 : index
    %c1_26 = arith.constant 1 : index
    %c0_27 = arith.constant 0 : index
    %c0_28 = arith.constant 0 : index
    %27 = vector.load %arg1[%c0_25, %c1_26, %c0_27, %c0_28] : memref<4x8x16x32xbf16, #tpu.memory_space<vmem>>, vector<1x7x16x32xbf16>
    %28 = vector.shape_cast %27 : vector<1x7x16x32xbf16> to vector<7x16x32xbf16>
    %29 = vector.shape_cast %28 : vector<7x16x32xbf16> to vector<112x32xbf16>
    %c8 = arith.constant 8 : index
    %c0_29 = arith.constant 0 : index
    %c0_30 = arith.constant 0 : index
    %30 = vector.load %arg2[%c8, %c0_29, %c0_30] : memref<10x32x84xbf16, #tpu.memory_space<vmem>>, vector<1x32x84xbf16>
    %31 = vector.shape_cast %30 : vector<1x32x84xbf16> to vector<32x84xbf16>
    %cst_31 = arith.constant dense<0.000000e+00> : vector<112x84xf32>
    %32 = tpu.matmul %29, %31, %cst_31 {dimension_numbers = #tpu.dot_dimension_numbers<[1], [0], [0], [1], [0, 0, 1, 1], [], []>} : vector<112x32xbf16>, vector<32x84xbf16>, vector<112x84xf32> -> vector<112x84xf32>
    %33 = arith.addf %26, %32 : vector<112x84xf32>
    %c0_32 = arith.constant 0 : index
    %c0_33 = arith.constant 0 : index
    %c0_34 = arith.constant 0 : index
    %c0_35 = arith.constant 0 : index
    %34 = vector.load %arg1[%c0_32, %c0_33, %c0_34, %c0_35] : memref<4x8x16x32xbf16, #tpu.memory_space<vmem>>, vector<1x7x16x32xbf16>
    %35 = vector.shape_cast %34 : vector<1x7x16x32xbf16> to vector<7x16x32xbf16>
    %36 = vector.shape_cast %35 : vector<7x16x32xbf16> to vector<112x32xbf16>
    %c1_36 = arith.constant 1 : index
    %c0_37 = arith.constant 0 : index
    %c0_38 = arith.constant 0 : index
    %37 = vector.load %arg2[%c1_36, %c0_37, %c0_38] : memref<10x32x84xbf16, #tpu.memory_space<vmem>>, vector<1x32x84xbf16>
    %38 = vector.shape_cast %37 : vector<1x32x84xbf16> to vector<32x84xbf16>
    %cst_39 = arith.constant dense<0.000000e+00> : vector<112x84xf32>
    %39 = tpu.matmul %36, %38, %cst_39 {dimension_numbers = #tpu.dot_dimension_numbers<[1], [0], [0], [1], [0, 0, 1, 1], [], []>} : vector<112x32xbf16>, vector<32x84xbf16>, vector<112x84xf32> -> vector<112x84xf32>
    %c1_40 = arith.constant 1 : index
    %c0_41 = arith.constant 0 : index
    %c0_42 = arith.constant 0 : index
    %c0_43 = arith.constant 0 : index
    %40 = vector.load %arg1[%c1_40, %c0_41, %c0_42, %c0_43] : memref<4x8x16x32xbf16, #tpu.memory_space<vmem>>, vector<1x7x16x32xbf16>
    %41 = vector.shape_cast %40 : vector<1x7x16x32xbf16> to vector<7x16x32xbf16>
    %42 = vector.shape_cast %41 : vector<7x16x32xbf16> to vector<112x32xbf16>
    %c3_44 = arith.constant 3 : index
    %c0_45 = arith.constant 0 : index
    %c0_46 = arith.constant 0 : index
    %43 = vector.load %arg2[%c3_44, %c0_45, %c0_46] : memref<10x32x84xbf16, #tpu.memory_space<vmem>>, vector<1x32x84xbf16>
    %44 = vector.shape_cast %43 : vector<1x32x84xbf16> to vector<32x84xbf16>
    %cst_47 = arith.constant dense<0.000000e+00> : vector<112x84xf32>
    %45 = tpu.matmul %42, %44, %cst_47 {dimension_numbers = #tpu.dot_dimension_numbers<[1], [0], [0], [1], [0, 0, 1, 1], [], []>} : vector<112x32xbf16>, vector<32x84xbf16>, vector<112x84xf32> -> vector<112x84xf32>
    %46 = arith.addf %39, %45 : vector<112x84xf32>
    %c2_48 = arith.constant 2 : index
    %c0_49 = arith.constant 0 : index
    %c0_50 = arith.constant 0 : index
    %c0_51 = arith.constant 0 : index
    %47 = vector.load %arg1[%c2_48, %c0_49, %c0_50, %c0_51] : memref<4x8x16x32xbf16, #tpu.memory_space<vmem>>, vector<1x7x16x32xbf16>
    %48 = vector.shape_cast %47 : vector<1x7x16x32xbf16> to vector<7x16x32xbf16>
    %49 = vector.shape_cast %48 : vector<7x16x32xbf16> to vector<112x32xbf16>
    %c5 = arith.constant 5 : index
    %c0_52 = arith.constant 0 : index
    %c0_53 = arith.constant 0 : index
    %50 = vector.load %arg2[%c5, %c0_52, %c0_53] : memref<10x32x84xbf16, #tpu.memory_space<vmem>>, vector<1x32x84xbf16>
    %51 = vector.shape_cast %50 : vector<1x32x84xbf16> to vector<32x84xbf16>
    %cst_54 = arith.constant dense<0.000000e+00> : vector<112x84xf32>
    %52 = tpu.matmul %49, %51, %cst_54 {dimension_numbers = #tpu.dot_dimension_numbers<[1], [0], [0], [1], [0, 0, 1, 1], [], []>} : vector<112x32xbf16>, vector<32x84xbf16>, vector<112x84xf32> -> vector<112x84xf32>
    %53 = arith.addf %46, %52 : vector<112x84xf32>
    %c3_55 = arith.constant 3 : index
    %c0_56 = arith.constant 0 : index
    %c0_57 = arith.constant 0 : index
    %c0_58 = arith.constant 0 : index
    %54 = vector.load %arg1[%c3_55, %c0_56, %c0_57, %c0_58] : memref<4x8x16x32xbf16, #tpu.memory_space<vmem>>, vector<1x7x16x32xbf16>
    %55 = vector.shape_cast %54 : vector<1x7x16x32xbf16> to vector<7x16x32xbf16>
    %56 = vector.shape_cast %55 : vector<7x16x32xbf16> to vector<112x32xbf16>
    %c7 = arith.constant 7 : index
    %c0_59 = arith.constant 0 : index
    %c0_60 = arith.constant 0 : index
    %57 = vector.load %arg2[%c7, %c0_59, %c0_60] : memref<10x32x84xbf16, #tpu.memory_space<vmem>>, vector<1x32x84xbf16>
    %58 = vector.shape_cast %57 : vector<1x32x84xbf16> to vector<32x84xbf16>
    %cst_61 = arith.constant dense<0.000000e+00> : vector<112x84xf32>
    %59 = tpu.matmul %56, %58, %cst_61 {dimension_numbers = #tpu.dot_dimension_numbers<[1], [0], [0], [1], [0, 0, 1, 1], [], []>} : vector<112x32xbf16>, vector<32x84xbf16>, vector<112x84xf32> -> vector<112x84xf32>
    %60 = arith.addf %53, %59 : vector<112x84xf32>
    %c0_62 = arith.constant 0 : index
    %c1_63 = arith.constant 1 : index
    %c0_64 = arith.constant 0 : index
    %c0_65 = arith.constant 0 : index
    %61 = vector.load %arg1[%c0_62, %c1_63, %c0_64, %c0_65] : memref<4x8x16x32xbf16, #tpu.memory_space<vmem>>, vector<1x7x16x32xbf16>
    %62 = vector.shape_cast %61 : vector<1x7x16x32xbf16> to vector<7x16x32xbf16>
    %63 = vector.shape_cast %62 : vector<7x16x32xbf16> to vector<112x32xbf16>
    %c9 = arith.constant 9 : index
    %c0_66 = arith.constant 0 : index
    %c0_67 = arith.constant 0 : index
    %64 = vector.load %arg2[%c9, %c0_66, %c0_67] : memref<10x32x84xbf16, #tpu.memory_space<vmem>>, vector<1x32x84xbf16>
    %65 = vector.shape_cast %64 : vector<1x32x84xbf16> to vector<32x84xbf16>
    %cst_68 = arith.constant dense<0.000000e+00> : vector<112x84xf32>
    %66 = tpu.matmul %63, %65, %cst_68 {dimension_numbers = #tpu.dot_dimension_numbers<[1], [0], [0], [1], [0, 0, 1, 1], [], []>} : vector<112x32xbf16>, vector<32x84xbf16>, vector<112x84xf32> -> vector<112x84xf32>
    %67 = arith.addf %60, %66 : vector<112x84xf32>
    %68 = arith.maximumf %33, %67 : vector<112x84xf32>
    %c1_69 = arith.constant 1 : index
    %c0_70 = arith.constant 0 : index
    %c0_71 = arith.constant 0 : index
    %c0_72 = arith.constant 0 : index
    %69 = vector.load %arg1[%c1_69, %c0_70, %c0_71, %c0_72] : memref<4x8x16x32xbf16, #tpu.memory_space<vmem>>, vector<1x7x16x32xbf16>
    %70 = vector.shape_cast %69 : vector<1x7x16x32xbf16> to vector<7x16x32xbf16>
    %71 = vector.shape_cast %70 : vector<7x16x32xbf16> to vector<112x32xbf16>
    %c0_73 = arith.constant 0 : index
    %c0_74 = arith.constant 0 : index
    %c0_75 = arith.constant 0 : index
    %72 = vector.load %arg2[%c0_73, %c0_74, %c0_75] : memref<10x32x84xbf16, #tpu.memory_space<vmem>>, vector<1x32x84xbf16>
    %73 = vector.shape_cast %72 : vector<1x32x84xbf16> to vector<32x84xbf16>
    %cst_76 = arith.constant dense<0.000000e+00> : vector<112x84xf32>
    %74 = tpu.matmul %71, %73, %cst_76 {dimension_numbers = #tpu.dot_dimension_numbers<[1], [0], [0], [1], [0, 0, 1, 1], [], []>} : vector<112x32xbf16>, vector<32x84xbf16>, vector<112x84xf32> -> vector<112x84xf32>
    %c2_77 = arith.constant 2 : index
    %c0_78 = arith.constant 0 : index
    %c0_79 = arith.constant 0 : index
    %c0_80 = arith.constant 0 : index
    %75 = vector.load %arg1[%c2_77, %c0_78, %c0_79, %c0_80] : memref<4x8x16x32xbf16, #tpu.memory_space<vmem>>, vector<1x7x16x32xbf16>
    %76 = vector.shape_cast %75 : vector<1x7x16x32xbf16> to vector<7x16x32xbf16>
    %77 = vector.shape_cast %76 : vector<7x16x32xbf16> to vector<112x32xbf16>
    %c2_81 = arith.constant 2 : index
    %c0_82 = arith.constant 0 : index
    %c0_83 = arith.constant 0 : index
    %78 = vector.load %arg2[%c2_81, %c0_82, %c0_83] : memref<10x32x84xbf16, #tpu.memory_space<vmem>>, vector<1x32x84xbf16>
    %79 = vector.shape_cast %78 : vector<1x32x84xbf16> to vector<32x84xbf16>
    %cst_84 = arith.constant dense<0.000000e+00> : vector<112x84xf32>
    %80 = tpu.matmul %77, %79, %cst_84 {dimension_numbers = #tpu.dot_dimension_numbers<[1], [0], [0], [1], [0, 0, 1, 1], [], []>} : vector<112x32xbf16>, vector<32x84xbf16>, vector<112x84xf32> -> vector<112x84xf32>
    %81 = arith.addf %74, %80 : vector<112x84xf32>
    %c3_85 = arith.constant 3 : index
    %c0_86 = arith.constant 0 : index
    %c0_87 = arith.constant 0 : index
    %c0_88 = arith.constant 0 : index
    %82 = vector.load %arg1[%c3_85, %c0_86, %c0_87, %c0_88] : memref<4x8x16x32xbf16, #tpu.memory_space<vmem>>, vector<1x7x16x32xbf16>
    %83 = vector.shape_cast %82 : vector<1x7x16x32xbf16> to vector<7x16x32xbf16>
    %84 = vector.shape_cast %83 : vector<7x16x32xbf16> to vector<112x32xbf16>
    %c4_89 = arith.constant 4 : index
    %c0_90 = arith.constant 0 : index
    %c0_91 = arith.constant 0 : index
    %85 = vector.load %arg2[%c4_89, %c0_90, %c0_91] : memref<10x32x84xbf16, #tpu.memory_space<vmem>>, vector<1x32x84xbf16>
    %86 = vector.shape_cast %85 : vector<1x32x84xbf16> to vector<32x84xbf16>
    %cst_92 = arith.constant dense<0.000000e+00> : vector<112x84xf32>
    %87 = tpu.matmul %84, %86, %cst_92 {dimension_numbers = #tpu.dot_dimension_numbers<[1], [0], [0], [1], [0, 0, 1, 1], [], []>} : vector<112x32xbf16>, vector<32x84xbf16>, vector<112x84xf32> -> vector<112x84xf32>
    %88 = arith.addf %81, %87 : vector<112x84xf32>
    %c0_93 = arith.constant 0 : index
    %c1_94 = arith.constant 1 : index
    %c0_95 = arith.constant 0 : index
    %c0_96 = arith.constant 0 : index
    %89 = vector.load %arg1[%c0_93, %c1_94, %c0_95, %c0_96] : memref<4x8x16x32xbf16, #tpu.memory_space<vmem>>, vector<1x7x16x32xbf16>
    %90 = vector.shape_cast %89 : vector<1x7x16x32xbf16> to vector<7x16x32xbf16>
    %91 = vector.shape_cast %90 : vector<7x16x32xbf16> to vector<112x32xbf16>
    %c6_97 = arith.constant 6 : index
    %c0_98 = arith.constant 0 : index
    %c0_99 = arith.constant 0 : index
    %92 = vector.load %arg2[%c6_97, %c0_98, %c0_99] : memref<10x32x84xbf16, #tpu.memory_space<vmem>>, vector<1x32x84xbf16>
    %93 = vector.shape_cast %92 : vector<1x32x84xbf16> to vector<32x84xbf16>
    %cst_100 = arith.constant dense<0.000000e+00> : vector<112x84xf32>
    %94 = tpu.matmul %91, %93, %cst_100 {dimension_numbers = #tpu.dot_dimension_numbers<[1], [0], [0], [1], [0, 0, 1, 1], [], []>} : vector<112x32xbf16>, vector<32x84xbf16>, vector<112x84xf32> -> vector<112x84xf32>
    %95 = arith.addf %88, %94 : vector<112x84xf32>
    %c1_101 = arith.constant 1 : index
    %c1_102 = arith.constant 1 : index
    %c0_103 = arith.constant 0 : index
    %c0_104 = arith.constant 0 : index
    %96 = vector.load %arg1[%c1_101, %c1_102, %c0_103, %c0_104] : memref<4x8x16x32xbf16, #tpu.memory_space<vmem>>, vector<1x7x16x32xbf16>
    %97 = vector.shape_cast %96 : vector<1x7x16x32xbf16> to vector<7x16x32xbf16>
    %98 = vector.shape_cast %97 : vector<7x16x32xbf16> to vector<112x32xbf16>
    %c8_105 = arith.constant 8 : index
    %c0_106 = arith.constant 0 : index
    %c0_107 = arith.constant 0 : index
    %99 = vector.load %arg2[%c8_105, %c0_106, %c0_107] : memref<10x32x84xbf16, #tpu.memory_space<vmem>>, vector<1x32x84xbf16>
    %100 = vector.shape_cast %99 : vector<1x32x84xbf16> to vector<32x84xbf16>
    %cst_108 = arith.constant dense<0.000000e+00> : vector<112x84xf32>
    %101 = tpu.matmul %98, %100, %cst_108 {dimension_numbers = #tpu.dot_dimension_numbers<[1], [0], [0], [1], [0, 0, 1, 1], [], []>} : vector<112x32xbf16>, vector<32x84xbf16>, vector<112x84xf32> -> vector<112x84xf32>
    %102 = arith.addf %95, %101 : vector<112x84xf32>
    %103 = arith.maximumf %68, %102 : vector<112x84xf32>
    %c1_109 = arith.constant 1 : index
    %c0_110 = arith.constant 0 : index
    %c0_111 = arith.constant 0 : index
    %c0_112 = arith.constant 0 : index
    %104 = vector.load %arg1[%c1_109, %c0_110, %c0_111, %c0_112] : memref<4x8x16x32xbf16, #tpu.memory_space<vmem>>, vector<1x7x16x32xbf16>
    %105 = vector.shape_cast %104 : vector<1x7x16x32xbf16> to vector<7x16x32xbf16>
    %106 = vector.shape_cast %105 : vector<7x16x32xbf16> to vector<112x32xbf16>
    %c1_113 = arith.constant 1 : index
    %c0_114 = arith.constant 0 : index
    %c0_115 = arith.constant 0 : index
    %107 = vector.load %arg2[%c1_113, %c0_114, %c0_115] : memref<10x32x84xbf16, #tpu.memory_space<vmem>>, vector<1x32x84xbf16>
    %108 = vector.shape_cast %107 : vector<1x32x84xbf16> to vector<32x84xbf16>
    %cst_116 = arith.constant dense<0.000000e+00> : vector<112x84xf32>
    %109 = tpu.matmul %106, %108, %cst_116 {dimension_numbers = #tpu.dot_dimension_numbers<[1], [0], [0], [1], [0, 0, 1, 1], [], []>} : vector<112x32xbf16>, vector<32x84xbf16>, vector<112x84xf32> -> vector<112x84xf32>
    %c2_117 = arith.constant 2 : index
    %c0_118 = arith.constant 0 : index
    %c0_119 = arith.constant 0 : index
    %c0_120 = arith.constant 0 : index
    %110 = vector.load %arg1[%c2_117, %c0_118, %c0_119, %c0_120] : memref<4x8x16x32xbf16, #tpu.memory_space<vmem>>, vector<1x7x16x32xbf16>
    %111 = vector.shape_cast %110 : vector<1x7x16x32xbf16> to vector<7x16x32xbf16>
    %112 = vector.shape_cast %111 : vector<7x16x32xbf16> to vector<112x32xbf16>
    %c3_121 = arith.constant 3 : index
    %c0_122 = arith.constant 0 : index
    %c0_123 = arith.constant 0 : index
    %113 = vector.load %arg2[%c3_121, %c0_122, %c0_123] : memref<10x32x84xbf16, #tpu.memory_space<vmem>>, vector<1x32x84xbf16>
    %114 = vector.shape_cast %113 : vector<1x32x84xbf16> to vector<32x84xbf16>
    %cst_124 = arith.constant dense<0.000000e+00> : vector<112x84xf32>
    %115 = tpu.matmul %112, %114, %cst_124 {dimension_numbers = #tpu.dot_dimension_numbers<[1], [0], [0], [1], [0, 0, 1, 1], [], []>} : vector<112x32xbf16>, vector<32x84xbf16>, vector<112x84xf32> -> vector<112x84xf32>
    %116 = arith.addf %109, %115 : vector<112x84xf32>
    %c3_125 = arith.constant 3 : index
    %c0_126 = arith.constant 0 : index
    %c0_127 = arith.constant 0 : index
    %c0_128 = arith.constant 0 : index
    %117 = vector.load %arg1[%c3_125, %c0_126, %c0_127, %c0_128] : memref<4x8x16x32xbf16, #tpu.memory_space<vmem>>, vector<1x7x16x32xbf16>
    %118 = vector.shape_cast %117 : vector<1x7x16x32xbf16> to vector<7x16x32xbf16>
    %119 = vector.shape_cast %118 : vector<7x16x32xbf16> to vector<112x32xbf16>
    %c5_129 = arith.constant 5 : index
    %c0_130 = arith.constant 0 : index
    %c0_131 = arith.constant 0 : index
    %120 = vector.load %arg2[%c5_129, %c0_130, %c0_131] : memref<10x32x84xbf16, #tpu.memory_space<vmem>>, vector<1x32x84xbf16>
    %121 = vector.shape_cast %120 : vector<1x32x84xbf16> to vector<32x84xbf16>
    %cst_132 = arith.constant dense<0.000000e+00> : vector<112x84xf32>
    %122 = tpu.matmul %119, %121, %cst_132 {dimension_numbers = #tpu.dot_dimension_numbers<[1], [0], [0], [1], [0, 0, 1, 1], [], []>} : vector<112x32xbf16>, vector<32x84xbf16>, vector<112x84xf32> -> vector<112x84xf32>
    %123 = arith.addf %116, %122 : vector<112x84xf32>
    %c0_133 = arith.constant 0 : index
    %c1_134 = arith.constant 1 : index
    %c0_135 = arith.constant 0 : index
    %c0_136 = arith.constant 0 : index
    %124 = vector.load %arg1[%c0_133, %c1_134, %c0_135, %c0_136] : memref<4x8x16x32xbf16, #tpu.memory_space<vmem>>, vector<1x7x16x32xbf16>
    %125 = vector.shape_cast %124 : vector<1x7x16x32xbf16> to vector<7x16x32xbf16>
    %126 = vector.shape_cast %125 : vector<7x16x32xbf16> to vector<112x32xbf16>
    %c7_137 = arith.constant 7 : index
    %c0_138 = arith.constant 0 : index
    %c0_139 = arith.constant 0 : index
    %127 = vector.load %arg2[%c7_137, %c0_138, %c0_139] : memref<10x32x84xbf16, #tpu.memory_space<vmem>>, vector<1x32x84xbf16>
    %128 = vector.shape_cast %127 : vector<1x32x84xbf16> to vector<32x84xbf16>
    %cst_140 = arith.constant dense<0.000000e+00> : vector<112x84xf32>
    %129 = tpu.matmul %126, %128, %cst_140 {dimension_numbers = #tpu.dot_dimension_numbers<[1], [0], [0], [1], [0, 0, 1, 1], [], []>} : vector<112x32xbf16>, vector<32x84xbf16>, vector<112x84xf32> -> vector<112x84xf32>
    %130 = arith.addf %123, %129 : vector<112x84xf32>
    %c1_141 = arith.constant 1 : index
    %c1_142 = arith.constant 1 : index
    %c0_143 = arith.constant 0 : index
    %c0_144 = arith.constant 0 : index
    %131 = vector.load %arg1[%c1_141, %c1_142, %c0_143, %c0_144] : memref<4x8x16x32xbf16, #tpu.memory_space<vmem>>, vector<1x7x16x32xbf16>
    %132 = vector.shape_cast %131 : vector<1x7x16x32xbf16> to vector<7x16x32xbf16>
    %133 = vector.shape_cast %132 : vector<7x16x32xbf16> to vector<112x32xbf16>
    %c9_145 = arith.constant 9 : index
    %c0_146 = arith.constant 0 : index
    %c0_147 = arith.constant 0 : index
    %134 = vector.load %arg2[%c9_145, %c0_146, %c0_147] : memref<10x32x84xbf16, #tpu.memory_space<vmem>>, vector<1x32x84xbf16>
    %135 = vector.shape_cast %134 : vector<1x32x84xbf16> to vector<32x84xbf16>
    %cst_148 = arith.constant dense<0.000000e+00> : vector<112x84xf32>
    %136 = tpu.matmul %133, %135, %cst_148 {dimension_numbers = #tpu.dot_dimension_numbers<[1], [0], [0], [1], [0, 0, 1, 1], [], []>} : vector<112x32xbf16>, vector<32x84xbf16>, vector<112x84xf32> -> vector<112x84xf32>
    %137 = arith.addf %130, %136 : vector<112x84xf32>
    %138 = arith.maximumf %103, %137 : vector<112x84xf32>
    %c0_149 = arith.constant 0 : index
    %c0_150 = arith.constant 0 : index
    %139 = vector.load %arg3[%c0_149, %c0_150] : memref<1x84xf32, #tpu.memory_space<vmem>>, vector<1x84xf32>
    %140 = vector.broadcast %139 : vector<1x84xf32> to vector<112x84xf32>
    %141 = arith.addf %138, %140 : vector<112x84xf32>
    %cst_151 = arith.constant 0.000000e+00 : f32
    %142 = vector.broadcast %cst_151 : f32 to vector<112x84xf32>
    %143 = arith.maximumf %141, %142 : vector<112x84xf32>
    %144 = vector.shape_cast %143 : vector<112x84xf32> to vector<7x16x84xf32>
    %145 = arith.truncf %144 : vector<7x16x84xf32> to vector<7x16x84xbf16>
    %c0_152 = arith.constant 0 : index
    %c0_153 = arith.constant 0 : index
    %c0_154 = arith.constant 0 : index
    %c0_155 = arith.constant 0 : index
    %146 = vector.load %arg13[%c0_152, %c0_153, %c0_154, %c0_155] : memref<2x7x16x84xbf16, #tpu.memory_space<vmem>>, vector<1x7x16x84xbf16>
    %147 = vector.shape_cast %146 : vector<1x7x16x84xbf16> to vector<7x16x84xbf16>
    %148 = vector.shape_cast %145 : vector<7x16x84xbf16> to vector<1x7x16x84xbf16>
    tpu.vector_store %arg13[%c0_152, %c0_153, %c0_154, %c0_155], %148 {strides = array<i32>} : memref<2x7x16x84xbf16, #tpu.memory_space<vmem>>, vector<1x7x16x84xbf16>,
    %c2_156 = arith.constant 2 : index
    %c0_157 = arith.constant 0 : index
    %c0_158 = arith.constant 0 : index
    %c0_159 = arith.constant 0 : index
    %149 = vector.load %arg1[%c2_156, %c0_157, %c0_158, %c0_159] : memref<4x8x16x32xbf16, #tpu.memory_space<vmem>>, vector<1x7x16x32xbf16>
    %150 = vector.shape_cast %149 : vector<1x7x16x32xbf16> to vector<7x16x32xbf16>
    %151 = vector.shape_cast %150 : vector<7x16x32xbf16> to vector<112x32xbf16>
    %c0_160 = arith.constant 0 : index
    %c0_161 = arith.constant 0 : index
    %c0_162 = arith.constant 0 : index
    %152 = vector.load %arg2[%c0_160, %c0_161, %c0_162] : memref<10x32x84xbf16, #tpu.memory_space<vmem>>, vector<1x32x84xbf16>
    %153 = vector.shape_cast %152 : vector<1x32x84xbf16> to vector<32x84xbf16>
    %cst_163 = arith.constant dense<0.000000e+00> : vector<112x84xf32>
    %154 = tpu.matmul %151, %153, %cst_163 {dimension_numbers = #tpu.dot_dimension_numbers<[1], [0], [0], [1], [0, 0, 1, 1], [], []>} : vector<112x32xbf16>, vector<32x84xbf16>, vector<112x84xf32> -> vector<112x84xf32>
    %c3_164 = arith.constant 3 : index
    %c0_165 = arith.constant 0 : index
    %c0_166 = arith.constant 0 : index
    %c0_167 = arith.constant 0 : index
    %155 = vector.load %arg1[%c3_164, %c0_165, %c0_166, %c0_167] : memref<4x8x16x32xbf16, #tpu.memory_space<vmem>>, vector<1x7x16x32xbf16>
    %156 = vector.shape_cast %155 : vector<1x7x16x32xbf16> to vector<7x16x32xbf16>
    %157 = vector.shape_cast %156 : vector<7x16x32xbf16> to vector<112x32xbf16>
    %c2_168 = arith.constant 2 : index
    %c0_169 = arith.constant 0 : index
    %c0_170 = arith.constant 0 : index
    %158 = vector.load %arg2[%c2_168, %c0_169, %c0_170] : memref<10x32x84xbf16, #tpu.memory_space<vmem>>, vector<1x32x84xbf16>
    %159 = vector.shape_cast %158 : vector<1x32x84xbf16> to vector<32x84xbf16>
    %cst_171 = arith.constant dense<0.000000e+00> : vector<112x84xf32>
    %160 = tpu.matmul %157, %159, %cst_171 {dimension_numbers = #tpu.dot_dimension_numbers<[1], [0], [0], [1], [0, 0, 1, 1], [], []>} : vector<112x32xbf16>, vector<32x84xbf16>, vector<112x84xf32> -> vector<112x84xf32>
    %161 = arith.addf %154, %160 : vector<112x84xf32>
    %c0_172 = arith.constant 0 : index
    %c1_173 = arith.constant 1 : index
    %c0_174 = arith.constant 0 : index
    %c0_175 = arith.constant 0 : index
    %162 = vector.load %arg1[%c0_172, %c1_173, %c0_174, %c0_175] : memref<4x8x16x32xbf16, #tpu.memory_space<vmem>>, vector<1x7x16x32xbf16>
    %163 = vector.shape_cast %162 : vector<1x7x16x32xbf16> to vector<7x16x32xbf16>
    %164 = vector.shape_cast %163 : vector<7x16x32xbf16> to vector<112x32xbf16>
    %c4_176 = arith.constant 4 : index
    %c0_177 = arith.constant 0 : index
    %c0_178 = arith.constant 0 : index
    %165 = vector.load %arg2[%c4_176, %c0_177, %c0_178] : memref<10x32x84xbf16, #tpu.memory_space<vmem>>, vector<1x32x84xbf16>
    %166 = vector.shape_cast %165 : vector<1x32x84xbf16> to vector<32x84xbf16>
    %cst_179 = arith.constant dense<0.000000e+00> : vector<112x84xf32>
    %167 = tpu.matmul %164, %166, %cst_179 {dimension_numbers = #tpu.dot_dimension_numbers<[1], [0], [0], [1], [0, 0, 1, 1], [], []>} : vector<112x32xbf16>, vector<32x84xbf16>, vector<112x84xf32> -> vector<112x84xf32>
    %168 = arith.addf %161, %167 : vector<112x84xf32>
    %c1_180 = arith.constant 1 : index
    %c1_181 = arith.constant 1 : index
    %c0_182 = arith.constant 0 : index
    %c0_183 = arith.constant 0 : index
    %169 = vector.load %arg1[%c1_180, %c1_181, %c0_182, %c0_183] : memref<4x8x16x32xbf16, #tpu.memory_space<vmem>>, vector<1x7x16x32xbf16>
    %170 = vector.shape_cast %169 : vector<1x7x16x32xbf16> to vector<7x16x32xbf16>
    %171 = vector.shape_cast %170 : vector<7x16x32xbf16> to vector<112x32xbf16>
    %c6_184 = arith.constant 6 : index
    %c0_185 = arith.constant 0 : index
    %c0_186 = arith.constant 0 : index
    %172 = vector.load %arg2[%c6_184, %c0_185, %c0_186] : memref<10x32x84xbf16, #tpu.memory_space<vmem>>, vector<1x32x84xbf16>
    %173 = vector.shape_cast %172 : vector<1x32x84xbf16> to vector<32x84xbf16>
    %cst_187 = arith.constant dense<0.000000e+00> : vector<112x84xf32>
    %174 = tpu.matmul %171, %173, %cst_187 {dimension_numbers = #tpu.dot_dimension_numbers<[1], [0], [0], [1], [0, 0, 1, 1], [], []>} : vector<112x32xbf16>, vector<32x84xbf16>, vector<112x84xf32> -> vector<112x84xf32>
    %175 = arith.addf %168, %174 : vector<112x84xf32>
    %c2_188 = arith.constant 2 : index
    %c1_189 = arith.constant 1 : index
    %c0_190 = arith.constant 0 : index
    %c0_191 = arith.constant 0 : index
    %176 = vector.load %arg1[%c2_188, %c1_189, %c0_190, %c0_191] : memref<4x8x16x32xbf16, #tpu.memory_space<vmem>>, vector<1x7x16x32xbf16>
    %177 = vector.shape_cast %176 : vector<1x7x16x32xbf16> to vector<7x16x32xbf16>
    %178 = vector.shape_cast %177 : vector<7x16x32xbf16> to vector<112x32xbf16>
    %c8_192 = arith.constant 8 : index
    %c0_193 = arith.constant 0 : index
    %c0_194 = arith.constant 0 : index
    %179 = vector.load %arg2[%c8_192, %c0_193, %c0_194] : memref<10x32x84xbf16, #tpu.memory_space<vmem>>, vector<1x32x84xbf16>
    %180 = vector.shape_cast %179 : vector<1x32x84xbf16> to vector<32x84xbf16>
    %cst_195 = arith.constant dense<0.000000e+00> : vector<112x84xf32>
    %181 = tpu.matmul %178, %180, %cst_195 {dimension_numbers = #tpu.dot_dimension_numbers<[1], [0], [0], [1], [0, 0, 1, 1], [], []>} : vector<112x32xbf16>, vector<32x84xbf16>, vector<112x84xf32> -> vector<112x84xf32>
    %182 = arith.addf %175, %181 : vector<112x84xf32>
    %c2_196 = arith.constant 2 : index
    %c0_197 = arith.constant 0 : index
    %c0_198 = arith.constant 0 : index
    %c0_199 = arith.constant 0 : index
    %183 = vector.load %arg1[%c2_196, %c0_197, %c0_198, %c0_199] : memref<4x8x16x32xbf16, #tpu.memory_space<vmem>>, vector<1x7x16x32xbf16>
    %184 = vector.shape_cast %183 : vector<1x7x16x32xbf16> to vector<7x16x32xbf16>
    %185 = vector.shape_cast %184 : vector<7x16x32xbf16> to vector<112x32xbf16>
    %c1_200 = arith.constant 1 : index
    %c0_201 = arith.constant 0 : index
    %c0_202 = arith.constant 0 : index
    %186 = vector.load %arg2[%c1_200, %c0_201, %c0_202] : memref<10x32x84xbf16, #tpu.memory_space<vmem>>, vector<1x32x84xbf16>
    %187 = vector.shape_cast %186 : vector<1x32x84xbf16> to vector<32x84xbf16>
    %cst_203 = arith.constant dense<0.000000e+00> : vector<112x84xf32>
    %188 = tpu.matmul %185, %187, %cst_203 {dimension_numbers = #tpu.dot_dimension_numbers<[1], [0], [0], [1], [0, 0, 1, 1], [], []>} : vector<112x32xbf16>, vector<32x84xbf16>, vector<112x84xf32> -> vector<112x84xf32>
    %c3_204 = arith.constant 3 : index
    %c0_205 = arith.constant 0 : index
    %c0_206 = arith.constant 0 : index
    %c0_207 = arith.constant 0 : index
    %189 = vector.load %arg1[%c3_204, %c0_205, %c0_206, %c0_207] : memref<4x8x16x32xbf16, #tpu.memory_space<vmem>>, vector<1x7x16x32xbf16>
    %190 = vector.shape_cast %189 : vector<1x7x16x32xbf16> to vector<7x16x32xbf16>
    %191 = vector.shape_cast %190 : vector<7x16x32xbf16> to vector<112x32xbf16>
    %c3_208 = arith.constant 3 : index
    %c0_209 = arith.constant 0 : index
    %c0_210 = arith.constant 0 : index
    %192 = vector.load %arg2[%c3_208, %c0_209, %c0_210] : memref<10x32x84xbf16, #tpu.memory_space<vmem>>, vector<1x32x84xbf16>
    %193 = vector.shape_cast %192 : vector<1x32x84xbf16> to vector<32x84xbf16>
    %cst_211 = arith.constant dense<0.000000e+00> : vector<112x84xf32>
    %194 = tpu.matmul %191, %193, %cst_211 {dimension_numbers = #tpu.dot_dimension_numbers<[1], [0], [0], [1], [0, 0, 1, 1], [], []>} : vector<112x32xbf16>, vector<32x84xbf16>, vector<112x84xf32> -> vector<112x84xf32>
    %195 = arith.addf %188, %194 : vector<112x84xf32>
    %c0_212 = arith.constant 0 : index
    %c1_213 = arith.constant 1 : index
    %c0_214 = arith.constant 0 : index
    %c0_215 = arith.constant 0 : index
    %196 = vector.load %arg1[%c0_212, %c1_213, %c0_214, %c0_215] : memref<4x8x16x32xbf16, #tpu.memory_space<vmem>>, vector<1x7x16x32xbf16>
    %197 = vector.shape_cast %196 : vector<1x7x16x32xbf16> to vector<7x16x32xbf16>
    %198 = vector.shape_cast %197 : vector<7x16x32xbf16> to vector<112x32xbf16>
    %c5_216 = arith.constant 5 : index
    %c0_217 = arith.constant 0 : index
    %c0_218 = arith.constant 0 : index
    %199 = vector.load %arg2[%c5_216, %c0_217, %c0_218] : memref<10x32x84xbf16, #tpu.memory_space<vmem>>, vector<1x32x84xbf16>
    %200 = vector.shape_cast %199 : vector<1x32x84xbf16> to vector<32x84xbf16>
    %cst_219 = arith.constant dense<0.000000e+00> : vector<112x84xf32>
    %201 = tpu.matmul %198, %200, %cst_219 {dimension_numbers = #tpu.dot_dimension_numbers<[1], [0], [0], [1], [0, 0, 1, 1], [], []>} : vector<112x32xbf16>, vector<32x84xbf16>, vector<112x84xf32> -> vector<112x84xf32>
    %202 = arith.addf %195, %201 : vector<112x84xf32>
    %c1_220 = arith.constant 1 : index
    %c1_221 = arith.constant 1 : index
    %c0_222 = arith.constant 0 : index
    %c0_223 = arith.constant 0 : index
    %203 = vector.load %arg1[%c1_220, %c1_221, %c0_222, %c0_223] : memref<4x8x16x32xbf16, #tpu.memory_space<vmem>>, vector<1x7x16x32xbf16>
    %204 = vector.shape_cast %203 : vector<1x7x16x32xbf16> to vector<7x16x32xbf16>
    %205 = vector.shape_cast %204 : vector<7x16x32xbf16> to vector<112x32xbf16>
    %c7_224 = arith.constant 7 : index
    %c0_225 = arith.constant 0 : index
    %c0_226 = arith.constant 0 : index
    %206 = vector.load %arg2[%c7_224, %c0_225, %c0_226] : memref<10x32x84xbf16, #tpu.memory_space<vmem>>, vector<1x32x84xbf16>
    %207 = vector.shape_cast %206 : vector<1x32x84xbf16> to vector<32x84xbf16>
    %cst_227 = arith.constant dense<0.000000e+00> : vector<112x84xf32>
    %208 = tpu.matmul %205, %207, %cst_227 {dimension_numbers = #tpu.dot_dimension_numbers<[1], [0], [0], [1], [0, 0, 1, 1], [], []>} : vector<112x32xbf16>, vector<32x84xbf16>, vector<112x84xf32> -> vector<112x84xf32>
    %209 = arith.addf %202, %208 : vector<112x84xf32>
    %c2_228 = arith.constant 2 : index
    %c1_229 = arith.constant 1 : index
    %c0_230 = arith.constant 0 : index
    %c0_231 = arith.constant 0 : index
    %210 = vector.load %arg1[%c2_228, %c1_229, %c0_230, %c0_231] : memref<4x8x16x32xbf16, #tpu.memory_space<vmem>>, vector<1x7x16x32xbf16>
    %211 = vector.shape_cast %210 : vector<1x7x16x32xbf16> to vector<7x16x32xbf16>
    %212 = vector.shape_cast %211 : vector<7x16x32xbf16> to vector<112x32xbf16>
    %c9_232 = arith.constant 9 : index
    %c0_233 = arith.constant 0 : index
    %c0_234 = arith.constant 0 : index
    %213 = vector.load %arg2[%c9_232, %c0_233, %c0_234] : memref<10x32x84xbf16, #tpu.memory_space<vmem>>, vector<1x32x84xbf16>
    %214 = vector.shape_cast %213 : vector<1x32x84xbf16> to vector<32x84xbf16>
    %cst_235 = arith.constant dense<0.000000e+00> : vector<112x84xf32>
    %215 = tpu.matmul %212, %214, %cst_235 {dimension_numbers = #tpu.dot_dimension_numbers<[1], [0], [0], [1], [0, 0, 1, 1], [], []>} : vector<112x32xbf16>, vector<32x84xbf16>, vector<112x84xf32> -> vector<112x84xf32>
    %216 = arith.addf %209, %215 : vector<112x84xf32>
    %217 = arith.maximumf %182, %216 : vector<112x84xf32>
    %c3_236 = arith.constant 3 : index
    %c0_237 = arith.constant 0 : index
    %c0_238 = arith.constant 0 : index
    %c0_239 = arith.constant 0 : index
    %218 = vector.load %arg1[%c3_236, %c0_237, %c0_238, %c0_239] : memref<4x8x16x32xbf16, #tpu.memory_space<vmem>>, vector<1x7x16x32xbf16>
    %219 = vector.shape_cast %218 : vector<1x7x16x32xbf16> to vector<7x16x32xbf16>
    %220 = vector.shape_cast %219 : vector<7x16x32xbf16> to vector<112x32xbf16>
    %c0_240 = arith.constant 0 : index
    %c0_241 = arith.constant 0 : index
    %c0_242 = arith.constant 0 : index
    %221 = vector.load %arg2[%c0_240, %c0_241, %c0_242] : memref<10x32x84xbf16, #tpu.memory_space<vmem>>, vector<1x32x84xbf16>
    %222 = vector.shape_cast %221 : vector<1x32x84xbf16> to vector<32x84xbf16>
    %cst_243 = arith.constant dense<0.000000e+00> : vector<112x84xf32>
    %223 = tpu.matmul %220, %222, %cst_243 {dimension_numbers = #tpu.dot_dimension_numbers<[1], [0], [0], [1], [0, 0, 1, 1], [], []>} : vector<112x32xbf16>, vector<32x84xbf16>, vector<112x84xf32> -> vector<112x84xf32>
    %c0_244 = arith.constant 0 : index
    %c1_245 = arith.constant 1 : index
    %c0_246 = arith.constant 0 : index
    %c0_247 = arith.constant 0 : index
    %224 = vector.load %arg1[%c0_244, %c1_245, %c0_246, %c0_247] : memref<4x8x16x32xbf16, #tpu.memory_space<vmem>>, vector<1x7x16x32xbf16>
    %225 = vector.shape_cast %224 : vector<1x7x16x32xbf16> to vector<7x16x32xbf16>
    %226 = vector.shape_cast %225 : vector<7x16x32xbf16> to vector<112x32xbf16>
    %c2_248 = arith.constant 2 : index
    %c0_249 = arith.constant 0 : index
    %c0_250 = arith.constant 0 : index
    %227 = vector.load %arg2[%c2_248, %c0_249, %c0_250] : memref<10x32x84xbf16, #tpu.memory_space<vmem>>, vector<1x32x84xbf16>
    %228 = vector.shape_cast %227 : vector<1x32x84xbf16> to vector<32x84xbf16>
    %cst_251 = arith.constant dense<0.000000e+00> : vector<112x84xf32>
    %229 = tpu.matmul %226, %228, %cst_251 {dimension_numbers = #tpu.dot_dimension_numbers<[1], [0], [0], [1], [0, 0, 1, 1], [], []>} : vector<112x32xbf16>, vector<32x84xbf16>, vector<112x84xf32> -> vector<112x84xf32>
    %230 = arith.addf %223, %229 : vector<112x84xf32>
    %c1_252 = arith.constant 1 : index
    %c1_253 = arith.constant 1 : index
    %c0_254 = arith.constant 0 : index
    %c0_255 = arith.constant 0 : index
    %231 = vector.load %arg1[%c1_252, %c1_253, %c0_254, %c0_255] : memref<4x8x16x32xbf16, #tpu.memory_space<vmem>>, vector<1x7x16x32xbf16>
    %232 = vector.shape_cast %231 : vector<1x7x16x32xbf16> to vector<7x16x32xbf16>
    %233 = vector.shape_cast %232 : vector<7x16x32xbf16> to vector<112x32xbf16>
    %c4_256 = arith.constant 4 : index
    %c0_257 = arith.constant 0 : index
    %c0_258 = arith.constant 0 : index
    %234 = vector.load %arg2[%c4_256, %c0_257, %c0_258] : memref<10x32x84xbf16, #tpu.memory_space<vmem>>, vector<1x32x84xbf16>
    %235 = vector.shape_cast %234 : vector<1x32x84xbf16> to vector<32x84xbf16>
    %cst_259 = arith.constant dense<0.000000e+00> : vector<112x84xf32>
    %236 = tpu.matmul %233, %235, %cst_259 {dimension_numbers = #tpu.dot_dimension_numbers<[1], [0], [0], [1], [0, 0, 1, 1], [], []>} : vector<112x32xbf16>, vector<32x84xbf16>, vector<112x84xf32> -> vector<112x84xf32>
    %237 = arith.addf %230, %236 : vector<112x84xf32>
    %c2_260 = arith.constant 2 : index
    %c1_261 = arith.constant 1 : index
    %c0_262 = arith.constant 0 : index
    %c0_263 = arith.constant 0 : index
    %238 = vector.load %arg1[%c2_260, %c1_261, %c0_262, %c0_263] : memref<4x8x16x32xbf16, #tpu.memory_space<vmem>>, vector<1x7x16x32xbf16>
    %239 = vector.shape_cast %238 : vector<1x7x16x32xbf16> to vector<7x16x32xbf16>
    %240 = vector.shape_cast %239 : vector<7x16x32xbf16> to vector<112x32xbf16>
    %c6_264 = arith.constant 6 : index
    %c0_265 = arith.constant 0 : index
    %c0_266 = arith.constant 0 : index
    %241 = vector.load %arg2[%c6_264, %c0_265, %c0_266] : memref<10x32x84xbf16, #tpu.memory_space<vmem>>, vector<1x32x84xbf16>
    %242 = vector.shape_cast %241 : vector<1x32x84xbf16> to vector<32x84xbf16>
    %cst_267 = arith.constant dense<0.000000e+00> : vector<112x84xf32>
    %243 = tpu.matmul %240, %242, %cst_267 {dimension_numbers = #tpu.dot_dimension_numbers<[1], [0], [0], [1], [0, 0, 1, 1], [], []>} : vector<112x32xbf16>, vector<32x84xbf16>, vector<112x84xf32> -> vector<112x84xf32>
    %244 = arith.addf %237, %243 : vector<112x84xf32>
    %c3_268 = arith.constant 3 : index
    %c1_269 = arith.constant 1 : index
    %c0_270 = arith.constant 0 : index
    %c0_271 = arith.constant 0 : index
    %245 = vector.load %arg1[%c3_268, %c1_269, %c0_270, %c0_271] : memref<4x8x16x32xbf16, #tpu.memory_space<vmem>>, vector<1x7x16x32xbf16>
    %246 = vector.shape_cast %245 : vector<1x7x16x32xbf16> to vector<7x16x32xbf16>
    %247 = vector.shape_cast %246 : vector<7x16x32xbf16> to vector<112x32xbf16>
    %c8_272 = arith.constant 8 : index
    %c0_273 = arith.constant 0 : index
    %c0_274 = arith.constant 0 : index
    %248 = vector.load %arg2[%c8_272, %c0_273, %c0_274] : memref<10x32x84xbf16, #tpu.memory_space<vmem>>, vector<1x32x84xbf16>
    %249 = vector.shape_cast %248 : vector<1x32x84xbf16> to vector<32x84xbf16>
    %cst_275 = arith.constant dense<0.000000e+00> : vector<112x84xf32>
    %250 = tpu.matmul %247, %249, %cst_275 {dimension_numbers = #tpu.dot_dimension_numbers<[1], [0], [0], [1], [0, 0, 1, 1], [], []>} : vector<112x32xbf16>, vector<32x84xbf16>, vector<112x84xf32> -> vector<112x84xf32>
    %251 = arith.addf %244, %250 : vector<112x84xf32>
    %252 = arith.maximumf %217, %251 : vector<112x84xf32>
    %c3_276 = arith.constant 3 : index
    %c0_277 = arith.constant 0 : index
    %c0_278 = arith.constant 0 : index
    %c0_279 = arith.constant 0 : index
    %253 = vector.load %arg1[%c3_276, %c0_277, %c0_278, %c0_279] : memref<4x8x16x32xbf16, #tpu.memory_space<vmem>>, vector<1x7x16x32xbf16>
    %254 = vector.shape_cast %253 : vector<1x7x16x32xbf16> to vector<7x16x32xbf16>
    %255 = vector.shape_cast %254 : vector<7x16x32xbf16> to vector<112x32xbf16>
    %c1_280 = arith.constant 1 : index
    %c0_281 = arith.constant 0 : index
    %c0_282 = arith.constant 0 : index
    %256 = vector.load %arg2[%c1_280, %c0_281, %c0_282] : memref<10x32x84xbf16, #tpu.memory_space<vmem>>, vector<1x32x84xbf16>
    %257 = vector.shape_cast %256 : vector<1x32x84xbf16> to vector<32x84xbf16>
    %cst_283 = arith.constant dense<0.000000e+00> : vector<112x84xf32>
    %258 = tpu.matmul %255, %257, %cst_283 {dimension_numbers = #tpu.dot_dimension_numbers<[1], [0], [0], [1], [0, 0, 1, 1], [], []>} : vector<112x32xbf16>, vector<32x84xbf16>, vector<112x84xf32> -> vector<112x84xf32>
    %c0_284 = arith.constant 0 : index
    %c1_285 = arith.constant 1 : index
    %c0_286 = arith.constant 0 : index
    %c0_287 = arith.constant 0 : index
    %259 = vector.load %arg1[%c0_284, %c1_285, %c0_286, %c0_287] : memref<4x8x16x32xbf16, #tpu.memory_space<vmem>>, vector<1x7x16x32xbf16>
    %260 = vector.shape_cast %259 : vector<1x7x16x32xbf16> to vector<7x16x32xbf16>
    %261 = vector.shape_cast %260 : vector<7x16x32xbf16> to vector<112x32xbf16>
    %c3_288 = arith.constant 3 : index
    %c0_289 = arith.constant 0 : index
    %c0_290 = arith.constant 0 : index
    %262 = vector.load %arg2[%c3_288, %c0_289, %c0_290] : memref<10x32x84xbf16, #tpu.memory_space<vmem>>, vector<1x32x84xbf16>
    %263 = vector.shape_cast %262 : vector<1x32x84xbf16> to vector<32x84xbf16>
    %cst_291 = arith.constant dense<0.000000e+00> : vector<112x84xf32>
    %264 = tpu.matmul %261, %263, %cst_291 {dimension_numbers = #tpu.dot_dimension_numbers<[1], [0], [0], [1], [0, 0, 1, 1], [], []>} : vector<112x32xbf16>, vector<32x84xbf16>, vector<112x84xf32> -> vector<112x84xf32>
    %265 = arith.addf %258, %264 : vector<112x84xf32>
    %c1_292 = arith.constant 1 : index
    %c1_293 = arith.constant 1 : index
    %c0_294 = arith.constant 0 : index
    %c0_295 = arith.constant 0 : index
    %266 = vector.load %arg1[%c1_292, %c1_293, %c0_294, %c0_295] : memref<4x8x16x32xbf16, #tpu.memory_space<vmem>>, vector<1x7x16x32xbf16>
    %267 = vector.shape_cast %266 : vector<1x7x16x32xbf16> to vector<7x16x32xbf16>
    %268 = vector.shape_cast %267 : vector<7x16x32xbf16> to vector<112x32xbf16>
    %c5_296 = arith.constant 5 : index
    %c0_297 = arith.constant 0 : index
    %c0_298 = arith.constant 0 : index
    %269 = vector.load %arg2[%c5_296, %c0_297, %c0_298] : memref<10x32x84xbf16, #tpu.memory_space<vmem>>, vector<1x32x84xbf16>
    %270 = vector.shape_cast %269 : vector<1x32x84xbf16> to vector<32x84xbf16>
    %cst_299 = arith.constant dense<0.000000e+00> : vector<112x84xf32>
    %271 = tpu.matmul %268, %270, %cst_299 {dimension_numbers = #tpu.dot_dimension_numbers<[1], [0], [0], [1], [0, 0, 1, 1], [], []>} : vector<112x32xbf16>, vector<32x84xbf16>, vector<112x84xf32> -> vector<112x84xf32>
    %272 = arith.addf %265, %271 : vector<112x84xf32>
    %c2_300 = arith.constant 2 : index
    %c1_301 = arith.constant 1 : index
    %c0_302 = arith.constant 0 : index
    %c0_303 = arith.constant 0 : index
    %273 = vector.load %arg1[%c2_300, %c1_301, %c0_302, %c0_303] : memref<4x8x16x32xbf16, #tpu.memory_space<vmem>>, vector<1x7x16x32xbf16>
    %274 = vector.shape_cast %273 : vector<1x7x16x32xbf16> to vector<7x16x32xbf16>
    %275 = vector.shape_cast %274 : vector<7x16x32xbf16> to vector<112x32xbf16>
    %c7_304 = arith.constant 7 : index
    %c0_305 = arith.constant 0 : index
    %c0_306 = arith.constant 0 : index
    %276 = vector.load %arg2[%c7_304, %c0_305, %c0_306] : memref<10x32x84xbf16, #tpu.memory_space<vmem>>, vector<1x32x84xbf16>
    %277 = vector.shape_cast %276 : vector<1x32x84xbf16> to vector<32x84xbf16>
    %cst_307 = arith.constant dense<0.000000e+00> : vector<112x84xf32>
    %278 = tpu.matmul %275, %277, %cst_307 {dimension_numbers = #tpu.dot_dimension_numbers<[1], [0], [0], [1], [0, 0, 1, 1], [], []>} : vector<112x32xbf16>, vector<32x84xbf16>, vector<112x84xf32> -> vector<112x84xf32>
    %279 = arith.addf %272, %278 : vector<112x84xf32>
    %c3_308 = arith.constant 3 : index
    %c1_309 = arith.constant 1 : index
    %c0_310 = arith.constant 0 : index
    %c0_311 = arith.constant 0 : index
    %280 = vector.load %arg1[%c3_308, %c1_309, %c0_310, %c0_311] : memref<4x8x16x32xbf16, #tpu.memory_space<vmem>>, vector<1x7x16x32xbf16>
    %281 = vector.shape_cast %280 : vector<1x7x16x32xbf16> to vector<7x16x32xbf16>
    %282 = vector.shape_cast %281 : vector<7x16x32xbf16> to vector<112x32xbf16>
    %c9_312 = arith.constant 9 : index
    %c0_313 = arith.constant 0 : index
    %c0_314 = arith.constant 0 : index
    %283 = vector.load %arg2[%c9_312, %c0_313, %c0_314] : memref<10x32x84xbf16, #tpu.memory_space<vmem>>, vector<1x32x84xbf16>
    %284 = vector.shape_cast %283 : vector<1x32x84xbf16> to vector<32x84xbf16>
    %cst_315 = arith.constant dense<0.000000e+00> : vector<112x84xf32>
    %285 = tpu.matmul %282, %284, %cst_315 {dimension_numbers = #tpu.dot_dimension_numbers<[1], [0], [0], [1], [0, 0, 1, 1], [], []>} : vector<112x32xbf16>, vector<32x84xbf16>, vector<112x84xf32> -> vector<112x84xf32>
    %286 = arith.addf %279, %285 : vector<112x84xf32>
    %287 = arith.maximumf %252, %286 : vector<112x84xf32>
    %c0_316 = arith.constant 0 : index
    %c0_317 = arith.constant 0 : index
    %288 = vector.load %arg3[%c0_316, %c0_317] : memref<1x84xf32, #tpu.memory_space<vmem>>, vector<1x84xf32>
    %289 = vector.broadcast %288 : vector<1x84xf32> to vector<112x84xf32>
    %290 = arith.addf %287, %289 : vector<112x84xf32>
    %cst_318 = arith.constant 0.000000e+00 : f32
    %291 = vector.broadcast %cst_318 : f32 to vector<112x84xf32>
    %292 = arith.maximumf %290, %291 : vector<112x84xf32>
    %293 = vector.shape_cast %292 : vector<112x84xf32> to vector<7x16x84xf32>
    %294 = arith.truncf %293 : vector<7x16x84xf32> to vector<7x16x84xbf16>
    %c1_319 = arith.constant 1 : index
    %c0_320 = arith.constant 0 : index
    %c0_321 = arith.constant 0 : index
    %c0_322 = arith.constant 0 : index
    %295 = vector.load %arg13[%c1_319, %c0_320, %c0_321, %c0_322] : memref<2x7x16x84xbf16, #tpu.memory_space<vmem>>, vector<1x7x16x84xbf16>
    %296 = vector.shape_cast %295 : vector<1x7x16x84xbf16> to vector<7x16x84xbf16>
    %297 = vector.shape_cast %294 : vector<7x16x84xbf16> to vector<1x7x16x84xbf16>
    tpu.vector_store %arg13[%c1_319, %c0_320, %c0_321, %c0_322], %297 {strides = array<i32>} : memref<2x7x16x84xbf16, #tpu.memory_space<vmem>>, vector<1x7x16x84xbf16>,
    %c0_323 = arith.constant 0 : index
    %c0_324 = arith.constant 0 : index
    %c0_325 = arith.constant 0 : index
    %c0_326 = arith.constant 0 : index
    %298 = vector.load %arg13[%c0_323, %c0_324, %c0_325, %c0_326] : memref<2x7x16x84xbf16, #tpu.memory_space<vmem>>, vector<1x5x16x84xbf16>
    %299 = vector.shape_cast %298 : vector<1x5x16x84xbf16> to vector<5x16x84xbf16>
    %300 = vector.shape_cast %299 : vector<5x16x84xbf16> to vector<80x84xbf16>
    %c0_327 = arith.constant 0 : index
    %c0_328 = arith.constant 0 : index
    %c0_329 = arith.constant 0 : index
    %301 = vector.load %arg4[%c0_327, %c0_328, %c0_329] : memref<10x84x80xbf16, #tpu.memory_space<vmem>>, vector<1x84x80xbf16>
    %302 = vector.shape_cast %301 : vector<1x84x80xbf16> to vector<84x80xbf16>
    %cst_330 = arith.constant dense<0.000000e+00> : vector<80x80xf32>
    %303 = tpu.matmul %300, %302, %cst_330 {dimension_numbers = #tpu.dot_dimension_numbers<[1], [0], [0], [1], [0, 0, 1, 1], [], []>} : vector<80x84xbf16>, vector<84x80xbf16>, vector<80x80xf32> -> vector<80x80xf32>
    %c1_331 = arith.constant 1 : index
    %c0_332 = arith.constant 0 : index
    %c0_333 = arith.constant 0 : index
    %c0_334 = arith.constant 0 : index
    %304 = vector.load %arg13[%c1_331, %c0_332, %c0_333, %c0_334] : memref<2x7x16x84xbf16, #tpu.memory_space<vmem>>, vector<1x5x16x84xbf16>
    %305 = vector.shape_cast %304 : vector<1x5x16x84xbf16> to vector<5x16x84xbf16>
    %306 = vector.shape_cast %305 : vector<5x16x84xbf16> to vector<80x84xbf16>
    %c2_335 = arith.constant 2 : index
    %c0_336 = arith.constant 0 : index
    %c0_337 = arith.constant 0 : index
    %307 = vector.load %arg4[%c2_335, %c0_336, %c0_337] : memref<10x84x80xbf16, #tpu.memory_space<vmem>>, vector<1x84x80xbf16>
    %308 = vector.shape_cast %307 : vector<1x84x80xbf16> to vector<84x80xbf16>
    %cst_338 = arith.constant dense<0.000000e+00> : vector<80x80xf32>
    %309 = tpu.matmul %306, %308, %cst_338 {dimension_numbers = #tpu.dot_dimension_numbers<[1], [0], [0], [1], [0, 0, 1, 1], [], []>} : vector<80x84xbf16>, vector<84x80xbf16>, vector<80x80xf32> -> vector<80x80xf32>
    %310 = arith.addf %303, %309 : vector<80x80xf32>
    %c0_339 = arith.constant 0 : index
    %c1_340 = arith.constant 1 : index
    %c0_341 = arith.constant 0 : index
    %c0_342 = arith.constant 0 : index
    %311 = vector.load %arg13[%c0_339, %c1_340, %c0_341, %c0_342] : memref<2x7x16x84xbf16, #tpu.memory_space<vmem>>, vector<1x5x16x84xbf16>
    %312 = vector.shape_cast %311 : vector<1x5x16x84xbf16> to vector<5x16x84xbf16>
    %313 = vector.shape_cast %312 : vector<5x16x84xbf16> to vector<80x84xbf16>
    %c4_343 = arith.constant 4 : index
    %c0_344 = arith.constant 0 : index
    %c0_345 = arith.constant 0 : index
    %314 = vector.load %arg4[%c4_343, %c0_344, %c0_345] : memref<10x84x80xbf16, #tpu.memory_space<vmem>>, vector<1x84x80xbf16>
    %315 = vector.shape_cast %314 : vector<1x84x80xbf16> to vector<84x80xbf16>
    %cst_346 = arith.constant dense<0.000000e+00> : vector<80x80xf32>
    %316 = tpu.matmul %313, %315, %cst_346 {dimension_numbers = #tpu.dot_dimension_numbers<[1], [0], [0], [1], [0, 0, 1, 1], [], []>} : vector<80x84xbf16>, vector<84x80xbf16>, vector<80x80xf32> -> vector<80x80xf32>
    %317 = arith.addf %310, %316 : vector<80x80xf32>
    %c1_347 = arith.constant 1 : index
    %c1_348 = arith.constant 1 : index
    %c0_349 = arith.constant 0 : index
    %c0_350 = arith.constant 0 : index
    %318 = vector.load %arg13[%c1_347, %c1_348, %c0_349, %c0_350] : memref<2x7x16x84xbf16, #tpu.memory_space<vmem>>, vector<1x5x16x84xbf16>
    %319 = vector.shape_cast %318 : vector<1x5x16x84xbf16> to vector<5x16x84xbf16>
    %320 = vector.shape_cast %319 : vector<5x16x84xbf16> to vector<80x84xbf16>
    %c6_351 = arith.constant 6 : index
    %c0_352 = arith.constant 0 : index
    %c0_353 = arith.constant 0 : index
    %321 = vector.load %arg4[%c6_351, %c0_352, %c0_353] : memref<10x84x80xbf16, #tpu.memory_space<vmem>>, vector<1x84x80xbf16>
    %322 = vector.shape_cast %321 : vector<1x84x80xbf16> to vector<84x80xbf16>
    %cst_354 = arith.constant dense<0.000000e+00> : vector<80x80xf32>
    %323 = tpu.matmul %320, %322, %cst_354 {dimension_numbers = #tpu.dot_dimension_numbers<[1], [0], [0], [1], [0, 0, 1, 1], [], []>} : vector<80x84xbf16>, vector<84x80xbf16>, vector<80x80xf32> -> vector<80x80xf32>
    %324 = arith.addf %317, %323 : vector<80x80xf32>
    %c0_355 = arith.constant 0 : index
    %c2_356 = arith.constant 2 : index
    %c0_357 = arith.constant 0 : index
    %c0_358 = arith.constant 0 : index
    %325 = vector.load %arg13[%c0_355, %c2_356, %c0_357, %c0_358] : memref<2x7x16x84xbf16, #tpu.memory_space<vmem>>, vector<1x5x16x84xbf16>
    %326 = vector.shape_cast %325 : vector<1x5x16x84xbf16> to vector<5x16x84xbf16>
    %327 = vector.shape_cast %326 : vector<5x16x84xbf16> to vector<80x84xbf16>
    %c8_359 = arith.constant 8 : index
    %c0_360 = arith.constant 0 : index
    %c0_361 = arith.constant 0 : index
    %328 = vector.load %arg4[%c8_359, %c0_360, %c0_361] : memref<10x84x80xbf16, #tpu.memory_space<vmem>>, vector<1x84x80xbf16>
    %329 = vector.shape_cast %328 : vector<1x84x80xbf16> to vector<84x80xbf16>
    %cst_362 = arith.constant dense<0.000000e+00> : vector<80x80xf32>
    %330 = tpu.matmul %327, %329, %cst_362 {dimension_numbers = #tpu.dot_dimension_numbers<[1], [0], [0], [1], [0, 0, 1, 1], [], []>} : vector<80x84xbf16>, vector<84x80xbf16>, vector<80x80xf32> -> vector<80x80xf32>
    %331 = arith.addf %324, %330 : vector<80x80xf32>
    %c0_363 = arith.constant 0 : index
    %c0_364 = arith.constant 0 : index
    %c0_365 = arith.constant 0 : index
    %c0_366 = arith.constant 0 : index
    %332 = vector.load %arg13[%c0_363, %c0_364, %c0_365, %c0_366] : memref<2x7x16x84xbf16, #tpu.memory_space<vmem>>, vector<1x5x16x84xbf16>
    %333 = vector.shape_cast %332 : vector<1x5x16x84xbf16> to vector<5x16x84xbf16>
    %334 = vector.shape_cast %333 : vector<5x16x84xbf16> to vector<80x84xbf16>
    %c1_367 = arith.constant 1 : index
    %c0_368 = arith.constant 0 : index
    %c0_369 = arith.constant 0 : index
    %335 = vector.load %arg4[%c1_367, %c0_368, %c0_369] : memref<10x84x80xbf16, #tpu.memory_space<vmem>>, vector<1x84x80xbf16>
    %336 = vector.shape_cast %335 : vector<1x84x80xbf16> to vector<84x80xbf16>
    %cst_370 = arith.constant dense<0.000000e+00> : vector<80x80xf32>
    %337 = tpu.matmul %334, %336, %cst_370 {dimension_numbers = #tpu.dot_dimension_numbers<[1], [0], [0], [1], [0, 0, 1, 1], [], []>} : vector<80x84xbf16>, vector<84x80xbf16>, vector<80x80xf32> -> vector<80x80xf32>
    %c1_371 = arith.constant 1 : index
    %c0_372 = arith.constant 0 : index
    %c0_373 = arith.constant 0 : index
    %c0_374 = arith.constant 0 : index
    %338 = vector.load %arg13[%c1_371, %c0_372, %c0_373, %c0_374] : memref<2x7x16x84xbf16, #tpu.memory_space<vmem>>, vector<1x5x16x84xbf16>
    %339 = vector.shape_cast %338 : vector<1x5x16x84xbf16> to vector<5x16x84xbf16>
    %340 = vector.shape_cast %339 : vector<5x16x84xbf16> to vector<80x84xbf16>
    %c3_375 = arith.constant 3 : index
    %c0_376 = arith.constant 0 : index
    %c0_377 = arith.constant 0 : index
    %341 = vector.load %arg4[%c3_375, %c0_376, %c0_377] : memref<10x84x80xbf16, #tpu.memory_space<vmem>>, vector<1x84x80xbf16>
    %342 = vector.shape_cast %341 : vector<1x84x80xbf16> to vector<84x80xbf16>
    %cst_378 = arith.constant dense<0.000000e+00> : vector<80x80xf32>
    %343 = tpu.matmul %340, %342, %cst_378 {dimension_numbers = #tpu.dot_dimension_numbers<[1], [0], [0], [1], [0, 0, 1, 1], [], []>} : vector<80x84xbf16>, vector<84x80xbf16>, vector<80x80xf32> -> vector<80x80xf32>
    %344 = arith.addf %337, %343 : vector<80x80xf32>
    %c0_379 = arith.constant 0 : index
    %c1_380 = arith.constant 1 : index
    %c0_381 = arith.constant 0 : index
    %c0_382 = arith.constant 0 : index
    %345 = vector.load %arg13[%c0_379, %c1_380, %c0_381, %c0_382] : memref<2x7x16x84xbf16, #tpu.memory_space<vmem>>, vector<1x5x16x84xbf16>
    %346 = vector.shape_cast %345 : vector<1x5x16x84xbf16> to vector<5x16x84xbf16>
    %347 = vector.shape_cast %346 : vector<5x16x84xbf16> to vector<80x84xbf16>
    %c5_383 = arith.constant 5 : index
    %c0_384 = arith.constant 0 : index
    %c0_385 = arith.constant 0 : index
    %348 = vector.load %arg4[%c5_383, %c0_384, %c0_385] : memref<10x84x80xbf16, #tpu.memory_space<vmem>>, vector<1x84x80xbf16>
    %349 = vector.shape_cast %348 : vector<1x84x80xbf16> to vector<84x80xbf16>
    %cst_386 = arith.constant dense<0.000000e+00> : vector<80x80xf32>
    %350 = tpu.matmul %347, %349, %cst_386 {dimension_numbers = #tpu.dot_dimension_numbers<[1], [0], [0], [1], [0, 0, 1, 1], [], []>} : vector<80x84xbf16>, vector<84x80xbf16>, vector<80x80xf32> -> vector<80x80xf32>
    %351 = arith.addf %344, %350 : vector<80x80xf32>
    %c1_387 = arith.constant 1 : index
    %c1_388 = arith.constant 1 : index
    %c0_389 = arith.constant 0 : index
    %c0_390 = arith.constant 0 : index
    %352 = vector.load %arg13[%c1_387, %c1_388, %c0_389, %c0_390] : memref<2x7x16x84xbf16, #tpu.memory_space<vmem>>, vector<1x5x16x84xbf16>
    %353 = vector.shape_cast %352 : vector<1x5x16x84xbf16> to vector<5x16x84xbf16>
    %354 = vector.shape_cast %353 : vector<5x16x84xbf16> to vector<80x84xbf16>
    %c7_391 = arith.constant 7 : index
    %c0_392 = arith.constant 0 : index
    %c0_393 = arith.constant 0 : index
    %355 = vector.load %arg4[%c7_391, %c0_392, %c0_393] : memref<10x84x80xbf16, #tpu.memory_space<vmem>>, vector<1x84x80xbf16>
    %356 = vector.shape_cast %355 : vector<1x84x80xbf16> to vector<84x80xbf16>
    %cst_394 = arith.constant dense<0.000000e+00> : vector<80x80xf32>
    %357 = tpu.matmul %354, %356, %cst_394 {dimension_numbers = #tpu.dot_dimension_numbers<[1], [0], [0], [1], [0, 0, 1, 1], [], []>} : vector<80x84xbf16>, vector<84x80xbf16>, vector<80x80xf32> -> vector<80x80xf32>
    %358 = arith.addf %351, %357 : vector<80x80xf32>
    %c0_395 = arith.constant 0 : index
    %c2_396 = arith.constant 2 : index
    %c0_397 = arith.constant 0 : index
    %c0_398 = arith.constant 0 : index
    %359 = vector.load %arg13[%c0_395, %c2_396, %c0_397, %c0_398] : memref<2x7x16x84xbf16, #tpu.memory_space<vmem>>, vector<1x5x16x84xbf16>
    %360 = vector.shape_cast %359 : vector<1x5x16x84xbf16> to vector<5x16x84xbf16>
    %361 = vector.shape_cast %360 : vector<5x16x84xbf16> to vector<80x84xbf16>
    %c9_399 = arith.constant 9 : index
    %c0_400 = arith.constant 0 : index
    %c0_401 = arith.constant 0 : index
    %362 = vector.load %arg4[%c9_399, %c0_400, %c0_401] : memref<10x84x80xbf16, #tpu.memory_space<vmem>>, vector<1x84x80xbf16>
    %363 = vector.shape_cast %362 : vector<1x84x80xbf16> to vector<84x80xbf16>
    %cst_402 = arith.constant dense<0.000000e+00> : vector<80x80xf32>
    %364 = tpu.matmul %361, %363, %cst_402 {dimension_numbers = #tpu.dot_dimension_numbers<[1], [0], [0], [1], [0, 0, 1, 1], [], []>} : vector<80x84xbf16>, vector<84x80xbf16>, vector<80x80xf32> -> vector<80x80xf32>
    %365 = arith.addf %358, %364 : vector<80x80xf32>
    %366 = arith.maximumf %331, %365 : vector<80x80xf32>
    %c1_403 = arith.constant 1 : index
    %c0_404 = arith.constant 0 : index
    %c0_405 = arith.constant 0 : index
    %c0_406 = arith.constant 0 : index
    %367 = vector.load %arg13[%c1_403, %c0_404, %c0_405, %c0_406] : memref<2x7x16x84xbf16, #tpu.memory_space<vmem>>, vector<1x5x16x84xbf16>
    %368 = vector.shape_cast %367 : vector<1x5x16x84xbf16> to vector<5x16x84xbf16>
    %369 = vector.shape_cast %368 : vector<5x16x84xbf16> to vector<80x84xbf16>
    %c0_407 = arith.constant 0 : index
    %c0_408 = arith.constant 0 : index
    %c0_409 = arith.constant 0 : index
    %370 = vector.load %arg4[%c0_407, %c0_408, %c0_409] : memref<10x84x80xbf16, #tpu.memory_space<vmem>>, vector<1x84x80xbf16>
    %371 = vector.shape_cast %370 : vector<1x84x80xbf16> to vector<84x80xbf16>
    %cst_410 = arith.constant dense<0.000000e+00> : vector<80x80xf32>
    %372 = tpu.matmul %369, %371, %cst_410 {dimension_numbers = #tpu.dot_dimension_numbers<[1], [0], [0], [1], [0, 0, 1, 1], [], []>} : vector<80x84xbf16>, vector<84x80xbf16>, vector<80x80xf32> -> vector<80x80xf32>
    %c0_411 = arith.constant 0 : index
    %c1_412 = arith.constant 1 : index
    %c0_413 = arith.constant 0 : index
    %c0_414 = arith.constant 0 : index
    %373 = vector.load %arg13[%c0_411, %c1_412, %c0_413, %c0_414] : memref<2x7x16x84xbf16, #tpu.memory_space<vmem>>, vector<1x5x16x84xbf16>
    %374 = vector.shape_cast %373 : vector<1x5x16x84xbf16> to vector<5x16x84xbf16>
    %375 = vector.shape_cast %374 : vector<5x16x84xbf16> to vector<80x84xbf16>
    %c2_415 = arith.constant 2 : index
    %c0_416 = arith.constant 0 : index
    %c0_417 = arith.constant 0 : index
    %376 = vector.load %arg4[%c2_415, %c0_416, %c0_417] : memref<10x84x80xbf16, #tpu.memory_space<vmem>>, vector<1x84x80xbf16>
    %377 = vector.shape_cast %376 : vector<1x84x80xbf16> to vector<84x80xbf16>
    %cst_418 = arith.constant dense<0.000000e+00> : vector<80x80xf32>
    %378 = tpu.matmul %375, %377, %cst_418 {dimension_numbers = #tpu.dot_dimension_numbers<[1], [0], [0], [1], [0, 0, 1, 1], [], []>} : vector<80x84xbf16>, vector<84x80xbf16>, vector<80x80xf32> -> vector<80x80xf32>
    %379 = arith.addf %372, %378 : vector<80x80xf32>
    %c1_419 = arith.constant 1 : index
    %c1_420 = arith.constant 1 : index
    %c0_421 = arith.constant 0 : index
    %c0_422 = arith.constant 0 : index
    %380 = vector.load %arg13[%c1_419, %c1_420, %c0_421, %c0_422] : memref<2x7x16x84xbf16, #tpu.memory_space<vmem>>, vector<1x5x16x84xbf16>
    %381 = vector.shape_cast %380 : vector<1x5x16x84xbf16> to vector<5x16x84xbf16>
    %382 = vector.shape_cast %381 : vector<5x16x84xbf16> to vector<80x84xbf16>
    %c4_423 = arith.constant 4 : index
    %c0_424 = arith.constant 0 : index
    %c0_425 = arith.constant 0 : index
    %383 = vector.load %arg4[%c4_423, %c0_424, %c0_425] : memref<10x84x80xbf16, #tpu.memory_space<vmem>>, vector<1x84x80xbf16>
    %384 = vector.shape_cast %383 : vector<1x84x80xbf16> to vector<84x80xbf16>
    %cst_426 = arith.constant dense<0.000000e+00> : vector<80x80xf32>
    %385 = tpu.matmul %382, %384, %cst_426 {dimension_numbers = #tpu.dot_dimension_numbers<[1], [0], [0], [1], [0, 0, 1, 1], [], []>} : vector<80x84xbf16>, vector<84x80xbf16>, vector<80x80xf32> -> vector<80x80xf32>
    %386 = arith.addf %379, %385 : vector<80x80xf32>
    %c0_427 = arith.constant 0 : index
    %c2_428 = arith.constant 2 : index
    %c0_429 = arith.constant 0 : index
    %c0_430 = arith.constant 0 : index
    %387 = vector.load %arg13[%c0_427, %c2_428, %c0_429, %c0_430] : memref<2x7x16x84xbf16, #tpu.memory_space<vmem>>, vector<1x5x16x84xbf16>
    %388 = vector.shape_cast %387 : vector<1x5x16x84xbf16> to vector<5x16x84xbf16>
    %389 = vector.shape_cast %388 : vector<5x16x84xbf16> to vector<80x84xbf16>
    %c6_431 = arith.constant 6 : index
    %c0_432 = arith.constant 0 : index
    %c0_433 = arith.constant 0 : index
    %390 = vector.load %arg4[%c6_431, %c0_432, %c0_433] : memref<10x84x80xbf16, #tpu.memory_space<vmem>>, vector<1x84x80xbf16>
    %391 = vector.shape_cast %390 : vector<1x84x80xbf16> to vector<84x80xbf16>
    %cst_434 = arith.constant dense<0.000000e+00> : vector<80x80xf32>
    %392 = tpu.matmul %389, %391, %cst_434 {dimension_numbers = #tpu.dot_dimension_numbers<[1], [0], [0], [1], [0, 0, 1, 1], [], []>} : vector<80x84xbf16>, vector<84x80xbf16>, vector<80x80xf32> -> vector<80x80xf32>
    %393 = arith.addf %386, %392 : vector<80x80xf32>
    %c1_435 = arith.constant 1 : index
    %c2_436 = arith.constant 2 : index
    %c0_437 = arith.constant 0 : index
    %c0_438 = arith.constant 0 : index
    %394 = vector.load %arg13[%c1_435, %c2_436, %c0_437, %c0_438] : memref<2x7x16x84xbf16, #tpu.memory_space<vmem>>, vector<1x5x16x84xbf16>
    %395 = vector.shape_cast %394 : vector<1x5x16x84xbf16> to vector<5x16x84xbf16>
    %396 = vector.shape_cast %395 : vector<5x16x84xbf16> to vector<80x84xbf16>
    %c8_439 = arith.constant 8 : index
    %c0_440 = arith.constant 0 : index
    %c0_441 = arith.constant 0 : index
    %397 = vector.load %arg4[%c8_439, %c0_440, %c0_441] : memref<10x84x80xbf16, #tpu.memory_space<vmem>>, vector<1x84x80xbf16>
    %398 = vector.shape_cast %397 : vector<1x84x80xbf16> to vector<84x80xbf16>
    %cst_442 = arith.constant dense<0.000000e+00> : vector<80x80xf32>
    %399 = tpu.matmul %396, %398, %cst_442 {dimension_numbers = #tpu.dot_dimension_numbers<[1], [0], [0], [1], [0, 0, 1, 1], [], []>} : vector<80x84xbf16>, vector<84x80xbf16>, vector<80x80xf32> -> vector<80x80xf32>
    %400 = arith.addf %393, %399 : vector<80x80xf32>
    %401 = arith.maximumf %366, %400 : vector<80x80xf32>
    %c1_443 = arith.constant 1 : index
    %c0_444 = arith.constant 0 : index
    %c0_445 = arith.constant 0 : index
    %c0_446 = arith.constant 0 : index
    %402 = vector.load %arg13[%c1_443, %c0_444, %c0_445, %c0_446] : memref<2x7x16x84xbf16, #tpu.memory_space<vmem>>, vector<1x5x16x84xbf16>
    %403 = vector.shape_cast %402 : vector<1x5x16x84xbf16> to vector<5x16x84xbf16>
    %404 = vector.shape_cast %403 : vector<5x16x84xbf16> to vector<80x84xbf16>
    %c1_447 = arith.constant 1 : index
    %c0_448 = arith.constant 0 : index
    %c0_449 = arith.constant 0 : index
    %405 = vector.load %arg4[%c1_447, %c0_448, %c0_449] : memref<10x84x80xbf16, #tpu.memory_space<vmem>>, vector<1x84x80xbf16>
    %406 = vector.shape_cast %405 : vector<1x84x80xbf16> to vector<84x80xbf16>
    %cst_450 = arith.constant dense<0.000000e+00> : vector<80x80xf32>
    %407 = tpu.matmul %404, %406, %cst_450 {dimension_numbers = #tpu.dot_dimension_numbers<[1], [0], [0], [1], [0, 0, 1, 1], [], []>} : vector<80x84xbf16>, vector<84x80xbf16>, vector<80x80xf32> -> vector<80x80xf32>
    %c0_451 = arith.constant 0 : index
    %c1_452 = arith.constant 1 : index
    %c0_453 = arith.constant 0 : index
    %c0_454 = arith.constant 0 : index
    %408 = vector.load %arg13[%c0_451, %c1_452, %c0_453, %c0_454] : memref<2x7x16x84xbf16, #tpu.memory_space<vmem>>, vector<1x5x16x84xbf16>
    %409 = vector.shape_cast %408 : vector<1x5x16x84xbf16> to vector<5x16x84xbf16>
    %410 = vector.shape_cast %409 : vector<5x16x84xbf16> to vector<80x84xbf16>
    %c3_455 = arith.constant 3 : index
    %c0_456 = arith.constant 0 : index
    %c0_457 = arith.constant 0 : index
    %411 = vector.load %arg4[%c3_455, %c0_456, %c0_457] : memref<10x84x80xbf16, #tpu.memory_space<vmem>>, vector<1x84x80xbf16>
    %412 = vector.shape_cast %411 : vector<1x84x80xbf16> to vector<84x80xbf16>
    %cst_458 = arith.constant dense<0.000000e+00> : vector<80x80xf32>
    %413 = tpu.matmul %410, %412, %cst_458 {dimension_numbers = #tpu.dot_dimension_numbers<[1], [0], [0], [1], [0, 0, 1, 1], [], []>} : vector<80x84xbf16>, vector<84x80xbf16>, vector<80x80xf32> -> vector<80x80xf32>
    %414 = arith.addf %407, %413 : vector<80x80xf32>
    %c1_459 = arith.constant 1 : index
    %c1_460 = arith.constant 1 : index
    %c0_461 = arith.constant 0 : index
    %c0_462 = arith.constant 0 : index
    %415 = vector.load %arg13[%c1_459, %c1_460, %c0_461, %c0_462] : memref<2x7x16x84xbf16, #tpu.memory_space<vmem>>, vector<1x5x16x84xbf16>
    %416 = vector.shape_cast %415 : vector<1x5x16x84xbf16> to vector<5x16x84xbf16>
    %417 = vector.shape_cast %416 : vector<5x16x84xbf16> to vector<80x84xbf16>
    %c5_463 = arith.constant 5 : index
    %c0_464 = arith.constant 0 : index
    %c0_465 = arith.constant 0 : index
    %418 = vector.load %arg4[%c5_463, %c0_464, %c0_465] : memref<10x84x80xbf16, #tpu.memory_space<vmem>>, vector<1x84x80xbf16>
    %419 = vector.shape_cast %418 : vector<1x84x80xbf16> to vector<84x80xbf16>
    %cst_466 = arith.constant dense<0.000000e+00> : vector<80x80xf32>
    %420 = tpu.matmul %417, %419, %cst_466 {dimension_numbers = #tpu.dot_dimension_numbers<[1], [0], [0], [1], [0, 0, 1, 1], [], []>} : vector<80x84xbf16>, vector<84x80xbf16>, vector<80x80xf32> -> vector<80x80xf32>
    %421 = arith.addf %414, %420 : vector<80x80xf32>
    %c0_467 = arith.constant 0 : index
    %c2_468 = arith.constant 2 : index
    %c0_469 = arith.constant 0 : index
    %c0_470 = arith.constant 0 : index
    %422 = vector.load %arg13[%c0_467, %c2_468, %c0_469, %c0_470] : memref<2x7x16x84xbf16, #tpu.memory_space<vmem>>, vector<1x5x16x84xbf16>
    %423 = vector.shape_cast %422 : vector<1x5x16x84xbf16> to vector<5x16x84xbf16>
    %424 = vector.shape_cast %423 : vector<5x16x84xbf16> to vector<80x84xbf16>
    %c7_471 = arith.constant 7 : index
    %c0_472 = arith.constant 0 : index
    %c0_473 = arith.constant 0 : index
    %425 = vector.load %arg4[%c7_471, %c0_472, %c0_473] : memref<10x84x80xbf16, #tpu.memory_space<vmem>>, vector<1x84x80xbf16>
    %426 = vector.shape_cast %425 : vector<1x84x80xbf16> to vector<84x80xbf16>
    %cst_474 = arith.constant dense<0.000000e+00> : vector<80x80xf32>
    %427 = tpu.matmul %424, %426, %cst_474 {dimension_numbers = #tpu.dot_dimension_numbers<[1], [0], [0], [1], [0, 0, 1, 1], [], []>} : vector<80x84xbf16>, vector<84x80xbf16>, vector<80x80xf32> -> vector<80x80xf32>
    %428 = arith.addf %421, %427 : vector<80x80xf32>
    %c1_475 = arith.constant 1 : index
    %c2_476 = arith.constant 2 : index
    %c0_477 = arith.constant 0 : index
    %c0_478 = arith.constant 0 : index
    %429 = vector.load %arg13[%c1_475, %c2_476, %c0_477, %c0_478] : memref<2x7x16x84xbf16, #tpu.memory_space<vmem>>, vector<1x5x16x84xbf16>
    %430 = vector.shape_cast %429 : vector<1x5x16x84xbf16> to vector<5x16x84xbf16>
    %431 = vector.shape_cast %430 : vector<5x16x84xbf16> to vector<80x84xbf16>
    %c9_479 = arith.constant 9 : index
    %c0_480 = arith.constant 0 : index
    %c0_481 = arith.constant 0 : index
    %432 = vector.load %arg4[%c9_479, %c0_480, %c0_481] : memref<10x84x80xbf16, #tpu.memory_space<vmem>>, vector<1x84x80xbf16>
    %433 = vector.shape_cast %432 : vector<1x84x80xbf16> to vector<84x80xbf16>
    %cst_482 = arith.constant dense<0.000000e+00> : vector<80x80xf32>
    %434 = tpu.matmul %431, %433, %cst_482 {dimension_numbers = #tpu.dot_dimension_numbers<[1], [0], [0], [1], [0, 0, 1, 1], [], []>} : vector<80x84xbf16>, vector<84x80xbf16>, vector<80x80xf32> -> vector<80x80xf32>
    %435 = arith.addf %428, %434 : vector<80x80xf32>
    %436 = arith.maximumf %401, %435 : vector<80x80xf32>
    %c0_483 = arith.constant 0 : index
    %c0_484 = arith.constant 0 : index
    %437 = vector.load %arg5[%c0_483, %c0_484] : memref<1x80xf32, #tpu.memory_space<vmem>>, vector<1x80xf32>
    %438 = vector.broadcast %437 : vector<1x80xf32> to vector<80x80xf32>
    %439 = arith.addf %436, %438 : vector<80x80xf32>
    %cst_485 = arith.constant 0.000000e+00 : f32
    %440 = vector.broadcast %cst_485 : f32 to vector<80x80xf32>
    %441 = arith.maximumf %439, %440 : vector<80x80xf32>
    %442 = vector.shape_cast %441 : vector<80x80xf32> to vector<5x16x80xf32>
    %443 = arith.truncf %442 : vector<5x16x80xf32> to vector<5x16x80xbf16>
    %c0_486 = arith.constant 0 : index
    %c0_487 = arith.constant 0 : index
    %c0_488 = arith.constant 0 : index
    %444 = vector.load %arg14[%c0_486, %c0_487, %c0_488] : memref<5x16x80xbf16, #tpu.memory_space<vmem>>, vector<5x16x80xbf16>
    tpu.vector_store %arg14[%c0_486, %c0_487, %c0_488], %443 {strides = array<i32>} : memref<5x16x80xbf16, #tpu.memory_space<vmem>>, vector<5x16x80xbf16>,
    %c0_489 = arith.constant 0 : index
    %c0_490 = arith.constant 0 : index
    %c0_491 = arith.constant 0 : index
    %445 = vector.load %arg14[%c0_489, %c0_490, %c0_491] : memref<5x16x80xbf16, #tpu.memory_space<vmem>>, vector<1x16x80xbf16>
    %446 = vector.shape_cast %445 : vector<1x16x80xbf16> to vector<16x80xbf16>
    %c0_492 = arith.constant 0 : index
    %c0_493 = arith.constant 0 : index
    %c0_494 = arith.constant 0 : index
    %447 = vector.load %arg6[%c0_492, %c0_493, %c0_494] : memref<5x80x128xbf16, #tpu.memory_space<vmem>>, vector<1x80x128xbf16>
    %448 = vector.shape_cast %447 : vector<1x80x128xbf16> to vector<80x128xbf16>
    %cst_495 = arith.constant dense<0.000000e+00> : vector<16x128xf32>
    %449 = tpu.matmul %446, %448, %cst_495 {dimension_numbers = #tpu.dot_dimension_numbers<[1], [0], [0], [1], [0, 0, 1, 1], [], []>} : vector<16x80xbf16>, vector<80x128xbf16>, vector<16x128xf32> -> vector<16x128xf32>
    %c1_496 = arith.constant 1 : index
    %c0_497 = arith.constant 0 : index
    %c0_498 = arith.constant 0 : index
    %450 = vector.load %arg14[%c1_496, %c0_497, %c0_498] : memref<5x16x80xbf16, #tpu.memory_space<vmem>>, vector<1x16x80xbf16>
    %451 = vector.shape_cast %450 : vector<1x16x80xbf16> to vector<16x80xbf16>
    %c1_499 = arith.constant 1 : index
    %c0_500 = arith.constant 0 : index
    %c0_501 = arith.constant 0 : index
    %452 = vector.load %arg6[%c1_499, %c0_500, %c0_501] : memref<5x80x128xbf16, #tpu.memory_space<vmem>>, vector<1x80x128xbf16>
    %453 = vector.shape_cast %452 : vector<1x80x128xbf16> to vector<80x128xbf16>
    %cst_502 = arith.constant dense<0.000000e+00> : vector<16x128xf32>
    %454 = tpu.matmul %451, %453, %cst_502 {dimension_numbers = #tpu.dot_dimension_numbers<[1], [0], [0], [1], [0, 0, 1, 1], [], []>} : vector<16x80xbf16>, vector<80x128xbf16>, vector<16x128xf32> -> vector<16x128xf32>
    %455 = arith.addf %449, %454 : vector<16x128xf32>
    %c2_503 = arith.constant 2 : index
    %c0_504 = arith.constant 0 : index
    %c0_505 = arith.constant 0 : index
    %456 = vector.load %arg14[%c2_503, %c0_504, %c0_505] : memref<5x16x80xbf16, #tpu.memory_space<vmem>>, vector<1x16x80xbf16>
    %457 = vector.shape_cast %456 : vector<1x16x80xbf16> to vector<16x80xbf16>
    %c2_506 = arith.constant 2 : index
    %c0_507 = arith.constant 0 : index
    %c0_508 = arith.constant 0 : index
    %458 = vector.load %arg6[%c2_506, %c0_507, %c0_508] : memref<5x80x128xbf16, #tpu.memory_space<vmem>>, vector<1x80x128xbf16>
    %459 = vector.shape_cast %458 : vector<1x80x128xbf16> to vector<80x128xbf16>
    %cst_509 = arith.constant dense<0.000000e+00> : vector<16x128xf32>
    %460 = tpu.matmul %457, %459, %cst_509 {dimension_numbers = #tpu.dot_dimension_numbers<[1], [0], [0], [1], [0, 0, 1, 1], [], []>} : vector<16x80xbf16>, vector<80x128xbf16>, vector<16x128xf32> -> vector<16x128xf32>
    %461 = arith.addf %455, %460 : vector<16x128xf32>
    %c3_510 = arith.constant 3 : index
    %c0_511 = arith.constant 0 : index
    %c0_512 = arith.constant 0 : index
    %462 = vector.load %arg14[%c3_510, %c0_511, %c0_512] : memref<5x16x80xbf16, #tpu.memory_space<vmem>>, vector<1x16x80xbf16>
    %463 = vector.shape_cast %462 : vector<1x16x80xbf16> to vector<16x80xbf16>
    %c3_513 = arith.constant 3 : index
    %c0_514 = arith.constant 0 : index
    %c0_515 = arith.constant 0 : index
    %464 = vector.load %arg6[%c3_513, %c0_514, %c0_515] : memref<5x80x128xbf16, #tpu.memory_space<vmem>>, vector<1x80x128xbf16>
    %465 = vector.shape_cast %464 : vector<1x80x128xbf16> to vector<80x128xbf16>
    %cst_516 = arith.constant dense<0.000000e+00> : vector<16x128xf32>
    %466 = tpu.matmul %463, %465, %cst_516 {dimension_numbers = #tpu.dot_dimension_numbers<[1], [0], [0], [1], [0, 0, 1, 1], [], []>} : vector<16x80xbf16>, vector<80x128xbf16>, vector<16x128xf32> -> vector<16x128xf32>
    %467 = arith.addf %461, %466 : vector<16x128xf32>
    %c4_517 = arith.constant 4 : index
    %c0_518 = arith.constant 0 : index
    %c0_519 = arith.constant 0 : index
    %468 = vector.load %arg14[%c4_517, %c0_518, %c0_519] : memref<5x16x80xbf16, #tpu.memory_space<vmem>>, vector<1x16x80xbf16>
    %469 = vector.shape_cast %468 : vector<1x16x80xbf16> to vector<16x80xbf16>
    %c4_520 = arith.constant 4 : index
    %c0_521 = arith.constant 0 : index
    %c0_522 = arith.constant 0 : index
    %470 = vector.load %arg6[%c4_520, %c0_521, %c0_522] : memref<5x80x128xbf16, #tpu.memory_space<vmem>>, vector<1x80x128xbf16>
    %471 = vector.shape_cast %470 : vector<1x80x128xbf16> to vector<80x128xbf16>
    %cst_523 = arith.constant dense<0.000000e+00> : vector<16x128xf32>
    %472 = tpu.matmul %469, %471, %cst_523 {dimension_numbers = #tpu.dot_dimension_numbers<[1], [0], [0], [1], [0, 0, 1, 1], [], []>} : vector<16x80xbf16>, vector<80x128xbf16>, vector<16x128xf32> -> vector<16x128xf32>
    %473 = arith.addf %467, %472 : vector<16x128xf32>
    %c0_524 = arith.constant 0 : index
    %c0_525 = arith.constant 0 : index
    %474 = vector.load %arg7[%c0_524, %c0_525] : memref<1x128xf32, #tpu.memory_space<vmem>>, vector<1x128xf32>
    %475 = vector.broadcast %474 : vector<1x128xf32> to vector<16x128xf32>
    %476 = arith.addf %473, %475 : vector<16x128xf32>
    %cst_526 = arith.constant 0.000000e+00 : f32
    %477 = vector.broadcast %cst_526 : f32 to vector<16x128xf32>
    %478 = arith.maximumf %476, %477 : vector<16x128xf32>
    %479 = arith.truncf %478 : vector<16x128xf32> to vector<16x128xbf16>
    %c0_527 = arith.constant 0 : index
    %c0_528 = arith.constant 0 : index
    %480 = vector.load %arg8[%c0_527, %c0_528] : memref<128x128xbf16, #tpu.memory_space<vmem>>, vector<128x128xbf16>
    %cst_529 = arith.constant dense<0.000000e+00> : vector<16x128xf32>
    %481 = tpu.matmul %479, %480, %cst_529 {dimension_numbers = #tpu.dot_dimension_numbers<[1], [0], [0], [1], [0, 0, 1, 1], [], []>} : vector<16x128xbf16>, vector<128x128xbf16>, vector<16x128xf32> -> vector<16x128xf32>
    %c0_530 = arith.constant 0 : index
    %c0_531 = arith.constant 0 : index
    %482 = vector.load %arg9[%c0_530, %c0_531] : memref<1x128xf32, #tpu.memory_space<vmem>>, vector<1x128xf32>
    %483 = vector.broadcast %482 : vector<1x128xf32> to vector<16x128xf32>
    %484 = arith.addf %481, %483 : vector<16x128xf32>
    %cst_532 = arith.constant 0.000000e+00 : f32
    %485 = vector.broadcast %cst_532 : f32 to vector<16x128xf32>
    %486 = arith.maximumf %484, %485 : vector<16x128xf32>
    %487 = arith.truncf %486 : vector<16x128xf32> to vector<16x128xbf16>
    %c0_533 = arith.constant 0 : index
    %c0_534 = arith.constant 0 : index
    %488 = vector.load %arg10[%c0_533, %c0_534] : memref<128x128xbf16, #tpu.memory_space<vmem>>, vector<128x128xbf16>
    %cst_535 = arith.constant dense<0.000000e+00> : vector<16x128xf32>
    %489 = tpu.matmul %487, %488, %cst_535 {dimension_numbers = #tpu.dot_dimension_numbers<[1], [0], [0], [1], [0, 0, 1, 1], [], []>} : vector<16x128xbf16>, vector<128x128xbf16>, vector<16x128xf32> -> vector<16x128xf32>
    %c0_536 = arith.constant 0 : index
    %c0_537 = arith.constant 0 : index
    %490 = vector.load %arg11[%c0_536, %c0_537] : memref<1x128xf32, #tpu.memory_space<vmem>>, vector<1x128xf32>
    %491 = vector.broadcast %490 : vector<1x128xf32> to vector<16x128xf32>
    %492 = arith.addf %489, %491 : vector<16x128xf32>
    %cst_538 = arith.constant dense<0xFF800000> : vector<16xf32>
    %493 = vector.multi_reduction <maximumf>, %492, %cst_538 [1] : vector<16x128xf32> to vector<16xf32>
    %494 = vector.shape_cast %493 : vector<16xf32> to vector<16x1xf32>
    %495 = vector.broadcast %494 : vector<16x1xf32> to vector<16x128xf32>
    %496 = arith.subf %492, %495 : vector<16x128xf32>
    %497 = math.exp %496 : vector<16x128xf32>
    %cst_539 = arith.constant dense<0.000000e+00> : vector<16xf32>
    %498 = vector.multi_reduction <add>, %497, %cst_539 [1] : vector<16x128xf32> to vector<16xf32>
    %499 = vector.shape_cast %498 : vector<16xf32> to vector<16x1xf32>
    %500 = tpu.reciprocal %499 {approx = true} : vector<16x1xf32> -> vector<16x1xf32>
    %501 = vector.broadcast %500 : vector<16x1xf32> to vector<16x128xf32>
    %502 = arith.mulf %497, %501 : vector<16x128xf32>
    %c0_540 = arith.constant 0 : index
    %c0_541 = arith.constant 0 : index
    %503 = vector.load %arg12[%c0_540, %c0_541] : memref<16x128xf32, #tpu.memory_space<vmem>>, vector<16x128xf32>
    tpu.vector_store %arg12[%c0_540, %c0_541], %502 {strides = array<i32>} : memref<16x128xf32, #tpu.memory_space<vmem>>, vector<16x128xf32>,
    return
  }
  func.func @transform_0(%arg0: i32) -> (i32, i32, i32, i32) {
    %c0_i32 = arith.constant 0 : i32
    %c0_i32_0 = arith.constant 0 : i32
    %c0_i32_1 = arith.constant 0 : i32
    %c0_i32_2 = arith.constant 0 : i32
    return %c0_i32, %c0_i32_0, %arg0, %c0_i32_1 : i32, i32, i32, i32
  }
  func.func @transform_1(%arg0: i32) -> (i32, i32, i32) {
    %c0_i32 = arith.constant 0 : i32
    %c0_i32_0 = arith.constant 0 : i32
    %c0_i32_1 = arith.constant 0 : i32
    %c0_i32_2 = arith.constant 0 : i32
    return %c0_i32, %c0_i32_0, %c0_i32_1 : i32, i32, i32
  }
  func.func @transform_2(%arg0: i32) -> (i32, i32) {
    %c0_i32 = arith.constant 0 : i32
    %c0_i32_0 = arith.constant 0 : i32
    %c0_i32_1 = arith.constant 0 : i32
    return %c0_i32, %c0_i32_0 : i32, i32
  }
  func.func @transform_3(%arg0: i32) -> (i32, i32, i32) {
    %c0_i32 = arith.constant 0 : i32
    %c0_i32_0 = arith.constant 0 : i32
    %c0_i32_1 = arith.constant 0 : i32
    %c0_i32_2 = arith.constant 0 : i32
    return %c0_i32, %c0_i32_0, %c0_i32_1 : i32, i32, i32
  }
  func.func @transform_4(%arg0: i32) -> (i32, i32) {
    %c0_i32 = arith.constant 0 : i32
    %c0_i32_0 = arith.constant 0 : i32
    %c0_i32_1 = arith.constant 0 : i32
    return %c0_i32, %c0_i32_0 : i32, i32
  }
  func.func @transform_5(%arg0: i32) -> (i32, i32, i32) {
    %c0_i32 = arith.constant 0 : i32
    %c0_i32_0 = arith.constant 0 : i32
    %c0_i32_1 = arith.constant 0 : i32
    %c0_i32_2 = arith.constant 0 : i32
    return %c0_i32, %c0_i32_0, %c0_i32_1 : i32, i32, i32
  }
  func.func @transform_6(%arg0: i32) -> (i32, i32) {
    %c0_i32 = arith.constant 0 : i32
    %c0_i32_0 = arith.constant 0 : i32
    %c0_i32_1 = arith.constant 0 : i32
    return %c0_i32, %c0_i32_0 : i32, i32
  }
  func.func @transform_7(%arg0: i32) -> (i32, i32) {
    %c0_i32 = arith.constant 0 : i32
    %c0_i32_0 = arith.constant 0 : i32
    %c0_i32_1 = arith.constant 0 : i32
    return %c0_i32, %c0_i32_0 : i32, i32
  }
  func.func @transform_8(%arg0: i32) -> (i32, i32) {
    %c0_i32 = arith.constant 0 : i32
    %c0_i32_0 = arith.constant 0 : i32
    %c0_i32_1 = arith.constant 0 : i32
    return %c0_i32, %c0_i32_0 : i32, i32
  }
  func.func @transform_9(%arg0: i32) -> (i32, i32) {
    %c0_i32 = arith.constant 0 : i32
    %c0_i32_0 = arith.constant 0 : i32
    %c0_i32_1 = arith.constant 0 : i32
    return %c0_i32, %c0_i32_0 : i32, i32
  }
  func.func @transform_10(%arg0: i32) -> (i32, i32) {
    %c0_i32 = arith.constant 0 : i32
    %c0_i32_0 = arith.constant 0 : i32
    %c0_i32_1 = arith.constant 0 : i32
    return %c0_i32, %c0_i32_0 : i32, i32
  }
  func.func @transform_11(%arg0: i32) -> (i32, i32) {
    %c0_i32 = arith.constant 0 : i32
    %c0_i32_0 = arith.constant 0 : i32
    return %arg0, %c0_i32 : i32, i32
  }
}

</mosaic_0001>

<llo_original>
// kernel: tile.13
$region0: #{tile.13}
  #allocation0 [shape = 's32[1]{0}', space=sflag, size = 0x4, scoped, tag = 'scoped memory for tile.13']
  %s0 = inlined_call_operand.vmem [shape: f32[6], index: 0, kind: input, shape index: {}]
  %s1 = inlined_call_operand.vmem [shape: f32[14,6], index: 1, kind: output, shape index: {}]
  // Predicated region
  $region2: #{tile.13} parent=0 // pred_check
    _
  $region3: #{tile.13} parent=0 // pred_check_branch
    %3 = sbr.rel (0) target = $region5
  $region4: #{tile.13} parent=0 // pred_region
    _
  $region5: #{tile.13} parent=0 // pred_fallthru
    _
  %v4 = vld [vmem:[%s0] ss:$0 sm:$0xff]
  %5 = vst [vmem:[%s1] sm:$0xff] %v4
  %s6 = scalar_lea.vmem %s1, 8
  %7 = vst [vmem:[%s6] sm:$0xff] %v4

// kernel: tile.14
$region0: #{tile.14}
  %s0 = inlined_call_operand.vmem [shape: f32[14,6], index: 0, kind: input, shape index: {}]
  %s1 = inlined_call_operand.vmem [shape: f32[1,84], index: 1, kind: output, shape index: {}]
  $region1: #{tile.14} parent=0
    #allocation0 [shape = 'u8[4096]{0}', space=vmem, size = 0x1000, scoped, tag = 'scoped mem for output reshape']
    %v2 = vld [vmem:[%s0] sm:$0x1]
    %vm3 = vcmask 48128
    %4 = vst.msk [vmem:[#allocation0] sm:$0x1] %vm3, %v2
    %s5 = scalar_lea.vmem %s0, 13
    %v6 = vld [vmem:[%s5] sm:$0x1]
    %7 = vrot.lane.b32.xlu0 %v6, 78
    %v8 = vpop.permute.xlu0 %7
    %vm9 = vcmask 687728
    %10 = vst.msk [vmem:[#allocation0] sm:$0x1] %vm9, %v8
    %s11 = scalar_lea.vmem %s0, 12
    %v12 = vld [vmem:[%s11] sm:$0x1]
    %13 = vrot.lane.b32.xlu0 %v12, 72
    %v14 = vpop.permute.xlu0 %13
    %vm15 = vcmask 638528
    %16 = vst.msk [vmem:[#allocation0] sm:$0x1] %vm15, %v14
    %s17 = scalar_lea.vmem %s0, 11
    %v18 = vld [vmem:[%s17] sm:$0x1]
    %19 = vrot.lane.b32.xlu0 %v18, 66
    %v20 = vpop.permute.xlu0 %19
    %vm21 = vcmask 589328
    %22 = vst.msk [vmem:[#allocation0] sm:$0x1] %vm21, %v20
    %s23 = scalar_lea.vmem %s0, 10
    %v24 = vld [vmem:[%s23] sm:$0x1]
    %25 = vrot.lane.b32.xlu0 %v24, 60
    %v26 = vpop.permute.xlu0 %25
    %vm27 = vcmask 540128
    %28 = vst.msk [vmem:[#allocation0] sm:$0x1] %vm27, %v26
    %s29 = scalar_lea.vmem %s0, 9
    %v30 = vld [vmem:[%s29] sm:$0x1]
    %31 = vrot.lane.b32.xlu0 %v30, 54
    %v32 = vpop.permute.xlu0 %31
    %vm33 = vcmask 490928
    %34 = vst.msk [vmem:[#allocation0] sm:$0x1] %vm33, %v32
    %s35 = scalar_lea.vmem %s0, 8
    %v36 = vld [vmem:[%s35] sm:$0x1]
    %37 = vrot.lane.b32.xlu0 %v36, 48
    %v38 = vpop.permute.xlu0 %37
    %vm39 = vcmask 441728
    %40 = vst.msk [vmem:[#allocation0] sm:$0x1] %vm39, %v38
    %s41 = scalar_lea.vmem %s0, 7
    %v42 = vld [vmem:[%s41] sm:$0x1]
    %43 = vrot.lane.b32.xlu0 %v42, 42
    %v44 = vpop.permute.xlu0 %43
    %vm45 = vcmask 392528
    %46 = vst.msk [vmem:[#allocation0] sm:$0x1] %vm45, %v44
    %s47 = scalar_lea.vmem %s0, 6
    %v48 = vld [vmem:[%s47] sm:$0x1]
    %49 = vrot.lane.b32.xlu0 %v48, 36
    %v50 = vpop.permute.xlu0 %49
    %vm51 = vcmask 343328
    %52 = vst.msk [vmem:[#allocation0] sm:$0x1] %vm51, %v50
    %s53 = scalar_lea.vmem %s0, 5
    %v54 = vld [vmem:[%s53] sm:$0x1]
    %55 = vrot.lane.b32.xlu0 %v54, 30
    %v56 = vpop.permute.xlu0 %55
    %vm57 = vcmask 294128
    %58 = vst.msk [vmem:[#allocation0] sm:$0x1] %vm57, %v56
    %s59 = scalar_lea.vmem %s0, 4
    %v60 = vld [vmem:[%s59] sm:$0x1]
    %61 = vrot.lane.b32.xlu0 %v60, 24
    %v62 = vpop.permute.xlu0 %61
    %vm63 = vcmask 244928
    %64 = vst.msk [vmem:[#allocation0] sm:$0x1] %vm63, %v62
    %s65 = scalar_lea.vmem %s0, 3
    %v66 = vld [vmem:[%s65] sm:$0x1]
    %67 = vrot.lane.b32.xlu0 %v66, 18
    %v68 = vpop.permute.xlu0 %67
    %vm69 = vcmask 195728
    %70 = vst.msk [vmem:[#allocation0] sm:$0x1] %vm69, %v68
    %s71 = scalar_lea.vmem %s0, 2
    %v72 = vld [vmem:[%s71] sm:$0x1]
    %73 = vrot.lane.b32.xlu0 %v72, 12
    %v74 = vpop.permute.xlu0 %73
    %vm75 = vcmask 146528
    %76 = vst.msk [vmem:[#allocation0] sm:$0x1] %vm75, %v74
    %s77 = scalar_lea.vmem %s0, 1
    %v78 = vld [vmem:[%s77] sm:$0x1]
    %79 = vrot.lane.b32.xlu0 %v78, 6
    %v80 = vpop.permute.xlu0 %79
    %vm81 = vcmask 97328
    %82 = vst.msk [vmem:[#allocation0] sm:$0x1] %vm81, %v80
    %s84 = ssub.s32 2, 1
    %v85 = vld [vmem:[#allocation0] sm:%s84]
    %s87 = ssub.s32 2, 1
    %88 = vst [vmem:[%s1] sm:%s87] %v85

// kernel: tile.18
$region0: #{tile.18}
  #allocation0 [shape = 's32[1]{0}', space=sflag, size = 0x4, scoped, tag = 'scoped memory for tile.18']
  %s0 = inlined_call_operand.vmem [shape: f32[16], index: 0, kind: input, shape index: {}]
  %s1 = inlined_call_operand.vmem [shape: f32[5,16], index: 1, kind: output, shape index: {}]
  // Predicated region
  $region2: #{tile.18} parent=0 // pred_check
    _
  $region3: #{tile.18} parent=0 // pred_check_branch
    %3 = sbr.rel (0) target = $region5
  $region4: #{tile.18} parent=0 // pred_region
    _
  $region5: #{tile.18} parent=0 // pred_fallthru
    _
  %v4 = vld [vmem:[%s0] ss:$0 sm:$0xff]
  %5 = vst [vmem:[%s1] sm:$0xff] %v4

// kernel: tile.19
$region0: #{tile.19}
  %s0 = inlined_call_operand.vmem [shape: f32[5,16], index: 0, kind: input, shape index: {}]
  %s1 = inlined_call_operand.vmem [shape: f32[1,80], index: 1, kind: output, shape index: {}]
  $region1: #{tile.19} parent=0
    #allocation0 [shape = 'u8[4096]{0}', space=vmem, size = 0x1000, scoped, tag = 'scoped mem for output reshape']
    %v2 = vld [vmem:[%s0] sm:$0x1]
    %vm3 = vcmask 130048
    %4 = vst.msk [vmem:[#allocation0] sm:$0x1] %vm3, %v2
    %s5 = scalar_lea.vmem %s0, 4
    %v6 = vld [vmem:[%s5] sm:$0x1]
    %7 = vrot.lane.b32.xlu0 %v6, 64
    %v8 = vpop.permute.xlu0 %7
    %vm9 = vcmask 654848
    %10 = vst.msk [vmem:[#allocation0] sm:$0x1] %vm9, %v8
    %s11 = scalar_lea.vmem %s0, 3
    %v12 = vld [vmem:[%s11] sm:$0x1]
    %13 = vrot.lane.b32.xlu0 %v12, 48
    %v14 = vpop.permute.xlu0 %13
    %vm15 = vcmask 523648
    %16 = vst.msk [vmem:[#allocation0] sm:$0x1] %vm15, %v14
    %s17 = scalar_lea.vmem %s0, 2
    %v18 = vld [vmem:[%s17] sm:$0x1]
    %19 = vrot.lane.b32.xlu0 %v18, 32
    %v20 = vpop.permute.xlu0 %19
    %vm21 = vcmask 392448
    %22 = vst.msk [vmem:[#allocation0] sm:$0x1] %vm21, %v20
    %s23 = scalar_lea.vmem %s0, 1
    %v24 = vld [vmem:[%s23] sm:$0x1]
    %25 = vrot.lane.b32.xlu0 %v24, 16
    %v26 = vpop.permute.xlu0 %25
    %vm27 = vcmask 261248
    %28 = vst.msk [vmem:[#allocation0] sm:$0x1] %vm27, %v26
    %s30 = ssub.s32 2, 1
    %v31 = vld [vmem:[#allocation0] sm:%s30]
    %s33 = ssub.s32 2, 1
    %34 = vst [vmem:[%s1] sm:%s33] %v31

// kernel: lenet5_curve_forward.1
$region0: #{lenet5_curve_forward.1}
  #allocation0 [shape = 'u32[]', space=smem, size = 0x4, offset = 0x4, fixed_abs, tag = 'smem constant byte address 0x4 - core index']
  #allocation1 [shape = 'u32[72,128]{1,0:T(1,128)}', space=vmem, size = 0x9000, scoped, tag = 'internal scratch']
  #allocation2 [shape = 'bf16[2,7,16,84]{3,2,1,0:T(8,128)(2,1)}', space=vmem, size = 0xe000, scoped, tag = 'scratch operand']
  #allocation3 [shape = 'bf16[5,16,80]{2,1,0:T(8,128)(2,1)}', space=vmem, size = 0x5000, scoped, tag = 'scratch operand']
  %s0 = inlined_call_operand.vmem [shape: bf16[4,8,16,32], index: 0, kind: input, shape index: {}]
  %s1 = inlined_call_operand.vmem [shape: bf16[10,32,84], index: 1, kind: input, shape index: {}]
  %s2 = inlined_call_operand.vmem [shape: f32[1,84], index: 2, kind: input, shape index: {}]
  %s3 = inlined_call_operand.vmem [shape: bf16[10,84,80], index: 3, kind: input, shape index: {}]
  %s4 = inlined_call_operand.vmem [shape: f32[1,80], index: 4, kind: input, shape index: {}]
  %s5 = inlined_call_operand.vmem [shape: bf16[5,80,128], index: 5, kind: input, shape index: {}]
  %s6 = inlined_call_operand.vmem [shape: f32[1,128], index: 6, kind: input, shape index: {}]
  %s7 = inlined_call_operand.vmem [shape: bf16[128,128], index: 7, kind: input, shape index: {}]
  %s8 = inlined_call_operand.vmem [shape: f32[1,128], index: 8, kind: input, shape index: {}]
  %s9 = inlined_call_operand.vmem [shape: bf16[128,128], index: 9, kind: input, shape index: {}]
  %s10 = inlined_call_operand.vmem [shape: f32[1,128], index: 10, kind: input, shape index: {}]
  %s11 = inlined_call_operand.vmem [shape: f32[16,128], index: 11, kind: output, shape index: {}]
  %s12 = sld [smem:[#allocation0]]
  $region54: #{lenet5_curve_forward.1} parent=0
    _
  %s14 = ssub.s32 1, %s12
  %s15 = scalar_select 0, %s14, %s12
  // Predicated region
  $region2: #{lenet5_curve_forward.1} parent=0 // pred_check
    _
  $region3: #{lenet5_curve_forward.1} parent=0 // pred_check_branch
    %17 = sbr.rel (0) target = $region5
  $region4: #{lenet5_curve_forward.1} parent=0 // pred_region
    _
  $region5: #{lenet5_curve_forward.1} parent=0 // pred_fallthru
    _
  // Predicated region
  $region6: #{lenet5_curve_forward.1} parent=0 // pred_check
    _
  $region7: #{lenet5_curve_forward.1} parent=0 // pred_check_branch
    %19 = sbr.rel (0) target = $region9
  $region8: #{lenet5_curve_forward.1} parent=0 // pred_region
    _
  $region9: #{lenet5_curve_forward.1} parent=0 // pred_fallthru
    _
  // Predicated region
  $region10: #{lenet5_curve_forward.1} parent=0 // pred_check
    _
  $region11: #{lenet5_curve_forward.1} parent=0 // pred_check_branch
    %21 = sbr.rel (0) target = $region13
  $region12: #{lenet5_curve_forward.1} parent=0 // pred_region
    _
  $region13: #{lenet5_curve_forward.1} parent=0 // pred_fallthru
    _
  // Predicated region
  $region14: #{lenet5_curve_forward.1} parent=0 // pred_check
    _
  $region15: #{lenet5_curve_forward.1} parent=0 // pred_check_branch
    %23 = sbr.rel (0) target = $region17
  $region16: #{lenet5_curve_forward.1} parent=0 // pred_region
    _
  $region17: #{lenet5_curve_forward.1} parent=0 // pred_fallthru
    _
  // Predicated region
  $region18: #{lenet5_curve_forward.1} parent=0 // pred_check
    _
  $region19: #{lenet5_curve_forward.1} parent=0 // pred_check_branch
    %25 = sbr.rel (0) target = $region21
  $region20: #{lenet5_curve_forward.1} parent=0 // pred_region
    _
  $region21: #{lenet5_curve_forward.1} parent=0 // pred_fallthru
    _
  // Predicated region
  $region22: #{lenet5_curve_forward.1} parent=0 // pred_check
    _
  $region23: #{lenet5_curve_forward.1} parent=0 // pred_check_branch
    %27 = sbr.rel (0) target = $region25
  $region24: #{lenet5_curve_forward.1} parent=0 // pred_region
    _
  $region25: #{lenet5_curve_forward.1} parent=0 // pred_fallthru
    _
  // Predicated region
  $region26: #{lenet5_curve_forward.1} parent=0 // pred_check
    _
  $region27: #{lenet5_curve_forward.1} parent=0 // pred_check_branch
    %29 = sbr.rel (0) target = $region29
  $region28: #{lenet5_curve_forward.1} parent=0 // pred_region
    _
  $region29: #{lenet5_curve_forward.1} parent=0 // pred_fallthru
    _
  // Predicated region
  $region30: #{lenet5_curve_forward.1} parent=0 // pred_check
    _
  $region31: #{lenet5_curve_forward.1} parent=0 // pred_check_branch
    %31 = sbr.rel (0) target = $region33
  $region32: #{lenet5_curve_forward.1} parent=0 // pred_region
    _
  $region33: #{lenet5_curve_forward.1} parent=0 // pred_fallthru
    _
  // Predicated region
  $region34: #{lenet5_curve_forward.1} parent=0 // pred_check
    _
  $region35: #{lenet5_curve_forward.1} parent=0 // pred_check_branch
    %33 = sbr.rel (0) target = $region37
  $region36: #{lenet5_curve_forward.1} parent=0 // pred_region
    _
  $region37: #{lenet5_curve_forward.1} parent=0 // pred_fallthru
    _
  // Predicated region
  $region38: #{lenet5_curve_forward.1} parent=0 // pred_check
    _
  $region39: #{lenet5_curve_forward.1} parent=0 // pred_check_branch
    %35 = sbr.rel (0) target = $region41
  $region40: #{lenet5_curve_forward.1} parent=0 // pred_region
    _
  $region41: #{lenet5_curve_forward.1} parent=0 // pred_fallthru
    _
  // Predicated region
  $region42: #{lenet5_curve_forward.1} parent=0 // pred_check
    _
  $region43: #{lenet5_curve_forward.1} parent=0 // pred_check_branch
    %37 = sbr.rel (0) target = $region45
  $region44: #{lenet5_curve_forward.1} parent=0 // pred_region
    _
  $region45: #{lenet5_curve_forward.1} parent=0 // pred_fallthru
    _
  %v39 = vld [vmem:[%s0] sm:$0xf]
  %v40 = vld [vmem:[%s0 + $0x4] sm:$0xf]
  %v41 = vld [vmem:[%s0 + $0x8] sm:$0xf]
  %v42 = vld [vmem:[%s0 + $0xc] sm:$0xf]
  %v43 = vld [vmem:[%s0 + $0x10] sm:$0xf]
  %v44 = vld [vmem:[%s0 + $0x14] sm:$0xf]
  %v45 = vld [vmem:[%s0 + $0x18] sm:$0xf]
  %v46 = vld [vmem:[%s0 + $0x1c] sm:$0xf]
  %v47 = vld [vmem:[%s0 + $0x20] sm:$0xf]
  %v48 = vld [vmem:[%s0 + $0x24] sm:$0xf]
  %v49 = vld [vmem:[%s0 + $0x28] sm:$0xf]
  %v50 = vld [vmem:[%s0 + $0x2c] sm:$0xf]
  %v51 = vld [vmem:[%s0 + $0x30] sm:$0xf]
  %v52 = vld [vmem:[%s0 + $0x34] sm:$0xf]
  %v53 = vld [vmem:[%s1] sm:$0xf]
  %v54 = vld [vmem:[%s1 + $0x4] sm:$0xf]
  %v55 = vld [vmem:[%s1 + $0x8] sm:$0xf]
  %v56 = vld [vmem:[%s1 + $0xc] sm:$0xf]
  %s57 = scalar_lea.vmem %s0, 64
  %v58 = vld [vmem:[%s57] sm:$0xf]
  %v59 = vld [vmem:[%s57 + $0x4] sm:$0xf]
  %v60 = vld [vmem:[%s57 + $0x8] sm:$0xf]
  %v61 = vld [vmem:[%s57 + $0xc] sm:$0xf]
  %v62 = vld [vmem:[%s57 + $0x10] sm:$0xf]
  %v63 = vld [vmem:[%s57 + $0x14] sm:$0xf]
  %v64 = vld [vmem:[%s57 + $0x18] sm:$0xf]
  %v65 = vld [vmem:[%s57 + $0x1c] sm:$0xf]
  %v66 = vld [vmem:[%s57 + $0x20] sm:$0xf]
  %v67 = vld [vmem:[%s57 + $0x24] sm:$0xf]
  %v68 = vld [vmem:[%s57 + $0x28] sm:$0xf]
  %v69 = vld [vmem:[%s57 + $0x2c] sm:$0xf]
  %v70 = vld [vmem:[%s57 + $0x30] sm:$0xf]
  %v71 = vld [vmem:[%s57 + $0x34] sm:$0xf]
  %s72 = scalar_lea.vmem %s1, 32
  %v73 = vld [vmem:[%s72] sm:$0xf]
  %v74 = vld [vmem:[%s72 + $0x4] sm:$0xf]
  %v75 = vld [vmem:[%s72 + $0x8] sm:$0xf]
  %v76 = vld [vmem:[%s72 + $0xc] sm:$0xf]
  %v91 = vunpack.c.l.b16 %v58
  %v92 = vunpack.c.l.b16 %v59
  %v93 = vunpack.c.l.b16 %v60
  %v94 = vunpack.c.l.b16 %v61
  %v95 = vunpack.c.l.b16 %v62
  %v96 = vunpack.c.l.b16 %v63
  %v97 = vunpack.c.l.b16 %v64
  %v98 = vunpack.c.l.b16 %v65
  %v99 = vunpack.c.l.b16 %v66
  %v100 = vunpack.c.l.b16 %v67
  %v101 = vunpack.c.l.b16 %v68
  %v102 = vunpack.c.l.b16 %v69
  %v103 = vunpack.c.l.b16 %v70
  %v104 = vunpack.c.l.b16 %v71
  %v105 = vpack.c.b16 %v92, %v91
  %v106 = vpack.c.b16 %v94, %v93
  %v107 = vpack.c.b16 %v96, %v95
  %v108 = vpack.c.b16 %v98, %v97
  %v109 = vpack.c.b16 %v100, %v99
  %v110 = vpack.c.b16 %v102, %v101
  %v111 = vpack.c.b16 %v104, %v103
  %v116 = vunpack.c.l.b16 %v73
  %v117 = vunpack.c.l.b16 %v74
  %v118 = vunpack.c.l.b16 %v75
  %v119 = vunpack.c.l.b16 %v76
  %v120 = vpack.c.b16 %v117, %v116
  %v121 = vpack.c.b16 %v119, %v118
  %vm124 = vcmask 261120
  %v126 = vsel %vm124, %v105, 0
  %v129 = vsel %vm124, %v106, 0
  %v132 = vsel %vm124, %v107, 0
  %v135 = vsel %vm124, %v108, 0
  %v138 = vsel %vm124, %v109, 0
  %v141 = vsel %vm124, %v110, 0
  %v144 = vsel %vm124, %v111, 0
  %146 = vmatpush.bf16.msra.mxu0 0
  %147 = vmatpush.bf16.msra.mxu0 0
  %148 = vmatpush.bf16.msra.mxu0 0
  %149 = vmatpush.bf16.msra.mxu0 0
  %150 = vmatpush.bf16.msra.mxu0 0
  %151 = vmatpush.bf16.msra.mxu0 0
  %152 = vmatpush.bf16.msra.mxu0 %v121
  %153 = vmatpush.bf16.msra.mxu0 %v120
  %154 = vmatmul.bf16.gmra.mxu0 %v126
  %v155 = vpop.f32.mrf.mxu0
  %v156 = vadd.f32 0.0, %v155
  %v157 = vpop.f32.mrf.mxu0
  %v158 = vadd.f32 0.0, %v157
  %159 = vmatmul.bf16.gmra.mxu0 %v129
  %v160 = vpop.f32.mrf.mxu0
  %v161 = vadd.f32 0.0, %v160
  %v162 = vpop.f32.mrf.mxu0
  %v163 = vadd.f32 0.0, %v162
  %164 = vmatmul.bf16.gmra.mxu0 %v132
  %v165 = vpop.f32.mrf.mxu0
  %v166 = vadd.f32 0.0, %v165
  %v167 = vpop.f32.mrf.mxu0
  %v168 = vadd.f32 0.0, %v167
  %169 = vmatmul.bf16.gmra.mxu0 %v135
  %v170 = vpop.f32.mrf.mxu0
  %v171 = vadd.f32 0.0, %v170
  %v172 = vpop.f32.mrf.mxu0
  %v173 = vadd.f32 0.0, %v172
  %174 = vmatmul.bf16.gmra.mxu0 %v138
  %v175 = vpop.f32.mrf.mxu0
  %v176 = vadd.f32 0.0, %v175
  %v177 = vpop.f32.mrf.mxu0
  %v178 = vadd.f32 0.0, %v177
  %179 = vmatmul.bf16.gmra.mxu0 %v141
  %v180 = vpop.f32.mrf.mxu0
  %v181 = vadd.f32 0.0, %v180
  %v182 = vpop.f32.mrf.mxu0
  %v183 = vadd.f32 0.0, %v182
  %184 = vmatmul.bf16.gmra.mxu0 %v144
  %v185 = vpop.f32.mrf.mxu0
  %v186 = vadd.f32 0.0, %v185
  %v187 = vpop.f32.mrf.mxu0
  %v188 = vadd.f32 0.0, %v187
  %189 = vdwg.mxu0
  %v204 = vunpack.c.l.b16 %v39
  %v205 = vunpack.c.l.b16 %v40
  %v206 = vunpack.c.l.b16 %v41
  %v207 = vunpack.c.l.b16 %v42
  %v208 = vunpack.c.l.b16 %v43
  %v209 = vunpack.c.l.b16 %v44
  %v210 = vunpack.c.l.b16 %v45
  %v211 = vunpack.c.l.b16 %v46
  %v212 = vunpack.c.l.b16 %v47
  %v213 = vunpack.c.l.b16 %v48
  %v214 = vunpack.c.l.b16 %v49
  %v215 = vunpack.c.l.b16 %v50
  %v216 = vunpack.c.l.b16 %v51
  %v217 = vunpack.c.l.b16 %v52
  %v218 = vpack.c.b16 %v205, %v204
  %v219 = vpack.c.b16 %v207, %v206
  %v220 = vpack.c.b16 %v209, %v208
  %v221 = vpack.c.b16 %v211, %v210
  %v222 = vpack.c.b16 %v213, %v212
  %v223 = vpack.c.b16 %v215, %v214
  %v224 = vpack.c.b16 %v217, %v216
  %v229 = vunpack.c.l.b16 %v53
  %v230 = vunpack.c.l.b16 %v54
  %v231 = vunpack.c.l.b16 %v55
  %v232 = vunpack.c.l.b16 %v56
  %v233 = vpack.c.b16 %v230, %v229
  %v234 = vpack.c.b16 %v232, %v231
  %v238 = vsel %vm124, %v218, 0
  %v241 = vsel %vm124, %v219, 0
  %v244 = vsel %vm124, %v220, 0
  %v247 = vsel %vm124, %v221, 0
  %v250 = vsel %vm124, %v222, 0
  %v253 = vsel %vm124, %v223, 0
  %v256 = vsel %vm124, %v224, 0
  %258 = vmatpush.bf16.msra.mxu0 0
  %259 = vmatpush.bf16.msra.mxu0 0
  %260 = vmatpush.bf16.msra.mxu0 0
  %261 = vmatpush.bf16.msra.mxu0 0
  %262 = vmatpush.bf16.msra.mxu0 0
  %263 = vmatpush.bf16.msra.mxu0 0
  %264 = vmatpush.bf16.msra.mxu0 %v234
  %265 = vmatpush.bf16.msra.mxu0 %v233
  %266 = vmatmul.bf16.gmra.mxu0 %v238
  %v267 = vpop.f32.mrf.mxu0
  %v268 = vadd.f32 %v156, %v267
  %v269 = vpop.f32.mrf.mxu0
  %v270 = vadd.f32 %v158, %v269
  %271 = vmatmul.bf16.gmra.mxu0 %v241
  %v272 = vpop.f32.mrf.mxu0
  %v273 = vadd.f32 %v161, %v272
  %v274 = vpop.f32.mrf.mxu0
  %v275 = vadd.f32 %v163, %v274
  %276 = vmatmul.bf16.gmra.mxu0 %v244
  %v277 = vpop.f32.mrf.mxu0
  %v278 = vadd.f32 %v166, %v277
  %v279 = vpop.f32.mrf.mxu0
  %v280 = vadd.f32 %v168, %v279
  %281 = vmatmul.bf16.gmra.mxu0 %v247
  %v282 = vpop.f32.mrf.mxu0
  %v283 = vadd.f32 %v171, %v282
  %v284 = vpop.f32.mrf.mxu0
  %v285 = vadd.f32 %v173, %v284
  %286 = vmatmul.bf16.gmra.mxu0 %v250
  %v287 = vpop.f32.mrf.mxu0
  %v288 = vadd.f32 %v176, %v287
  %v289 = vpop.f32.mrf.mxu0
  %v290 = vadd.f32 %v178, %v289
  %291 = vmatmul.bf16.gmra.mxu0 %v253
  %v292 = vpop.f32.mrf.mxu0
  %v293 = vadd.f32 %v181, %v292
  %v294 = vpop.f32.mrf.mxu0
  %v295 = vadd.f32 %v183, %v294
  %296 = vmatmul.bf16.gmra.mxu0 %v256
  %v297 = vpop.f32.mrf.mxu0
  %v298 = vadd.f32 %v186, %v297
  %v299 = vpop.f32.mrf.mxu0
  %v300 = vadd.f32 %v188, %v299
  %301 = vdwg.mxu0
  %s302 = scalar_lea.vmem %s0, 128
  %v303 = vld [vmem:[%s302] sm:$0xf]
  %v304 = vld [vmem:[%s302 + $0x4] sm:$0xf]
  %v305 = vld [vmem:[%s302 + $0x8] sm:$0xf]
  %v306 = vld [vmem:[%s302 + $0xc] sm:$0xf]
  %v307 = vld [vmem:[%s302 + $0x10] sm:$0xf]
  %v308 = vld [vmem:[%s302 + $0x14] sm:$0xf]
  %v309 = vld [vmem:[%s302 + $0x18] sm:$0xf]
  %v310 = vld [vmem:[%s302 + $0x1c] sm:$0xf]
  %v311 = vld [vmem:[%s302 + $0x20] sm:$0xf]
  %v312 = vld [vmem:[%s302 + $0x24] sm:$0xf]
  %v313 = vld [vmem:[%s302 + $0x28] sm:$0xf]
  %v314 = vld [vmem:[%s302 + $0x2c] sm:$0xf]
  %v315 = vld [vmem:[%s302 + $0x30] sm:$0xf]
  %v316 = vld [vmem:[%s302 + $0x34] sm:$0xf]
  %s317 = scalar_lea.vmem %s1, 64
  %v318 = vld [vmem:[%s317] sm:$0xf]
  %v319 = vld [vmem:[%s317 + $0x4] sm:$0xf]
  %v320 = vld [vmem:[%s317 + $0x8] sm:$0xf]
  %v321 = vld [vmem:[%s317 + $0xc] sm:$0xf]
  %v336 = vunpack.c.l.b16 %v303
  %v337 = vunpack.c.l.b16 %v304
  %v338 = vunpack.c.l.b16 %v305
  %v339 = vunpack.c.l.b16 %v306
  %v340 = vunpack.c.l.b16 %v307
  %v341 = vunpack.c.l.b16 %v308
  %v342 = vunpack.c.l.b16 %v309
  %v343 = vunpack.c.l.b16 %v310
  %v344 = vunpack.c.l.b16 %v311
  %v345 = vunpack.c.l.b16 %v312
  %v346 = vunpack.c.l.b16 %v313
  %v347 = vunpack.c.l.b16 %v314
  %v348 = vunpack.c.l.b16 %v315
  %v349 = vunpack.c.l.b16 %v316
  %v350 = vpack.c.b16 %v337, %v336
  %v351 = vpack.c.b16 %v339, %v338
  %v352 = vpack.c.b16 %v341, %v340
  %v353 = vpack.c.b16 %v343, %v342
  %v354 = vpack.c.b16 %v345, %v344
  %v355 = vpack.c.b16 %v347, %v346
  %v356 = vpack.c.b16 %v349, %v348
  %v361 = vunpack.c.l.b16 %v318
  %v362 = vunpack.c.l.b16 %v319
  %v363 = vunpack.c.l.b16 %v320
  %v364 = vunpack.c.l.b16 %v321
  %v365 = vpack.c.b16 %v362, %v361
  %v366 = vpack.c.b16 %v364, %v363
  %v370 = vsel %vm124, %v350, 0
  %v373 = vsel %vm124, %v351, 0
  %v376 = vsel %vm124, %v352, 0
  %v379 = vsel %vm124, %v353, 0
  %v382 = vsel %vm124, %v354, 0
  %v385 = vsel %vm124, %v355, 0
  %v388 = vsel %vm124, %v356, 0
  %390 = vmatpush.bf16.msra.mxu0 0
  %391 = vmatpush.bf16.msra.mxu0 0
  %392 = vmatpush.bf16.msra.mxu0 0
  %393 = vmatpush.bf16.msra.mxu0 0
  %394 = vmatpush.bf16.msra.mxu0 0
  %395 = vmatpush.bf16.msra.mxu0 0
  %396 = vmatpush.bf16.msra.mxu0 %v366
  %397 = vmatpush.bf16.msra.mxu0 %v365
  %398 = vmatmul.bf16.gmra.mxu0 %v370
  %v399 = vpop.f32.mrf.mxu0
  %v400 = vadd.f32 0.0, %v399
  %v401 = vpop.f32.mrf.mxu0
  %v402 = vadd.f32 0.0, %v401
  %403 = vmatmul.bf16.gmra.mxu0 %v373
  %v404 = vpop.f32.mrf.mxu0
  %v405 = vadd.f32 0.0, %v404
  %v406 = vpop.f32.mrf.mxu0
  %v407 = vadd.f32 0.0, %v406
  %408 = vmatmul.bf16.gmra.mxu0 %v376
  %v409 = vpop.f32.mrf.mxu0
  %v410 = vadd.f32 0.0, %v409
  %v411 = vpop.f32.mrf.mxu0
  %v412 = vadd.f32 0.0, %v411
  %413 = vmatmul.bf16.gmra.mxu0 %v379
  %v414 = vpop.f32.mrf.mxu0
  %v415 = vadd.f32 0.0, %v414
  %v416 = vpop.f32.mrf.mxu0
  %v417 = vadd.f32 0.0, %v416
  %418 = vmatmul.bf16.gmra.mxu0 %v382
  %v419 = vpop.f32.mrf.mxu0
  %v420 = vadd.f32 0.0, %v419
  %v421 = vpop.f32.mrf.mxu0
  %v422 = vadd.f32 0.0, %v421
  %423 = vmatmul.bf16.gmra.mxu0 %v385
  %v424 = vpop.f32.mrf.mxu0
  %v425 = vadd.f32 0.0, %v424
  %v426 = vpop.f32.mrf.mxu0
  %v427 = vadd.f32 0.0, %v426
  %428 = vmatmul.bf16.gmra.mxu0 %v388
  %v429 = vpop.f32.mrf.mxu0
  %v430 = vadd.f32 0.0, %v429
  %v431 = vpop.f32.mrf.mxu0
  %v432 = vadd.f32 0.0, %v431
  %433 = vdwg.mxu0
  %v434 = vadd.f32 %v268, %v400
  %v435 = vadd.f32 %v270, %v402
  %v436 = vadd.f32 %v273, %v405
  %v437 = vadd.f32 %v275, %v407
  %v438 = vadd.f32 %v278, %v410
  %v439 = vadd.f32 %v280, %v412
  %v440 = vadd.f32 %v283, %v415
  %v441 = vadd.f32 %v285, %v417
  %v442 = vadd.f32 %v288, %v420
  %v443 = vadd.f32 %v290, %v422
  %v444 = vadd.f32 %v293, %v425
  %v445 = vadd.f32 %v295, %v427
  %v446 = vadd.f32 %v298, %v430
  %v447 = vadd.f32 %v300, %v432
  %s448 = scalar_lea.vmem %s0, 192
  %v449 = vld [vmem:[%s448] sm:$0xf]
  %v450 = vld [vmem:[%s448 + $0x4] sm:$0xf]
  %v451 = vld [vmem:[%s448 + $0x8] sm:$0xf]
  %v452 = vld [vmem:[%s448 + $0xc] sm:$0xf]
  %v453 = vld [vmem:[%s448 + $0x10] sm:$0xf]
  %v454 = vld [vmem:[%s448 + $0x14] sm:$0xf]
  %v455 = vld [vmem:[%s448 + $0x18] sm:$0xf]
  %v456 = vld [vmem:[%s448 + $0x1c] sm:$0xf]
  %v457 = vld [vmem:[%s448 + $0x20] sm:$0xf]
  %v458 = vld [vmem:[%s448 + $0x24] sm:$0xf]
  %v459 = vld [vmem:[%s448 + $0x28] sm:$0xf]
  %v460 = vld [vmem:[%s448 + $0x2c] sm:$0xf]
  %v461 = vld [vmem:[%s448 + $0x30] sm:$0xf]
  %v462 = vld [vmem:[%s448 + $0x34] sm:$0xf]
  %s463 = scalar_lea.vmem %s1, 96
  %v464 = vld [vmem:[%s463] sm:$0xf]
  %v465 = vld [vmem:[%s463 + $0x4] sm:$0xf]
  %v466 = vld [vmem:[%s463 + $0x8] sm:$0xf]
  %v467 = vld [vmem:[%s463 + $0xc] sm:$0xf]
  %v482 = vunpack.c.l.b16 %v449
  %v483 = vunpack.c.l.b16 %v450
  %v484 = vunpack.c.l.b16 %v451
  %v485 = vunpack.c.l.b16 %v452
  %v486 = vunpack.c.l.b16 %v453
  %v487 = vunpack.c.l.b16 %v454
  %v488 = vunpack.c.l.b16 %v455
  %v489 = vunpack.c.l.b16 %v456
  %v490 = vunpack.c.l.b16 %v457
  %v491 = vunpack.c.l.b16 %v458
  %v492 = vunpack.c.l.b16 %v459
  %v493 = vunpack.c.l.b16 %v460
  %v494 = vunpack.c.l.b16 %v461
  %v495 = vunpack.c.l.b16 %v462
  %v496 = vpack.c.b16 %v483, %v482
  %v497 = vpack.c.b16 %v485, %v484
  %v498 = vpack.c.b16 %v487, %v486
  %v499 = vpack.c.b16 %v489, %v488
  %v500 = vpack.c.b16 %v491, %v490
  %v501 = vpack.c.b16 %v493, %v492
  %v502 = vpack.c.b16 %v495, %v494
  %v507 = vunpack.c.l.b16 %v464
  %v508 = vunpack.c.l.b16 %v465
  %v509 = vunpack.c.l.b16 %v466
  %v510 = vunpack.c.l.b16 %v467
  %v511 = vpack.c.b16 %v508, %v507
  %v512 = vpack.c.b16 %v510, %v509
  %v516 = vsel %vm124, %v496, 0
  %v519 = vsel %vm124, %v497, 0
  %v522 = vsel %vm124, %v498, 0
  %v525 = vsel %vm124, %v499, 0
  %v528 = vsel %vm124, %v500, 0
  %v531 = vsel %vm124, %v501, 0
  %v534 = vsel %vm124, %v502, 0
  %536 = vmatpush.bf16.msra.mxu0 0
  %537 = vmatpush.bf16.msra.mxu0 0
  %538 = vmatpush.bf16.msra.mxu0 0
  %539 = vmatpush.bf16.msra.mxu0 0
  %540 = vmatpush.bf16.msra.mxu0 0
  %541 = vmatpush.bf16.msra.mxu0 0
  %542 = vmatpush.bf16.msra.mxu0 %v512
  %543 = vmatpush.bf16.msra.mxu0 %v511
  %544 = vmatmul.bf16.gmra.mxu0 %v516
  %v545 = vpop.f32.mrf.mxu0
  %v546 = vadd.f32 0.0, %v545
  %v547 = vpop.f32.mrf.mxu0
  %v548 = vadd.f32 0.0, %v547
  %549 = vmatmul.bf16.gmra.mxu0 %v519
  %v550 = vpop.f32.mrf.mxu0
  %v551 = vadd.f32 0.0, %v550
  %v552 = vpop.f32.mrf.mxu0
  %v553 = vadd.f32 0.0, %v552
  %554 = vmatmul.bf16.gmra.mxu0 %v522
  %v555 = vpop.f32.mrf.mxu0
  %v556 = vadd.f32 0.0, %v555
  %v557 = vpop.f32.mrf.mxu0
  %v558 = vadd.f32 0.0, %v557
  %559 = vmatmul.bf16.gmra.mxu0 %v525
  %v560 = vpop.f32.mrf.mxu0
  %v561 = vadd.f32 0.0, %v560
  %v562 = vpop.f32.mrf.mxu0
  %v563 = vadd.f32 0.0, %v562
  %564 = vmatmul.bf16.gmra.mxu0 %v528
  %v565 = vpop.f32.mrf.mxu0
  %v566 = vadd.f32 0.0, %v565
  %v567 = vpop.f32.mrf.mxu0
  %v568 = vadd.f32 0.0, %v567
  %569 = vmatmul.bf16.gmra.mxu0 %v531
  %v570 = vpop.f32.mrf.mxu0
  %v571 = vadd.f32 0.0, %v570
  %v572 = vpop.f32.mrf.mxu0
  %v573 = vadd.f32 0.0, %v572
  %574 = vmatmul.bf16.gmra.mxu0 %v534
  %v575 = vpop.f32.mrf.mxu0
  %v576 = vadd.f32 0.0, %v575
  %v577 = vpop.f32.mrf.mxu0
  %v578 = vadd.f32 0.0, %v577
  %579 = vdwg.mxu0
  %v580 = vadd.f32 %v434, %v546
  %v581 = vadd.f32 %v435, %v548
  %v582 = vadd.f32 %v436, %v551
  %v583 = vadd.f32 %v437, %v553
  %v584 = vadd.f32 %v438, %v556
  %v585 = vadd.f32 %v439, %v558
  %v586 = vadd.f32 %v440, %v561
  %v587 = vadd.f32 %v441, %v563
  %v588 = vadd.f32 %v442, %v566
  %v589 = vadd.f32 %v443, %v568
  %v590 = vadd.f32 %v444, %v571
  %v591 = vadd.f32 %v445, %v573
  %v592 = vadd.f32 %v446, %v576
  %v593 = vadd.f32 %v447, %v578
  %s594 = scalar_lea.vmem %s0, 8
  %v595 = vld [vmem:[%s594] sm:$0xf]
  %v596 = vld [vmem:[%s594 + $0x4] sm:$0xf]
  %v597 = vld [vmem:[%s594 + $0x8] sm:$0xf]
  %v598 = vld [vmem:[%s594 + $0xc] sm:$0xf]
  %v599 = vld [vmem:[%s594 + $0x10] sm:$0xf]
  %v600 = vld [vmem:[%s594 + $0x14] sm:$0xf]
  %v601 = vld [vmem:[%s594 + $0x18] sm:$0xf]
  %v602 = vld [vmem:[%s594 + $0x1c] sm:$0xf]
  %v603 = vld [vmem:[%s594 + $0x20] sm:$0xf]
  %v604 = vld [vmem:[%s594 + $0x24] sm:$0xf]
  %v605 = vld [vmem:[%s594 + $0x28] sm:$0xf]
  %v606 = vld [vmem:[%s594 + $0x2c] sm:$0xf]
  %v607 = vld [vmem:[%s594 + $0x30] sm:$0xf]
  %v608 = vld [vmem:[%s594 + $0x34] sm:$0xf]
  %s609 = scalar_lea.vmem %s1, 128
  %v610 = vld [vmem:[%s609] sm:$0xf]
  %v611 = vld [vmem:[%s609 + $0x4] sm:$0xf]
  %v612 = vld [vmem:[%s609 + $0x8] sm:$0xf]
  %v613 = vld [vmem:[%s609 + $0xc] sm:$0xf]
  %v628 = vunpack.c.l.b16 %v595
  %v629 = vunpack.c.l.b16 %v596
  %v630 = vunpack.c.l.b16 %v597
  %v631 = vunpack.c.l.b16 %v598
  %v632 = vunpack.c.l.b16 %v599
  %v633 = vunpack.c.l.b16 %v600
  %v634 = vunpack.c.l.b16 %v601
  %v635 = vunpack.c.l.b16 %v602
  %v636 = vunpack.c.l.b16 %v603
  %v637 = vunpack.c.l.b16 %v604
  %v638 = vunpack.c.l.b16 %v605
  %v639 = vunpack.c.l.b16 %v606
  %v640 = vunpack.c.l.b16 %v607
  %v641 = vunpack.c.l.b16 %v608
  %v642 = vpack.c.b16 %v629, %v628
  %v643 = vpack.c.b16 %v631, %v630
  %v644 = vpack.c.b16 %v633, %v632
  %v645 = vpack.c.b16 %v635, %v634
  %v646 = vpack.c.b16 %v637, %v636
  %v647 = vpack.c.b16 %v639, %v638
  %v648 = vpack.c.b16 %v641, %v640
  %v653 = vunpack.c.l.b16 %v610
  %v654 = vunpack.c.l.b16 %v611
  %v655 = vunpack.c.l.b16 %v612
  %v656 = vunpack.c.l.b16 %v613
  %v657 = vpack.c.b16 %v654, %v653
  %v658 = vpack.c.b16 %v656, %v655
  %v662 = vsel %vm124, %v642, 0
  %v665 = vsel %vm124, %v643, 0
  %v668 = vsel %vm124, %v644, 0
  %v671 = vsel %vm124, %v645, 0
  %v674 = vsel %vm124, %v646, 0
  %v677 = vsel %vm124, %v647, 0
  %v680 = vsel %vm124, %v648, 0
  %682 = vmatpush.bf16.msra.mxu0 0
  %683 = vmatpush.bf16.msra.mxu0 0
  %684 = vmatpush.bf16.msra.mxu0 0
  %685 = vmatpush.bf16.msra.mxu0 0
  %686 = vmatpush.bf16.msra.mxu0 0
  %687 = vmatpush.bf16.msra.mxu0 0
  %688 = vmatpush.bf16.msra.mxu0 %v658
  %689 = vmatpush.bf16.msra.mxu0 %v657
  %690 = vmatmul.bf16.gmra.mxu0 %v662
  %v691 = vpop.f32.mrf.mxu0
  %v692 = vadd.f32 0.0, %v691
  %v693 = vpop.f32.mrf.mxu0
  %v694 = vadd.f32 0.0, %v693
  %695 = vmatmul.bf16.gmra.mxu0 %v665
  %v696 = vpop.f32.mrf.mxu0
  %v697 = vadd.f32 0.0, %v696
  %v698 = vpop.f32.mrf.mxu0
  %v699 = vadd.f32 0.0, %v698
  %700 = vmatmul.bf16.gmra.mxu0 %v668
  %v701 = vpop.f32.mrf.mxu0
  %v702 = vadd.f32 0.0, %v701
  %v703 = vpop.f32.mrf.mxu0
  %v704 = vadd.f32 0.0, %v703
  %705 = vmatmul.bf16.gmra.mxu0 %v671
  %v706 = vpop.f32.mrf.mxu0
  %v707 = vadd.f32 0.0, %v706
  %v708 = vpop.f32.mrf.mxu0
  %v709 = vadd.f32 0.0, %v708
  %710 = vmatmul.bf16.gmra.mxu0 %v674
  %v711 = vpop.f32.mrf.mxu0
  %v712 = vadd.f32 0.0, %v711
  %v713 = vpop.f32.mrf.mxu0
  %v714 = vadd.f32 0.0, %v713
  %715 = vmatmul.bf16.gmra.mxu0 %v677
  %v716 = vpop.f32.mrf.mxu0
  %v717 = vadd.f32 0.0, %v716
  %v718 = vpop.f32.mrf.mxu0
  %v719 = vadd.f32 0.0, %v718
  %720 = vmatmul.bf16.gmra.mxu0 %v680
  %v721 = vpop.f32.mrf.mxu0
  %v722 = vadd.f32 0.0, %v721
  %v723 = vpop.f32.mrf.mxu0
  %v724 = vadd.f32 0.0, %v723
  %725 = vdwg.mxu0
  %v726 = vadd.f32 %v580, %v692
  %v727 = vadd.f32 %v581, %v694
  %v728 = vadd.f32 %v582, %v697
  %v729 = vadd.f32 %v583, %v699
  %v730 = vadd.f32 %v584, %v702
  %v731 = vadd.f32 %v585, %v704
  %v732 = vadd.f32 %v586, %v707
  %v733 = vadd.f32 %v587, %v709
  %v734 = vadd.f32 %v588, %v712
  %v735 = vadd.f32 %v589, %v714
  %v736 = vadd.f32 %v590, %v717
  %v737 = vadd.f32 %v591, %v719
  %v738 = vadd.f32 %v592, %v722
  %v739 = vadd.f32 %v593, %v724
  %s740 = scalar_lea.vmem %s1, 16
  %v741 = vld [vmem:[%s740] sm:$0xf]
  %v742 = vld [vmem:[%s740 + $0x4] sm:$0xf]
  %v743 = vld [vmem:[%s740 + $0x8] sm:$0xf]
  %v744 = vld [vmem:[%s740 + $0xc] sm:$0xf]
  %s745 = scalar_lea.vmem %s1, 48
  %v746 = vld [vmem:[%s745] sm:$0xf]
  %v747 = vld [vmem:[%s745 + $0x4] sm:$0xf]
  %v748 = vld [vmem:[%s745 + $0x8] sm:$0xf]
  %v749 = vld [vmem:[%s745 + $0xc] sm:$0xf]
  %v754 = vunpack.c.l.b16 %v746
  %v755 = vunpack.c.l.b16 %v747
  %v756 = vunpack.c.l.b16 %v748
  %v757 = vunpack.c.l.b16 %v749
  %v758 = vpack.c.b16 %v755, %v754
  %v759 = vpack.c.b16 %v757, %v756
  %762 = vmatpush.bf16.msra.mxu0 0
  %763 = vmatpush.bf16.msra.mxu0 0
  %764 = vmatpush.bf16.msra.mxu0 0
  %765 = vmatpush.bf16.msra.mxu0 0
  %766 = vmatpush.bf16.msra.mxu0 0
  %767 = vmatpush.bf16.msra.mxu0 0
  %768 = vmatpush.bf16.msra.mxu0 %v759
  %769 = vmatpush.bf16.msra.mxu0 %v758
  %770 = vmatmul.bf16.gmra.mxu0 %v126
  %v771 = vpop.f32.mrf.mxu0
  %v772 = vadd.f32 0.0, %v771
  %v773 = vpop.f32.mrf.mxu0
  %v774 = vadd.f32 0.0, %v773
  %775 = vmatmul.bf16.gmra.mxu0 %v129
  %v776 = vpop.f32.mrf.mxu0
  %v777 = vadd.f32 0.0, %v776
  %v778 = vpop.f32.mrf.mxu0
  %v779 = vadd.f32 0.0, %v778
  %780 = vmatmul.bf16.gmra.mxu0 %v132
  %v781 = vpop.f32.mrf.mxu0
  %v782 = vadd.f32 0.0, %v781
  %v783 = vpop.f32.mrf.mxu0
  %v784 = vadd.f32 0.0, %v783
  %785 = vmatmul.bf16.gmra.mxu0 %v135
  %v786 = vpop.f32.mrf.mxu0
  %v787 = vadd.f32 0.0, %v786
  %v788 = vpop.f32.mrf.mxu0
  %v789 = vadd.f32 0.0, %v788
  %790 = vmatmul.bf16.gmra.mxu0 %v138
  %v791 = vpop.f32.mrf.mxu0
  %v792 = vadd.f32 0.0, %v791
  %v793 = vpop.f32.mrf.mxu0
  %v794 = vadd.f32 0.0, %v793
  %795 = vmatmul.bf16.gmra.mxu0 %v141
  %v796 = vpop.f32.mrf.mxu0
  %v797 = vadd.f32 0.0, %v796
  %v798 = vpop.f32.mrf.mxu0
  %v799 = vadd.f32 0.0, %v798
  %800 = vmatmul.bf16.gmra.mxu0 %v144
  %v801 = vpop.f32.mrf.mxu0
  %v802 = vadd.f32 0.0, %v801
  %v803 = vpop.f32.mrf.mxu0
  %v804 = vadd.f32 0.0, %v803
  %805 = vdwg.mxu0
  %v810 = vunpack.c.l.b16 %v741
  %v811 = vunpack.c.l.b16 %v742
  %v812 = vunpack.c.l.b16 %v743
  %v813 = vunpack.c.l.b16 %v744
  %v814 = vpack.c.b16 %v811, %v810
  %v815 = vpack.c.b16 %v813, %v812
  %818 = vmatpush.bf16.msra.mxu0 0
  %819 = vmatpush.bf16.msra.mxu0 0
  %820 = vmatpush.bf16.msra.mxu0 0
  %821 = vmatpush.bf16.msra.mxu0 0
  %822 = vmatpush.bf16.msra.mxu0 0
  %823 = vmatpush.bf16.msra.mxu0 0
  %824 = vmatpush.bf16.msra.mxu0 %v815
  %825 = vmatpush.bf16.msra.mxu0 %v814
  %826 = vmatmul.bf16.gmra.mxu0 %v238
  %v827 = vpop.f32.mrf.mxu0
  %v828 = vadd.f32 %v772, %v827
  %v829 = vpop.f32.mrf.mxu0
  %v830 = vadd.f32 %v774, %v829
  %831 = vmatmul.bf16.gmra.mxu0 %v241
  %v832 = vpop.f32.mrf.mxu0
  %v833 = vadd.f32 %v777, %v832
  %v834 = vpop.f32.mrf.mxu0
  %v835 = vadd.f32 %v779, %v834
  %836 = vmatmul.bf16.gmra.mxu0 %v244
  %v837 = vpop.f32.mrf.mxu0
  %v838 = vadd.f32 %v782, %v837
  %v839 = vpop.f32.mrf.mxu0
  %v840 = vadd.f32 %v784, %v839
  %841 = vmatmul.bf16.gmra.mxu0 %v247
  %v842 = vpop.f32.mrf.mxu0
  %v843 = vadd.f32 %v787, %v842
  %v844 = vpop.f32.mrf.mxu0
  %v845 = vadd.f32 %v789, %v844
  %846 = vmatmul.bf16.gmra.mxu0 %v250
  %v847 = vpop.f32.mrf.mxu0
  %v848 = vadd.f32 %v792, %v847
  %v849 = vpop.f32.mrf.mxu0
  %v850 = vadd.f32 %v794, %v849
  %851 = vmatmul.bf16.gmra.mxu0 %v253
  %v852 = vpop.f32.mrf.mxu0
  %v853 = vadd.f32 %v797, %v852
  %v854 = vpop.f32.mrf.mxu0
  %v855 = vadd.f32 %v799, %v854
  %856 = vmatmul.bf16.gmra.mxu0 %v256
  %v857 = vpop.f32.mrf.mxu0
  %v858 = vadd.f32 %v802, %v857
  %v859 = vpop.f32.mrf.mxu0
  %v860 = vadd.f32 %v804, %v859
  %861 = vdwg.mxu0
  %s862 = scalar_lea.vmem %s1, 80
  %v863 = vld [vmem:[%s862] sm:$0xf]
  %v864 = vld [vmem:[%s862 + $0x4] sm:$0xf]
  %v865 = vld [vmem:[%s862 + $0x8] sm:$0xf]
  %v866 = vld [vmem:[%s862 + $0xc] sm:$0xf]
  %v871 = vunpack.c.l.b16 %v863
  %v872 = vunpack.c.l.b16 %v864
  %v873 = vunpack.c.l.b16 %v865
  %v874 = vunpack.c.l.b16 %v866
  %v875 = vpack.c.b16 %v872, %v871
  %v876 = vpack.c.b16 %v874, %v873
  %879 = vmatpush.bf16.msra.mxu0 0
  %880 = vmatpush.bf16.msra.mxu0 0
  %881 = vmatpush.bf16.msra.mxu0 0
  %882 = vmatpush.bf16.msra.mxu0 0
  %883 = vmatpush.bf16.msra.mxu0 0
  %884 = vmatpush.bf16.msra.mxu0 0
  %885 = vmatpush.bf16.msra.mxu0 %v876
  %886 = vmatpush.bf16.msra.mxu0 %v875
  %887 = vmatmul.bf16.gmra.mxu0 %v370
  %v888 = vpop.f32.mrf.mxu0
  %v889 = vadd.f32 0.0, %v888
  %v890 = vpop.f32.mrf.mxu0
  %v891 = vadd.f32 0.0, %v890
  %892 = vmatmul.bf16.gmra.mxu0 %v373
  %v893 = vpop.f32.mrf.mxu0
  %v894 = vadd.f32 0.0, %v893
  %v895 = vpop.f32.mrf.mxu0
  %v896 = vadd.f32 0.0, %v895
  %897 = vmatmul.bf16.gmra.mxu0 %v376
  %v898 = vpop.f32.mrf.mxu0
  %v899 = vadd.f32 0.0, %v898
  %v900 = vpop.f32.mrf.mxu0
  %v901 = vadd.f32 0.0, %v900
  %902 = vmatmul.bf16.gmra.mxu0 %v379
  %v903 = vpop.f32.mrf.mxu0
  %v904 = vadd.f32 0.0, %v903
  %v905 = vpop.f32.mrf.mxu0
  %v906 = vadd.f32 0.0, %v905
  %907 = vmatmul.bf16.gmra.mxu0 %v382
  %v908 = vpop.f32.mrf.mxu0
  %v909 = vadd.f32 0.0, %v908
  %v910 = vpop.f32.mrf.mxu0
  %v911 = vadd.f32 0.0, %v910
  %912 = vmatmul.bf16.gmra.mxu0 %v385
  %v913 = vpop.f32.mrf.mxu0
  %v914 = vadd.f32 0.0, %v913
  %v915 = vpop.f32.mrf.mxu0
  %v916 = vadd.f32 0.0, %v915
  %917 = vmatmul.bf16.gmra.mxu0 %v388
  %v918 = vpop.f32.mrf.mxu0
  %v919 = vadd.f32 0.0, %v918
  %v920 = vpop.f32.mrf.mxu0
  %v921 = vadd.f32 0.0, %v920
  %922 = vdwg.mxu0
  %v923 = vadd.f32 %v828, %v889
  %v924 = vadd.f32 %v830, %v891
  %v925 = vadd.f32 %v833, %v894
  %v926 = vadd.f32 %v835, %v896
  %v927 = vadd.f32 %v838, %v899
  %v928 = vadd.f32 %v840, %v901
  %v929 = vadd.f32 %v843, %v904
  %v930 = vadd.f32 %v845, %v906
  %v931 = vadd.f32 %v848, %v909
  %v932 = vadd.f32 %v850, %v911
  %v933 = vadd.f32 %v853, %v914
  %v934 = vadd.f32 %v855, %v916
  %v935 = vadd.f32 %v858, %v919
  %v936 = vadd.f32 %v860, %v921
  %s937 = scalar_lea.vmem %s1, 112
  %v938 = vld [vmem:[%s937] sm:$0xf]
  %v939 = vld [vmem:[%s937 + $0x4] sm:$0xf]
  %v940 = vld [vmem:[%s937 + $0x8] sm:$0xf]
  %v941 = vld [vmem:[%s937 + $0xc] sm:$0xf]
  %v946 = vunpack.c.l.b16 %v938
  %v947 = vunpack.c.l.b16 %v939
  %v948 = vunpack.c.l.b16 %v940
  %v949 = vunpack.c.l.b16 %v941
  %v950 = vpack.c.b16 %v947, %v946
  %v951 = vpack.c.b16 %v949, %v948
  %954 = vmatpush.bf16.msra.mxu0 0
  %955 = vmatpush.bf16.msra.mxu0 0
  %956 = vmatpush.bf16.msra.mxu0 0
  %957 = vmatpush.bf16.msra.mxu0 0
  %958 = vmatpush.bf16.msra.mxu0 0
  %959 = vmatpush.bf16.msra.mxu0 0
  %960 = vmatpush.bf16.msra.mxu0 %v951
  %961 = vmatpush.bf16.msra.mxu0 %v950
  %962 = vmatmul.bf16.gmra.mxu0 %v516
  %v963 = vpop.f32.mrf.mxu0
  %v964 = vadd.f32 0.0, %v963
  %v965 = vpop.f32.mrf.mxu0
  %v966 = vadd.f32 0.0, %v965
  %967 = vmatmul.bf16.gmra.mxu0 %v519
  %v968 = vpop.f32.mrf.mxu0
  %v969 = vadd.f32 0.0, %v968
  %v970 = vpop.f32.mrf.mxu0
  %v971 = vadd.f32 0.0, %v970
  %972 = vmatmul.bf16.gmra.mxu0 %v522
  %v973 = vpop.f32.mrf.mxu0
  %v974 = vadd.f32 0.0, %v973
  %v975 = vpop.f32.mrf.mxu0
  %v976 = vadd.f32 0.0, %v975
  %977 = vmatmul.bf16.gmra.mxu0 %v525
  %v978 = vpop.f32.mrf.mxu0
  %v979 = vadd.f32 0.0, %v978
  %v980 = vpop.f32.mrf.mxu0
  %v981 = vadd.f32 0.0, %v980
  %982 = vmatmul.bf16.gmra.mxu0 %v528
  %v983 = vpop.f32.mrf.mxu0
  %v984 = vadd.f32 0.0, %v983
  %v985 = vpop.f32.mrf.mxu0
  %v986 = vadd.f32 0.0, %v985
  %987 = vmatmul.bf16.gmra.mxu0 %v531
  %v988 = vpop.f32.mrf.mxu0
  %v989 = vadd.f32 0.0, %v988
  %v990 = vpop.f32.mrf.mxu0
  %v991 = vadd.f32 0.0, %v990
  %992 = vmatmul.bf16.gmra.mxu0 %v534
  %v993 = vpop.f32.mrf.mxu0
  %v994 = vadd.f32 0.0, %v993
  %v995 = vpop.f32.mrf.mxu0
  %v996 = vadd.f32 0.0, %v995
  %997 = vdwg.mxu0
  %v998 = vadd.f32 %v923, %v964
  %v999 = vadd.f32 %v924, %v966
  %v1000 = vadd.f32 %v925, %v969
  %v1001 = vadd.f32 %v926, %v971
  %v1002 = vadd.f32 %v927, %v974
  %v1003 = vadd.f32 %v928, %v976
  %v1004 = vadd.f32 %v929, %v979
  %v1005 = vadd.f32 %v930, %v981
  %v1006 = vadd.f32 %v931, %v984
  %v1007 = vadd.f32 %v932, %v986
  %v1008 = vadd.f32 %v933, %v989
  %v1009 = vadd.f32 %v934, %v991
  %v1010 = vadd.f32 %v935, %v994
  %v1011 = vadd.f32 %v936, %v996
  %s1012 = scalar_lea.vmem %s1, 144
  %v1013 = vld [vmem:[%s1012] sm:$0xf]
  %v1014 = vld [vmem:[%s1012 + $0x4] sm:$0xf]
  %v1015 = vld [vmem:[%s1012 + $0x8] sm:$0xf]
  %v1016 = vld [vmem:[%s1012 + $0xc] sm:$0xf]
  %v1021 = vunpack.c.l.b16 %v1013
  %v1022 = vunpack.c.l.b16 %v1014
  %v1023 = vunpack.c.l.b16 %v1015
  %v1024 = vunpack.c.l.b16 %v1016
  %v1025 = vpack.c.b16 %v1022, %v1021
  %v1026 = vpack.c.b16 %v1024, %v1023
  %1029 = vmatpush.bf16.msra.mxu0 0
  %1030 = vmatpush.bf16.msra.mxu0 0
  %1031 = vmatpush.bf16.msra.mxu0 0
  %1032 = vmatpush.bf16.msra.mxu0 0
  %1033 = vmatpush.bf16.msra.mxu0 0
  %1034 = vmatpush.bf16.msra.mxu0 0
  %1035 = vmatpush.bf16.msra.mxu0 %v1026
  %1036 = vmatpush.bf16.msra.mxu0 %v1025
  %1037 = vmatmul.bf16.gmra.mxu0 %v662
  %v1038 = vpop.f32.mrf.mxu0
  %v1039 = vadd.f32 0.0, %v1038
  %v1040 = vpop.f32.mrf.mxu0
  %v1041 = vadd.f32 0.0, %v1040
  %1042 = vmatmul.bf16.gmra.mxu0 %v665
  %v1043 = vpop.f32.mrf.mxu0
  %v1044 = vadd.f32 0.0, %v1043
  %v1045 = vpop.f32.mrf.mxu0
  %v1046 = vadd.f32 0.0, %v1045
  %1047 = vmatmul.bf16.gmra.mxu0 %v668
  %v1048 = vpop.f32.mrf.mxu0
  %v1049 = vadd.f32 0.0, %v1048
  %v1050 = vpop.f32.mrf.mxu0
  %v1051 = vadd.f32 0.0, %v1050
  %1052 = vmatmul.bf16.gmra.mxu0 %v671
  %v1053 = vpop.f32.mrf.mxu0
  %v1054 = vadd.f32 0.0, %v1053
  %v1055 = vpop.f32.mrf.mxu0
  %v1056 = vadd.f32 0.0, %v1055
  %1057 = vmatmul.bf16.gmra.mxu0 %v674
  %v1058 = vpop.f32.mrf.mxu0
  %v1059 = vadd.f32 0.0, %v1058
  %v1060 = vpop.f32.mrf.mxu0
  %v1061 = vadd.f32 0.0, %v1060
  %1062 = vmatmul.bf16.gmra.mxu0 %v677
  %v1063 = vpop.f32.mrf.mxu0
  %v1064 = vadd.f32 0.0, %v1063
  %v1065 = vpop.f32.mrf.mxu0
  %v1066 = vadd.f32 0.0, %v1065
  %1067 = vmatmul.bf16.gmra.mxu0 %v680
  %v1068 = vpop.f32.mrf.mxu0
  %v1069 = vadd.f32 0.0, %v1068
  %v1070 = vpop.f32.mrf.mxu0
  %v1071 = vadd.f32 0.0, %v1070
  %1072 = vdwg.mxu0
  %v1073 = vadd.f32 %v998, %v1039
  %v1074 = vadd.f32 %v999, %v1041
  %v1075 = vadd.f32 %v1000, %v1044
  %v1076 = vadd.f32 %v1001, %v1046
  %v1077 = vadd.f32 %v1002, %v1049
  %v1078 = vadd.f32 %v1003, %v1051
  %v1079 = vadd.f32 %v1004, %v1054
  %v1080 = vadd.f32 %v1005, %v1056
  %v1081 = vadd.f32 %v1006, %v1059
  %v1082 = vadd.f32 %v1007, %v1061
  %v1083 = vadd.f32 %v1008, %v1064
  %v1084 = vadd.f32 %v1009, %v1066
  %v1085 = vadd.f32 %v1010, %v1069
  %v1086 = vadd.f32 %v1011, %v1071
  %v1087 = vmax.f32 %v726, %v1073
  %v1088 = vmax.f32 %v727, %v1074
  %v1089 = vmax.f32 %v728, %v1075
  %v1090 = vmax.f32 %v729, %v1076
  %v1091 = vmax.f32 %v730, %v1077
  %v1092 = vmax.f32 %v731, %v1078
  %v1093 = vmax.f32 %v732, %v1079
  %v1094 = vmax.f32 %v733, %v1080
  %v1095 = vmax.f32 %v734, %v1081
  %v1096 = vmax.f32 %v735, %v1082
  %v1097 = vmax.f32 %v736, %v1083
  %v1098 = vmax.f32 %v737, %v1084
  %v1099 = vmax.f32 %v738, %v1085
  %v1100 = vmax.f32 %v739, %v1086
  %1101 = vmatpush.bf16.msra.mxu0 0
  %1102 = vmatpush.bf16.msra.mxu0 0
  %1103 = vmatpush.bf16.msra.mxu0 0
  %1104 = vmatpush.bf16.msra.mxu0 0
  %1105 = vmatpush.bf16.msra.mxu0 0
  %1106 = vmatpush.bf16.msra.mxu0 0
  %1107 = vmatpush.bf16.msra.mxu0 %v121
  %1108 = vmatpush.bf16.msra.mxu0 %v120
  %1109 = vmatmul.bf16.gmra.mxu0 %v370
  %v1110 = vpop.f32.mrf.mxu0
  %v1111 = vadd.f32 0.0, %v1110
  %v1112 = vpop.f32.mrf.mxu0
  %v1113 = vadd.f32 0.0, %v1112
  %1114 = vmatmul.bf16.gmra.mxu0 %v373
  %v1115 = vpop.f32.mrf.mxu0
  %v1116 = vadd.f32 0.0, %v1115
  %v1117 = vpop.f32.mrf.mxu0
  %v1118 = vadd.f32 0.0, %v1117
  %1119 = vmatmul.bf16.gmra.mxu0 %v376
  %v1120 = vpop.f32.mrf.mxu0
  %v1121 = vadd.f32 0.0, %v1120
  %v1122 = vpop.f32.mrf.mxu0
  %v1123 = vadd.f32 0.0, %v1122
  %1124 = vmatmul.bf16.gmra.mxu0 %v379
  %v1125 = vpop.f32.mrf.mxu0
  %v1126 = vadd.f32 0.0, %v1125
  %v1127 = vpop.f32.mrf.mxu0
  %v1128 = vadd.f32 0.0, %v1127
  %1129 = vmatmul.bf16.gmra.mxu0 %v382
  %v1130 = vpop.f32.mrf.mxu0
  %v1131 = vadd.f32 0.0, %v1130
  %v1132 = vpop.f32.mrf.mxu0
  %v1133 = vadd.f32 0.0, %v1132
  %1134 = vmatmul.bf16.gmra.mxu0 %v385
  %v1135 = vpop.f32.mrf.mxu0
  %v1136 = vadd.f32 0.0, %v1135
  %v1137 = vpop.f32.mrf.mxu0
  %v1138 = vadd.f32 0.0, %v1137
  %1139 = vmatmul.bf16.gmra.mxu0 %v388
  %v1140 = vpop.f32.mrf.mxu0
  %v1141 = vadd.f32 0.0, %v1140
  %v1142 = vpop.f32.mrf.mxu0
  %v1143 = vadd.f32 0.0, %v1142
  %1144 = vdwg.mxu0
  %1145 = vmatpush.bf16.msra.mxu0 0
  %1146 = vmatpush.bf16.msra.mxu0 0
  %1147 = vmatpush.bf16.msra.mxu0 0
  %1148 = vmatpush.bf16.msra.mxu0 0
  %1149 = vmatpush.bf16.msra.mxu0 0
  %1150 = vmatpush.bf16.msra.mxu0 0
  %1151 = vmatpush.bf16.msra.mxu0 %v234
  %1152 = vmatpush.bf16.msra.mxu0 %v233
  %1153 = vmatmul.bf16.gmra.mxu0 %v126
  %v1154 = vpop.f32.mrf.mxu0
  %v1155 = vadd.f32 %v1111, %v1154
  %v1156 = vpop.f32.mrf.mxu0
  %v1157 = vadd.f32 %v1113, %v1156
  %1158 = vmatmul.bf16.gmra.mxu0 %v129
  %v1159 = vpop.f32.mrf.mxu0
  %v1160 = vadd.f32 %v1116, %v1159
  %v1161 = vpop.f32.mrf.mxu0
  %v1162 = vadd.f32 %v1118, %v1161
  %1163 = vmatmul.bf16.gmra.mxu0 %v132
  %v1164 = vpop.f32.mrf.mxu0
  %v1165 = vadd.f32 %v1121, %v1164
  %v1166 = vpop.f32.mrf.mxu0
  %v1167 = vadd.f32 %v1123, %v1166
  %1168 = vmatmul.bf16.gmra.mxu0 %v135
  %v1169 = vpop.f32.mrf.mxu0
  %v1170 = vadd.f32 %v1126, %v1169
  %v1171 = vpop.f32.mrf.mxu0
  %v1172 = vadd.f32 %v1128, %v1171
  %1173 = vmatmul.bf16.gmra.mxu0 %v138
  %v1174 = vpop.f32.mrf.mxu0
  %v1175 = vadd.f32 %v1131, %v1174
  %v1176 = vpop.f32.mrf.mxu0
  %v1177 = vadd.f32 %v1133, %v1176
  %1178 = vmatmul.bf16.gmra.mxu0 %v141
  %v1179 = vpop.f32.mrf.mxu0
  %v1180 = vadd.f32 %v1136, %v1179
  %v1181 = vpop.f32.mrf.mxu0
  %v1182 = vadd.f32 %v1138, %v1181
  %1183 = vmatmul.bf16.gmra.mxu0 %v144
  %v1184 = vpop.f32.mrf.mxu0
  %v1185 = vadd.f32 %v1141, %v1184
  %v1186 = vpop.f32.mrf.mxu0
  %v1187 = vadd.f32 %v1143, %v1186
  %1188 = vdwg.mxu0
  %1189 = vmatpush.bf16.msra.mxu0 0
  %1190 = vmatpush.bf16.msra.mxu0 0
  %1191 = vmatpush.bf16.msra.mxu0 0
  %1192 = vmatpush.bf16.msra.mxu0 0
  %1193 = vmatpush.bf16.msra.mxu0 0
  %1194 = vmatpush.bf16.msra.mxu0 0
  %1195 = vmatpush.bf16.msra.mxu0 %v366
  %1196 = vmatpush.bf16.msra.mxu0 %v365
  %1197 = vmatmul.bf16.gmra.mxu0 %v516
  %v1198 = vpop.f32.mrf.mxu0
  %v1199 = vadd.f32 0.0, %v1198
  %v1200 = vpop.f32.mrf.mxu0
  %v1201 = vadd.f32 0.0, %v1200
  %1202 = vmatmul.bf16.gmra.mxu0 %v519
  %v1203 = vpop.f32.mrf.mxu0
  %v1204 = vadd.f32 0.0, %v1203
  %v1205 = vpop.f32.mrf.mxu0
  %v1206 = vadd.f32 0.0, %v1205
  %1207 = vmatmul.bf16.gmra.mxu0 %v522
  %v1208 = vpop.f32.mrf.mxu0
  %v1209 = vadd.f32 0.0, %v1208
  %v1210 = vpop.f32.mrf.mxu0
  %v1211 = vadd.f32 0.0, %v1210
  %1212 = vmatmul.bf16.gmra.mxu0 %v525
  %v1213 = vpop.f32.mrf.mxu0
  %v1214 = vadd.f32 0.0, %v1213
  %v1215 = vpop.f32.mrf.mxu0
  %v1216 = vadd.f32 0.0, %v1215
  %1217 = vmatmul.bf16.gmra.mxu0 %v528
  %v1218 = vpop.f32.mrf.mxu0
  %v1219 = vadd.f32 0.0, %v1218
  %v1220 = vpop.f32.mrf.mxu0
  %v1221 = vadd.f32 0.0, %v1220
  %1222 = vmatmul.bf16.gmra.mxu0 %v531
  %v1223 = vpop.f32.mrf.mxu0
  %v1224 = vadd.f32 0.0, %v1223
  %v1225 = vpop.f32.mrf.mxu0
  %v1226 = vadd.f32 0.0, %v1225
  %1227 = vmatmul.bf16.gmra.mxu0 %v534
  %v1228 = vpop.f32.mrf.mxu0
  %v1229 = vadd.f32 0.0, %v1228
  %v1230 = vpop.f32.mrf.mxu0
  %v1231 = vadd.f32 0.0, %v1230
  %1232 = vdwg.mxu0
  %v1233 = vadd.f32 %v1155, %v1199
  %v1234 = vadd.f32 %v1157, %v1201
  %v1235 = vadd.f32 %v1160, %v1204
  %v1236 = vadd.f32 %v1162, %v1206
  %v1237 = vadd.f32 %v1165, %v1209
  %v1238 = vadd.f32 %v1167, %v1211
  %v1239 = vadd.f32 %v1170, %v1214
  %v1240 = vadd.f32 %v1172, %v1216
  %v1241 = vadd.f32 %v1175, %v1219
  %v1242 = vadd.f32 %v1177, %v1221
  %v1243 = vadd.f32 %v1180, %v1224
  %v1244 = vadd.f32 %v1182, %v1226
  %v1245 = vadd.f32 %v1185, %v1229
  %v1246 = vadd.f32 %v1187, %v1231
  %1247 = vmatpush.bf16.msra.mxu0 0
  %1248 = vmatpush.bf16.msra.mxu0 0
  %1249 = vmatpush.bf16.msra.mxu0 0
  %1250 = vmatpush.bf16.msra.mxu0 0
  %1251 = vmatpush.bf16.msra.mxu0 0
  %1252 = vmatpush.bf16.msra.mxu0 0
  %1253 = vmatpush.bf16.msra.mxu0 %v512
  %1254 = vmatpush.bf16.msra.mxu0 %v511
  %1255 = vmatmul.bf16.gmra.mxu0 %v662
  %v1256 = vpop.f32.mrf.mxu0
  %v1257 = vadd.f32 0.0, %v1256
  %v1258 = vpop.f32.mrf.mxu0
  %v1259 = vadd.f32 0.0, %v1258
  %1260 = vmatmul.bf16.gmra.mxu0 %v665
  %v1261 = vpop.f32.mrf.mxu0
  %v1262 = vadd.f32 0.0, %v1261
  %v1263 = vpop.f32.mrf.mxu0
  %v1264 = vadd.f32 0.0, %v1263
  %1265 = vmatmul.bf16.gmra.mxu0 %v668
  %v1266 = vpop.f32.mrf.mxu0
  %v1267 = vadd.f32 0.0, %v1266
  %v1268 = vpop.f32.mrf.mxu0
  %v1269 = vadd.f32 0.0, %v1268
  %1270 = vmatmul.bf16.gmra.mxu0 %v671
  %v1271 = vpop.f32.mrf.mxu0
  %v1272 = vadd.f32 0.0, %v1271
  %v1273 = vpop.f32.mrf.mxu0
  %v1274 = vadd.f32 0.0, %v1273
  %1275 = vmatmul.bf16.gmra.mxu0 %v674
  %v1276 = vpop.f32.mrf.mxu0
  %v1277 = vadd.f32 0.0, %v1276
  %v1278 = vpop.f32.mrf.mxu0
  %v1279 = vadd.f32 0.0, %v1278
  %1280 = vmatmul.bf16.gmra.mxu0 %v677
  %v1281 = vpop.f32.mrf.mxu0
  %v1282 = vadd.f32 0.0, %v1281
  %v1283 = vpop.f32.mrf.mxu0
  %v1284 = vadd.f32 0.0, %v1283
  %1285 = vmatmul.bf16.gmra.mxu0 %v680
  %v1286 = vpop.f32.mrf.mxu0
  %v1287 = vadd.f32 0.0, %v1286
  %v1288 = vpop.f32.mrf.mxu0
  %v1289 = vadd.f32 0.0, %v1288
  %1290 = vdwg.mxu0
  %v1291 = vadd.f32 %v1233, %v1257
  %v1292 = vadd.f32 %v1234, %v1259
  %v1293 = vadd.f32 %v1235, %v1262
  %v1294 = vadd.f32 %v1236, %v1264
  %v1295 = vadd.f32 %v1237, %v1267
  %v1296 = vadd.f32 %v1238, %v1269
  %v1297 = vadd.f32 %v1239, %v1272
  %v1298 = vadd.f32 %v1240, %v1274
  %v1299 = vadd.f32 %v1241, %v1277
  %v1300 = vadd.f32 %v1242, %v1279
  %v1301 = vadd.f32 %v1243, %v1282
  %v1302 = vadd.f32 %v1244, %v1284
  %v1303 = vadd.f32 %v1245, %v1287
  %v1304 = vadd.f32 %v1246, %v1289
  %s1305 = scalar_lea.vmem %s0, 72
  %v1306 = vld [vmem:[%s1305] sm:$0xf]
  %v1307 = vld [vmem:[%s1305 + $0x4] sm:$0xf]
  %v1308 = vld [vmem:[%s1305 + $0x8] sm:$0xf]
  %v1309 = vld [vmem:[%s1305 + $0xc] sm:$0xf]
  %v1310 = vld [vmem:[%s1305 + $0x10] sm:$0xf]
  %v1311 = vld [vmem:[%s1305 + $0x14] sm:$0xf]
  %v1312 = vld [vmem:[%s1305 + $0x18] sm:$0xf]
  %v1313 = vld [vmem:[%s1305 + $0x1c] sm:$0xf]
  %v1314 = vld [vmem:[%s1305 + $0x20] sm:$0xf]
  %v1315 = vld [vmem:[%s1305 + $0x24] sm:$0xf]
  %v1316 = vld [vmem:[%s1305 + $0x28] sm:$0xf]
  %v1317 = vld [vmem:[%s1305 + $0x2c] sm:$0xf]
  %v1318 = vld [vmem:[%s1305 + $0x30] sm:$0xf]
  %v1319 = vld [vmem:[%s1305 + $0x34] sm:$0xf]
  %v1334 = vunpack.c.l.b16 %v1306
  %v1335 = vunpack.c.l.b16 %v1307
  %v1336 = vunpack.c.l.b16 %v1308
  %v1337 = vunpack.c.l.b16 %v1309
  %v1338 = vunpack.c.l.b16 %v1310
  %v1339 = vunpack.c.l.b16 %v1311
  %v1340 = vunpack.c.l.b16 %v1312
  %v1341 = vunpack.c.l.b16 %v1313
  %v1342 = vunpack.c.l.b16 %v1314
  %v1343 = vunpack.c.l.b16 %v1315
  %v1344 = vunpack.c.l.b16 %v1316
  %v1345 = vunpack.c.l.b16 %v1317
  %v1346 = vunpack.c.l.b16 %v1318
  %v1347 = vunpack.c.l.b16 %v1319
  %v1348 = vpack.c.b16 %v1335, %v1334
  %v1349 = vpack.c.b16 %v1337, %v1336
  %v1350 = vpack.c.b16 %v1339, %v1338
  %v1351 = vpack.c.b16 %v1341, %v1340
  %v1352 = vpack.c.b16 %v1343, %v1342
  %v1353 = vpack.c.b16 %v1345, %v1344
  %v1354 = vpack.c.b16 %v1347, %v1346
  %v1356 = vsel %vm124, %v1348, 0
  %v1359 = vsel %vm124, %v1349, 0
  %v1362 = vsel %vm124, %v1350, 0
  %v1365 = vsel %vm124, %v1351, 0
  %v1368 = vsel %vm124, %v1352, 0
  %v1371 = vsel %vm124, %v1353, 0
  %v1374 = vsel %vm124, %v1354, 0
  %1376 = vmatpush.bf16.msra.mxu0 0
  %1377 = vmatpush.bf16.msra.mxu0 0
  %1378 = vmatpush.bf16.msra.mxu0 0
  %1379 = vmatpush.bf16.msra.mxu0 0
  %1380 = vmatpush.bf16.msra.mxu0 0
  %1381 = vmatpush.bf16.msra.mxu0 0
  %1382 = vmatpush.bf16.msra.mxu0 %v658
  %1383 = vmatpush.bf16.msra.mxu0 %v657
  %1384 = vmatmul.bf16.gmra.mxu0 %v1356
  %v1385 = vpop.f32.mrf.mxu0
  %v1386 = vadd.f32 0.0, %v1385
  %v1387 = vpop.f32.mrf.mxu0
  %v1388 = vadd.f32 0.0, %v1387
  %1389 = vmatmul.bf16.gmra.mxu0 %v1359
  %v1390 = vpop.f32.mrf.mxu0
  %v1391 = vadd.f32 0.0, %v1390
  %v1392 = vpop.f32.mrf.mxu0
  %v1393 = vadd.f32 0.0, %v1392
  %1394 = vmatmul.bf16.gmra.mxu0 %v1362
  %v1395 = vpop.f32.mrf.mxu0
  %v1396 = vadd.f32 0.0, %v1395
  %v1397 = vpop.f32.mrf.mxu0
  %v1398 = vadd.f32 0.0, %v1397
  %1399 = vmatmul.bf16.gmra.mxu0 %v1365
  %v1400 = vpop.f32.mrf.mxu0
  %v1401 = vadd.f32 0.0, %v1400
  %v1402 = vpop.f32.mrf.mxu0
  %v1403 = vadd.f32 0.0, %v1402
  %1404 = vmatmul.bf16.gmra.mxu0 %v1368
  %v1405 = vpop.f32.mrf.mxu0
  %v1406 = vadd.f32 0.0, %v1405
  %v1407 = vpop.f32.mrf.mxu0
  %v1408 = vadd.f32 0.0, %v1407
  %1409 = vmatmul.bf16.gmra.mxu0 %v1371
  %v1410 = vpop.f32.mrf.mxu0
  %v1411 = vadd.f32 0.0, %v1410
  %v1412 = vpop.f32.mrf.mxu0
  %v1413 = vadd.f32 0.0, %v1412
  %1414 = vmatmul.bf16.gmra.mxu0 %v1374
  %v1415 = vpop.f32.mrf.mxu0
  %v1416 = vadd.f32 0.0, %v1415
  %v1417 = vpop.f32.mrf.mxu0
  %v1418 = vadd.f32 0.0, %v1417
  %1419 = vdwg.mxu0
  %v1420 = vadd.f32 %v1291, %v1386
  %v1421 = vadd.f32 %v1292, %v1388
  %v1422 = vadd.f32 %v1293, %v1391
  %v1423 = vadd.f32 %v1294, %v1393
  %v1424 = vadd.f32 %v1295, %v1396
  %v1425 = vadd.f32 %v1296, %v1398
  %v1426 = vadd.f32 %v1297, %v1401
  %v1427 = vadd.f32 %v1298, %v1403
  %v1428 = vadd.f32 %v1299, %v1406
  %v1429 = vadd.f32 %v1300, %v1408
  %v1430 = vadd.f32 %v1301, %v1411
  %v1431 = vadd.f32 %v1302, %v1413
  %v1432 = vadd.f32 %v1303, %v1416
  %v1433 = vadd.f32 %v1304, %v1418
  %v1434 = vmax.f32 %v1087, %v1420
  %v1435 = vmax.f32 %v1088, %v1421
  %v1436 = vmax.f32 %v1089, %v1422
  %v1437 = vmax.f32 %v1090, %v1423
  %v1438 = vmax.f32 %v1091, %v1424
  %v1439 = vmax.f32 %v1092, %v1425
  %v1440 = vmax.f32 %v1093, %v1426
  %v1441 = vmax.f32 %v1094, %v1427
  %v1442 = vmax.f32 %v1095, %v1428
  %v1443 = vmax.f32 %v1096, %v1429
  %v1444 = vmax.f32 %v1097, %v1430
  %v1445 = vmax.f32 %v1098, %v1431
  %v1446 = vmax.f32 %v1099, %v1432
  %v1447 = vmax.f32 %v1100, %v1433
  %1448 = vmatpush.bf16.msra.mxu0 0
  %1449 = vmatpush.bf16.msra.mxu0 0
  %1450 = vmatpush.bf16.msra.mxu0 0
  %1451 = vmatpush.bf16.msra.mxu0 0
  %1452 = vmatpush.bf16.msra.mxu0 0
  %1453 = vmatpush.bf16.msra.mxu0 0
  %1454 = vmatpush.bf16.msra.mxu0 %v759
  %1455 = vmatpush.bf16.msra.mxu0 %v758
  %1456 = vmatmul.bf16.gmra.mxu0 %v370
  %v1457 = vpop.f32.mrf.mxu0
  %v1458 = vadd.f32 0.0, %v1457
  %v1459 = vpop.f32.mrf.mxu0
  %v1460 = vadd.f32 0.0, %v1459
  %1461 = vmatmul.bf16.gmra.mxu0 %v373
  %v1462 = vpop.f32.mrf.mxu0
  %v1463 = vadd.f32 0.0, %v1462
  %v1464 = vpop.f32.mrf.mxu0
  %v1465 = vadd.f32 0.0, %v1464
  %1466 = vmatmul.bf16.gmra.mxu0 %v376
  %v1467 = vpop.f32.mrf.mxu0
  %v1468 = vadd.f32 0.0, %v1467
  %v1469 = vpop.f32.mrf.mxu0
  %v1470 = vadd.f32 0.0, %v1469
  %1471 = vmatmul.bf16.gmra.mxu0 %v379
  %v1472 = vpop.f32.mrf.mxu0
  %v1473 = vadd.f32 0.0, %v1472
  %v1474 = vpop.f32.mrf.mxu0
  %v1475 = vadd.f32 0.0, %v1474
  %1476 = vmatmul.bf16.gmra.mxu0 %v382
  %v1477 = vpop.f32.mrf.mxu0
  %v1478 = vadd.f32 0.0, %v1477
  %v1479 = vpop.f32.mrf.mxu0
  %v1480 = vadd.f32 0.0, %v1479
  %1481 = vmatmul.bf16.gmra.mxu0 %v385
  %v1482 = vpop.f32.mrf.mxu0
  %v1483 = vadd.f32 0.0, %v1482
  %v1484 = vpop.f32.mrf.mxu0
  %v1485 = vadd.f32 0.0, %v1484
  %1486 = vmatmul.bf16.gmra.mxu0 %v388
  %v1487 = vpop.f32.mrf.mxu0
  %v1488 = vadd.f32 0.0, %v1487
  %v1489 = vpop.f32.mrf.mxu0
  %v1490 = vadd.f32 0.0, %v1489
  %1491 = vdwg.mxu0
  %1492 = vmatpush.bf16.msra.mxu0 0
  %1493 = vmatpush.bf16.msra.mxu0 0
  %1494 = vmatpush.bf16.msra.mxu0 0
  %1495 = vmatpush.bf16.msra.mxu0 0
  %1496 = vmatpush.bf16.msra.mxu0 0
  %1497 = vmatpush.bf16.msra.mxu0 0
  %1498 = vmatpush.bf16.msra.mxu0 %v815
  %1499 = vmatpush.bf16.msra.mxu0 %v814
  %1500 = vmatmul.bf16.gmra.mxu0 %v126
  %v1501 = vpop.f32.mrf.mxu0
  %v1502 = vadd.f32 %v1458, %v1501
  %v1503 = vpop.f32.mrf.mxu0
  %v1504 = vadd.f32 %v1460, %v1503
  %1505 = vmatmul.bf16.gmra.mxu0 %v129
  %v1506 = vpop.f32.mrf.mxu0
  %v1507 = vadd.f32 %v1463, %v1506
  %v1508 = vpop.f32.mrf.mxu0
  %v1509 = vadd.f32 %v1465, %v1508
  %1510 = vmatmul.bf16.gmra.mxu0 %v132
  %v1511 = vpop.f32.mrf.mxu0
  %v1512 = vadd.f32 %v1468, %v1511
  %v1513 = vpop.f32.mrf.mxu0
  %v1514 = vadd.f32 %v1470, %v1513
  %1515 = vmatmul.bf16.gmra.mxu0 %v135
  %v1516 = vpop.f32.mrf.mxu0
  %v1517 = vadd.f32 %v1473, %v1516
  %v1518 = vpop.f32.mrf.mxu0
  %v1519 = vadd.f32 %v1475, %v1518
  %1520 = vmatmul.bf16.gmra.mxu0 %v138
  %v1521 = vpop.f32.mrf.mxu0
  %v1522 = vadd.f32 %v1478, %v1521
  %v1523 = vpop.f32.mrf.mxu0
  %v1524 = vadd.f32 %v1480, %v1523
  %1525 = vmatmul.bf16.gmra.mxu0 %v141
  %v1526 = vpop.f32.mrf.mxu0
  %v1527 = vadd.f32 %v1483, %v1526
  %v1528 = vpop.f32.mrf.mxu0
  %v1529 = vadd.f32 %v1485, %v1528
  %1530 = vmatmul.bf16.gmra.mxu0 %v144
  %v1531 = vpop.f32.mrf.mxu0
  %v1532 = vadd.f32 %v1488, %v1531
  %v1533 = vpop.f32.mrf.mxu0
  %v1534 = vadd.f32 %v1490, %v1533
  %1535 = vdwg.mxu0
  %1536 = vmatpush.bf16.msra.mxu0 0
  %1537 = vmatpush.bf16.msra.mxu0 0
  %1538 = vmatpush.bf16.msra.mxu0 0
  %1539 = vmatpush.bf16.msra.mxu0 0
  %1540 = vmatpush.bf16.msra.mxu0 0
  %1541 = vmatpush.bf16.msra.mxu0 0
  %1542 = vmatpush.bf16.msra.mxu0 %v876
  %1543 = vmatpush.bf16.msra.mxu0 %v875
  %1544 = vmatmul.bf16.gmra.mxu0 %v516
  %v1545 = vpop.f32.mrf.mxu0
  %v1546 = vadd.f32 0.0, %v1545
  %v1547 = vpop.f32.mrf.mxu0
  %v1548 = vadd.f32 0.0, %v1547
  %1549 = vmatmul.bf16.gmra.mxu0 %v519
  %v1550 = vpop.f32.mrf.mxu0
  %v1551 = vadd.f32 0.0, %v1550
  %v1552 = vpop.f32.mrf.mxu0
  %v1553 = vadd.f32 0.0, %v1552
  %1554 = vmatmul.bf16.gmra.mxu0 %v522
  %v1555 = vpop.f32.mrf.mxu0
  %v1556 = vadd.f32 0.0, %v1555
  %v1557 = vpop.f32.mrf.mxu0
  %v1558 = vadd.f32 0.0, %v1557
  %1559 = vmatmul.bf16.gmra.mxu0 %v525
  %v1560 = vpop.f32.mrf.mxu0
  %v1561 = vadd.f32 0.0, %v1560
  %v1562 = vpop.f32.mrf.mxu0
  %v1563 = vadd.f32 0.0, %v1562
  %1564 = vmatmul.bf16.gmra.mxu0 %v528
  %v1565 = vpop.f32.mrf.mxu0
  %v1566 = vadd.f32 0.0, %v1565
  %v1567 = vpop.f32.mrf.mxu0
  %v1568 = vadd.f32 0.0, %v1567
  %1569 = vmatmul.bf16.gmra.mxu0 %v531
  %v1570 = vpop.f32.mrf.mxu0
  %v1571 = vadd.f32 0.0, %v1570
  %v1572 = vpop.f32.mrf.mxu0
  %v1573 = vadd.f32 0.0, %v1572
  %1574 = vmatmul.bf16.gmra.mxu0 %v534
  %v1575 = vpop.f32.mrf.mxu0
  %v1576 = vadd.f32 0.0, %v1575
  %v1577 = vpop.f32.mrf.mxu0
  %v1578 = vadd.f32 0.0, %v1577
  %1579 = vdwg.mxu0
  %v1580 = vadd.f32 %v1502, %v1546
  %v1581 = vadd.f32 %v1504, %v1548
  %v1582 = vadd.f32 %v1507, %v1551
  %v1583 = vadd.f32 %v1509, %v1553
  %v1584 = vadd.f32 %v1512, %v1556
  %v1585 = vadd.f32 %v1514, %v1558
  %v1586 = vadd.f32 %v1517, %v1561
  %v1587 = vadd.f32 %v1519, %v1563
  %v1588 = vadd.f32 %v1522, %v1566
  %v1589 = vadd.f32 %v1524, %v1568
  %v1590 = vadd.f32 %v1527, %v1571
  %v1591 = vadd.f32 %v1529, %v1573
  %v1592 = vadd.f32 %v1532, %v1576
  %v1593 = vadd.f32 %v1534, %v1578
  %1594 = vmatpush.bf16.msra.mxu0 0
  %1595 = vmatpush.bf16.msra.mxu0 0
  %1596 = vmatpush.bf16.msra.mxu0 0
  %1597 = vmatpush.bf16.msra.mxu0 0
  %1598 = vmatpush.bf16.msra.mxu0 0
  %1599 = vmatpush.bf16.msra.mxu0 0
  %1600 = vmatpush.bf16.msra.mxu0 %v951
  %1601 = vmatpush.bf16.msra.mxu0 %v950
  %1602 = vmatmul.bf16.gmra.mxu0 %v662
  %v1603 = vpop.f32.mrf.mxu0
  %v1604 = vadd.f32 0.0, %v1603
  %v1605 = vpop.f32.mrf.mxu0
  %v1606 = vadd.f32 0.0, %v1605
  %1607 = vmatmul.bf16.gmra.mxu0 %v665
  %v1608 = vpop.f32.mrf.mxu0
  %v1609 = vadd.f32 0.0, %v1608
  %v1610 = vpop.f32.mrf.mxu0
  %v1611 = vadd.f32 0.0, %v1610
  %1612 = vmatmul.bf16.gmra.mxu0 %v668
  %v1613 = vpop.f32.mrf.mxu0
  %v1614 = vadd.f32 0.0, %v1613
  %v1615 = vpop.f32.mrf.mxu0
  %v1616 = vadd.f32 0.0, %v1615
  %1617 = vmatmul.bf16.gmra.mxu0 %v671
  %v1618 = vpop.f32.mrf.mxu0
  %v1619 = vadd.f32 0.0, %v1618
  %v1620 = vpop.f32.mrf.mxu0
  %v1621 = vadd.f32 0.0, %v1620
  %1622 = vmatmul.bf16.gmra.mxu0 %v674
  %v1623 = vpop.f32.mrf.mxu0
  %v1624 = vadd.f32 0.0, %v1623
  %v1625 = vpop.f32.mrf.mxu0
  %v1626 = vadd.f32 0.0, %v1625
  %1627 = vmatmul.bf16.gmra.mxu0 %v677
  %v1628 = vpop.f32.mrf.mxu0
  %v1629 = vadd.f32 0.0, %v1628
  %v1630 = vpop.f32.mrf.mxu0
  %v1631 = vadd.f32 0.0, %v1630
  %1632 = vmatmul.bf16.gmra.mxu0 %v680
  %v1633 = vpop.f32.mrf.mxu0
  %v1634 = vadd.f32 0.0, %v1633
  %v1635 = vpop.f32.mrf.mxu0
  %v1636 = vadd.f32 0.0, %v1635
  %1637 = vdwg.mxu0
  %v1638 = vadd.f32 %v1580, %v1604
  %v1639 = vadd.f32 %v1581, %v1606
  %v1640 = vadd.f32 %v1582, %v1609
  %v1641 = vadd.f32 %v1583, %v1611
  %v1642 = vadd.f32 %v1584, %v1614
  %v1643 = vadd.f32 %v1585, %v1616
  %v1644 = vadd.f32 %v1586, %v1619
  %v1645 = vadd.f32 %v1587, %v1621
  %v1646 = vadd.f32 %v1588, %v1624
  %v1647 = vadd.f32 %v1589, %v1626
  %v1648 = vadd.f32 %v1590, %v1629
  %v1649 = vadd.f32 %v1591, %v1631
  %v1650 = vadd.f32 %v1592, %v1634
  %v1651 = vadd.f32 %v1593, %v1636
  %1652 = vmatpush.bf16.msra.mxu0 0
  %1653 = vmatpush.bf16.msra.mxu0 0
  %1654 = vmatpush.bf16.msra.mxu0 0
  %1655 = vmatpush.bf16.msra.mxu0 0
  %1656 = vmatpush.bf16.msra.mxu0 0
  %1657 = vmatpush.bf16.msra.mxu0 0
  %1658 = vmatpush.bf16.msra.mxu0 %v1026
  %1659 = vmatpush.bf16.msra.mxu0 %v1025
  %1660 = vmatmul.bf16.gmra.mxu0 %v1356
  %v1661 = vpop.f32.mrf.mxu0
  %v1662 = vadd.f32 0.0, %v1661
  %v1663 = vpop.f32.mrf.mxu0
  %v1664 = vadd.f32 0.0, %v1663
  %1665 = vmatmul.bf16.gmra.mxu0 %v1359
  %v1666 = vpop.f32.mrf.mxu0
  %v1667 = vadd.f32 0.0, %v1666
  %v1668 = vpop.f32.mrf.mxu0
  %v1669 = vadd.f32 0.0, %v1668
  %1670 = vmatmul.bf16.gmra.mxu0 %v1362
  %v1671 = vpop.f32.mrf.mxu0
  %v1672 = vadd.f32 0.0, %v1671
  %v1673 = vpop.f32.mrf.mxu0
  %v1674 = vadd.f32 0.0, %v1673
  %1675 = vmatmul.bf16.gmra.mxu0 %v1365
  %v1676 = vpop.f32.mrf.mxu0
  %v1677 = vadd.f32 0.0, %v1676
  %v1678 = vpop.f32.mrf.mxu0
  %v1679 = vadd.f32 0.0, %v1678
  %1680 = vmatmul.bf16.gmra.mxu0 %v1368
  %v1681 = vpop.f32.mrf.mxu0
  %v1682 = vadd.f32 0.0, %v1681
  %v1683 = vpop.f32.mrf.mxu0
  %v1684 = vadd.f32 0.0, %v1683
  %1685 = vmatmul.bf16.gmra.mxu0 %v1371
  %v1686 = vpop.f32.mrf.mxu0
  %v1687 = vadd.f32 0.0, %v1686
  %v1688 = vpop.f32.mrf.mxu0
  %v1689 = vadd.f32 0.0, %v1688
  %1690 = vmatmul.bf16.gmra.mxu0 %v1374
  %v1691 = vpop.f32.mrf.mxu0
  %v1692 = vadd.f32 0.0, %v1691
  %v1693 = vpop.f32.mrf.mxu0
  %v1694 = vadd.f32 0.0, %v1693
  %1695 = vdwg.mxu0
  %v1696 = vadd.f32 %v1638, %v1662
  %v1697 = vadd.f32 %v1639, %v1664
  %v1698 = vadd.f32 %v1640, %v1667
  %v1699 = vadd.f32 %v1641, %v1669
  %v1700 = vadd.f32 %v1642, %v1672
  %v1701 = vadd.f32 %v1643, %v1674
  %v1702 = vadd.f32 %v1644, %v1677
  %v1703 = vadd.f32 %v1645, %v1679
  %v1704 = vadd.f32 %v1646, %v1682
  %v1705 = vadd.f32 %v1647, %v1684
  %v1706 = vadd.f32 %v1648, %v1687
  %v1707 = vadd.f32 %v1649, %v1689
  %v1708 = vadd.f32 %v1650, %v1692
  %v1709 = vadd.f32 %v1651, %v1694
  %v1710 = vmax.f32 %v1434, %v1696
  %v1711 = vmax.f32 %v1435, %v1697
  %v1712 = vmax.f32 %v1436, %v1698
  %v1713 = vmax.f32 %v1437, %v1699
  %v1714 = vmax.f32 %v1438, %v1700
  %v1715 = vmax.f32 %v1439, %v1701
  %v1716 = vmax.f32 %v1440, %v1702
  %v1717 = vmax.f32 %v1441, %v1703
  %v1718 = vmax.f32 %v1442, %v1704
  %v1719 = vmax.f32 %v1443, %v1705
  %v1720 = vmax.f32 %v1444, %v1706
  %v1721 = vmax.f32 %v1445, %v1707
  %v1722 = vmax.f32 %v1446, %v1708
  %v1723 = vmax.f32 %v1447, %v1709
  %v1724 = vld [vmem:[%s2] sm:$0x1]
  %v1726 = vperm.slane %v1724, 0
  %v1728 = vadd.f32 %v1710, %v1726
  %v1729 = vadd.f32 %v1711, %v1726
  %v1730 = vadd.f32 %v1712, %v1726
  %v1731 = vadd.f32 %v1713, %v1726
  %v1732 = vadd.f32 %v1714, %v1726
  %v1733 = vadd.f32 %v1715, %v1726
  %v1734 = vadd.f32 %v1716, %v1726
  %v1735 = vadd.f32 %v1717, %v1726
  %v1736 = vadd.f32 %v1718, %v1726
  %v1737 = vadd.f32 %v1719, %v1726
  %v1738 = vadd.f32 %v1720, %v1726
  %v1739 = vadd.f32 %v1721, %v1726
  %v1740 = vadd.f32 %v1722, %v1726
  %v1741 = vadd.f32 %v1723, %v1726
  %v1742 = vmax.f32 %v1728, 0.0
  %v1743 = vmax.f32 %v1729, 0.0
  %v1744 = vmax.f32 %v1730, 0.0
  %v1745 = vmax.f32 %v1731, 0.0
  %v1746 = vmax.f32 %v1732, 0.0
  %v1747 = vmax.f32 %v1733, 0.0
  %v1748 = vmax.f32 %v1734, 0.0
  %v1749 = vmax.f32 %v1735, 0.0
  %v1750 = vmax.f32 %v1736, 0.0
  %v1751 = vmax.f32 %v1737, 0.0
  %v1752 = vmax.f32 %v1738, 0.0
  %v1753 = vmax.f32 %v1739, 0.0
  %v1754 = vmax.f32 %v1740, 0.0
  %v1755 = vmax.f32 %v1741, 0.0
  %v1756 = vpack.c.bf16 %v1742, %v1742
  %v1757 = vpack.c.bf16 %v1743, %v1743
  %v1758 = vpack.c.bf16 %v1744, %v1744
  %v1759 = vpack.c.bf16 %v1745, %v1745
  %v1760 = vpack.c.bf16 %v1746, %v1746
  %v1761 = vpack.c.bf16 %v1747, %v1747
  %v1762 = vpack.c.bf16 %v1748, %v1748
  %v1763 = vpack.c.bf16 %v1749, %v1749
  %v1764 = vpack.c.bf16 %v1750, %v1750
  %v1765 = vpack.c.bf16 %v1751, %v1751
  %v1766 = vpack.c.bf16 %v1752, %v1752
  %v1767 = vpack.c.bf16 %v1753, %v1753
  %v1768 = vpack.c.bf16 %v1754, %v1754
  %v1769 = vpack.c.bf16 %v1755, %v1755
  %vm1770 = vcmask 683008
  %1771 = vst.msk [vmem:[#allocation2] sm:$0xf] %vm1770, %v1756
  %1772 = vst.msk [vmem:[#allocation2 + $0x4] sm:$0xf] %vm1770, %v1757
  %1773 = vst.msk [vmem:[#allocation2 + $0x8] sm:$0xf] %vm1770, %v1758
  %1774 = vst.msk [vmem:[#allocation2 + $0xc] sm:$0xf] %vm1770, %v1759
  %1775 = vst.msk [vmem:[#allocation2 + $0x10] sm:$0xf] %vm1770, %v1760
  %1776 = vst.msk [vmem:[#allocation2 + $0x14] sm:$0xf] %vm1770, %v1761
  %1777 = vst.msk [vmem:[#allocation2 + $0x18] sm:$0xf] %vm1770, %v1762
  %1778 = vst.msk [vmem:[#allocation2 + $0x1c] sm:$0xf] %vm1770, %v1763
  %1779 = vst.msk [vmem:[#allocation2 + $0x20] sm:$0xf] %vm1770, %v1764
  %1780 = vst.msk [vmem:[#allocation2 + $0x24] sm:$0xf] %vm1770, %v1765
  %1781 = vst.msk [vmem:[#allocation2 + $0x28] sm:$0xf] %vm1770, %v1766
  %1782 = vst.msk [vmem:[#allocation2 + $0x2c] sm:$0xf] %vm1770, %v1767
  %1783 = vst.msk [vmem:[#allocation2 + $0x30] sm:$0xf] %vm1770, %v1768
  %1784 = vst.msk [vmem:[#allocation2 + $0x34] sm:$0xf] %vm1770, %v1769
  %v1785 = vld [vmem:[%s302] sm:$0xf]
  %v1786 = vld [vmem:[%s302 + $0x4] sm:$0xf]
  %v1787 = vld [vmem:[%s302 + $0x8] sm:$0xf]
  %v1788 = vld [vmem:[%s302 + $0xc] sm:$0xf]
  %v1789 = vld [vmem:[%s302 + $0x10] sm:$0xf]
  %v1790 = vld [vmem:[%s302 + $0x14] sm:$0xf]
  %v1791 = vld [vmem:[%s302 + $0x18] sm:$0xf]
  %v1792 = vld [vmem:[%s302 + $0x1c] sm:$0xf]
  %v1793 = vld [vmem:[%s302 + $0x20] sm:$0xf]
  %v1794 = vld [vmem:[%s302 + $0x24] sm:$0xf]
  %v1795 = vld [vmem:[%s302 + $0x28] sm:$0xf]
  %v1796 = vld [vmem:[%s302 + $0x2c] sm:$0xf]
  %v1797 = vld [vmem:[%s302 + $0x30] sm:$0xf]
  %v1798 = vld [vmem:[%s302 + $0x34] sm:$0xf]
  %v1799 = vld [vmem:[%s1] sm:$0xf]
  %v1800 = vld [vmem:[%s1 + $0x4] sm:$0xf]
  %v1801 = vld [vmem:[%s1 + $0x8] sm:$0xf]
  %v1802 = vld [vmem:[%s1 + $0xc] sm:$0xf]
  %v1803 = vld [vmem:[%s448] sm:$0xf]
  %v1804 = vld [vmem:[%s448 + $0x4] sm:$0xf]
  %v1805 = vld [vmem:[%s448 + $0x8] sm:$0xf]
  %v1806 = vld [vmem:[%s448 + $0xc] sm:$0xf]
  %v1807 = vld [vmem:[%s448 + $0x10] sm:$0xf]
  %v1808 = vld [vmem:[%s448 + $0x14] sm:$0xf]
  %v1809 = vld [vmem:[%s448 + $0x18] sm:$0xf]
  %v1810 = vld [vmem:[%s448 + $0x1c] sm:$0xf]
  %v1811 = vld [vmem:[%s448 + $0x20] sm:$0xf]
  %v1812 = vld [vmem:[%s448 + $0x24] sm:$0xf]
  %v1813 = vld [vmem:[%s448 + $0x28] sm:$0xf]
  %v1814 = vld [vmem:[%s448 + $0x2c] sm:$0xf]
  %v1815 = vld [vmem:[%s448 + $0x30] sm:$0xf]
  %v1816 = vld [vmem:[%s448 + $0x34] sm:$0xf]
  %v1817 = vld [vmem:[%s72] sm:$0xf]
  %v1818 = vld [vmem:[%s72 + $0x4] sm:$0xf]
  %v1819 = vld [vmem:[%s72 + $0x8] sm:$0xf]
  %v1820 = vld [vmem:[%s72 + $0xc] sm:$0xf]
  %v1835 = vunpack.c.l.b16 %v1803
  %v1836 = vunpack.c.l.b16 %v1804
  %v1837 = vunpack.c.l.b16 %v1805
  %v1838 = vunpack.c.l.b16 %v1806
  %v1839 = vunpack.c.l.b16 %v1807
  %v1840 = vunpack.c.l.b16 %v1808
  %v1841 = vunpack.c.l.b16 %v1809
  %v1842 = vunpack.c.l.b16 %v1810
  %v1843 = vunpack.c.l.b16 %v1811
  %v1844 = vunpack.c.l.b16 %v1812
  %v1845 = vunpack.c.l.b16 %v1813
  %v1846 = vunpack.c.l.b16 %v1814
  %v1847 = vunpack.c.l.b16 %v1815
  %v1848 = vunpack.c.l.b16 %v1816
  %v1849 = vpack.c.b16 %v1836, %v1835
  %v1850 = vpack.c.b16 %v1838, %v1837
  %v1851 = vpack.c.b16 %v1840, %v1839
  %v1852 = vpack.c.b16 %v1842, %v1841
  %v1853 = vpack.c.b16 %v1844, %v1843
  %v1854 = vpack.c.b16 %v1846, %v1845
  %v1855 = vpack.c.b16 %v1848, %v1847
  %v1860 = vunpack.c.l.b16 %v1817
  %v1861 = vunpack.c.l.b16 %v1818
  %v1862 = vunpack.c.l.b16 %v1819
  %v1863 = vunpack.c.l.b16 %v1820
  %v1864 = vpack.c.b16 %v1861, %v1860
  %v1865 = vpack.c.b16 %v1863, %v1862
  %v1869 = vsel %vm124, %v1849, 0
  %v1872 = vsel %vm124, %v1850, 0
  %v1875 = vsel %vm124, %v1851, 0
  %v1878 = vsel %vm124, %v1852, 0
  %v1881 = vsel %vm124, %v1853, 0
  %v1884 = vsel %vm124, %v1854, 0
  %v1887 = vsel %vm124, %v1855, 0
  %1889 = vmatpush.bf16.msra.mxu0 0
  %1890 = vmatpush.bf16.msra.mxu0 0
  %1891 = vmatpush.bf16.msra.mxu0 0
  %1892 = vmatpush.bf16.msra.mxu0 0
  %1893 = vmatpush.bf16.msra.mxu0 0
  %1894 = vmatpush.bf16.msra.mxu0 0
  %1895 = vmatpush.bf16.msra.mxu0 %v1865
  %1896 = vmatpush.bf16.msra.mxu0 %v1864
  %1897 = vmatmul.bf16.gmra.mxu0 %v1869
  %v1898 = vpop.f32.mrf.mxu0
  %v1899 = vadd.f32 0.0, %v1898
  %v1900 = vpop.f32.mrf.mxu0
  %v1901 = vadd.f32 0.0, %v1900
  %1902 = vmatmul.bf16.gmra.mxu0 %v1872
  %v1903 = vpop.f32.mrf.mxu0
  %v1904 = vadd.f32 0.0, %v1903
  %v1905 = vpop.f32.mrf.mxu0
  %v1906 = vadd.f32 0.0, %v1905
  %1907 = vmatmul.bf16.gmra.mxu0 %v1875
  %v1908 = vpop.f32.mrf.mxu0
  %v1909 = vadd.f32 0.0, %v1908
  %v1910 = vpop.f32.mrf.mxu0
  %v1911 = vadd.f32 0.0, %v1910
  %1912 = vmatmul.bf16.gmra.mxu0 %v1878
  %v1913 = vpop.f32.mrf.mxu0
  %v1914 = vadd.f32 0.0, %v1913
  %v1915 = vpop.f32.mrf.mxu0
  %v1916 = vadd.f32 0.0, %v1915
  %1917 = vmatmul.bf16.gmra.mxu0 %v1881
  %v1918 = vpop.f32.mrf.mxu0
  %v1919 = vadd.f32 0.0, %v1918
  %v1920 = vpop.f32.mrf.mxu0
  %v1921 = vadd.f32 0.0, %v1920
  %1922 = vmatmul.bf16.gmra.mxu0 %v1884
  %v1923 = vpop.f32.mrf.mxu0
  %v1924 = vadd.f32 0.0, %v1923
  %v1925 = vpop.f32.mrf.mxu0
  %v1926 = vadd.f32 0.0, %v1925
  %1927 = vmatmul.bf16.gmra.mxu0 %v1887
  %v1928 = vpop.f32.mrf.mxu0
  %v1929 = vadd.f32 0.0, %v1928
  %v1930 = vpop.f32.mrf.mxu0
  %v1931 = vadd.f32 0.0, %v1930
  %1932 = vdwg.mxu0
  %v1947 = vunpack.c.l.b16 %v1785
  %v1948 = vunpack.c.l.b16 %v1786
  %v1949 = vunpack.c.l.b16 %v1787
  %v1950 = vunpack.c.l.b16 %v1788
  %v1951 = vunpack.c.l.b16 %v1789
  %v1952 = vunpack.c.l.b16 %v1790
  %v1953 = vunpack.c.l.b16 %v1791
  %v1954 = vunpack.c.l.b16 %v1792
  %v1955 = vunpack.c.l.b16 %v1793
  %v1956 = vunpack.c.l.b16 %v1794
  %v1957 = vunpack.c.l.b16 %v1795
  %v1958 = vunpack.c.l.b16 %v1796
  %v1959 = vunpack.c.l.b16 %v1797
  %v1960 = vunpack.c.l.b16 %v1798
  %v1961 = vpack.c.b16 %v1948, %v1947
  %v1962 = vpack.c.b16 %v1950, %v1949
  %v1963 = vpack.c.b16 %v1952, %v1951
  %v1964 = vpack.c.b16 %v1954, %v1953
  %v1965 = vpack.c.b16 %v1956, %v1955
  %v1966 = vpack.c.b16 %v1958, %v1957
  %v1967 = vpack.c.b16 %v1960, %v1959
  %v1972 = vunpack.c.l.b16 %v1799
  %v1973 = vunpack.c.l.b16 %v1800
  %v1974 = vunpack.c.l.b16 %v1801
  %v1975 = vunpack.c.l.b16 %v1802
  %v1976 = vpack.c.b16 %v1973, %v1972
  %v1977 = vpack.c.b16 %v1975, %v1974
  %v1981 = vsel %vm124, %v1961, 0
  %v1984 = vsel %vm124, %v1962, 0
  %v1987 = vsel %vm124, %v1963, 0
  %v1990 = vsel %vm124, %v1964, 0
  %v1993 = vsel %vm124, %v1965, 0
  %v1996 = vsel %vm124, %v1966, 0
  %v1999 = vsel %vm124, %v1967, 0
  %2001 = vmatpush.bf16.msra.mxu0 0
  %2002 = vmatpush.bf16.msra.mxu0 0
  %2003 = vmatpush.bf16.msra.mxu0 0
  %2004 = vmatpush.bf16.msra.mxu0 0
  %2005 = vmatpush.bf16.msra.mxu0 0
  %2006 = vmatpush.bf16.msra.mxu0 0
  %2007 = vmatpush.bf16.msra.mxu0 %v1977
  %2008 = vmatpush.bf16.msra.mxu0 %v1976
  %2009 = vmatmul.bf16.gmra.mxu0 %v1981
  %v2010 = vpop.f32.mrf.mxu0
  %v2011 = vadd.f32 %v1899, %v2010
  %v2012 = vpop.f32.mrf.mxu0
  %v2013 = vadd.f32 %v1901, %v2012
  %2014 = vmatmul.bf16.gmra.mxu0 %v1984
  %v2015 = vpop.f32.mrf.mxu0
  %v2016 = vadd.f32 %v1904, %v2015
  %v2017 = vpop.f32.mrf.mxu0
  %v2018 = vadd.f32 %v1906, %v2017
  %2019 = vmatmul.bf16.gmra.mxu0 %v1987
  %v2020 = vpop.f32.mrf.mxu0
  %v2021 = vadd.f32 %v1909, %v2020
  %v2022 = vpop.f32.mrf.mxu0
  %v2023 = vadd.f32 %v1911, %v2022
  %2024 = vmatmul.bf16.gmra.mxu0 %v1990
  %v2025 = vpop.f32.mrf.mxu0
  %v2026 = vadd.f32 %v1914, %v2025
  %v2027 = vpop.f32.mrf.mxu0
  %v2028 = vadd.f32 %v1916, %v2027
  %2029 = vmatmul.bf16.gmra.mxu0 %v1993
  %v2030 = vpop.f32.mrf.mxu0
  %v2031 = vadd.f32 %v1919, %v2030
  %v2032 = vpop.f32.mrf.mxu0
  %v2033 = vadd.f32 %v1921, %v2032
  %2034 = vmatmul.bf16.gmra.mxu0 %v1996
  %v2035 = vpop.f32.mrf.mxu0
  %v2036 = vadd.f32 %v1924, %v2035
  %v2037 = vpop.f32.mrf.mxu0
  %v2038 = vadd.f32 %v1926, %v2037
  %2039 = vmatmul.bf16.gmra.mxu0 %v1999
  %v2040 = vpop.f32.mrf.mxu0
  %v2041 = vadd.f32 %v1929, %v2040
  %v2042 = vpop.f32.mrf.mxu0
  %v2043 = vadd.f32 %v1931, %v2042
  %2044 = vdwg.mxu0
  %v2045 = vld [vmem:[%s594] sm:$0xf]
  %v2046 = vld [vmem:[%s594 + $0x4] sm:$0xf]
  %v2047 = vld [vmem:[%s594 + $0x8] sm:$0xf]
  %v2048 = vld [vmem:[%s594 + $0xc] sm:$0xf]
  %v2049 = vld [vmem:[%s594 + $0x10] sm:$0xf]
  %v2050 = vld [vmem:[%s594 + $0x14] sm:$0xf]
  %v2051 = vld [vmem:[%s594 + $0x18] sm:$0xf]
  %v2052 = vld [vmem:[%s594 + $0x1c] sm:$0xf]
  %v2053 = vld [vmem:[%s594 + $0x20] sm:$0xf]
  %v2054 = vld [vmem:[%s594 + $0x24] sm:$0xf]
  %v2055 = vld [vmem:[%s594 + $0x28] sm:$0xf]
  %v2056 = vld [vmem:[%s594 + $0x2c] sm:$0xf]
  %v2057 = vld [vmem:[%s594 + $0x30] sm:$0xf]
  %v2058 = vld [vmem:[%s594 + $0x34] sm:$0xf]
  %v2059 = vld [vmem:[%s317] sm:$0xf]
  %v2060 = vld [vmem:[%s317 + $0x4] sm:$0xf]
  %v2061 = vld [vmem:[%s317 + $0x8] sm:$0xf]
  %v2062 = vld [vmem:[%s317 + $0xc] sm:$0xf]
  %v2077 = vunpack.c.l.b16 %v2045
  %v2078 = vunpack.c.l.b16 %v2046
  %v2079 = vunpack.c.l.b16 %v2047
  %v2080 = vunpack.c.l.b16 %v2048
  %v2081 = vunpack.c.l.b16 %v2049
  %v2082 = vunpack.c.l.b16 %v2050
  %v2083 = vunpack.c.l.b16 %v2051
  %v2084 = vunpack.c.l.b16 %v2052
  %v2085 = vunpack.c.l.b16 %v2053
  %v2086 = vunpack.c.l.b16 %v2054
  %v2087 = vunpack.c.l.b16 %v2055
  %v2088 = vunpack.c.l.b16 %v2056
  %v2089 = vunpack.c.l.b16 %v2057
  %v2090 = vunpack.c.l.b16 %v2058
  %v2091 = vpack.c.b16 %v2078, %v2077
  %v2092 = vpack.c.b16 %v2080, %v2079
  %v2093 = vpack.c.b16 %v2082, %v2081
  %v2094 = vpack.c.b16 %v2084, %v2083
  %v2095 = vpack.c.b16 %v2086, %v2085
  %v2096 = vpack.c.b16 %v2088, %v2087
  %v2097 = vpack.c.b16 %v2090, %v2089
  %v2102 = vunpack.c.l.b16 %v2059
  %v2103 = vunpack.c.l.b16 %v2060
  %v2104 = vunpack.c.l.b16 %v2061
  %v2105 = vunpack.c.l.b16 %v2062
  %v2106 = vpack.c.b16 %v2103, %v2102
  %v2107 = vpack.c.b16 %v2105, %v2104
  %v2111 = vsel %vm124, %v2091, 0
  %v2114 = vsel %vm124, %v2092, 0
  %v2117 = vsel %vm124, %v2093, 0
  %v2120 = vsel %vm124, %v2094, 0
  %v2123 = vsel %vm124, %v2095, 0
  %v2126 = vsel %vm124, %v2096, 0
  %v2129 = vsel %vm124, %v2097, 0
  %2131 = vmatpush.bf16.msra.mxu0 0
  %2132 = vmatpush.bf16.msra.mxu0 0
  %2133 = vmatpush.bf16.msra.mxu0 0
  %2134 = vmatpush.bf16.msra.mxu0 0
  %2135 = vmatpush.bf16.msra.mxu0 0
  %2136 = vmatpush.bf16.msra.mxu0 0
  %2137 = vmatpush.bf16.msra.mxu0 %v2107
  %2138 = vmatpush.bf16.msra.mxu0 %v2106
  %2139 = vmatmul.bf16.gmra.mxu0 %v2111
  %v2140 = vpop.f32.mrf.mxu0
  %v2141 = vadd.f32 0.0, %v2140
  %v2142 = vpop.f32.mrf.mxu0
  %v2143 = vadd.f32 0.0, %v2142
  %2144 = vmatmul.bf16.gmra.mxu0 %v2114
  %v2145 = vpop.f32.mrf.mxu0
  %v2146 = vadd.f32 0.0, %v2145
  %v2147 = vpop.f32.mrf.mxu0
  %v2148 = vadd.f32 0.0, %v2147
  %2149 = vmatmul.bf16.gmra.mxu0 %v2117
  %v2150 = vpop.f32.mrf.mxu0
  %v2151 = vadd.f32 0.0, %v2150
  %v2152 = vpop.f32.mrf.mxu0
  %v2153 = vadd.f32 0.0, %v2152
  %2154 = vmatmul.bf16.gmra.mxu0 %v2120
  %v2155 = vpop.f32.mrf.mxu0
  %v2156 = vadd.f32 0.0, %v2155
  %v2157 = vpop.f32.mrf.mxu0
  %v2158 = vadd.f32 0.0, %v2157
  %2159 = vmatmul.bf16.gmra.mxu0 %v2123
  %v2160 = vpop.f32.mrf.mxu0
  %v2161 = vadd.f32 0.0, %v2160
  %v2162 = vpop.f32.mrf.mxu0
  %v2163 = vadd.f32 0.0, %v2162
  %2164 = vmatmul.bf16.gmra.mxu0 %v2126
  %v2165 = vpop.f32.mrf.mxu0
  %v2166 = vadd.f32 0.0, %v2165
  %v2167 = vpop.f32.mrf.mxu0
  %v2168 = vadd.f32 0.0, %v2167
  %2169 = vmatmul.bf16.gmra.mxu0 %v2129
  %v2170 = vpop.f32.mrf.mxu0
  %v2171 = vadd.f32 0.0, %v2170
  %v2172 = vpop.f32.mrf.mxu0
  %v2173 = vadd.f32 0.0, %v2172
  %2174 = vdwg.mxu0
  %v2175 = vadd.f32 %v2011, %v2141
  %v2176 = vadd.f32 %v2013, %v2143
  %v2177 = vadd.f32 %v2016, %v2146
  %v2178 = vadd.f32 %v2018, %v2148
  %v2179 = vadd.f32 %v2021, %v2151
  %v2180 = vadd.f32 %v2023, %v2153
  %v2181 = vadd.f32 %v2026, %v2156
  %v2182 = vadd.f32 %v2028, %v2158
  %v2183 = vadd.f32 %v2031, %v2161
  %v2184 = vadd.f32 %v2033, %v2163
  %v2185 = vadd.f32 %v2036, %v2166
  %v2186 = vadd.f32 %v2038, %v2168
  %v2187 = vadd.f32 %v2041, %v2171
  %v2188 = vadd.f32 %v2043, %v2173
  %v2189 = vld [vmem:[%s1305] sm:$0xf]
  %v2190 = vld [vmem:[%s1305 + $0x4] sm:$0xf]
  %v2191 = vld [vmem:[%s1305 + $0x8] sm:$0xf]
  %v2192 = vld [vmem:[%s1305 + $0xc] sm:$0xf]
  %v2193 = vld [vmem:[%s1305 + $0x10] sm:$0xf]
  %v2194 = vld [vmem:[%s1305 + $0x14] sm:$0xf]
  %v2195 = vld [vmem:[%s1305 + $0x18] sm:$0xf]
  %v2196 = vld [vmem:[%s1305 + $0x1c] sm:$0xf]
  %v2197 = vld [vmem:[%s1305 + $0x20] sm:$0xf]
  %v2198 = vld [vmem:[%s1305 + $0x24] sm:$0xf]
  %v2199 = vld [vmem:[%s1305 + $0x28] sm:$0xf]
  %v2200 = vld [vmem:[%s1305 + $0x2c] sm:$0xf]
  %v2201 = vld [vmem:[%s1305 + $0x30] sm:$0xf]
  %v2202 = vld [vmem:[%s1305 + $0x34] sm:$0xf]
  %v2203 = vld [vmem:[%s463] sm:$0xf]
  %v2204 = vld [vmem:[%s463 + $0x4] sm:$0xf]
  %v2205 = vld [vmem:[%s463 + $0x8] sm:$0xf]
  %v2206 = vld [vmem:[%s463 + $0xc] sm:$0xf]
  %v2221 = vunpack.c.l.b16 %v2189
  %v2222 = vunpack.c.l.b16 %v2190
  %v2223 = vunpack.c.l.b16 %v2191
  %v2224 = vunpack.c.l.b16 %v2192
  %v2225 = vunpack.c.l.b16 %v2193
  %v2226 = vunpack.c.l.b16 %v2194
  %v2227 = vunpack.c.l.b16 %v2195
  %v2228 = vunpack.c.l.b16 %v2196
  %v2229 = vunpack.c.l.b16 %v2197
  %v2230 = vunpack.c.l.b16 %v2198
  %v2231 = vunpack.c.l.b16 %v2199
  %v2232 = vunpack.c.l.b16 %v2200
  %v2233 = vunpack.c.l.b16 %v2201
  %v2234 = vunpack.c.l.b16 %v2202
  %v2235 = vpack.c.b16 %v2222, %v2221
  %v2236 = vpack.c.b16 %v2224, %v2223
  %v2237 = vpack.c.b16 %v2226, %v2225
  %v2238 = vpack.c.b16 %v2228, %v2227
  %v2239 = vpack.c.b16 %v2230, %v2229
  %v2240 = vpack.c.b16 %v2232, %v2231
  %v2241 = vpack.c.b16 %v2234, %v2233
  %v2246 = vunpack.c.l.b16 %v2203
  %v2247 = vunpack.c.l.b16 %v2204
  %v2248 = vunpack.c.l.b16 %v2205
  %v2249 = vunpack.c.l.b16 %v2206
  %v2250 = vpack.c.b16 %v2247, %v2246
  %v2251 = vpack.c.b16 %v2249, %v2248
  %v2255 = vsel %vm124, %v2235, 0
  %v2258 = vsel %vm124, %v2236, 0
  %v2261 = vsel %vm124, %v2237, 0
  %v2264 = vsel %vm124, %v2238, 0
  %v2267 = vsel %vm124, %v2239, 0
  %v2270 = vsel %vm124, %v2240, 0
  %v2273 = vsel %vm124, %v2241, 0
  %2275 = vmatpush.bf16.msra.mxu0 0
  %2276 = vmatpush.bf16.msra.mxu0 0
  %2277 = vmatpush.bf16.msra.mxu0 0
  %2278 = vmatpush.bf16.msra.mxu0 0
  %2279 = vmatpush.bf16.msra.mxu0 0
  %2280 = vmatpush.bf16.msra.mxu0 0
  %2281 = vmatpush.bf16.msra.mxu0 %v2251
  %2282 = vmatpush.bf16.msra.mxu0 %v2250
  %2283 = vmatmul.bf16.gmra.mxu0 %v2255
  %v2284 = vpop.f32.mrf.mxu0
  %v2285 = vadd.f32 0.0, %v2284
  %v2286 = vpop.f32.mrf.mxu0
  %v2287 = vadd.f32 0.0, %v2286
  %2288 = vmatmul.bf16.gmra.mxu0 %v2258
  %v2289 = vpop.f32.mrf.mxu0
  %v2290 = vadd.f32 0.0, %v2289
  %v2291 = vpop.f32.mrf.mxu0
  %v2292 = vadd.f32 0.0, %v2291
  %2293 = vmatmul.bf16.gmra.mxu0 %v2261
  %v2294 = vpop.f32.mrf.mxu0
  %v2295 = vadd.f32 0.0, %v2294
  %v2296 = vpop.f32.mrf.mxu0
  %v2297 = vadd.f32 0.0, %v2296
  %2298 = vmatmul.bf16.gmra.mxu0 %v2264
  %v2299 = vpop.f32.mrf.mxu0
  %v2300 = vadd.f32 0.0, %v2299
  %v2301 = vpop.f32.mrf.mxu0
  %v2302 = vadd.f32 0.0, %v2301
  %2303 = vmatmul.bf16.gmra.mxu0 %v2267
  %v2304 = vpop.f32.mrf.mxu0
  %v2305 = vadd.f32 0.0, %v2304
  %v2306 = vpop.f32.mrf.mxu0
  %v2307 = vadd.f32 0.0, %v2306
  %2308 = vmatmul.bf16.gmra.mxu0 %v2270
  %v2309 = vpop.f32.mrf.mxu0
  %v2310 = vadd.f32 0.0, %v2309
  %v2311 = vpop.f32.mrf.mxu0
  %v2312 = vadd.f32 0.0, %v2311
  %2313 = vmatmul.bf16.gmra.mxu0 %v2273
  %v2314 = vpop.f32.mrf.mxu0
  %v2315 = vadd.f32 0.0, %v2314
  %v2316 = vpop.f32.mrf.mxu0
  %v2317 = vadd.f32 0.0, %v2316
  %2318 = vdwg.mxu0
  %v2319 = vadd.f32 %v2175, %v2285
  %v2320 = vadd.f32 %v2176, %v2287
  %v2321 = vadd.f32 %v2177, %v2290
  %v2322 = vadd.f32 %v2178, %v2292
  %v2323 = vadd.f32 %v2179, %v2295
  %v2324 = vadd.f32 %v2180, %v2297
  %v2325 = vadd.f32 %v2181, %v2300
  %v2326 = vadd.f32 %v2182, %v2302
  %v2327 = vadd.f32 %v2183, %v2305
  %v2328 = vadd.f32 %v2184, %v2307
  %v2329 = vadd.f32 %v2185, %v2310
  %v2330 = vadd.f32 %v2186, %v2312
  %v2331 = vadd.f32 %v2187, %v2315
  %v2332 = vadd.f32 %v2188, %v2317
  %s2333 = scalar_lea.vmem %s0, 136
  %v2334 = vld [vmem:[%s2333] sm:$0xf]
  %v2335 = vld [vmem:[%s2333 + $0x4] sm:$0xf]
  %v2336 = vld [vmem:[%s2333 + $0x8] sm:$0xf]
  %v2337 = vld [vmem:[%s2333 + $0xc] sm:$0xf]
  %v2338 = vld [vmem:[%s2333 + $0x10] sm:$0xf]
  %v2339 = vld [vmem:[%s2333 + $0x14] sm:$0xf]
  %v2340 = vld [vmem:[%s2333 + $0x18] sm:$0xf]
  %v2341 = vld [vmem:[%s2333 + $0x1c] sm:$0xf]
  %v2342 = vld [vmem:[%s2333 + $0x20] sm:$0xf]
  %v2343 = vld [vmem:[%s2333 + $0x24] sm:$0xf]
  %v2344 = vld [vmem:[%s2333 + $0x28] sm:$0xf]
  %v2345 = vld [vmem:[%s2333 + $0x2c] sm:$0xf]
  %v2346 = vld [vmem:[%s2333 + $0x30] sm:$0xf]
  %v2347 = vld [vmem:[%s2333 + $0x34] sm:$0xf]
  %v2348 = vld [vmem:[%s609] sm:$0xf]
  %v2349 = vld [vmem:[%s609 + $0x4] sm:$0xf]
  %v2350 = vld [vmem:[%s609 + $0x8] sm:$0xf]
  %v2351 = vld [vmem:[%s609 + $0xc] sm:$0xf]
  %v2366 = vunpack.c.l.b16 %v2334
  %v2367 = vunpack.c.l.b16 %v2335
  %v2368 = vunpack.c.l.b16 %v2336
  %v2369 = vunpack.c.l.b16 %v2337
  %v2370 = vunpack.c.l.b16 %v2338
  %v2371 = vunpack.c.l.b16 %v2339
  %v2372 = vunpack.c.l.b16 %v2340
  %v2373 = vunpack.c.l.b16 %v2341
  %v2374 = vunpack.c.l.b16 %v2342
  %v2375 = vunpack.c.l.b16 %v2343
  %v2376 = vunpack.c.l.b16 %v2344
  %v2377 = vunpack.c.l.b16 %v2345
  %v2378 = vunpack.c.l.b16 %v2346
  %v2379 = vunpack.c.l.b16 %v2347
  %v2380 = vpack.c.b16 %v2367, %v2366
  %v2381 = vpack.c.b16 %v2369, %v2368
  %v2382 = vpack.c.b16 %v2371, %v2370
  %v2383 = vpack.c.b16 %v2373, %v2372
  %v2384 = vpack.c.b16 %v2375, %v2374
  %v2385 = vpack.c.b16 %v2377, %v2376
  %v2386 = vpack.c.b16 %v2379, %v2378
  %v2391 = vunpack.c.l.b16 %v2348
  %v2392 = vunpack.c.l.b16 %v2349
  %v2393 = vunpack.c.l.b16 %v2350
  %v2394 = vunpack.c.l.b16 %v2351
  %v2395 = vpack.c.b16 %v2392, %v2391
  %v2396 = vpack.c.b16 %v2394, %v2393
  %v2400 = vsel %vm124, %v2380, 0
  %v2403 = vsel %vm124, %v2381, 0
  %v2406 = vsel %vm124, %v2382, 0
  %v2409 = vsel %vm124, %v2383, 0
  %v2412 = vsel %vm124, %v2384, 0
  %v2415 = vsel %vm124, %v2385, 0
  %v2418 = vsel %vm124, %v2386, 0
  %2420 = vmatpush.bf16.msra.mxu0 0
  %2421 = vmatpush.bf16.msra.mxu0 0
  %2422 = vmatpush.bf16.msra.mxu0 0
  %2423 = vmatpush.bf16.msra.mxu0 0
  %2424 = vmatpush.bf16.msra.mxu0 0
  %2425 = vmatpush.bf16.msra.mxu0 0
  %2426 = vmatpush.bf16.msra.mxu0 %v2396
  %2427 = vmatpush.bf16.msra.mxu0 %v2395
  %2428 = vmatmul.bf16.gmra.mxu0 %v2400
  %v2429 = vpop.f32.mrf.mxu0
  %v2430 = vadd.f32 0.0, %v2429
  %v2431 = vpop.f32.mrf.mxu0
  %v2432 = vadd.f32 0.0, %v2431
  %2433 = vmatmul.bf16.gmra.mxu0 %v2403
  %v2434 = vpop.f32.mrf.mxu0
  %v2435 = vadd.f32 0.0, %v2434
  %v2436 = vpop.f32.mrf.mxu0
  %v2437 = vadd.f32 0.0, %v2436
  %2438 = vmatmul.bf16.gmra.mxu0 %v2406
  %v2439 = vpop.f32.mrf.mxu0
  %v2440 = vadd.f32 0.0, %v2439
  %v2441 = vpop.f32.mrf.mxu0
  %v2442 = vadd.f32 0.0, %v2441
  %2443 = vmatmul.bf16.gmra.mxu0 %v2409
  %v2444 = vpop.f32.mrf.mxu0
  %v2445 = vadd.f32 0.0, %v2444
  %v2446 = vpop.f32.mrf.mxu0
  %v2447 = vadd.f32 0.0, %v2446
  %2448 = vmatmul.bf16.gmra.mxu0 %v2412
  %v2449 = vpop.f32.mrf.mxu0
  %v2450 = vadd.f32 0.0, %v2449
  %v2451 = vpop.f32.mrf.mxu0
  %v2452 = vadd.f32 0.0, %v2451
  %2453 = vmatmul.bf16.gmra.mxu0 %v2415
  %v2454 = vpop.f32.mrf.mxu0
  %v2455 = vadd.f32 0.0, %v2454
  %v2456 = vpop.f32.mrf.mxu0
  %v2457 = vadd.f32 0.0, %v2456
  %2458 = vmatmul.bf16.gmra.mxu0 %v2418
  %v2459 = vpop.f32.mrf.mxu0
  %v2460 = vadd.f32 0.0, %v2459
  %v2461 = vpop.f32.mrf.mxu0
  %v2462 = vadd.f32 0.0, %v2461
  %2463 = vdwg.mxu0
  %v2464 = vadd.f32 %v2319, %v2430
  %v2465 = vadd.f32 %v2320, %v2432
  %v2466 = vadd.f32 %v2321, %v2435
  %v2467 = vadd.f32 %v2322, %v2437
  %v2468 = vadd.f32 %v2323, %v2440
  %v2469 = vadd.f32 %v2324, %v2442
  %v2470 = vadd.f32 %v2325, %v2445
  %v2471 = vadd.f32 %v2326, %v2447
  %v2472 = vadd.f32 %v2327, %v2450
  %v2473 = vadd.f32 %v2328, %v2452
  %v2474 = vadd.f32 %v2329, %v2455
  %v2475 = vadd.f32 %v2330, %v2457
  %v2476 = vadd.f32 %v2331, %v2460
  %v2477 = vadd.f32 %v2332, %v2462
  %v2478 = vld [vmem:[%s740] sm:$0xf]
  %v2479 = vld [vmem:[%s740 + $0x4] sm:$0xf]
  %v2480 = vld [vmem:[%s740 + $0x8] sm:$0xf]
  %v2481 = vld [vmem:[%s740 + $0xc] sm:$0xf]
  %v2482 = vld [vmem:[%s745] sm:$0xf]
  %v2483 = vld [vmem:[%s745 + $0x4] sm:$0xf]
  %v2484 = vld [vmem:[%s745 + $0x8] sm:$0xf]
  %v2485 = vld [vmem:[%s745 + $0xc] sm:$0xf]
  %v2490 = vunpack.c.l.b16 %v2482
  %v2491 = vunpack.c.l.b16 %v2483
  %v2492 = vunpack.c.l.b16 %v2484
  %v2493 = vunpack.c.l.b16 %v2485
  %v2494 = vpack.c.b16 %v2491, %v2490
  %v2495 = vpack.c.b16 %v2493, %v2492
  %2498 = vmatpush.bf16.msra.mxu0 0
  %2499 = vmatpush.bf16.msra.mxu0 0
  %2500 = vmatpush.bf16.msra.mxu0 0
  %2501 = vmatpush.bf16.msra.mxu0 0
  %2502 = vmatpush.bf16.msra.mxu0 0
  %2503 = vmatpush.bf16.msra.mxu0 0
  %2504 = vmatpush.bf16.msra.mxu0 %v2495
  %2505 = vmatpush.bf16.msra.mxu0 %v2494
  %2506 = vmatmul.bf16.gmra.mxu0 %v1869
  %v2507 = vpop.f32.mrf.mxu0
  %v2508 = vadd.f32 0.0, %v2507
  %v2509 = vpop.f32.mrf.mxu0
  %v2510 = vadd.f32 0.0, %v2509
  %2511 = vmatmul.bf16.gmra.mxu0 %v1872
  %v2512 = vpop.f32.mrf.mxu0
  %v2513 = vadd.f32 0.0, %v2512
  %v2514 = vpop.f32.mrf.mxu0
  %v2515 = vadd.f32 0.0, %v2514
  %2516 = vmatmul.bf16.gmra.mxu0 %v1875
  %v2517 = vpop.f32.mrf.mxu0
  %v2518 = vadd.f32 0.0, %v2517
  %v2519 = vpop.f32.mrf.mxu0
  %v2520 = vadd.f32 0.0, %v2519
  %2521 = vmatmul.bf16.gmra.mxu0 %v1878
  %v2522 = vpop.f32.mrf.mxu0
  %v2523 = vadd.f32 0.0, %v2522
  %v2524 = vpop.f32.mrf.mxu0
  %v2525 = vadd.f32 0.0, %v2524
  %2526 = vmatmul.bf16.gmra.mxu0 %v1881
  %v2527 = vpop.f32.mrf.mxu0
  %v2528 = vadd.f32 0.0, %v2527
  %v2529 = vpop.f32.mrf.mxu0
  %v2530 = vadd.f32 0.0, %v2529
  %2531 = vmatmul.bf16.gmra.mxu0 %v1884
  %v2532 = vpop.f32.mrf.mxu0
  %v2533 = vadd.f32 0.0, %v2532
  %v2534 = vpop.f32.mrf.mxu0
  %v2535 = vadd.f32 0.0, %v2534
  %2536 = vmatmul.bf16.gmra.mxu0 %v1887
  %v2537 = vpop.f32.mrf.mxu0
  %v2538 = vadd.f32 0.0, %v2537
  %v2539 = vpop.f32.mrf.mxu0
  %v2540 = vadd.f32 0.0, %v2539
  %2541 = vdwg.mxu0
  %v2546 = vunpack.c.l.b16 %v2478
  %v2547 = vunpack.c.l.b16 %v2479
  %v2548 = vunpack.c.l.b16 %v2480
  %v2549 = vunpack.c.l.b16 %v2481
  %v2550 = vpack.c.b16 %v2547, %v2546
  %v2551 = vpack.c.b16 %v2549, %v2548
  %2554 = vmatpush.bf16.msra.mxu0 0
  %2555 = vmatpush.bf16.msra.mxu0 0
  %2556 = vmatpush.bf16.msra.mxu0 0
  %2557 = vmatpush.bf16.msra.mxu0 0
  %2558 = vmatpush.bf16.msra.mxu0 0
  %2559 = vmatpush.bf16.msra.mxu0 0
  %2560 = vmatpush.bf16.msra.mxu0 %v2551
  %2561 = vmatpush.bf16.msra.mxu0 %v2550
  %2562 = vmatmul.bf16.gmra.mxu0 %v1981
  %v2563 = vpop.f32.mrf.mxu0
  %v2564 = vadd.f32 %v2508, %v2563
  %v2565 = vpop.f32.mrf.mxu0
  %v2566 = vadd.f32 %v2510, %v2565
  %2567 = vmatmul.bf16.gmra.mxu0 %v1984
  %v2568 = vpop.f32.mrf.mxu0
  %v2569 = vadd.f32 %v2513, %v2568
  %v2570 = vpop.f32.mrf.mxu0
  %v2571 = vadd.f32 %v2515, %v2570
  %2572 = vmatmul.bf16.gmra.mxu0 %v1987
  %v2573 = vpop.f32.mrf.mxu0
  %v2574 = vadd.f32 %v2518, %v2573
  %v2575 = vpop.f32.mrf.mxu0
  %v2576 = vadd.f32 %v2520, %v2575
  %2577 = vmatmul.bf16.gmra.mxu0 %v1990
  %v2578 = vpop.f32.mrf.mxu0
  %v2579 = vadd.f32 %v2523, %v2578
  %v2580 = vpop.f32.mrf.mxu0
  %v2581 = vadd.f32 %v2525, %v2580
  %2582 = vmatmul.bf16.gmra.mxu0 %v1993
  %v2583 = vpop.f32.mrf.mxu0
  %v2584 = vadd.f32 %v2528, %v2583
  %v2585 = vpop.f32.mrf.mxu0
  %v2586 = vadd.f32 %v2530, %v2585
  %2587 = vmatmul.bf16.gmra.mxu0 %v1996
  %v2588 = vpop.f32.mrf.mxu0
  %v2589 = vadd.f32 %v2533, %v2588
  %v2590 = vpop.f32.mrf.mxu0
  %v2591 = vadd.f32 %v2535, %v2590
  %2592 = vmatmul.bf16.gmra.mxu0 %v1999
  %v2593 = vpop.f32.mrf.mxu0
  %v2594 = vadd.f32 %v2538, %v2593
  %v2595 = vpop.f32.mrf.mxu0
  %v2596 = vadd.f32 %v2540, %v2595
  %2597 = vdwg.mxu0
  %v2598 = vld [vmem:[%s862] sm:$0xf]
  %v2599 = vld [vmem:[%s862 + $0x4] sm:$0xf]
  %v2600 = vld [vmem:[%s862 + $0x8] sm:$0xf]
  %v2601 = vld [vmem:[%s862 + $0xc] sm:$0xf]
  %v2606 = vunpack.c.l.b16 %v2598
  %v2607 = vunpack.c.l.b16 %v2599
  %v2608 = vunpack.c.l.b16 %v2600
  %v2609 = vunpack.c.l.b16 %v2601
  %v2610 = vpack.c.b16 %v2607, %v2606
  %v2611 = vpack.c.b16 %v2609, %v2608
  %2614 = vmatpush.bf16.msra.mxu0 0
  %2615 = vmatpush.bf16.msra.mxu0 0
  %2616 = vmatpush.bf16.msra.mxu0 0
  %2617 = vmatpush.bf16.msra.mxu0 0
  %2618 = vmatpush.bf16.msra.mxu0 0
  %2619 = vmatpush.bf16.msra.mxu0 0
  %2620 = vmatpush.bf16.msra.mxu0 %v2611
  %2621 = vmatpush.bf16.msra.mxu0 %v2610
  %2622 = vmatmul.bf16.gmra.mxu0 %v2111
  %v2623 = vpop.f32.mrf.mxu0
  %v2624 = vadd.f32 0.0, %v2623
  %v2625 = vpop.f32.mrf.mxu0
  %v2626 = vadd.f32 0.0, %v2625
  %2627 = vmatmul.bf16.gmra.mxu0 %v2114
  %v2628 = vpop.f32.mrf.mxu0
  %v2629 = vadd.f32 0.0, %v2628
  %v2630 = vpop.f32.mrf.mxu0
  %v2631 = vadd.f32 0.0, %v2630
  %2632 = vmatmul.bf16.gmra.mxu0 %v2117
  %v2633 = vpop.f32.mrf.mxu0
  %v2634 = vadd.f32 0.0, %v2633
  %v2635 = vpop.f32.mrf.mxu0
  %v2636 = vadd.f32 0.0, %v2635
  %2637 = vmatmul.bf16.gmra.mxu0 %v2120
  %v2638 = vpop.f32.mrf.mxu0
  %v2639 = vadd.f32 0.0, %v2638
  %v2640 = vpop.f32.mrf.mxu0
  %v2641 = vadd.f32 0.0, %v2640
  %2642 = vmatmul.bf16.gmra.mxu0 %v2123
  %v2643 = vpop.f32.mrf.mxu0
  %v2644 = vadd.f32 0.0, %v2643
  %v2645 = vpop.f32.mrf.mxu0
  %v2646 = vadd.f32 0.0, %v2645
  %2647 = vmatmul.bf16.gmra.mxu0 %v2126
  %v2648 = vpop.f32.mrf.mxu0
  %v2649 = vadd.f32 0.0, %v2648
  %v2650 = vpop.f32.mrf.mxu0
  %v2651 = vadd.f32 0.0, %v2650
  %2652 = vmatmul.bf16.gmra.mxu0 %v2129
  %v2653 = vpop.f32.mrf.mxu0
  %v2654 = vadd.f32 0.0, %v2653
  %v2655 = vpop.f32.mrf.mxu0
  %v2656 = vadd.f32 0.0, %v2655
  %2657 = vdwg.mxu0
  %v2658 = vadd.f32 %v2564, %v2624
  %v2659 = vadd.f32 %v2566, %v2626
  %v2660 = vadd.f32 %v2569, %v2629
  %v2661 = vadd.f32 %v2571, %v2631
  %v2662 = vadd.f32 %v2574, %v2634
  %v2663 = vadd.f32 %v2576, %v2636
  %v2664 = vadd.f32 %v2579, %v2639
  %v2665 = vadd.f32 %v2581, %v2641
  %v2666 = vadd.f32 %v2584, %v2644
  %v2667 = vadd.f32 %v2586, %v2646
  %v2668 = vadd.f32 %v2589, %v2649
  %v2669 = vadd.f32 %v2591, %v2651
  %v2670 = vadd.f32 %v2594, %v2654
  %v2671 = vadd.f32 %v2596, %v2656
  %v2672 = vld [vmem:[%s937] sm:$0xf]
  %v2673 = vld [vmem:[%s937 + $0x4] sm:$0xf]
  %v2674 = vld [vmem:[%s937 + $0x8] sm:$0xf]
  %v2675 = vld [vmem:[%s937 + $0xc] sm:$0xf]
  %v2680 = vunpack.c.l.b16 %v2672
  %v2681 = vunpack.c.l.b16 %v2673
  %v2682 = vunpack.c.l.b16 %v2674
  %v2683 = vunpack.c.l.b16 %v2675
  %v2684 = vpack.c.b16 %v2681, %v2680
  %v2685 = vpack.c.b16 %v2683, %v2682
  %2688 = vmatpush.bf16.msra.mxu0 0
  %2689 = vmatpush.bf16.msra.mxu0 0
  %2690 = vmatpush.bf16.msra.mxu0 0
  %2691 = vmatpush.bf16.msra.mxu0 0
  %2692 = vmatpush.bf16.msra.mxu0 0
  %2693 = vmatpush.bf16.msra.mxu0 0
  %2694 = vmatpush.bf16.msra.mxu0 %v2685
  %2695 = vmatpush.bf16.msra.mxu0 %v2684
  %2696 = vmatmul.bf16.gmra.mxu0 %v2255
  %v2697 = vpop.f32.mrf.mxu0
  %v2698 = vadd.f32 0.0, %v2697
  %v2699 = vpop.f32.mrf.mxu0
  %v2700 = vadd.f32 0.0, %v2699
  %2701 = vmatmul.bf16.gmra.mxu0 %v2258
  %v2702 = vpop.f32.mrf.mxu0
  %v2703 = vadd.f32 0.0, %v2702
  %v2704 = vpop.f32.mrf.mxu0
  %v2705 = vadd.f32 0.0, %v2704
  %2706 = vmatmul.bf16.gmra.mxu0 %v2261
  %v2707 = vpop.f32.mrf.mxu0
  %v2708 = vadd.f32 0.0, %v2707
  %v2709 = vpop.f32.mrf.mxu0
  %v2710 = vadd.f32 0.0, %v2709
  %2711 = vmatmul.bf16.gmra.mxu0 %v2264
  %v2712 = vpop.f32.mrf.mxu0
  %v2713 = vadd.f32 0.0, %v2712
  %v2714 = vpop.f32.mrf.mxu0
  %v2715 = vadd.f32 0.0, %v2714
  %2716 = vmatmul.bf16.gmra.mxu0 %v2267
  %v2717 = vpop.f32.mrf.mxu0
  %v2718 = vadd.f32 0.0, %v2717
  %v2719 = vpop.f32.mrf.mxu0
  %v2720 = vadd.f32 0.0, %v2719
  %2721 = vmatmul.bf16.gmra.mxu0 %v2270
  %v2722 = vpop.f32.mrf.mxu0
  %v2723 = vadd.f32 0.0, %v2722
  %v2724 = vpop.f32.mrf.mxu0
  %v2725 = vadd.f32 0.0, %v2724
  %2726 = vmatmul.bf16.gmra.mxu0 %v2273
  %v2727 = vpop.f32.mrf.mxu0
  %v2728 = vadd.f32 0.0, %v2727
  %v2729 = vpop.f32.mrf.mxu0
  %v2730 = vadd.f32 0.0, %v2729
  %2731 = vdwg.mxu0
  %v2732 = vadd.f32 %v2658, %v2698
  %v2733 = vadd.f32 %v2659, %v2700
  %v2734 = vadd.f32 %v2660, %v2703
  %v2735 = vadd.f32 %v2661, %v2705
  %v2736 = vadd.f32 %v2662, %v2708
  %v2737 = vadd.f32 %v2663, %v2710
  %v2738 = vadd.f32 %v2664, %v2713
  %v2739 = vadd.f32 %v2665, %v2715
  %v2740 = vadd.f32 %v2666, %v2718
  %v2741 = vadd.f32 %v2667, %v2720
  %v2742 = vadd.f32 %v2668, %v2723
  %v2743 = vadd.f32 %v2669, %v2725
  %v2744 = vadd.f32 %v2670, %v2728
  %v2745 = vadd.f32 %v2671, %v2730
  %v2746 = vld [vmem:[%s1012] sm:$0xf]
  %v2747 = vld [vmem:[%s1012 + $0x4] sm:$0xf]
  %v2748 = vld [vmem:[%s1012 + $0x8] sm:$0xf]
  %v2749 = vld [vmem:[%s1012 + $0xc] sm:$0xf]
  %v2754 = vunpack.c.l.b16 %v2746
  %v2755 = vunpack.c.l.b16 %v2747
  %v2756 = vunpack.c.l.b16 %v2748
  %v2757 = vunpack.c.l.b16 %v2749
  %v2758 = vpack.c.b16 %v2755, %v2754
  %v2759 = vpack.c.b16 %v2757, %v2756
  %2762 = vmatpush.bf16.msra.mxu0 0
  %2763 = vmatpush.bf16.msra.mxu0 0
  %2764 = vmatpush.bf16.msra.mxu0 0
  %2765 = vmatpush.bf16.msra.mxu0 0
  %2766 = vmatpush.bf16.msra.mxu0 0
  %2767 = vmatpush.bf16.msra.mxu0 0
  %2768 = vmatpush.bf16.msra.mxu0 %v2759
  %2769 = vmatpush.bf16.msra.mxu0 %v2758
  %2770 = vmatmul.bf16.gmra.mxu0 %v2400
  %v2771 = vpop.f32.mrf.mxu0
  %v2772 = vadd.f32 0.0, %v2771
  %v2773 = vpop.f32.mrf.mxu0
  %v2774 = vadd.f32 0.0, %v2773
  %2775 = vmatmul.bf16.gmra.mxu0 %v2403
  %v2776 = vpop.f32.mrf.mxu0
  %v2777 = vadd.f32 0.0, %v2776
  %v2778 = vpop.f32.mrf.mxu0
  %v2779 = vadd.f32 0.0, %v2778
  %2780 = vmatmul.bf16.gmra.mxu0 %v2406
  %v2781 = vpop.f32.mrf.mxu0
  %v2782 = vadd.f32 0.0, %v2781
  %v2783 = vpop.f32.mrf.mxu0
  %v2784 = vadd.f32 0.0, %v2783
  %2785 = vmatmul.bf16.gmra.mxu0 %v2409
  %v2786 = vpop.f32.mrf.mxu0
  %v2787 = vadd.f32 0.0, %v2786
  %v2788 = vpop.f32.mrf.mxu0
  %v2789 = vadd.f32 0.0, %v2788
  %2790 = vmatmul.bf16.gmra.mxu0 %v2412
  %v2791 = vpop.f32.mrf.mxu0
  %v2792 = vadd.f32 0.0, %v2791
  %v2793 = vpop.f32.mrf.mxu0
  %v2794 = vadd.f32 0.0, %v2793
  %2795 = vmatmul.bf16.gmra.mxu0 %v2415
  %v2796 = vpop.f32.mrf.mxu0
  %v2797 = vadd.f32 0.0, %v2796
  %v2798 = vpop.f32.mrf.mxu0
  %v2799 = vadd.f32 0.0, %v2798
  %2800 = vmatmul.bf16.gmra.mxu0 %v2418
  %v2801 = vpop.f32.mrf.mxu0
  %v2802 = vadd.f32 0.0, %v2801
  %v2803 = vpop.f32.mrf.mxu0
  %v2804 = vadd.f32 0.0, %v2803
  %2805 = vdwg.mxu0
  %v2806 = vadd.f32 %v2732, %v2772
  %v2807 = vadd.f32 %v2733, %v2774
  %v2808 = vadd.f32 %v2734, %v2777
  %v2809 = vadd.f32 %v2735, %v2779
  %v2810 = vadd.f32 %v2736, %v2782
  %v2811 = vadd.f32 %v2737, %v2784
  %v2812 = vadd.f32 %v2738, %v2787
  %v2813 = vadd.f32 %v2739, %v2789
  %v2814 = vadd.f32 %v2740, %v2792
  %v2815 = vadd.f32 %v2741, %v2794
  %v2816 = vadd.f32 %v2742, %v2797
  %v2817 = vadd.f32 %v2743, %v2799
  %v2818 = vadd.f32 %v2744, %v2802
  %v2819 = vadd.f32 %v2745, %v2804
  %v2820 = vmax.f32 %v2464, %v2806
  %v2821 = vmax.f32 %v2465, %v2807
  %v2822 = vmax.f32 %v2466, %v2808
  %v2823 = vmax.f32 %v2467, %v2809
  %v2824 = vmax.f32 %v2468, %v2810
  %v2825 = vmax.f32 %v2469, %v2811
  %v2826 = vmax.f32 %v2470, %v2812
  %v2827 = vmax.f32 %v2471, %v2813
  %v2828 = vmax.f32 %v2472, %v2814
  %v2829 = vmax.f32 %v2473, %v2815
  %v2830 = vmax.f32 %v2474, %v2816
  %v2831 = vmax.f32 %v2475, %v2817
  %v2832 = vmax.f32 %v2476, %v2818
  %v2833 = vmax.f32 %v2477, %v2819
  %2834 = vmatpush.bf16.msra.mxu0 0
  %2835 = vmatpush.bf16.msra.mxu0 0
  %2836 = vmatpush.bf16.msra.mxu0 0
  %2837 = vmatpush.bf16.msra.mxu0 0
  %2838 = vmatpush.bf16.msra.mxu0 0
  %2839 = vmatpush.bf16.msra.mxu0 0
  %2840 = vmatpush.bf16.msra.mxu0 %v1865
  %2841 = vmatpush.bf16.msra.mxu0 %v1864
  %2842 = vmatmul.bf16.gmra.mxu0 %v2111
  %v2843 = vpop.f32.mrf.mxu0
  %v2844 = vadd.f32 0.0, %v2843
  %v2845 = vpop.f32.mrf.mxu0
  %v2846 = vadd.f32 0.0, %v2845
  %2847 = vmatmul.bf16.gmra.mxu0 %v2114
  %v2848 = vpop.f32.mrf.mxu0
  %v2849 = vadd.f32 0.0, %v2848
  %v2850 = vpop.f32.mrf.mxu0
  %v2851 = vadd.f32 0.0, %v2850
  %2852 = vmatmul.bf16.gmra.mxu0 %v2117
  %v2853 = vpop.f32.mrf.mxu0
  %v2854 = vadd.f32 0.0, %v2853
  %v2855 = vpop.f32.mrf.mxu0
  %v2856 = vadd.f32 0.0, %v2855
  %2857 = vmatmul.bf16.gmra.mxu0 %v2120
  %v2858 = vpop.f32.mrf.mxu0
  %v2859 = vadd.f32 0.0, %v2858
  %v2860 = vpop.f32.mrf.mxu0
  %v2861 = vadd.f32 0.0, %v2860
  %2862 = vmatmul.bf16.gmra.mxu0 %v2123
  %v2863 = vpop.f32.mrf.mxu0
  %v2864 = vadd.f32 0.0, %v2863
  %v2865 = vpop.f32.mrf.mxu0
  %v2866 = vadd.f32 0.0, %v2865
  %2867 = vmatmul.bf16.gmra.mxu0 %v2126
  %v2868 = vpop.f32.mrf.mxu0
  %v2869 = vadd.f32 0.0, %v2868
  %v2870 = vpop.f32.mrf.mxu0
  %v2871 = vadd.f32 0.0, %v2870
  %2872 = vmatmul.bf16.gmra.mxu0 %v2129
  %v2873 = vpop.f32.mrf.mxu0
  %v2874 = vadd.f32 0.0, %v2873
  %v2875 = vpop.f32.mrf.mxu0
  %v2876 = vadd.f32 0.0, %v2875
  %2877 = vdwg.mxu0
  %2878 = vmatpush.bf16.msra.mxu0 0
  %2879 = vmatpush.bf16.msra.mxu0 0
  %2880 = vmatpush.bf16.msra.mxu0 0
  %2881 = vmatpush.bf16.msra.mxu0 0
  %2882 = vmatpush.bf16.msra.mxu0 0
  %2883 = vmatpush.bf16.msra.mxu0 0
  %2884 = vmatpush.bf16.msra.mxu0 %v1977
  %2885 = vmatpush.bf16.msra.mxu0 %v1976
  %2886 = vmatmul.bf16.gmra.mxu0 %v1869
  %v2887 = vpop.f32.mrf.mxu0
  %v2888 = vadd.f32 %v2844, %v2887
  %v2889 = vpop.f32.mrf.mxu0
  %v2890 = vadd.f32 %v2846, %v2889
  %2891 = vmatmul.bf16.gmra.mxu0 %v1872
  %v2892 = vpop.f32.mrf.mxu0
  %v2893 = vadd.f32 %v2849, %v2892
  %v2894 = vpop.f32.mrf.mxu0
  %v2895 = vadd.f32 %v2851, %v2894
  %2896 = vmatmul.bf16.gmra.mxu0 %v1875
  %v2897 = vpop.f32.mrf.mxu0
  %v2898 = vadd.f32 %v2854, %v2897
  %v2899 = vpop.f32.mrf.mxu0
  %v2900 = vadd.f32 %v2856, %v2899
  %2901 = vmatmul.bf16.gmra.mxu0 %v1878
  %v2902 = vpop.f32.mrf.mxu0
  %v2903 = vadd.f32 %v2859, %v2902
  %v2904 = vpop.f32.mrf.mxu0
  %v2905 = vadd.f32 %v2861, %v2904
  %2906 = vmatmul.bf16.gmra.mxu0 %v1881
  %v2907 = vpop.f32.mrf.mxu0
  %v2908 = vadd.f32 %v2864, %v2907
  %v2909 = vpop.f32.mrf.mxu0
  %v2910 = vadd.f32 %v2866, %v2909
  %2911 = vmatmul.bf16.gmra.mxu0 %v1884
  %v2912 = vpop.f32.mrf.mxu0
  %v2913 = vadd.f32 %v2869, %v2912
  %v2914 = vpop.f32.mrf.mxu0
  %v2915 = vadd.f32 %v2871, %v2914
  %2916 = vmatmul.bf16.gmra.mxu0 %v1887
  %v2917 = vpop.f32.mrf.mxu0
  %v2918 = vadd.f32 %v2874, %v2917
  %v2919 = vpop.f32.mrf.mxu0
  %v2920 = vadd.f32 %v2876, %v2919
  %2921 = vdwg.mxu0
  %2922 = vmatpush.bf16.msra.mxu0 0
  %2923 = vmatpush.bf16.msra.mxu0 0
  %2924 = vmatpush.bf16.msra.mxu0 0
  %2925 = vmatpush.bf16.msra.mxu0 0
  %2926 = vmatpush.bf16.msra.mxu0 0
  %2927 = vmatpush.bf16.msra.mxu0 0
  %2928 = vmatpush.bf16.msra.mxu0 %v2107
  %2929 = vmatpush.bf16.msra.mxu0 %v2106
  %2930 = vmatmul.bf16.gmra.mxu0 %v2255
  %v2931 = vpop.f32.mrf.mxu0
  %v2932 = vadd.f32 0.0, %v2931
  %v2933 = vpop.f32.mrf.mxu0
  %v2934 = vadd.f32 0.0, %v2933
  %2935 = vmatmul.bf16.gmra.mxu0 %v2258
  %v2936 = vpop.f32.mrf.mxu0
  %v2937 = vadd.f32 0.0, %v2936
  %v2938 = vpop.f32.mrf.mxu0
  %v2939 = vadd.f32 0.0, %v2938
  %2940 = vmatmul.bf16.gmra.mxu0 %v2261
  %v2941 = vpop.f32.mrf.mxu0
  %v2942 = vadd.f32 0.0, %v2941
  %v2943 = vpop.f32.mrf.mxu0
  %v2944 = vadd.f32 0.0, %v2943
  %2945 = vmatmul.bf16.gmra.mxu0 %v2264
  %v2946 = vpop.f32.mrf.mxu0
  %v2947 = vadd.f32 0.0, %v2946
  %v2948 = vpop.f32.mrf.mxu0
  %v2949 = vadd.f32 0.0, %v2948
  %2950 = vmatmul.bf16.gmra.mxu0 %v2267
  %v2951 = vpop.f32.mrf.mxu0
  %v2952 = vadd.f32 0.0, %v2951
  %v2953 = vpop.f32.mrf.mxu0
  %v2954 = vadd.f32 0.0, %v2953
  %2955 = vmatmul.bf16.gmra.mxu0 %v2270
  %v2956 = vpop.f32.mrf.mxu0
  %v2957 = vadd.f32 0.0, %v2956
  %v2958 = vpop.f32.mrf.mxu0
  %v2959 = vadd.f32 0.0, %v2958
  %2960 = vmatmul.bf16.gmra.mxu0 %v2273
  %v2961 = vpop.f32.mrf.mxu0
  %v2962 = vadd.f32 0.0, %v2961
  %v2963 = vpop.f32.mrf.mxu0
  %v2964 = vadd.f32 0.0, %v2963
  %2965 = vdwg.mxu0
  %v2966 = vadd.f32 %v2888, %v2932
  %v2967 = vadd.f32 %v2890, %v2934
  %v2968 = vadd.f32 %v2893, %v2937
  %v2969 = vadd.f32 %v2895, %v2939
  %v2970 = vadd.f32 %v2898, %v2942
  %v2971 = vadd.f32 %v2900, %v2944
  %v2972 = vadd.f32 %v2903, %v2947
  %v2973 = vadd.f32 %v2905, %v2949
  %v2974 = vadd.f32 %v2908, %v2952
  %v2975 = vadd.f32 %v2910, %v2954
  %v2976 = vadd.f32 %v2913, %v2957
  %v2977 = vadd.f32 %v2915, %v2959
  %v2978 = vadd.f32 %v2918, %v2962
  %v2979 = vadd.f32 %v2920, %v2964
  %2980 = vmatpush.bf16.msra.mxu0 0
  %2981 = vmatpush.bf16.msra.mxu0 0
  %2982 = vmatpush.bf16.msra.mxu0 0
  %2983 = vmatpush.bf16.msra.mxu0 0
  %2984 = vmatpush.bf16.msra.mxu0 0
  %2985 = vmatpush.bf16.msra.mxu0 0
  %2986 = vmatpush.bf16.msra.mxu0 %v2251
  %2987 = vmatpush.bf16.msra.mxu0 %v2250
  %2988 = vmatmul.bf16.gmra.mxu0 %v2400
  %v2989 = vpop.f32.mrf.mxu0
  %v2990 = vadd.f32 0.0, %v2989
  %v2991 = vpop.f32.mrf.mxu0
  %v2992 = vadd.f32 0.0, %v2991
  %2993 = vmatmul.bf16.gmra.mxu0 %v2403
  %v2994 = vpop.f32.mrf.mxu0
  %v2995 = vadd.f32 0.0, %v2994
  %v2996 = vpop.f32.mrf.mxu0
  %v2997 = vadd.f32 0.0, %v2996
  %2998 = vmatmul.bf16.gmra.mxu0 %v2406
  %v2999 = vpop.f32.mrf.mxu0
  %v3000 = vadd.f32 0.0, %v2999
  %v3001 = vpop.f32.mrf.mxu0
  %v3002 = vadd.f32 0.0, %v3001
  %3003 = vmatmul.bf16.gmra.mxu0 %v2409
  %v3004 = vpop.f32.mrf.mxu0
  %v3005 = vadd.f32 0.0, %v3004
  %v3006 = vpop.f32.mrf.mxu0
  %v3007 = vadd.f32 0.0, %v3006
  %3008 = vmatmul.bf16.gmra.mxu0 %v2412
  %v3009 = vpop.f32.mrf.mxu0
  %v3010 = vadd.f32 0.0, %v3009
  %v3011 = vpop.f32.mrf.mxu0
  %v3012 = vadd.f32 0.0, %v3011
  %3013 = vmatmul.bf16.gmra.mxu0 %v2415
  %v3014 = vpop.f32.mrf.mxu0
  %v3015 = vadd.f32 0.0, %v3014
  %v3016 = vpop.f32.mrf.mxu0
  %v3017 = vadd.f32 0.0, %v3016
  %3018 = vmatmul.bf16.gmra.mxu0 %v2418
  %v3019 = vpop.f32.mrf.mxu0
  %v3020 = vadd.f32 0.0, %v3019
  %v3021 = vpop.f32.mrf.mxu0
  %v3022 = vadd.f32 0.0, %v3021
  %3023 = vdwg.mxu0
  %v3024 = vadd.f32 %v2966, %v2990
  %v3025 = vadd.f32 %v2967, %v2992
  %v3026 = vadd.f32 %v2968, %v2995
  %v3027 = vadd.f32 %v2969, %v2997
  %v3028 = vadd.f32 %v2970, %v3000
  %v3029 = vadd.f32 %v2971, %v3002
  %v3030 = vadd.f32 %v2972, %v3005
  %v3031 = vadd.f32 %v2973, %v3007
  %v3032 = vadd.f32 %v2974, %v3010
  %v3033 = vadd.f32 %v2975, %v3012
  %v3034 = vadd.f32 %v2976, %v3015
  %v3035 = vadd.f32 %v2977, %v3017
  %v3036 = vadd.f32 %v2978, %v3020
  %v3037 = vadd.f32 %v2979, %v3022
  %s3038 = scalar_lea.vmem %s0, 200
  %v3039 = vld [vmem:[%s3038] sm:$0xf]
  %v3040 = vld [vmem:[%s3038 + $0x4] sm:$0xf]
  %v3041 = vld [vmem:[%s3038 + $0x8] sm:$0xf]
  %v3042 = vld [vmem:[%s3038 + $0xc] sm:$0xf]
  %v3043 = vld [vmem:[%s3038 + $0x10] sm:$0xf]
  %v3044 = vld [vmem:[%s3038 + $0x14] sm:$0xf]
  %v3045 = vld [vmem:[%s3038 + $0x18] sm:$0xf]
  %v3046 = vld [vmem:[%s3038 + $0x1c] sm:$0xf]
  %v3047 = vld [vmem:[%s3038 + $0x20] sm:$0xf]
  %v3048 = vld [vmem:[%s3038 + $0x24] sm:$0xf]
  %v3049 = vld [vmem:[%s3038 + $0x28] sm:$0xf]
  %v3050 = vld [vmem:[%s3038 + $0x2c] sm:$0xf]
  %v3051 = vld [vmem:[%s3038 + $0x30] sm:$0xf]
  %v3052 = vld [vmem:[%s3038 + $0x34] sm:$0xf]
  %v3067 = vunpack.c.l.b16 %v3039
  %v3068 = vunpack.c.l.b16 %v3040
  %v3069 = vunpack.c.l.b16 %v3041
  %v3070 = vunpack.c.l.b16 %v3042
  %v3071 = vunpack.c.l.b16 %v3043
  %v3072 = vunpack.c.l.b16 %v3044
  %v3073 = vunpack.c.l.b16 %v3045
  %v3074 = vunpack.c.l.b16 %v3046
  %v3075 = vunpack.c.l.b16 %v3047
  %v3076 = vunpack.c.l.b16 %v3048
  %v3077 = vunpack.c.l.b16 %v3049
  %v3078 = vunpack.c.l.b16 %v3050
  %v3079 = vunpack.c.l.b16 %v3051
  %v3080 = vunpack.c.l.b16 %v3052
  %v3081 = vpack.c.b16 %v3068, %v3067
  %v3082 = vpack.c.b16 %v3070, %v3069
  %v3083 = vpack.c.b16 %v3072, %v3071
  %v3084 = vpack.c.b16 %v3074, %v3073
  %v3085 = vpack.c.b16 %v3076, %v3075
  %v3086 = vpack.c.b16 %v3078, %v3077
  %v3087 = vpack.c.b16 %v3080, %v3079
  %v3089 = vsel %vm124, %v3081, 0
  %v3092 = vsel %vm124, %v3082, 0
  %v3095 = vsel %vm124, %v3083, 0
  %v3098 = vsel %vm124, %v3084, 0
  %v3101 = vsel %vm124, %v3085, 0
  %v3104 = vsel %vm124, %v3086, 0
  %v3107 = vsel %vm124, %v3087, 0
  %3109 = vmatpush.bf16.msra.mxu0 0
  %3110 = vmatpush.bf16.msra.mxu0 0
  %3111 = vmatpush.bf16.msra.mxu0 0
  %3112 = vmatpush.bf16.msra.mxu0 0
  %3113 = vmatpush.bf16.msra.mxu0 0
  %3114 = vmatpush.bf16.msra.mxu0 0
  %3115 = vmatpush.bf16.msra.mxu0 %v2396
  %3116 = vmatpush.bf16.msra.mxu0 %v2395
  %3117 = vmatmul.bf16.gmra.mxu0 %v3089
  %v3118 = vpop.f32.mrf.mxu0
  %v3119 = vadd.f32 0.0, %v3118
  %v3120 = vpop.f32.mrf.mxu0
  %v3121 = vadd.f32 0.0, %v3120
  %3122 = vmatmul.bf16.gmra.mxu0 %v3092
  %v3123 = vpop.f32.mrf.mxu0
  %v3124 = vadd.f32 0.0, %v3123
  %v3125 = vpop.f32.mrf.mxu0
  %v3126 = vadd.f32 0.0, %v3125
  %3127 = vmatmul.bf16.gmra.mxu0 %v3095
  %v3128 = vpop.f32.mrf.mxu0
  %v3129 = vadd.f32 0.0, %v3128
  %v3130 = vpop.f32.mrf.mxu0
  %v3131 = vadd.f32 0.0, %v3130
  %3132 = vmatmul.bf16.gmra.mxu0 %v3098
  %v3133 = vpop.f32.mrf.mxu0
  %v3134 = vadd.f32 0.0, %v3133
  %v3135 = vpop.f32.mrf.mxu0
  %v3136 = vadd.f32 0.0, %v3135
  %3137 = vmatmul.bf16.gmra.mxu0 %v3101
  %v3138 = vpop.f32.mrf.mxu0
  %v3139 = vadd.f32 0.0, %v3138
  %v3140 = vpop.f32.mrf.mxu0
  %v3141 = vadd.f32 0.0, %v3140
  %3142 = vmatmul.bf16.gmra.mxu0 %v3104
  %v3143 = vpop.f32.mrf.mxu0
  %v3144 = vadd.f32 0.0, %v3143
  %v3145 = vpop.f32.mrf.mxu0
  %v3146 = vadd.f32 0.0, %v3145
  %3147 = vmatmul.bf16.gmra.mxu0 %v3107
  %v3148 = vpop.f32.mrf.mxu0
  %v3149 = vadd.f32 0.0, %v3148
  %v3150 = vpop.f32.mrf.mxu0
  %v3151 = vadd.f32 0.0, %v3150
  %3152 = vdwg.mxu0
  %v3153 = vadd.f32 %v3024, %v3119
  %v3154 = vadd.f32 %v3025, %v3121
  %v3155 = vadd.f32 %v3026, %v3124
  %v3156 = vadd.f32 %v3027, %v3126
  %v3157 = vadd.f32 %v3028, %v3129
  %v3158 = vadd.f32 %v3029, %v3131
  %v3159 = vadd.f32 %v3030, %v3134
  %v3160 = vadd.f32 %v3031, %v3136
  %v3161 = vadd.f32 %v3032, %v3139
  %v3162 = vadd.f32 %v3033, %v3141
  %v3163 = vadd.f32 %v3034, %v3144
  %v3164 = vadd.f32 %v3035, %v3146
  %v3165 = vadd.f32 %v3036, %v3149
  %v3166 = vadd.f32 %v3037, %v3151
  %v3167 = vmax.f32 %v2820, %v3153
  %v3168 = vmax.f32 %v2821, %v3154
  %v3169 = vmax.f32 %v2822, %v3155
  %v3170 = vmax.f32 %v2823, %v3156
  %v3171 = vmax.f32 %v2824, %v3157
  %v3172 = vmax.f32 %v2825, %v3158
  %v3173 = vmax.f32 %v2826, %v3159
  %v3174 = vmax.f32 %v2827, %v3160
  %v3175 = vmax.f32 %v2828, %v3161
  %v3176 = vmax.f32 %v2829, %v3162
  %v3177 = vmax.f32 %v2830, %v3163
  %v3178 = vmax.f32 %v2831, %v3164
  %v3179 = vmax.f32 %v2832, %v3165
  %v3180 = vmax.f32 %v2833, %v3166
  %3181 = vmatpush.bf16.msra.mxu0 0
  %3182 = vmatpush.bf16.msra.mxu0 0
  %3183 = vmatpush.bf16.msra.mxu0 0
  %3184 = vmatpush.bf16.msra.mxu0 0
  %3185 = vmatpush.bf16.msra.mxu0 0
  %3186 = vmatpush.bf16.msra.mxu0 0
  %3187 = vmatpush.bf16.msra.mxu0 %v2495
  %3188 = vmatpush.bf16.msra.mxu0 %v2494
  %3189 = vmatmul.bf16.gmra.mxu0 %v2111
  %v3190 = vpop.f32.mrf.mxu0
  %v3191 = vadd.f32 0.0, %v3190
  %v3192 = vpop.f32.mrf.mxu0
  %v3193 = vadd.f32 0.0, %v3192
  %3194 = vmatmul.bf16.gmra.mxu0 %v2114
  %v3195 = vpop.f32.mrf.mxu0
  %v3196 = vadd.f32 0.0, %v3195
  %v3197 = vpop.f32.mrf.mxu0
  %v3198 = vadd.f32 0.0, %v3197
  %3199 = vmatmul.bf16.gmra.mxu0 %v2117
  %v3200 = vpop.f32.mrf.mxu0
  %v3201 = vadd.f32 0.0, %v3200
  %v3202 = vpop.f32.mrf.mxu0
  %v3203 = vadd.f32 0.0, %v3202
  %3204 = vmatmul.bf16.gmra.mxu0 %v2120
  %v3205 = vpop.f32.mrf.mxu0
  %v3206 = vadd.f32 0.0, %v3205
  %v3207 = vpop.f32.mrf.mxu0
  %v3208 = vadd.f32 0.0, %v3207
  %3209 = vmatmul.bf16.gmra.mxu0 %v2123
  %v3210 = vpop.f32.mrf.mxu0
  %v3211 = vadd.f32 0.0, %v3210
  %v3212 = vpop.f32.mrf.mxu0
  %v3213 = vadd.f32 0.0, %v3212
  %3214 = vmatmul.bf16.gmra.mxu0 %v2126
  %v3215 = vpop.f32.mrf.mxu0
  %v3216 = vadd.f32 0.0, %v3215
  %v3217 = vpop.f32.mrf.mxu0
  %v3218 = vadd.f32 0.0, %v3217
  %3219 = vmatmul.bf16.gmra.mxu0 %v2129
  %v3220 = vpop.f32.mrf.mxu0
  %v3221 = vadd.f32 0.0, %v3220
  %v3222 = vpop.f32.mrf.mxu0
  %v3223 = vadd.f32 0.0, %v3222
  %3224 = vdwg.mxu0
  %3225 = vmatpush.bf16.msra.mxu0 0
  %3226 = vmatpush.bf16.msra.mxu0 0
  %3227 = vmatpush.bf16.msra.mxu0 0
  %3228 = vmatpush.bf16.msra.mxu0 0
  %3229 = vmatpush.bf16.msra.mxu0 0
  %3230 = vmatpush.bf16.msra.mxu0 0
  %3231 = vmatpush.bf16.msra.mxu0 %v2551
  %3232 = vmatpush.bf16.msra.mxu0 %v2550
  %3233 = vmatmul.bf16.gmra.mxu0 %v1869
  %v3234 = vpop.f32.mrf.mxu0
  %v3235 = vadd.f32 %v3191, %v3234
  %v3236 = vpop.f32.mrf.mxu0
  %v3237 = vadd.f32 %v3193, %v3236
  %3238 = vmatmul.bf16.gmra.mxu0 %v1872
  %v3239 = vpop.f32.mrf.mxu0
  %v3240 = vadd.f32 %v3196, %v3239
  %v3241 = vpop.f32.mrf.mxu0
  %v3242 = vadd.f32 %v3198, %v3241
  %3243 = vmatmul.bf16.gmra.mxu0 %v1875
  %v3244 = vpop.f32.mrf.mxu0
  %v3245 = vadd.f32 %v3201, %v3244
  %v3246 = vpop.f32.mrf.mxu0
  %v3247 = vadd.f32 %v3203, %v3246
  %3248 = vmatmul.bf16.gmra.mxu0 %v1878
  %v3249 = vpop.f32.mrf.mxu0
  %v3250 = vadd.f32 %v3206, %v3249
  %v3251 = vpop.f32.mrf.mxu0
  %v3252 = vadd.f32 %v3208, %v3251
  %3253 = vmatmul.bf16.gmra.mxu0 %v1881
  %v3254 = vpop.f32.mrf.mxu0
  %v3255 = vadd.f32 %v3211, %v3254
  %v3256 = vpop.f32.mrf.mxu0
  %v3257 = vadd.f32 %v3213, %v3256
  %3258 = vmatmul.bf16.gmra.mxu0 %v1884
  %v3259 = vpop.f32.mrf.mxu0
  %v3260 = vadd.f32 %v3216, %v3259
  %v3261 = vpop.f32.mrf.mxu0
  %v3262 = vadd.f32 %v3218, %v3261
  %3263 = vmatmul.bf16.gmra.mxu0 %v1887
  %v3264 = vpop.f32.mrf.mxu0
  %v3265 = vadd.f32 %v3221, %v3264
  %v3266 = vpop.f32.mrf.mxu0
  %v3267 = vadd.f32 %v3223, %v3266
  %3268 = vdwg.mxu0
  %3269 = vmatpush.bf16.msra.mxu0 0
  %3270 = vmatpush.bf16.msra.mxu0 0
  %3271 = vmatpush.bf16.msra.mxu0 0
  %3272 = vmatpush.bf16.msra.mxu0 0
  %3273 = vmatpush.bf16.msra.mxu0 0
  %3274 = vmatpush.bf16.msra.mxu0 0
  %3275 = vmatpush.bf16.msra.mxu0 %v2611
  %3276 = vmatpush.bf16.msra.mxu0 %v2610
  %3277 = vmatmul.bf16.gmra.mxu0 %v2255
  %v3278 = vpop.f32.mrf.mxu0
  %v3279 = vadd.f32 0.0, %v3278
  %v3280 = vpop.f32.mrf.mxu0
  %v3281 = vadd.f32 0.0, %v3280
  %3282 = vmatmul.bf16.gmra.mxu0 %v2258
  %v3283 = vpop.f32.mrf.mxu0
  %v3284 = vadd.f32 0.0, %v3283
  %v3285 = vpop.f32.mrf.mxu0
  %v3286 = vadd.f32 0.0, %v3285
  %3287 = vmatmul.bf16.gmra.mxu0 %v2261
  %v3288 = vpop.f32.mrf.mxu0
  %v3289 = vadd.f32 0.0, %v3288
  %v3290 = vpop.f32.mrf.mxu0
  %v3291 = vadd.f32 0.0, %v3290
  %3292 = vmatmul.bf16.gmra.mxu0 %v2264
  %v3293 = vpop.f32.mrf.mxu0
  %v3294 = vadd.f32 0.0, %v3293
  %v3295 = vpop.f32.mrf.mxu0
  %v3296 = vadd.f32 0.0, %v3295
  %3297 = vmatmul.bf16.gmra.mxu0 %v2267
  %v3298 = vpop.f32.mrf.mxu0
  %v3299 = vadd.f32 0.0, %v3298
  %v3300 = vpop.f32.mrf.mxu0
  %v3301 = vadd.f32 0.0, %v3300
  %3302 = vmatmul.bf16.gmra.mxu0 %v2270
  %v3303 = vpop.f32.mrf.mxu0
  %v3304 = vadd.f32 0.0, %v3303
  %v3305 = vpop.f32.mrf.mxu0
  %v3306 = vadd.f32 0.0, %v3305
  %3307 = vmatmul.bf16.gmra.mxu0 %v2273
  %v3308 = vpop.f32.mrf.mxu0
  %v3309 = vadd.f32 0.0, %v3308
  %v3310 = vpop.f32.mrf.mxu0
  %v3311 = vadd.f32 0.0, %v3310
  %3312 = vdwg.mxu0
  %v3313 = vadd.f32 %v3235, %v3279
  %v3314 = vadd.f32 %v3237, %v3281
  %v3315 = vadd.f32 %v3240, %v3284
  %v3316 = vadd.f32 %v3242, %v3286
  %v3317 = vadd.f32 %v3245, %v3289
  %v3318 = vadd.f32 %v3247, %v3291
  %v3319 = vadd.f32 %v3250, %v3294
  %v3320 = vadd.f32 %v3252, %v3296
  %v3321 = vadd.f32 %v3255, %v3299
  %v3322 = vadd.f32 %v3257, %v3301
  %v3323 = vadd.f32 %v3260, %v3304
  %v3324 = vadd.f32 %v3262, %v3306
  %v3325 = vadd.f32 %v3265, %v3309
  %v3326 = vadd.f32 %v3267, %v3311
  %3327 = vmatpush.bf16.msra.mxu0 0
  %3328 = vmatpush.bf16.msra.mxu0 0
  %3329 = vmatpush.bf16.msra.mxu0 0
  %3330 = vmatpush.bf16.msra.mxu0 0
  %3331 = vmatpush.bf16.msra.mxu0 0
  %3332 = vmatpush.bf16.msra.mxu0 0
  %3333 = vmatpush.bf16.msra.mxu0 %v2685
  %3334 = vmatpush.bf16.msra.mxu0 %v2684
  %3335 = vmatmul.bf16.gmra.mxu0 %v2400
  %v3336 = vpop.f32.mrf.mxu0
  %v3337 = vadd.f32 0.0, %v3336
  %v3338 = vpop.f32.mrf.mxu0
  %v3339 = vadd.f32 0.0, %v3338
  %3340 = vmatmul.bf16.gmra.mxu0 %v2403
  %v3341 = vpop.f32.mrf.mxu0
  %v3342 = vadd.f32 0.0, %v3341
  %v3343 = vpop.f32.mrf.mxu0
  %v3344 = vadd.f32 0.0, %v3343
  %3345 = vmatmul.bf16.gmra.mxu0 %v2406
  %v3346 = vpop.f32.mrf.mxu0
  %v3347 = vadd.f32 0.0, %v3346
  %v3348 = vpop.f32.mrf.mxu0
  %v3349 = vadd.f32 0.0, %v3348
  %3350 = vmatmul.bf16.gmra.mxu0 %v2409
  %v3351 = vpop.f32.mrf.mxu0
  %v3352 = vadd.f32 0.0, %v3351
  %v3353 = vpop.f32.mrf.mxu0
  %v3354 = vadd.f32 0.0, %v3353
  %3355 = vmatmul.bf16.gmra.mxu0 %v2412
  %v3356 = vpop.f32.mrf.mxu0
  %v3357 = vadd.f32 0.0, %v3356
  %v3358 = vpop.f32.mrf.mxu0
  %v3359 = vadd.f32 0.0, %v3358
  %3360 = vmatmul.bf16.gmra.mxu0 %v2415
  %v3361 = vpop.f32.mrf.mxu0
  %v3362 = vadd.f32 0.0, %v3361
  %v3363 = vpop.f32.mrf.mxu0
  %v3364 = vadd.f32 0.0, %v3363
  %3365 = vmatmul.bf16.gmra.mxu0 %v2418
  %v3366 = vpop.f32.mrf.mxu0
  %v3367 = vadd.f32 0.0, %v3366
  %v3368 = vpop.f32.mrf.mxu0
  %v3369 = vadd.f32 0.0, %v3368
  %3370 = vdwg.mxu0
  %v3371 = vadd.f32 %v3313, %v3337
  %v3372 = vadd.f32 %v3314, %v3339
  %v3373 = vadd.f32 %v3315, %v3342
  %v3374 = vadd.f32 %v3316, %v3344
  %v3375 = vadd.f32 %v3317, %v3347
  %v3376 = vadd.f32 %v3318, %v3349
  %v3377 = vadd.f32 %v3319, %v3352
  %v3378 = vadd.f32 %v3320, %v3354
  %v3379 = vadd.f32 %v3321, %v3357
  %v3380 = vadd.f32 %v3322, %v3359
  %v3381 = vadd.f32 %v3323, %v3362
  %v3382 = vadd.f32 %v3324, %v3364
  %v3383 = vadd.f32 %v3325, %v3367
  %v3384 = vadd.f32 %v3326, %v3369
  %3385 = vmatpush.bf16.msra.mxu0 0
  %3386 = vmatpush.bf16.msra.mxu0 0
  %3387 = vmatpush.bf16.msra.mxu0 0
  %3388 = vmatpush.bf16.msra.mxu0 0
  %3389 = vmatpush.bf16.msra.mxu0 0
  %3390 = vmatpush.bf16.msra.mxu0 0
  %3391 = vmatpush.bf16.msra.mxu0 %v2759
  %3392 = vmatpush.bf16.msra.mxu0 %v2758
  %3393 = vmatmul.bf16.gmra.mxu0 %v3089
  %v3394 = vpop.f32.mrf.mxu0
  %v3395 = vadd.f32 0.0, %v3394
  %v3396 = vpop.f32.mrf.mxu0
  %v3397 = vadd.f32 0.0, %v3396
  %3398 = vmatmul.bf16.gmra.mxu0 %v3092
  %v3399 = vpop.f32.mrf.mxu0
  %v3400 = vadd.f32 0.0, %v3399
  %v3401 = vpop.f32.mrf.mxu0
  %v3402 = vadd.f32 0.0, %v3401
  %3403 = vmatmul.bf16.gmra.mxu0 %v3095
  %v3404 = vpop.f32.mrf.mxu0
  %v3405 = vadd.f32 0.0, %v3404
  %v3406 = vpop.f32.mrf.mxu0
  %v3407 = vadd.f32 0.0, %v3406
  %3408 = vmatmul.bf16.gmra.mxu0 %v3098
  %v3409 = vpop.f32.mrf.mxu0
  %v3410 = vadd.f32 0.0, %v3409
  %v3411 = vpop.f32.mrf.mxu0
  %v3412 = vadd.f32 0.0, %v3411
  %3413 = vmatmul.bf16.gmra.mxu0 %v3101
  %v3414 = vpop.f32.mrf.mxu0
  %v3415 = vadd.f32 0.0, %v3414
  %v3416 = vpop.f32.mrf.mxu0
  %v3417 = vadd.f32 0.0, %v3416
  %3418 = vmatmul.bf16.gmra.mxu0 %v3104
  %v3419 = vpop.f32.mrf.mxu0
  %v3420 = vadd.f32 0.0, %v3419
  %v3421 = vpop.f32.mrf.mxu0
  %v3422 = vadd.f32 0.0, %v3421
  %3423 = vmatmul.bf16.gmra.mxu0 %v3107
  %v3424 = vpop.f32.mrf.mxu0
  %v3425 = vadd.f32 0.0, %v3424
  %v3426 = vpop.f32.mrf.mxu0
  %v3427 = vadd.f32 0.0, %v3426
  %3428 = vdwg.mxu0
  %v3429 = vadd.f32 %v3371, %v3395
  %v3430 = vadd.f32 %v3372, %v3397
  %v3431 = vadd.f32 %v3373, %v3400
  %v3432 = vadd.f32 %v3374, %v3402
  %v3433 = vadd.f32 %v3375, %v3405
  %v3434 = vadd.f32 %v3376, %v3407
  %v3435 = vadd.f32 %v3377, %v3410
  %v3436 = vadd.f32 %v3378, %v3412
  %v3437 = vadd.f32 %v3379, %v3415
  %v3438 = vadd.f32 %v3380, %v3417
  %v3439 = vadd.f32 %v3381, %v3420
  %v3440 = vadd.f32 %v3382, %v3422
  %v3441 = vadd.f32 %v3383, %v3425
  %v3442 = vadd.f32 %v3384, %v3427
  %v3443 = vmax.f32 %v3167, %v3429
  %v3444 = vmax.f32 %v3168, %v3430
  %v3445 = vmax.f32 %v3169, %v3431
  %v3446 = vmax.f32 %v3170, %v3432
  %v3447 = vmax.f32 %v3171, %v3433
  %v3448 = vmax.f32 %v3172, %v3434
  %v3449 = vmax.f32 %v3173, %v3435
  %v3450 = vmax.f32 %v3174, %v3436
  %v3451 = vmax.f32 %v3175, %v3437
  %v3452 = vmax.f32 %v3176, %v3438
  %v3453 = vmax.f32 %v3177, %v3439
  %v3454 = vmax.f32 %v3178, %v3440
  %v3455 = vmax.f32 %v3179, %v3441
  %v3456 = vmax.f32 %v3180, %v3442
  %v3457 = vld [vmem:[%s2] sm:$0x1]
  %v3459 = vperm.slane %v3457, 0
  %v3461 = vadd.f32 %v3443, %v3459
  %v3462 = vadd.f32 %v3444, %v3459
  %v3463 = vadd.f32 %v3445, %v3459
  %v3464 = vadd.f32 %v3446, %v3459
  %v3465 = vadd.f32 %v3447, %v3459
  %v3466 = vadd.f32 %v3448, %v3459
  %v3467 = vadd.f32 %v3449, %v3459
  %v3468 = vadd.f32 %v3450, %v3459
  %v3469 = vadd.f32 %v3451, %v3459
  %v3470 = vadd.f32 %v3452, %v3459
  %v3471 = vadd.f32 %v3453, %v3459
  %v3472 = vadd.f32 %v3454, %v3459
  %v3473 = vadd.f32 %v3455, %v3459
  %v3474 = vadd.f32 %v3456, %v3459
  %v3475 = vmax.f32 %v3461, 0.0
  %v3476 = vmax.f32 %v3462, 0.0
  %v3477 = vmax.f32 %v3463, 0.0
  %v3478 = vmax.f32 %v3464, 0.0
  %v3479 = vmax.f32 %v3465, 0.0
  %v3480 = vmax.f32 %v3466, 0.0
  %v3481 = vmax.f32 %v3467, 0.0
  %v3482 = vmax.f32 %v3468, 0.0
  %v3483 = vmax.f32 %v3469, 0.0
  %v3484 = vmax.f32 %v3470, 0.0
  %v3485 = vmax.f32 %v3471, 0.0
  %v3486 = vmax.f32 %v3472, 0.0
  %v3487 = vmax.f32 %v3473, 0.0
  %v3488 = vmax.f32 %v3474, 0.0
  %v3489 = vpack.c.bf16 %v3475, %v3475
  %v3490 = vpack.c.bf16 %v3476, %v3476
  %v3491 = vpack.c.bf16 %v3477, %v3477
  %v3492 = vpack.c.bf16 %v3478, %v3478
  %v3493 = vpack.c.bf16 %v3479, %v3479
  %v3494 = vpack.c.bf16 %v3480, %v3480
  %v3495 = vpack.c.bf16 %v3481, %v3481
  %v3496 = vpack.c.bf16 %v3482, %v3482
  %v3497 = vpack.c.bf16 %v3483, %v3483
  %v3498 = vpack.c.bf16 %v3484, %v3484
  %v3499 = vpack.c.bf16 %v3485, %v3485
  %v3500 = vpack.c.bf16 %v3486, %v3486
  %v3501 = vpack.c.bf16 %v3487, %v3487
  %v3502 = vpack.c.bf16 %v3488, %v3488
  %s3503 = scalar_lea.vmem [#allocation2], 56
  %3504 = vst.msk [vmem:[%s3503] sm:$0xf] %vm1770, %v3489
  %3505 = vst.msk [vmem:[%s3503 + $0x4] sm:$0xf] %vm1770, %v3490
  %3506 = vst.msk [vmem:[%s3503 + $0x8] sm:$0xf] %vm1770, %v3491
  %3507 = vst.msk [vmem:[%s3503 + $0xc] sm:$0xf] %vm1770, %v3492
  %3508 = vst.msk [vmem:[%s3503 + $0x10] sm:$0xf] %vm1770, %v3493
  %3509 = vst.msk [vmem:[%s3503 + $0x14] sm:$0xf] %vm1770, %v3494
  %3510 = vst.msk [vmem:[%s3503 + $0x18] sm:$0xf] %vm1770, %v3495
  %3511 = vst.msk [vmem:[%s3503 + $0x1c] sm:$0xf] %vm1770, %v3496
  %3512 = vst.msk [vmem:[%s3503 + $0x20] sm:$0xf] %vm1770, %v3497
  %3513 = vst.msk [vmem:[%s3503 + $0x24] sm:$0xf] %vm1770, %v3498
  %3514 = vst.msk [vmem:[%s3503 + $0x28] sm:$0xf] %vm1770, %v3499
  %3515 = vst.msk [vmem:[%s3503 + $0x2c] sm:$0xf] %vm1770, %v3500
  %3516 = vst.msk [vmem:[%s3503 + $0x30] sm:$0xf] %vm1770, %v3501
  %3517 = vst.msk [vmem:[%s3503 + $0x34] sm:$0xf] %vm1770, %v3502
  %v3518 = vld [vmem:[#allocation2] sm:$0xf]
  %v3519 = vld [vmem:[#allocation2 + $0x4] sm:$0xf]
  %v3520 = vld [vmem:[#allocation2 + $0x8] sm:$0xf]
  %v3521 = vld [vmem:[#allocation2 + $0xc] sm:$0xf]
  %v3522 = vld [vmem:[#allocation2 + $0x10] sm:$0xf]
  %v3523 = vld [vmem:[#allocation2 + $0x14] sm:$0xf]
  %v3524 = vld [vmem:[#allocation2 + $0x18] sm:$0xf]
  %v3525 = vld [vmem:[#allocation2 + $0x1c] sm:$0xf]
  %v3526 = vld [vmem:[#allocation2 + $0x20] sm:$0xf]
  %v3527 = vld [vmem:[#allocation2 + $0x24] sm:$0xf]
  %v3528 = vld [vmem:[%s3] sm:$0xf]
  %v3529 = vld [vmem:[%s3 + $0x4] sm:$0xf]
  %v3530 = vld [vmem:[%s3 + $0x8] sm:$0xf]
  %v3531 = vld [vmem:[%s3 + $0xc] sm:$0xf]
  %v3532 = vld [vmem:[%s3 + $0x10] sm:$0xf]
  %v3533 = vld [vmem:[%s3 + $0x14] sm:$0xf]
  %v3534 = vld [vmem:[%s3 + $0x18] sm:$0xf]
  %v3535 = vld [vmem:[%s3 + $0x1c] sm:$0xf]
  %v3536 = vld [vmem:[%s3 + $0x20] sm:$0xf]
  %v3537 = vld [vmem:[%s3 + $0x24] sm:$0xf]
  %v3538 = vld [vmem:[%s3 + $0x28] sm:$0x3]
  %v3539 = vld [vmem:[%s3503] sm:$0xf]
  %v3540 = vld [vmem:[%s3503 + $0x4] sm:$0xf]
  %v3541 = vld [vmem:[%s3503 + $0x8] sm:$0xf]
  %v3542 = vld [vmem:[%s3503 + $0xc] sm:$0xf]
  %v3543 = vld [vmem:[%s3503 + $0x10] sm:$0xf]
  %v3544 = vld [vmem:[%s3503 + $0x14] sm:$0xf]
  %v3545 = vld [vmem:[%s3503 + $0x18] sm:$0xf]
  %v3546 = vld [vmem:[%s3503 + $0x1c] sm:$0xf]
  %v3547 = vld [vmem:[%s3503 + $0x20] sm:$0xf]
  %v3548 = vld [vmem:[%s3503 + $0x24] sm:$0xf]
  %s3549 = scalar_lea.vmem %s3, 88
  %v3550 = vld [vmem:[%s3549] sm:$0xf]
  %v3551 = vld [vmem:[%s3549 + $0x4] sm:$0xf]
  %v3552 = vld [vmem:[%s3549 + $0x8] sm:$0xf]
  %v3553 = vld [vmem:[%s3549 + $0xc] sm:$0xf]
  %v3554 = vld [vmem:[%s3549 + $0x10] sm:$0xf]
  %v3555 = vld [vmem:[%s3549 + $0x14] sm:$0xf]
  %v3556 = vld [vmem:[%s3549 + $0x18] sm:$0xf]
  %v3557 = vld [vmem:[%s3549 + $0x1c] sm:$0xf]
  %v3558 = vld [vmem:[%s3549 + $0x20] sm:$0xf]
  %v3559 = vld [vmem:[%s3549 + $0x24] sm:$0xf]
  %v3560 = vld [vmem:[%s3549 + $0x28] sm:$0x3]
  %v3571 = vunpack.c.l.b16 %v3539
  %v3572 = vunpack.c.l.b16 %v3540
  %v3573 = vunpack.c.l.b16 %v3541
  %v3574 = vunpack.c.l.b16 %v3542
  %v3575 = vunpack.c.l.b16 %v3543
  %v3576 = vunpack.c.l.b16 %v3544
  %v3577 = vunpack.c.l.b16 %v3545
  %v3578 = vunpack.c.l.b16 %v3546
  %v3579 = vunpack.c.l.b16 %v3547
  %v3580 = vunpack.c.l.b16 %v3548
  %v3581 = vpack.c.b16 %v3572, %v3571
  %v3582 = vpack.c.b16 %v3574, %v3573
  %v3583 = vpack.c.b16 %v3576, %v3575
  %v3584 = vpack.c.b16 %v3578, %v3577
  %v3585 = vpack.c.b16 %v3580, %v3579
  %v3597 = vunpack.c.l.b16 %v3550
  %v3598 = vunpack.c.l.b16 %v3551
  %v3599 = vunpack.c.l.b16 %v3552
  %v3600 = vunpack.c.l.b16 %v3553
  %v3601 = vunpack.c.l.b16 %v3554
  %v3602 = vunpack.c.l.b16 %v3555
  %v3603 = vunpack.c.l.b16 %v3556
  %v3604 = vunpack.c.l.b16 %v3557
  %v3605 = vunpack.c.l.b16 %v3558
  %v3606 = vunpack.c.l.b16 %v3559
  %v3607 = vunpack.c.l.b16 %v3560
  %v3608 = vpack.c.b16 %v3598, %v3597
  %v3609 = vpack.c.b16 %v3600, %v3599
  %v3610 = vpack.c.b16 %v3602, %v3601
  %v3611 = vpack.c.b16 %v3604, %v3603
  %v3612 = vpack.c.b16 %v3606, %v3605
  %v3613 = vpack.c.b16 %v3607, %v3607
  %vm3619 = vcmask 687104
  %v3621 = vsel %vm3619, %v3581, 0
  %v3624 = vsel %vm3619, %v3582, 0
  %v3627 = vsel %vm3619, %v3583, 0
  %v3630 = vsel %vm3619, %v3584, 0
  %v3633 = vsel %vm3619, %v3585, 0
  %vm3635 = vcmask 1041408
  %v3637 = vsel %vm3635, %v3613, 0
  %3639 = vmatpush.bf16.msra.mxu0 0
  %3640 = vmatpush.bf16.msra.mxu0 0
  %3641 = vmatpush.bf16.msra.mxu0 %v3637
  %3642 = vmatpush.bf16.msra.mxu0 %v3612
  %3643 = vmatpush.bf16.msra.mxu0 %v3611
  %3644 = vmatpush.bf16.msra.mxu0 %v3610
  %3645 = vmatpush.bf16.msra.mxu0 %v3609
  %3646 = vmatpush.bf16.msra.mxu0 %v3608
  %3647 = vmatmul.bf16.gmra.mxu0 %v3621
  %v3648 = vpop.f32.mrf.mxu0
  %v3649 = vadd.f32 0.0, %v3648
  %v3650 = vpop.f32.mrf.mxu0
  %v3651 = vadd.f32 0.0, %v3650
  %3652 = vmatmul.bf16.gmra.mxu0 %v3624
  %v3653 = vpop.f32.mrf.mxu0
  %v3654 = vadd.f32 0.0, %v3653
  %v3655 = vpop.f32.mrf.mxu0
  %v3656 = vadd.f32 0.0, %v3655
  %3657 = vmatmul.bf16.gmra.mxu0 %v3627
  %v3658 = vpop.f32.mrf.mxu0
  %v3659 = vadd.f32 0.0, %v3658
  %v3660 = vpop.f32.mrf.mxu0
  %v3661 = vadd.f32 0.0, %v3660
  %3662 = vmatmul.bf16.gmra.mxu0 %v3630
  %v3663 = vpop.f32.mrf.mxu0
  %v3664 = vadd.f32 0.0, %v3663
  %v3665 = vpop.f32.mrf.mxu0
  %v3666 = vadd.f32 0.0, %v3665
  %3667 = vmatmul.bf16.gmra.mxu0 %v3633
  %v3668 = vpop.f32.mrf.mxu0
  %v3669 = vadd.f32 0.0, %v3668
  %v3670 = vpop.f32.mrf.mxu0
  %v3671 = vadd.f32 0.0, %v3670
  %3672 = vdwg.mxu0
  %v3683 = vunpack.c.l.b16 %v3518
  %v3684 = vunpack.c.l.b16 %v3519
  %v3685 = vunpack.c.l.b16 %v3520
  %v3686 = vunpack.c.l.b16 %v3521
  %v3687 = vunpack.c.l.b16 %v3522
  %v3688 = vunpack.c.l.b16 %v3523
  %v3689 = vunpack.c.l.b16 %v3524
  %v3690 = vunpack.c.l.b16 %v3525
  %v3691 = vunpack.c.l.b16 %v3526
  %v3692 = vunpack.c.l.b16 %v3527
  %v3693 = vpack.c.b16 %v3684, %v3683
  %v3694 = vpack.c.b16 %v3686, %v3685
  %v3695 = vpack.c.b16 %v3688, %v3687
  %v3696 = vpack.c.b16 %v3690, %v3689
  %v3697 = vpack.c.b16 %v3692, %v3691
  %v3709 = vunpack.c.l.b16 %v3528
  %v3710 = vunpack.c.l.b16 %v3529
  %v3711 = vunpack.c.l.b16 %v3530
  %v3712 = vunpack.c.l.b16 %v3531
  %v3713 = vunpack.c.l.b16 %v3532
  %v3714 = vunpack.c.l.b16 %v3533
  %v3715 = vunpack.c.l.b16 %v3534
  %v3716 = vunpack.c.l.b16 %v3535
  %v3717 = vunpack.c.l.b16 %v3536
  %v3718 = vunpack.c.l.b16 %v3537
  %v3719 = vunpack.c.l.b16 %v3538
  %v3720 = vpack.c.b16 %v3710, %v3709
  %v3721 = vpack.c.b16 %v3712, %v3711
  %v3722 = vpack.c.b16 %v3714, %v3713
  %v3723 = vpack.c.b16 %v3716, %v3715
  %v3724 = vpack.c.b16 %v3718, %v3717
  %v3725 = vpack.c.b16 %v3719, %v3719
  %v3732 = vsel %vm3619, %v3693, 0
  %v3735 = vsel %vm3619, %v3694, 0
  %v3738 = vsel %vm3619, %v3695, 0
  %v3741 = vsel %vm3619, %v3696, 0
  %v3744 = vsel %vm3619, %v3697, 0
  %v3747 = vsel %vm3635, %v3725, 0
  %3749 = vmatpush.bf16.msra.mxu0 0
  %3750 = vmatpush.bf16.msra.mxu0 0
  %3751 = vmatpush.bf16.msra.mxu0 %v3747
  %3752 = vmatpush.bf16.msra.mxu0 %v3724
  %3753 = vmatpush.bf16.msra.mxu0 %v3723
  %3754 = vmatpush.bf16.msra.mxu0 %v3722
  %3755 = vmatpush.bf16.msra.mxu0 %v3721
  %3756 = vmatpush.bf16.msra.mxu0 %v3720
  %3757 = vmatmul.bf16.gmra.mxu0 %v3732
  %v3758 = vpop.f32.mrf.mxu0
  %v3759 = vadd.f32 %v3649, %v3758
  %v3760 = vpop.f32.mrf.mxu0
  %v3761 = vadd.f32 %v3651, %v3760
  %3762 = vmatmul.bf16.gmra.mxu0 %v3735
  %v3763 = vpop.f32.mrf.mxu0
  %v3764 = vadd.f32 %v3654, %v3763
  %v3765 = vpop.f32.mrf.mxu0
  %v3766 = vadd.f32 %v3656, %v3765
  %3767 = vmatmul.bf16.gmra.mxu0 %v3738
  %v3768 = vpop.f32.mrf.mxu0
  %v3769 = vadd.f32 %v3659, %v3768
  %v3770 = vpop.f32.mrf.mxu0
  %v3771 = vadd.f32 %v3661, %v3770
  %3772 = vmatmul.bf16.gmra.mxu0 %v3741
  %v3773 = vpop.f32.mrf.mxu0
  %v3774 = vadd.f32 %v3664, %v3773
  %v3775 = vpop.f32.mrf.mxu0
  %v3776 = vadd.f32 %v3666, %v3775
  %3777 = vmatmul.bf16.gmra.mxu0 %v3744
  %v3778 = vpop.f32.mrf.mxu0
  %v3779 = vadd.f32 %v3669, %v3778
  %v3780 = vpop.f32.mrf.mxu0
  %v3781 = vadd.f32 %v3671, %v3780
  %3782 = vdwg.mxu0
  %s3783 = scalar_lea.vmem [#allocation2], 8
  %v3784 = vld [vmem:[%s3783] sm:$0xf]
  %v3785 = vld [vmem:[%s3783 + $0x4] sm:$0xf]
  %v3786 = vld [vmem:[%s3783 + $0x8] sm:$0xf]
  %v3787 = vld [vmem:[%s3783 + $0xc] sm:$0xf]
  %v3788 = vld [vmem:[%s3783 + $0x10] sm:$0xf]
  %v3789 = vld [vmem:[%s3783 + $0x14] sm:$0xf]
  %v3790 = vld [vmem:[%s3783 + $0x18] sm:$0xf]
  %v3791 = vld [vmem:[%s3783 + $0x1c] sm:$0xf]
  %v3792 = vld [vmem:[%s3783 + $0x20] sm:$0xf]
  %v3793 = vld [vmem:[%s3783 + $0x24] sm:$0xf]
  %s3794 = scalar_lea.vmem %s3, 176
  %v3795 = vld [vmem:[%s3794] sm:$0xf]
  %v3796 = vld [vmem:[%s3794 + $0x4] sm:$0xf]
  %v3797 = vld [vmem:[%s3794 + $0x8] sm:$0xf]
  %v3798 = vld [vmem:[%s3794 + $0xc] sm:$0xf]
  %v3799 = vld [vmem:[%s3794 + $0x10] sm:$0xf]
  %v3800 = vld [vmem:[%s3794 + $0x14] sm:$0xf]
  %v3801 = vld [vmem:[%s3794 + $0x18] sm:$0xf]
  %v3802 = vld [vmem:[%s3794 + $0x1c] sm:$0xf]
  %v3803 = vld [vmem:[%s3794 + $0x20] sm:$0xf]
  %v3804 = vld [vmem:[%s3794 + $0x24] sm:$0xf]
  %v3805 = vld [vmem:[%s3794 + $0x28] sm:$0x3]
  %v3816 = vunpack.c.l.b16 %v3784
  %v3817 = vunpack.c.l.b16 %v3785
  %v3818 = vunpack.c.l.b16 %v3786
  %v3819 = vunpack.c.l.b16 %v3787
  %v3820 = vunpack.c.l.b16 %v3788
  %v3821 = vunpack.c.l.b16 %v3789
  %v3822 = vunpack.c.l.b16 %v3790
  %v3823 = vunpack.c.l.b16 %v3791
  %v3824 = vunpack.c.l.b16 %v3792
  %v3825 = vunpack.c.l.b16 %v3793
  %v3826 = vpack.c.b16 %v3817, %v3816
  %v3827 = vpack.c.b16 %v3819, %v3818
  %v3828 = vpack.c.b16 %v3821, %v3820
  %v3829 = vpack.c.b16 %v3823, %v3822
  %v3830 = vpack.c.b16 %v3825, %v3824
  %v3842 = vunpack.c.l.b16 %v3795
  %v3843 = vunpack.c.l.b16 %v3796
  %v3844 = vunpack.c.l.b16 %v3797
  %v3845 = vunpack.c.l.b16 %v3798
  %v3846 = vunpack.c.l.b16 %v3799
  %v3847 = vunpack.c.l.b16 %v3800
  %v3848 = vunpack.c.l.b16 %v3801
  %v3849 = vunpack.c.l.b16 %v3802
  %v3850 = vunpack.c.l.b16 %v3803
  %v3851 = vunpack.c.l.b16 %v3804
  %v3852 = vunpack.c.l.b16 %v3805
  %v3853 = vpack.c.b16 %v3843, %v3842
  %v3854 = vpack.c.b16 %v3845, %v3844
  %v3855 = vpack.c.b16 %v3847, %v3846
  %v3856 = vpack.c.b16 %v3849, %v3848
  %v3857 = vpack.c.b16 %v3851, %v3850
  %v3858 = vpack.c.b16 %v3852, %v3852
  %v3865 = vsel %vm3619, %v3826, 0
  %v3868 = vsel %vm3619, %v3827, 0
  %v3871 = vsel %vm3619, %v3828, 0
  %v3874 = vsel %vm3619, %v3829, 0
  %v3877 = vsel %vm3619, %v3830, 0
  %v3880 = vsel %vm3635, %v3858, 0
  %3882 = vmatpush.bf16.msra.mxu0 0
  %3883 = vmatpush.bf16.msra.mxu0 0
  %3884 = vmatpush.bf16.msra.mxu0 %v3880
  %3885 = vmatpush.bf16.msra.mxu0 %v3857
  %3886 = vmatpush.bf16.msra.mxu0 %v3856
  %3887 = vmatpush.bf16.msra.mxu0 %v3855
  %3888 = vmatpush.bf16.msra.mxu0 %v3854
  %3889 = vmatpush.bf16.msra.mxu0 %v3853
  %3890 = vmatmul.bf16.gmra.mxu0 %v3865
  %v3891 = vpop.f32.mrf.mxu0
  %v3892 = vadd.f32 0.0, %v3891
  %v3893 = vpop.f32.mrf.mxu0
  %v3894 = vadd.f32 0.0, %v3893
  %3895 = vmatmul.bf16.gmra.mxu0 %v3868
  %v3896 = vpop.f32.mrf.mxu0
  %v3897 = vadd.f32 0.0, %v3896
  %v3898 = vpop.f32.mrf.mxu0
  %v3899 = vadd.f32 0.0, %v3898
  %3900 = vmatmul.bf16.gmra.mxu0 %v3871
  %v3901 = vpop.f32.mrf.mxu0
  %v3902 = vadd.f32 0.0, %v3901
  %v3903 = vpop.f32.mrf.mxu0
  %v3904 = vadd.f32 0.0, %v3903
  %3905 = vmatmul.bf16.gmra.mxu0 %v3874
  %v3906 = vpop.f32.mrf.mxu0
  %v3907 = vadd.f32 0.0, %v3906
  %v3908 = vpop.f32.mrf.mxu0
  %v3909 = vadd.f32 0.0, %v3908
  %3910 = vmatmul.bf16.gmra.mxu0 %v3877
  %v3911 = vpop.f32.mrf.mxu0
  %v3912 = vadd.f32 0.0, %v3911
  %v3913 = vpop.f32.mrf.mxu0
  %v3914 = vadd.f32 0.0, %v3913
  %3915 = vdwg.mxu0
  %v3916 = vadd.f32 %v3759, %v3892
  %v3917 = vadd.f32 %v3761, %v3894
  %v3918 = vadd.f32 %v3764, %v3897
  %v3919 = vadd.f32 %v3766, %v3899
  %v3920 = vadd.f32 %v3769, %v3902
  %v3921 = vadd.f32 %v3771, %v3904
  %v3922 = vadd.f32 %v3774, %v3907
  %v3923 = vadd.f32 %v3776, %v3909
  %v3924 = vadd.f32 %v3779, %v3912
  %v3925 = vadd.f32 %v3781, %v3914
  %s3926 = scalar_lea.vmem [#allocation2], 64
  %v3927 = vld [vmem:[%s3926] sm:$0xf]
  %v3928 = vld [vmem:[%s3926 + $0x4] sm:$0xf]
  %v3929 = vld [vmem:[%s3926 + $0x8] sm:$0xf]
  %v3930 = vld [vmem:[%s3926 + $0xc] sm:$0xf]
  %v3931 = vld [vmem:[%s3926 + $0x10] sm:$0xf]
  %v3932 = vld [vmem:[%s3926 + $0x14] sm:$0xf]
  %v3933 = vld [vmem:[%s3926 + $0x18] sm:$0xf]
  %v3934 = vld [vmem:[%s3926 + $0x1c] sm:$0xf]
  %v3935 = vld [vmem:[%s3926 + $0x20] sm:$0xf]
  %v3936 = vld [vmem:[%s3926 + $0x24] sm:$0xf]
  %s3937 = scalar_lea.vmem %s3, 264
  %v3938 = vld [vmem:[%s3937] sm:$0xf]
  %v3939 = vld [vmem:[%s3937 + $0x4] sm:$0xf]
  %v3940 = vld [vmem:[%s3937 + $0x8] sm:$0xf]
  %v3941 = vld [vmem:[%s3937 + $0xc] sm:$0xf]
  %v3942 = vld [vmem:[%s3937 + $0x10] sm:$0xf]
  %v3943 = vld [vmem:[%s3937 + $0x14] sm:$0xf]
  %v3944 = vld [vmem:[%s3937 + $0x18] sm:$0xf]
  %v3945 = vld [vmem:[%s3937 + $0x1c] sm:$0xf]
  %v3946 = vld [vmem:[%s3937 + $0x20] sm:$0xf]
  %v3947 = vld [vmem:[%s3937 + $0x24] sm:$0xf]
  %v3948 = vld [vmem:[%s3937 + $0x28] sm:$0x3]
  %v3959 = vunpack.c.l.b16 %v3927
  %v3960 = vunpack.c.l.b16 %v3928
  %v3961 = vunpack.c.l.b16 %v3929
  %v3962 = vunpack.c.l.b16 %v3930
  %v3963 = vunpack.c.l.b16 %v3931
  %v3964 = vunpack.c.l.b16 %v3932
  %v3965 = vunpack.c.l.b16 %v3933
  %v3966 = vunpack.c.l.b16 %v3934
  %v3967 = vunpack.c.l.b16 %v3935
  %v3968 = vunpack.c.l.b16 %v3936
  %v3969 = vpack.c.b16 %v3960, %v3959
  %v3970 = vpack.c.b16 %v3962, %v3961
  %v3971 = vpack.c.b16 %v3964, %v3963
  %v3972 = vpack.c.b16 %v3966, %v3965
  %v3973 = vpack.c.b16 %v3968, %v3967
  %v3985 = vunpack.c.l.b16 %v3938
  %v3986 = vunpack.c.l.b16 %v3939
  %v3987 = vunpack.c.l.b16 %v3940
  %v3988 = vunpack.c.l.b16 %v3941
  %v3989 = vunpack.c.l.b16 %v3942
  %v3990 = vunpack.c.l.b16 %v3943
  %v3991 = vunpack.c.l.b16 %v3944
  %v3992 = vunpack.c.l.b16 %v3945
  %v3993 = vunpack.c.l.b16 %v3946
  %v3994 = vunpack.c.l.b16 %v3947
  %v3995 = vunpack.c.l.b16 %v3948
  %v3996 = vpack.c.b16 %v3986, %v3985
  %v3997 = vpack.c.b16 %v3988, %v3987
  %v3998 = vpack.c.b16 %v3990, %v3989
  %v3999 = vpack.c.b16 %v3992, %v3991
  %v4000 = vpack.c.b16 %v3994, %v3993
  %v4001 = vpack.c.b16 %v3995, %v3995
  %v4008 = vsel %vm3619, %v3969, 0
  %v4011 = vsel %vm3619, %v3970, 0
  %v4014 = vsel %vm3619, %v3971, 0
  %v4017 = vsel %vm3619, %v3972, 0
  %v4020 = vsel %vm3619, %v3973, 0
  %v4023 = vsel %vm3635, %v4001, 0
  %4025 = vmatpush.bf16.msra.mxu0 0
  %4026 = vmatpush.bf16.msra.mxu0 0
  %4027 = vmatpush.bf16.msra.mxu0 %v4023
  %4028 = vmatpush.bf16.msra.mxu0 %v4000
  %4029 = vmatpush.bf16.msra.mxu0 %v3999
  %4030 = vmatpush.bf16.msra.mxu0 %v3998
  %4031 = vmatpush.bf16.msra.mxu0 %v3997
  %4032 = vmatpush.bf16.msra.mxu0 %v3996
  %4033 = vmatmul.bf16.gmra.mxu0 %v4008
  %v4034 = vpop.f32.mrf.mxu0
  %v4035 = vadd.f32 0.0, %v4034
  %v4036 = vpop.f32.mrf.mxu0
  %v4037 = vadd.f32 0.0, %v4036
  %4038 = vmatmul.bf16.gmra.mxu0 %v4011
  %v4039 = vpop.f32.mrf.mxu0
  %v4040 = vadd.f32 0.0, %v4039
  %v4041 = vpop.f32.mrf.mxu0
  %v4042 = vadd.f32 0.0, %v4041
  %4043 = vmatmul.bf16.gmra.mxu0 %v4014
  %v4044 = vpop.f32.mrf.mxu0
  %v4045 = vadd.f32 0.0, %v4044
  %v4046 = vpop.f32.mrf.mxu0
  %v4047 = vadd.f32 0.0, %v4046
  %4048 = vmatmul.bf16.gmra.mxu0 %v4017
  %v4049 = vpop.f32.mrf.mxu0
  %v4050 = vadd.f32 0.0, %v4049
  %v4051 = vpop.f32.mrf.mxu0
  %v4052 = vadd.f32 0.0, %v4051
  %4053 = vmatmul.bf16.gmra.mxu0 %v4020
  %v4054 = vpop.f32.mrf.mxu0
  %v4055 = vadd.f32 0.0, %v4054
  %v4056 = vpop.f32.mrf.mxu0
  %v4057 = vadd.f32 0.0, %v4056
  %4058 = vdwg.mxu0
  %v4059 = vadd.f32 %v3916, %v4035
  %v4060 = vadd.f32 %v3917, %v4037
  %v4061 = vadd.f32 %v3918, %v4040
  %v4062 = vadd.f32 %v3919, %v4042
  %v4063 = vadd.f32 %v3920, %v4045
  %v4064 = vadd.f32 %v3921, %v4047
  %v4065 = vadd.f32 %v3922, %v4050
  %v4066 = vadd.f32 %v3923, %v4052
  %v4067 = vadd.f32 %v3924, %v4055
  %v4068 = vadd.f32 %v3925, %v4057
  %s4069 = scalar_lea.vmem [#allocation2], 16
  %v4070 = vld [vmem:[%s4069] sm:$0xf]
  %v4071 = vld [vmem:[%s4069 + $0x4] sm:$0xf]
  %v4072 = vld [vmem:[%s4069 + $0x8] sm:$0xf]
  %v4073 = vld [vmem:[%s4069 + $0xc] sm:$0xf]
  %v4074 = vld [vmem:[%s4069 + $0x10] sm:$0xf]
  %v4075 = vld [vmem:[%s4069 + $0x14] sm:$0xf]
  %v4076 = vld [vmem:[%s4069 + $0x18] sm:$0xf]
  %v4077 = vld [vmem:[%s4069 + $0x1c] sm:$0xf]
  %v4078 = vld [vmem:[%s4069 + $0x20] sm:$0xf]
  %v4079 = vld [vmem:[%s4069 + $0x24] sm:$0xf]
  %s4080 = scalar_lea.vmem %s3, 352
  %v4081 = vld [vmem:[%s4080] sm:$0xf]
  %v4082 = vld [vmem:[%s4080 + $0x4] sm:$0xf]
  %v4083 = vld [vmem:[%s4080 + $0x8] sm:$0xf]
  %v4084 = vld [vmem:[%s4080 + $0xc] sm:$0xf]
  %v4085 = vld [vmem:[%s4080 + $0x10] sm:$0xf]
  %v4086 = vld [vmem:[%s4080 + $0x14] sm:$0xf]
  %v4087 = vld [vmem:[%s4080 + $0x18] sm:$0xf]
  %v4088 = vld [vmem:[%s4080 + $0x1c] sm:$0xf]
  %v4089 = vld [vmem:[%s4080 + $0x20] sm:$0xf]
  %v4090 = vld [vmem:[%s4080 + $0x24] sm:$0xf]
  %v4091 = vld [vmem:[%s4080 + $0x28] sm:$0x3]
  %v4102 = vunpack.c.l.b16 %v4070
  %v4103 = vunpack.c.l.b16 %v4071
  %v4104 = vunpack.c.l.b16 %v4072
  %v4105 = vunpack.c.l.b16 %v4073
  %v4106 = vunpack.c.l.b16 %v4074
  %v4107 = vunpack.c.l.b16 %v4075
  %v4108 = vunpack.c.l.b16 %v4076
  %v4109 = vunpack.c.l.b16 %v4077
  %v4110 = vunpack.c.l.b16 %v4078
  %v4111 = vunpack.c.l.b16 %v4079
  %v4112 = vpack.c.b16 %v4103, %v4102
  %v4113 = vpack.c.b16 %v4105, %v4104
  %v4114 = vpack.c.b16 %v4107, %v4106
  %v4115 = vpack.c.b16 %v4109, %v4108
  %v4116 = vpack.c.b16 %v4111, %v4110
  %v4128 = vunpack.c.l.b16 %v4081
  %v4129 = vunpack.c.l.b16 %v4082
  %v4130 = vunpack.c.l.b16 %v4083
  %v4131 = vunpack.c.l.b16 %v4084
  %v4132 = vunpack.c.l.b16 %v4085
  %v4133 = vunpack.c.l.b16 %v4086
  %v4134 = vunpack.c.l.b16 %v4087
  %v4135 = vunpack.c.l.b16 %v4088
  %v4136 = vunpack.c.l.b16 %v4089
  %v4137 = vunpack.c.l.b16 %v4090
  %v4138 = vunpack.c.l.b16 %v4091
  %v4139 = vpack.c.b16 %v4129, %v4128
  %v4140 = vpack.c.b16 %v4131, %v4130
  %v4141 = vpack.c.b16 %v4133, %v4132
  %v4142 = vpack.c.b16 %v4135, %v4134
  %v4143 = vpack.c.b16 %v4137, %v4136
  %v4144 = vpack.c.b16 %v4138, %v4138
  %v4151 = vsel %vm3619, %v4112, 0
  %v4154 = vsel %vm3619, %v4113, 0
  %v4157 = vsel %vm3619, %v4114, 0
  %v4160 = vsel %vm3619, %v4115, 0
  %v4163 = vsel %vm3619, %v4116, 0
  %v4166 = vsel %vm3635, %v4144, 0
  %4168 = vmatpush.bf16.msra.mxu0 0
  %4169 = vmatpush.bf16.msra.mxu0 0
  %4170 = vmatpush.bf16.msra.mxu0 %v4166
  %4171 = vmatpush.bf16.msra.mxu0 %v4143
  %4172 = vmatpush.bf16.msra.mxu0 %v4142
  %4173 = vmatpush.bf16.msra.mxu0 %v4141
  %4174 = vmatpush.bf16.msra.mxu0 %v4140
  %4175 = vmatpush.bf16.msra.mxu0 %v4139
  %4176 = vmatmul.bf16.gmra.mxu0 %v4151
  %v4177 = vpop.f32.mrf.mxu0
  %v4178 = vadd.f32 0.0, %v4177
  %v4179 = vpop.f32.mrf.mxu0
  %v4180 = vadd.f32 0.0, %v4179
  %4181 = vmatmul.bf16.gmra.mxu0 %v4154
  %v4182 = vpop.f32.mrf.mxu0
  %v4183 = vadd.f32 0.0, %v4182
  %v4184 = vpop.f32.mrf.mxu0
  %v4185 = vadd.f32 0.0, %v4184
  %4186 = vmatmul.bf16.gmra.mxu0 %v4157
  %v4187 = vpop.f32.mrf.mxu0
  %v4188 = vadd.f32 0.0, %v4187
  %v4189 = vpop.f32.mrf.mxu0
  %v4190 = vadd.f32 0.0, %v4189
  %4191 = vmatmul.bf16.gmra.mxu0 %v4160
  %v4192 = vpop.f32.mrf.mxu0
  %v4193 = vadd.f32 0.0, %v4192
  %v4194 = vpop.f32.mrf.mxu0
  %v4195 = vadd.f32 0.0, %v4194
  %4196 = vmatmul.bf16.gmra.mxu0 %v4163
  %v4197 = vpop.f32.mrf.mxu0
  %v4198 = vadd.f32 0.0, %v4197
  %v4199 = vpop.f32.mrf.mxu0
  %v4200 = vadd.f32 0.0, %v4199
  %4201 = vdwg.mxu0
  %v4202 = vadd.f32 %v4059, %v4178
  %v4203 = vadd.f32 %v4060, %v4180
  %v4204 = vadd.f32 %v4061, %v4183
  %v4205 = vadd.f32 %v4062, %v4185
  %v4206 = vadd.f32 %v4063, %v4188
  %v4207 = vadd.f32 %v4064, %v4190
  %v4208 = vadd.f32 %v4065, %v4193
  %v4209 = vadd.f32 %v4066, %v4195
  %v4210 = vadd.f32 %v4067, %v4198
  %v4211 = vadd.f32 %v4068, %v4200
  %s4212 = scalar_lea.vmem %s3, 44
  %v4213 = vld [vmem:[%s4212] sm:$0xf]
  %v4214 = vld [vmem:[%s4212 + $0x4] sm:$0xf]
  %v4215 = vld [vmem:[%s4212 + $0x8] sm:$0xf]
  %v4216 = vld [vmem:[%s4212 + $0xc] sm:$0xf]
  %v4217 = vld [vmem:[%s4212 + $0x10] sm:$0xf]
  %v4218 = vld [vmem:[%s4212 + $0x14] sm:$0xf]
  %v4219 = vld [vmem:[%s4212 + $0x18] sm:$0xf]
  %v4220 = vld [vmem:[%s4212 + $0x1c] sm:$0xf]
  %v4221 = vld [vmem:[%s4212 + $0x20] sm:$0xf]
  %v4222 = vld [vmem:[%s4212 + $0x24] sm:$0xf]
  %v4223 = vld [vmem:[%s4212 + $0x28] sm:$0x3]
  %s4224 = scalar_lea.vmem %s3, 132
  %v4225 = vld [vmem:[%s4224] sm:$0xf]
  %v4226 = vld [vmem:[%s4224 + $0x4] sm:$0xf]
  %v4227 = vld [vmem:[%s4224 + $0x8] sm:$0xf]
  %v4228 = vld [vmem:[%s4224 + $0xc] sm:$0xf]
  %v4229 = vld [vmem:[%s4224 + $0x10] sm:$0xf]
  %v4230 = vld [vmem:[%s4224 + $0x14] sm:$0xf]
  %v4231 = vld [vmem:[%s4224 + $0x18] sm:$0xf]
  %v4232 = vld [vmem:[%s4224 + $0x1c] sm:$0xf]
  %v4233 = vld [vmem:[%s4224 + $0x20] sm:$0xf]
  %v4234 = vld [vmem:[%s4224 + $0x24] sm:$0xf]
  %v4235 = vld [vmem:[%s4224 + $0x28] sm:$0x3]
  %v4247 = vunpack.c.l.b16 %v4225
  %v4248 = vunpack.c.l.b16 %v4226
  %v4249 = vunpack.c.l.b16 %v4227
  %v4250 = vunpack.c.l.b16 %v4228
  %v4251 = vunpack.c.l.b16 %v4229
  %v4252 = vunpack.c.l.b16 %v4230
  %v4253 = vunpack.c.l.b16 %v4231
  %v4254 = vunpack.c.l.b16 %v4232
  %v4255 = vunpack.c.l.b16 %v4233
  %v4256 = vunpack.c.l.b16 %v4234
  %v4257 = vunpack.c.l.b16 %v4235
  %v4258 = vpack.c.b16 %v4248, %v4247
  %v4259 = vpack.c.b16 %v4250, %v4249
  %v4260 = vpack.c.b16 %v4252, %v4251
  %v4261 = vpack.c.b16 %v4254, %v4253
  %v4262 = vpack.c.b16 %v4256, %v4255
  %v4263 = vpack.c.b16 %v4257, %v4257
  %v4270 = vsel %vm3635, %v4263, 0
  %4272 = vmatpush.bf16.msra.mxu0 0
  %4273 = vmatpush.bf16.msra.mxu0 0
  %4274 = vmatpush.bf16.msra.mxu0 %v4270
  %4275 = vmatpush.bf16.msra.mxu0 %v4262
  %4276 = vmatpush.bf16.msra.mxu0 %v4261
  %4277 = vmatpush.bf16.msra.mxu0 %v4260
  %4278 = vmatpush.bf16.msra.mxu0 %v4259
  %4279 = vmatpush.bf16.msra.mxu0 %v4258
  %4280 = vmatmul.bf16.gmra.mxu0 %v3621
  %v4281 = vpop.f32.mrf.mxu0
  %v4282 = vadd.f32 0.0, %v4281
  %v4283 = vpop.f32.mrf.mxu0
  %v4284 = vadd.f32 0.0, %v4283
  %4285 = vmatmul.bf16.gmra.mxu0 %v3624
  %v4286 = vpop.f32.mrf.mxu0
  %v4287 = vadd.f32 0.0, %v4286
  %v4288 = vpop.f32.mrf.mxu0
  %v4289 = vadd.f32 0.0, %v4288
  %4290 = vmatmul.bf16.gmra.mxu0 %v3627
  %v4291 = vpop.f32.mrf.mxu0
  %v4292 = vadd.f32 0.0, %v4291
  %v4293 = vpop.f32.mrf.mxu0
  %v4294 = vadd.f32 0.0, %v4293
  %4295 = vmatmul.bf16.gmra.mxu0 %v3630
  %v4296 = vpop.f32.mrf.mxu0
  %v4297 = vadd.f32 0.0, %v4296
  %v4298 = vpop.f32.mrf.mxu0
  %v4299 = vadd.f32 0.0, %v4298
  %4300 = vmatmul.bf16.gmra.mxu0 %v3633
  %v4301 = vpop.f32.mrf.mxu0
  %v4302 = vadd.f32 0.0, %v4301
  %v4303 = vpop.f32.mrf.mxu0
  %v4304 = vadd.f32 0.0, %v4303
  %4305 = vdwg.mxu0
  %v4317 = vunpack.c.l.b16 %v4213
  %v4318 = vunpack.c.l.b16 %v4214
  %v4319 = vunpack.c.l.b16 %v4215
  %v4320 = vunpack.c.l.b16 %v4216
  %v4321 = vunpack.c.l.b16 %v4217
  %v4322 = vunpack.c.l.b16 %v4218
  %v4323 = vunpack.c.l.b16 %v4219
  %v4324 = vunpack.c.l.b16 %v4220
  %v4325 = vunpack.c.l.b16 %v4221
  %v4326 = vunpack.c.l.b16 %v4222
  %v4327 = vunpack.c.l.b16 %v4223
  %v4328 = vpack.c.b16 %v4318, %v4317
  %v4329 = vpack.c.b16 %v4320, %v4319
  %v4330 = vpack.c.b16 %v4322, %v4321
  %v4331 = vpack.c.b16 %v4324, %v4323
  %v4332 = vpack.c.b16 %v4326, %v4325
  %v4333 = vpack.c.b16 %v4327, %v4327
  %v4340 = vsel %vm3635, %v4333, 0
  %4342 = vmatpush.bf16.msra.mxu0 0
  %4343 = vmatpush.bf16.msra.mxu0 0
  %4344 = vmatpush.bf16.msra.mxu0 %v4340
  %4345 = vmatpush.bf16.msra.mxu0 %v4332
  %4346 = vmatpush.bf16.msra.mxu0 %v4331
  %4347 = vmatpush.bf16.msra.mxu0 %v4330
  %4348 = vmatpush.bf16.msra.mxu0 %v4329
  %4349 = vmatpush.bf16.msra.mxu0 %v4328
  %4350 = vmatmul.bf16.gmra.mxu0 %v3732
  %v4351 = vpop.f32.mrf.mxu0
  %v4352 = vadd.f32 %v4282, %v4351
  %v4353 = vpop.f32.mrf.mxu0
  %v4354 = vadd.f32 %v4284, %v4353
  %4355 = vmatmul.bf16.gmra.mxu0 %v3735
  %v4356 = vpop.f32.mrf.mxu0
  %v4357 = vadd.f32 %v4287, %v4356
  %v4358 = vpop.f32.mrf.mxu0
  %v4359 = vadd.f32 %v4289, %v4358
  %4360 = vmatmul.bf16.gmra.mxu0 %v3738
  %v4361 = vpop.f32.mrf.mxu0
  %v4362 = vadd.f32 %v4292, %v4361
  %v4363 = vpop.f32.mrf.mxu0
  %v4364 = vadd.f32 %v4294, %v4363
  %4365 = vmatmul.bf16.gmra.mxu0 %v3741
  %v4366 = vpop.f32.mrf.mxu0
  %v4367 = vadd.f32 %v4297, %v4366
  %v4368 = vpop.f32.mrf.mxu0
  %v4369 = vadd.f32 %v4299, %v4368
  %4370 = vmatmul.bf16.gmra.mxu0 %v3744
  %v4371 = vpop.f32.mrf.mxu0
  %v4372 = vadd.f32 %v4302, %v4371
  %v4373 = vpop.f32.mrf.mxu0
  %v4374 = vadd.f32 %v4304, %v4373
  %4375 = vdwg.mxu0
  %s4376 = scalar_lea.vmem %s3, 220
  %v4377 = vld [vmem:[%s4376] sm:$0xf]
  %v4378 = vld [vmem:[%s4376 + $0x4] sm:$0xf]
  %v4379 = vld [vmem:[%s4376 + $0x8] sm:$0xf]
  %v4380 = vld [vmem:[%s4376 + $0xc] sm:$0xf]
  %v4381 = vld [vmem:[%s4376 + $0x10] sm:$0xf]
  %v4382 = vld [vmem:[%s4376 + $0x14] sm:$0xf]
  %v4383 = vld [vmem:[%s4376 + $0x18] sm:$0xf]
  %v4384 = vld [vmem:[%s4376 + $0x1c] sm:$0xf]
  %v4385 = vld [vmem:[%s4376 + $0x20] sm:$0xf]
  %v4386 = vld [vmem:[%s4376 + $0x24] sm:$0xf]
  %v4387 = vld [vmem:[%s4376 + $0x28] sm:$0x3]
  %v4399 = vunpack.c.l.b16 %v4377
  %v4400 = vunpack.c.l.b16 %v4378
  %v4401 = vunpack.c.l.b16 %v4379
  %v4402 = vunpack.c.l.b16 %v4380
  %v4403 = vunpack.c.l.b16 %v4381
  %v4404 = vunpack.c.l.b16 %v4382
  %v4405 = vunpack.c.l.b16 %v4383
  %v4406 = vunpack.c.l.b16 %v4384
  %v4407 = vunpack.c.l.b16 %v4385
  %v4408 = vunpack.c.l.b16 %v4386
  %v4409 = vunpack.c.l.b16 %v4387
  %v4410 = vpack.c.b16 %v4400, %v4399
  %v4411 = vpack.c.b16 %v4402, %v4401
  %v4412 = vpack.c.b16 %v4404, %v4403
  %v4413 = vpack.c.b16 %v4406, %v4405
  %v4414 = vpack.c.b16 %v4408, %v4407
  %v4415 = vpack.c.b16 %v4409, %v4409
  %v4422 = vsel %vm3635, %v4415, 0
  %4424 = vmatpush.bf16.msra.mxu0 0
  %4425 = vmatpush.bf16.msra.mxu0 0
  %4426 = vmatpush.bf16.msra.mxu0 %v4422
  %4427 = vmatpush.bf16.msra.mxu0 %v4414
  %4428 = vmatpush.bf16.msra.mxu0 %v4413
  %4429 = vmatpush.bf16.msra.mxu0 %v4412
  %4430 = vmatpush.bf16.msra.mxu0 %v4411
  %4431 = vmatpush.bf16.msra.mxu0 %v4410
  %4432 = vmatmul.bf16.gmra.mxu0 %v3865
  %v4433 = vpop.f32.mrf.mxu0
  %v4434 = vadd.f32 0.0, %v4433
  %v4435 = vpop.f32.mrf.mxu0
  %v4436 = vadd.f32 0.0, %v4435
  %4437 = vmatmul.bf16.gmra.mxu0 %v3868
  %v4438 = vpop.f32.mrf.mxu0
  %v4439 = vadd.f32 0.0, %v4438
  %v4440 = vpop.f32.mrf.mxu0
  %v4441 = vadd.f32 0.0, %v4440
  %4442 = vmatmul.bf16.gmra.mxu0 %v3871
  %v4443 = vpop.f32.mrf.mxu0
  %v4444 = vadd.f32 0.0, %v4443
  %v4445 = vpop.f32.mrf.mxu0
  %v4446 = vadd.f32 0.0, %v4445
  %4447 = vmatmul.bf16.gmra.mxu0 %v3874
  %v4448 = vpop.f32.mrf.mxu0
  %v4449 = vadd.f32 0.0, %v4448
  %v4450 = vpop.f32.mrf.mxu0
  %v4451 = vadd.f32 0.0, %v4450
  %4452 = vmatmul.bf16.gmra.mxu0 %v3877
  %v4453 = vpop.f32.mrf.mxu0
  %v4454 = vadd.f32 0.0, %v4453
  %v4455 = vpop.f32.mrf.mxu0
  %v4456 = vadd.f32 0.0, %v4455
  %4457 = vdwg.mxu0
  %v4458 = vadd.f32 %v4352, %v4434
  %v4459 = vadd.f32 %v4354, %v4436
  %v4460 = vadd.f32 %v4357, %v4439
  %v4461 = vadd.f32 %v4359, %v4441
  %v4462 = vadd.f32 %v4362, %v4444
  %v4463 = vadd.f32 %v4364, %v4446
  %v4464 = vadd.f32 %v4367, %v4449
  %v4465 = vadd.f32 %v4369, %v4451
  %v4466 = vadd.f32 %v4372, %v4454
  %v4467 = vadd.f32 %v4374, %v4456
  %s4468 = scalar_lea.vmem %s3, 308
  %v4469 = vld [vmem:[%s4468] sm:$0xf]
  %v4470 = vld [vmem:[%s4468 + $0x4] sm:$0xf]
  %v4471 = vld [vmem:[%s4468 + $0x8] sm:$0xf]
  %v4472 = vld [vmem:[%s4468 + $0xc] sm:$0xf]
  %v4473 = vld [vmem:[%s4468 + $0x10] sm:$0xf]
  %v4474 = vld [vmem:[%s4468 + $0x14] sm:$0xf]
  %v4475 = vld [vmem:[%s4468 + $0x18] sm:$0xf]
  %v4476 = vld [vmem:[%s4468 + $0x1c] sm:$0xf]
  %v4477 = vld [vmem:[%s4468 + $0x20] sm:$0xf]
  %v4478 = vld [vmem:[%s4468 + $0x24] sm:$0xf]
  %v4479 = vld [vmem:[%s4468 + $0x28] sm:$0x3]
  %v4491 = vunpack.c.l.b16 %v4469
  %v4492 = vunpack.c.l.b16 %v4470
  %v4493 = vunpack.c.l.b16 %v4471
  %v4494 = vunpack.c.l.b16 %v4472
  %v4495 = vunpack.c.l.b16 %v4473
  %v4496 = vunpack.c.l.b16 %v4474
  %v4497 = vunpack.c.l.b16 %v4475
  %v4498 = vunpack.c.l.b16 %v4476
  %v4499 = vunpack.c.l.b16 %v4477
  %v4500 = vunpack.c.l.b16 %v4478
  %v4501 = vunpack.c.l.b16 %v4479
  %v4502 = vpack.c.b16 %v4492, %v4491
  %v4503 = vpack.c.b16 %v4494, %v4493
  %v4504 = vpack.c.b16 %v4496, %v4495
  %v4505 = vpack.c.b16 %v4498, %v4497
  %v4506 = vpack.c.b16 %v4500, %v4499
  %v4507 = vpack.c.b16 %v4501, %v4501
  %v4514 = vsel %vm3635, %v4507, 0
  %4516 = vmatpush.bf16.msra.mxu0 0
  %4517 = vmatpush.bf16.msra.mxu0 0
  %4518 = vmatpush.bf16.msra.mxu0 %v4514
  %4519 = vmatpush.bf16.msra.mxu0 %v4506
  %4520 = vmatpush.bf16.msra.mxu0 %v4505
  %4521 = vmatpush.bf16.msra.mxu0 %v4504
  %4522 = vmatpush.bf16.msra.mxu0 %v4503
  %4523 = vmatpush.bf16.msra.mxu0 %v4502
  %4524 = vmatmul.bf16.gmra.mxu0 %v4008
  %v4525 = vpop.f32.mrf.mxu0
  %v4526 = vadd.f32 0.0, %v4525
  %v4527 = vpop.f32.mrf.mxu0
  %v4528 = vadd.f32 0.0, %v4527
  %4529 = vmatmul.bf16.gmra.mxu0 %v4011
  %v4530 = vpop.f32.mrf.mxu0
  %v4531 = vadd.f32 0.0, %v4530
  %v4532 = vpop.f32.mrf.mxu0
  %v4533 = vadd.f32 0.0, %v4532
  %4534 = vmatmul.bf16.gmra.mxu0 %v4014
  %v4535 = vpop.f32.mrf.mxu0
  %v4536 = vadd.f32 0.0, %v4535
  %v4537 = vpop.f32.mrf.mxu0
  %v4538 = vadd.f32 0.0, %v4537
  %4539 = vmatmul.bf16.gmra.mxu0 %v4017
  %v4540 = vpop.f32.mrf.mxu0
  %v4541 = vadd.f32 0.0, %v4540
  %v4542 = vpop.f32.mrf.mxu0
  %v4543 = vadd.f32 0.0, %v4542
  %4544 = vmatmul.bf16.gmra.mxu0 %v4020
  %v4545 = vpop.f32.mrf.mxu0
  %v4546 = vadd.f32 0.0, %v4545
  %v4547 = vpop.f32.mrf.mxu0
  %v4548 = vadd.f32 0.0, %v4547
  %4549 = vdwg.mxu0
  %v4550 = vadd.f32 %v4458, %v4526
  %v4551 = vadd.f32 %v4459, %v4528
  %v4552 = vadd.f32 %v4460, %v4531
  %v4553 = vadd.f32 %v4461, %v4533
  %v4554 = vadd.f32 %v4462, %v4536
  %v4555 = vadd.f32 %v4463, %v4538
  %v4556 = vadd.f32 %v4464, %v4541
  %v4557 = vadd.f32 %v4465, %v4543
  %v4558 = vadd.f32 %v4466, %v4546
  %v4559 = vadd.f32 %v4467, %v4548
  %s4560 = scalar_lea.vmem %s3, 396
  %v4561 = vld [vmem:[%s4560] sm:$0xf]
  %v4562 = vld [vmem:[%s4560 + $0x4] sm:$0xf]
  %v4563 = vld [vmem:[%s4560 + $0x8] sm:$0xf]
  %v4564 = vld [vmem:[%s4560 + $0xc] sm:$0xf]
  %v4565 = vld [vmem:[%s4560 + $0x10] sm:$0xf]
  %v4566 = vld [vmem:[%s4560 + $0x14] sm:$0xf]
  %v4567 = vld [vmem:[%s4560 + $0x18] sm:$0xf]
  %v4568 = vld [vmem:[%s4560 + $0x1c] sm:$0xf]
  %v4569 = vld [vmem:[%s4560 + $0x20] sm:$0xf]
  %v4570 = vld [vmem:[%s4560 + $0x24] sm:$0xf]
  %v4571 = vld [vmem:[%s4560 + $0x28] sm:$0x3]
  %v4583 = vunpack.c.l.b16 %v4561
  %v4584 = vunpack.c.l.b16 %v4562
  %v4585 = vunpack.c.l.b16 %v4563
  %v4586 = vunpack.c.l.b16 %v4564
  %v4587 = vunpack.c.l.b16 %v4565
  %v4588 = vunpack.c.l.b16 %v4566
  %v4589 = vunpack.c.l.b16 %v4567
  %v4590 = vunpack.c.l.b16 %v4568
  %v4591 = vunpack.c.l.b16 %v4569
  %v4592 = vunpack.c.l.b16 %v4570
  %v4593 = vunpack.c.l.b16 %v4571
  %v4594 = vpack.c.b16 %v4584, %v4583
  %v4595 = vpack.c.b16 %v4586, %v4585
  %v4596 = vpack.c.b16 %v4588, %v4587
  %v4597 = vpack.c.b16 %v4590, %v4589
  %v4598 = vpack.c.b16 %v4592, %v4591
  %v4599 = vpack.c.b16 %v4593, %v4593
  %v4606 = vsel %vm3635, %v4599, 0
  %4608 = vmatpush.bf16.msra.mxu0 0
  %4609 = vmatpush.bf16.msra.mxu0 0
  %4610 = vmatpush.bf16.msra.mxu0 %v4606
  %4611 = vmatpush.bf16.msra.mxu0 %v4598
  %4612 = vmatpush.bf16.msra.mxu0 %v4597
  %4613 = vmatpush.bf16.msra.mxu0 %v4596
  %4614 = vmatpush.bf16.msra.mxu0 %v4595
  %4615 = vmatpush.bf16.msra.mxu0 %v4594
  %4616 = vmatmul.bf16.gmra.mxu0 %v4151
  %v4617 = vpop.f32.mrf.mxu0
  %v4618 = vadd.f32 0.0, %v4617
  %v4619 = vpop.f32.mrf.mxu0
  %v4620 = vadd.f32 0.0, %v4619
  %4621 = vmatmul.bf16.gmra.mxu0 %v4154
  %v4622 = vpop.f32.mrf.mxu0
  %v4623 = vadd.f32 0.0, %v4622
  %v4624 = vpop.f32.mrf.mxu0
  %v4625 = vadd.f32 0.0, %v4624
  %4626 = vmatmul.bf16.gmra.mxu0 %v4157
  %v4627 = vpop.f32.mrf.mxu0
  %v4628 = vadd.f32 0.0, %v4627
  %v4629 = vpop.f32.mrf.mxu0
  %v4630 = vadd.f32 0.0, %v4629
  %4631 = vmatmul.bf16.gmra.mxu0 %v4160
  %v4632 = vpop.f32.mrf.mxu0
  %v4633 = vadd.f32 0.0, %v4632
  %v4634 = vpop.f32.mrf.mxu0
  %v4635 = vadd.f32 0.0, %v4634
  %4636 = vmatmul.bf16.gmra.mxu0 %v4163
  %v4637 = vpop.f32.mrf.mxu0
  %v4638 = vadd.f32 0.0, %v4637
  %v4639 = vpop.f32.mrf.mxu0
  %v4640 = vadd.f32 0.0, %v4639
  %4641 = vdwg.mxu0
  %v4642 = vadd.f32 %v4550, %v4618
  %v4643 = vadd.f32 %v4551, %v4620
  %v4644 = vadd.f32 %v4552, %v4623
  %v4645 = vadd.f32 %v4553, %v4625
  %v4646 = vadd.f32 %v4554, %v4628
  %v4647 = vadd.f32 %v4555, %v4630
  %v4648 = vadd.f32 %v4556, %v4633
  %v4649 = vadd.f32 %v4557, %v4635
  %v4650 = vadd.f32 %v4558, %v4638
  %v4651 = vadd.f32 %v4559, %v4640
  %v4652 = vmax.f32 %v4202, %v4642
  %v4653 = vmax.f32 %v4203, %v4643
  %v4654 = vmax.f32 %v4204, %v4644
  %v4655 = vmax.f32 %v4205, %v4645
  %v4656 = vmax.f32 %v4206, %v4646
  %v4657 = vmax.f32 %v4207, %v4647
  %v4658 = vmax.f32 %v4208, %v4648
  %v4659 = vmax.f32 %v4209, %v4649
  %v4660 = vmax.f32 %v4210, %v4650
  %v4661 = vmax.f32 %v4211, %v4651
  %4662 = vmatpush.bf16.msra.mxu0 0
  %4663 = vmatpush.bf16.msra.mxu0 0
  %4664 = vmatpush.bf16.msra.mxu0 %v3637
  %4665 = vmatpush.bf16.msra.mxu0 %v3612
  %4666 = vmatpush.bf16.msra.mxu0 %v3611
  %4667 = vmatpush.bf16.msra.mxu0 %v3610
  %4668 = vmatpush.bf16.msra.mxu0 %v3609
  %4669 = vmatpush.bf16.msra.mxu0 %v3608
  %4670 = vmatmul.bf16.gmra.mxu0 %v3865
  %v4671 = vpop.f32.mrf.mxu0
  %v4672 = vadd.f32 0.0, %v4671
  %v4673 = vpop.f32.mrf.mxu0
  %v4674 = vadd.f32 0.0, %v4673
  %4675 = vmatmul.bf16.gmra.mxu0 %v3868
  %v4676 = vpop.f32.mrf.mxu0
  %v4677 = vadd.f32 0.0, %v4676
  %v4678 = vpop.f32.mrf.mxu0
  %v4679 = vadd.f32 0.0, %v4678
  %4680 = vmatmul.bf16.gmra.mxu0 %v3871
  %v4681 = vpop.f32.mrf.mxu0
  %v4682 = vadd.f32 0.0, %v4681
  %v4683 = vpop.f32.mrf.mxu0
  %v4684 = vadd.f32 0.0, %v4683
  %4685 = vmatmul.bf16.gmra.mxu0 %v3874
  %v4686 = vpop.f32.mrf.mxu0
  %v4687 = vadd.f32 0.0, %v4686
  %v4688 = vpop.f32.mrf.mxu0
  %v4689 = vadd.f32 0.0, %v4688
  %4690 = vmatmul.bf16.gmra.mxu0 %v3877
  %v4691 = vpop.f32.mrf.mxu0
  %v4692 = vadd.f32 0.0, %v4691
  %v4693 = vpop.f32.mrf.mxu0
  %v4694 = vadd.f32 0.0, %v4693
  %4695 = vdwg.mxu0
  %4696 = vmatpush.bf16.msra.mxu0 0
  %4697 = vmatpush.bf16.msra.mxu0 0
  %4698 = vmatpush.bf16.msra.mxu0 %v3747
  %4699 = vmatpush.bf16.msra.mxu0 %v3724
  %4700 = vmatpush.bf16.msra.mxu0 %v3723
  %4701 = vmatpush.bf16.msra.mxu0 %v3722
  %4702 = vmatpush.bf16.msra.mxu0 %v3721
  %4703 = vmatpush.bf16.msra.mxu0 %v3720
  %4704 = vmatmul.bf16.gmra.mxu0 %v3621
  %v4705 = vpop.f32.mrf.mxu0
  %v4706 = vadd.f32 %v4672, %v4705
  %v4707 = vpop.f32.mrf.mxu0
  %v4708 = vadd.f32 %v4674, %v4707
  %4709 = vmatmul.bf16.gmra.mxu0 %v3624
  %v4710 = vpop.f32.mrf.mxu0
  %v4711 = vadd.f32 %v4677, %v4710
  %v4712 = vpop.f32.mrf.mxu0
  %v4713 = vadd.f32 %v4679, %v4712
  %4714 = vmatmul.bf16.gmra.mxu0 %v3627
  %v4715 = vpop.f32.mrf.mxu0
  %v4716 = vadd.f32 %v4682, %v4715
  %v4717 = vpop.f32.mrf.mxu0
  %v4718 = vadd.f32 %v4684, %v4717
  %4719 = vmatmul.bf16.gmra.mxu0 %v3630
  %v4720 = vpop.f32.mrf.mxu0
  %v4721 = vadd.f32 %v4687, %v4720
  %v4722 = vpop.f32.mrf.mxu0
  %v4723 = vadd.f32 %v4689, %v4722
  %4724 = vmatmul.bf16.gmra.mxu0 %v3633
  %v4725 = vpop.f32.mrf.mxu0
  %v4726 = vadd.f32 %v4692, %v4725
  %v4727 = vpop.f32.mrf.mxu0
  %v4728 = vadd.f32 %v4694, %v4727
  %4729 = vdwg.mxu0
  %4730 = vmatpush.bf16.msra.mxu0 0
  %4731 = vmatpush.bf16.msra.mxu0 0
  %4732 = vmatpush.bf16.msra.mxu0 %v3880
  %4733 = vmatpush.bf16.msra.mxu0 %v3857
  %4734 = vmatpush.bf16.msra.mxu0 %v3856
  %4735 = vmatpush.bf16.msra.mxu0 %v3855
  %4736 = vmatpush.bf16.msra.mxu0 %v3854
  %4737 = vmatpush.bf16.msra.mxu0 %v3853
  %4738 = vmatmul.bf16.gmra.mxu0 %v4008
  %v4739 = vpop.f32.mrf.mxu0
  %v4740 = vadd.f32 0.0, %v4739
  %v4741 = vpop.f32.mrf.mxu0
  %v4742 = vadd.f32 0.0, %v4741
  %4743 = vmatmul.bf16.gmra.mxu0 %v4011
  %v4744 = vpop.f32.mrf.mxu0
  %v4745 = vadd.f32 0.0, %v4744
  %v4746 = vpop.f32.mrf.mxu0
  %v4747 = vadd.f32 0.0, %v4746
  %4748 = vmatmul.bf16.gmra.mxu0 %v4014
  %v4749 = vpop.f32.mrf.mxu0
  %v4750 = vadd.f32 0.0, %v4749
  %v4751 = vpop.f32.mrf.mxu0
  %v4752 = vadd.f32 0.0, %v4751
  %4753 = vmatmul.bf16.gmra.mxu0 %v4017
  %v4754 = vpop.f32.mrf.mxu0
  %v4755 = vadd.f32 0.0, %v4754
  %v4756 = vpop.f32.mrf.mxu0
  %v4757 = vadd.f32 0.0, %v4756
  %4758 = vmatmul.bf16.gmra.mxu0 %v4020
  %v4759 = vpop.f32.mrf.mxu0
  %v4760 = vadd.f32 0.0, %v4759
  %v4761 = vpop.f32.mrf.mxu0
  %v4762 = vadd.f32 0.0, %v4761
  %4763 = vdwg.mxu0
  %v4764 = vadd.f32 %v4706, %v4740
  %v4765 = vadd.f32 %v4708, %v4742
  %v4766 = vadd.f32 %v4711, %v4745
  %v4767 = vadd.f32 %v4713, %v4747
  %v4768 = vadd.f32 %v4716, %v4750
  %v4769 = vadd.f32 %v4718, %v4752
  %v4770 = vadd.f32 %v4721, %v4755
  %v4771 = vadd.f32 %v4723, %v4757
  %v4772 = vadd.f32 %v4726, %v4760
  %v4773 = vadd.f32 %v4728, %v4762
  %4774 = vmatpush.bf16.msra.mxu0 0
  %4775 = vmatpush.bf16.msra.mxu0 0
  %4776 = vmatpush.bf16.msra.mxu0 %v4023
  %4777 = vmatpush.bf16.msra.mxu0 %v4000
  %4778 = vmatpush.bf16.msra.mxu0 %v3999
  %4779 = vmatpush.bf16.msra.mxu0 %v3998
  %4780 = vmatpush.bf16.msra.mxu0 %v3997
  %4781 = vmatpush.bf16.msra.mxu0 %v3996
  %4782 = vmatmul.bf16.gmra.mxu0 %v4151
  %v4783 = vpop.f32.mrf.mxu0
  %v4784 = vadd.f32 0.0, %v4783
  %v4785 = vpop.f32.mrf.mxu0
  %v4786 = vadd.f32 0.0, %v4785
  %4787 = vmatmul.bf16.gmra.mxu0 %v4154
  %v4788 = vpop.f32.mrf.mxu0
  %v4789 = vadd.f32 0.0, %v4788
  %v4790 = vpop.f32.mrf.mxu0
  %v4791 = vadd.f32 0.0, %v4790
  %4792 = vmatmul.bf16.gmra.mxu0 %v4157
  %v4793 = vpop.f32.mrf.mxu0
  %v4794 = vadd.f32 0.0, %v4793
  %v4795 = vpop.f32.mrf.mxu0
  %v4796 = vadd.f32 0.0, %v4795
  %4797 = vmatmul.bf16.gmra.mxu0 %v4160
  %v4798 = vpop.f32.mrf.mxu0
  %v4799 = vadd.f32 0.0, %v4798
  %v4800 = vpop.f32.mrf.mxu0
  %v4801 = vadd.f32 0.0, %v4800
  %4802 = vmatmul.bf16.gmra.mxu0 %v4163
  %v4803 = vpop.f32.mrf.mxu0
  %v4804 = vadd.f32 0.0, %v4803
  %v4805 = vpop.f32.mrf.mxu0
  %v4806 = vadd.f32 0.0, %v4805
  %4807 = vdwg.mxu0
  %v4808 = vadd.f32 %v4764, %v4784
  %v4809 = vadd.f32 %v4765, %v4786
  %v4810 = vadd.f32 %v4766, %v4789
  %v4811 = vadd.f32 %v4767, %v4791
  %v4812 = vadd.f32 %v4768, %v4794
  %v4813 = vadd.f32 %v4769, %v4796
  %v4814 = vadd.f32 %v4770, %v4799
  %v4815 = vadd.f32 %v4771, %v4801
  %v4816 = vadd.f32 %v4772, %v4804
  %v4817 = vadd.f32 %v4773, %v4806
  %s4818 = scalar_lea.vmem [#allocation2], 72
  %v4819 = vld [vmem:[%s4818] sm:$0xf]
  %v4820 = vld [vmem:[%s4818 + $0x4] sm:$0xf]
  %v4821 = vld [vmem:[%s4818 + $0x8] sm:$0xf]
  %v4822 = vld [vmem:[%s4818 + $0xc] sm:$0xf]
  %v4823 = vld [vmem:[%s4818 + $0x10] sm:$0xf]
  %v4824 = vld [vmem:[%s4818 + $0x14] sm:$0xf]
  %v4825 = vld [vmem:[%s4818 + $0x18] sm:$0xf]
  %v4826 = vld [vmem:[%s4818 + $0x1c] sm:$0xf]
  %v4827 = vld [vmem:[%s4818 + $0x20] sm:$0xf]
  %v4828 = vld [vmem:[%s4818 + $0x24] sm:$0xf]
  %v4839 = vunpack.c.l.b16 %v4819
  %v4840 = vunpack.c.l.b16 %v4820
  %v4841 = vunpack.c.l.b16 %v4821
  %v4842 = vunpack.c.l.b16 %v4822
  %v4843 = vunpack.c.l.b16 %v4823
  %v4844 = vunpack.c.l.b16 %v4824
  %v4845 = vunpack.c.l.b16 %v4825
  %v4846 = vunpack.c.l.b16 %v4826
  %v4847 = vunpack.c.l.b16 %v4827
  %v4848 = vunpack.c.l.b16 %v4828
  %v4849 = vpack.c.b16 %v4840, %v4839
  %v4850 = vpack.c.b16 %v4842, %v4841
  %v4851 = vpack.c.b16 %v4844, %v4843
  %v4852 = vpack.c.b16 %v4846, %v4845
  %v4853 = vpack.c.b16 %v4848, %v4847
  %v4855 = vsel %vm3619, %v4849, 0
  %v4858 = vsel %vm3619, %v4850, 0
  %v4861 = vsel %vm3619, %v4851, 0
  %v4864 = vsel %vm3619, %v4852, 0
  %v4867 = vsel %vm3619, %v4853, 0
  %4869 = vmatpush.bf16.msra.mxu0 0
  %4870 = vmatpush.bf16.msra.mxu0 0
  %4871 = vmatpush.bf16.msra.mxu0 %v4166
  %4872 = vmatpush.bf16.msra.mxu0 %v4143
  %4873 = vmatpush.bf16.msra.mxu0 %v4142
  %4874 = vmatpush.bf16.msra.mxu0 %v4141
  %4875 = vmatpush.bf16.msra.mxu0 %v4140
  %4876 = vmatpush.bf16.msra.mxu0 %v4139
  %4877 = vmatmul.bf16.gmra.mxu0 %v4855
  %v4878 = vpop.f32.mrf.mxu0
  %v4879 = vadd.f32 0.0, %v4878
  %v4880 = vpop.f32.mrf.mxu0
  %v4881 = vadd.f32 0.0, %v4880
  %4882 = vmatmul.bf16.gmra.mxu0 %v4858
  %v4883 = vpop.f32.mrf.mxu0
  %v4884 = vadd.f32 0.0, %v4883
  %v4885 = vpop.f32.mrf.mxu0
  %v4886 = vadd.f32 0.0, %v4885
  %4887 = vmatmul.bf16.gmra.mxu0 %v4861
  %v4888 = vpop.f32.mrf.mxu0
  %v4889 = vadd.f32 0.0, %v4888
  %v4890 = vpop.f32.mrf.mxu0
  %v4891 = vadd.f32 0.0, %v4890
  %4892 = vmatmul.bf16.gmra.mxu0 %v4864
  %v4893 = vpop.f32.mrf.mxu0
  %v4894 = vadd.f32 0.0, %v4893
  %v4895 = vpop.f32.mrf.mxu0
  %v4896 = vadd.f32 0.0, %v4895
  %4897 = vmatmul.bf16.gmra.mxu0 %v4867
  %v4898 = vpop.f32.mrf.mxu0
  %v4899 = vadd.f32 0.0, %v4898
  %v4900 = vpop.f32.mrf.mxu0
  %v4901 = vadd.f32 0.0, %v4900
  %4902 = vdwg.mxu0
  %v4903 = vadd.f32 %v4808, %v4879
  %v4904 = vadd.f32 %v4809, %v4881
  %v4905 = vadd.f32 %v4810, %v4884
  %v4906 = vadd.f32 %v4811, %v4886
  %v4907 = vadd.f32 %v4812, %v4889
  %v4908 = vadd.f32 %v4813, %v4891
  %v4909 = vadd.f32 %v4814, %v4894
  %v4910 = vadd.f32 %v4815, %v4896
  %v4911 = vadd.f32 %v4816, %v4899
  %v4912 = vadd.f32 %v4817, %v4901
  %v4913 = vmax.f32 %v4652, %v4903
  %v4914 = vmax.f32 %v4653, %v4904
  %v4915 = vmax.f32 %v4654, %v4905
  %v4916 = vmax.f32 %v4655, %v4906
  %v4917 = vmax.f32 %v4656, %v4907
  %v4918 = vmax.f32 %v4657, %v4908
  %v4919 = vmax.f32 %v4658, %v4909
  %v4920 = vmax.f32 %v4659, %v4910
  %v4921 = vmax.f32 %v4660, %v4911
  %v4922 = vmax.f32 %v4661, %v4912
  %4923 = vmatpush.bf16.msra.mxu0 0
  %4924 = vmatpush.bf16.msra.mxu0 0
  %4925 = vmatpush.bf16.msra.mxu0 %v4270
  %4926 = vmatpush.bf16.msra.mxu0 %v4262
  %4927 = vmatpush.bf16.msra.mxu0 %v4261
  %4928 = vmatpush.bf16.msra.mxu0 %v4260
  %4929 = vmatpush.bf16.msra.mxu0 %v4259
  %4930 = vmatpush.bf16.msra.mxu0 %v4258
  %4931 = vmatmul.bf16.gmra.mxu0 %v3865
  %v4932 = vpop.f32.mrf.mxu0
  %v4933 = vadd.f32 0.0, %v4932
  %v4934 = vpop.f32.mrf.mxu0
  %v4935 = vadd.f32 0.0, %v4934
  %4936 = vmatmul.bf16.gmra.mxu0 %v3868
  %v4937 = vpop.f32.mrf.mxu0
  %v4938 = vadd.f32 0.0, %v4937
  %v4939 = vpop.f32.mrf.mxu0
  %v4940 = vadd.f32 0.0, %v4939
  %4941 = vmatmul.bf16.gmra.mxu0 %v3871
  %v4942 = vpop.f32.mrf.mxu0
  %v4943 = vadd.f32 0.0, %v4942
  %v4944 = vpop.f32.mrf.mxu0
  %v4945 = vadd.f32 0.0, %v4944
  %4946 = vmatmul.bf16.gmra.mxu0 %v3874
  %v4947 = vpop.f32.mrf.mxu0
  %v4948 = vadd.f32 0.0, %v4947
  %v4949 = vpop.f32.mrf.mxu0
  %v4950 = vadd.f32 0.0, %v4949
  %4951 = vmatmul.bf16.gmra.mxu0 %v3877
  %v4952 = vpop.f32.mrf.mxu0
  %v4953 = vadd.f32 0.0, %v4952
  %v4954 = vpop.f32.mrf.mxu0
  %v4955 = vadd.f32 0.0, %v4954
  %4956 = vdwg.mxu0
  %4957 = vmatpush.bf16.msra.mxu0 0
  %4958 = vmatpush.bf16.msra.mxu0 0
  %4959 = vmatpush.bf16.msra.mxu0 %v4340
  %4960 = vmatpush.bf16.msra.mxu0 %v4332
  %4961 = vmatpush.bf16.msra.mxu0 %v4331
  %4962 = vmatpush.bf16.msra.mxu0 %v4330
  %4963 = vmatpush.bf16.msra.mxu0 %v4329
  %4964 = vmatpush.bf16.msra.mxu0 %v4328
  %4965 = vmatmul.bf16.gmra.mxu0 %v3621
  %v4966 = vpop.f32.mrf.mxu0
  %v4967 = vadd.f32 %v4933, %v4966
  %v4968 = vpop.f32.mrf.mxu0
  %v4969 = vadd.f32 %v4935, %v4968
  %4970 = vmatmul.bf16.gmra.mxu0 %v3624
  %v4971 = vpop.f32.mrf.mxu0
  %v4972 = vadd.f32 %v4938, %v4971
  %v4973 = vpop.f32.mrf.mxu0
  %v4974 = vadd.f32 %v4940, %v4973
  %4975 = vmatmul.bf16.gmra.mxu0 %v3627
  %v4976 = vpop.f32.mrf.mxu0
  %v4977 = vadd.f32 %v4943, %v4976
  %v4978 = vpop.f32.mrf.mxu0
  %v4979 = vadd.f32 %v4945, %v4978
  %4980 = vmatmul.bf16.gmra.mxu0 %v3630
  %v4981 = vpop.f32.mrf.mxu0
  %v4982 = vadd.f32 %v4948, %v4981
  %v4983 = vpop.f32.mrf.mxu0
  %v4984 = vadd.f32 %v4950, %v4983
  %4985 = vmatmul.bf16.gmra.mxu0 %v3633
  %v4986 = vpop.f32.mrf.mxu0
  %v4987 = vadd.f32 %v4953, %v4986
  %v4988 = vpop.f32.mrf.mxu0
  %v4989 = vadd.f32 %v4955, %v4988
  %4990 = vdwg.mxu0
  %4991 = vmatpush.bf16.msra.mxu0 0
  %4992 = vmatpush.bf16.msra.mxu0 0
  %4993 = vmatpush.bf16.msra.mxu0 %v4422
  %4994 = vmatpush.bf16.msra.mxu0 %v4414
  %4995 = vmatpush.bf16.msra.mxu0 %v4413
  %4996 = vmatpush.bf16.msra.mxu0 %v4412
  %4997 = vmatpush.bf16.msra.mxu0 %v4411
  %4998 = vmatpush.bf16.msra.mxu0 %v4410
  %4999 = vmatmul.bf16.gmra.mxu0 %v4008
  %v5000 = vpop.f32.mrf.mxu0
  %v5001 = vadd.f32 0.0, %v5000
  %v5002 = vpop.f32.mrf.mxu0
  %v5003 = vadd.f32 0.0, %v5002
  %5004 = vmatmul.bf16.gmra.mxu0 %v4011
  %v5005 = vpop.f32.mrf.mxu0
  %v5006 = vadd.f32 0.0, %v5005
  %v5007 = vpop.f32.mrf.mxu0
  %v5008 = vadd.f32 0.0, %v5007
  %5009 = vmatmul.bf16.gmra.mxu0 %v4014
  %v5010 = vpop.f32.mrf.mxu0
  %v5011 = vadd.f32 0.0, %v5010
  %v5012 = vpop.f32.mrf.mxu0
  %v5013 = vadd.f32 0.0, %v5012
  %5014 = vmatmul.bf16.gmra.mxu0 %v4017
  %v5015 = vpop.f32.mrf.mxu0
  %v5016 = vadd.f32 0.0, %v5015
  %v5017 = vpop.f32.mrf.mxu0
  %v5018 = vadd.f32 0.0, %v5017
  %5019 = vmatmul.bf16.gmra.mxu0 %v4020
  %v5020 = vpop.f32.mrf.mxu0
  %v5021 = vadd.f32 0.0, %v5020
  %v5022 = vpop.f32.mrf.mxu0
  %v5023 = vadd.f32 0.0, %v5022
  %5024 = vdwg.mxu0
  %v5025 = vadd.f32 %v4967, %v5001
  %v5026 = vadd.f32 %v4969, %v5003
  %v5027 = vadd.f32 %v4972, %v5006
  %v5028 = vadd.f32 %v4974, %v5008
  %v5029 = vadd.f32 %v4977, %v5011
  %v5030 = vadd.f32 %v4979, %v5013
  %v5031 = vadd.f32 %v4982, %v5016
  %v5032 = vadd.f32 %v4984, %v5018
  %v5033 = vadd.f32 %v4987, %v5021
  %v5034 = vadd.f32 %v4989, %v5023
  %5035 = vmatpush.bf16.msra.mxu0 0
  %5036 = vmatpush.bf16.msra.mxu0 0
  %5037 = vmatpush.bf16.msra.mxu0 %v4514
  %5038 = vmatpush.bf16.msra.mxu0 %v4506
  %5039 = vmatpush.bf16.msra.mxu0 %v4505
  %5040 = vmatpush.bf16.msra.mxu0 %v4504
  %5041 = vmatpush.bf16.msra.mxu0 %v4503
  %5042 = vmatpush.bf16.msra.mxu0 %v4502
  %5043 = vmatmul.bf16.gmra.mxu0 %v4151
  %v5044 = vpop.f32.mrf.mxu0
  %v5045 = vadd.f32 0.0, %v5044
  %v5046 = vpop.f32.mrf.mxu0
  %v5047 = vadd.f32 0.0, %v5046
  %5048 = vmatmul.bf16.gmra.mxu0 %v4154
  %v5049 = vpop.f32.mrf.mxu0
  %v5050 = vadd.f32 0.0, %v5049
  %v5051 = vpop.f32.mrf.mxu0
  %v5052 = vadd.f32 0.0, %v5051
  %5053 = vmatmul.bf16.gmra.mxu0 %v4157
  %v5054 = vpop.f32.mrf.mxu0
  %v5055 = vadd.f32 0.0, %v5054
  %v5056 = vpop.f32.mrf.mxu0
  %v5057 = vadd.f32 0.0, %v5056
  %5058 = vmatmul.bf16.gmra.mxu0 %v4160
  %v5059 = vpop.f32.mrf.mxu0
  %v5060 = vadd.f32 0.0, %v5059
  %v5061 = vpop.f32.mrf.mxu0
  %v5062 = vadd.f32 0.0, %v5061
  %5063 = vmatmul.bf16.gmra.mxu0 %v4163
  %v5064 = vpop.f32.mrf.mxu0
  %v5065 = vadd.f32 0.0, %v5064
  %v5066 = vpop.f32.mrf.mxu0
  %v5067 = vadd.f32 0.0, %v5066
  %5068 = vdwg.mxu0
  %v5069 = vadd.f32 %v5025, %v5045
  %v5070 = vadd.f32 %v5026, %v5047
  %v5071 = vadd.f32 %v5027, %v5050
  %v5072 = vadd.f32 %v5028, %v5052
  %v5073 = vadd.f32 %v5029, %v5055
  %v5074 = vadd.f32 %v5030, %v5057
  %v5075 = vadd.f32 %v5031, %v5060
  %v5076 = vadd.f32 %v5032, %v5062
  %v5077 = vadd.f32 %v5033, %v5065
  %v5078 = vadd.f32 %v5034, %v5067
  %5079 = vmatpush.bf16.msra.mxu0 0
  %5080 = vmatpush.bf16.msra.mxu0 0
  %5081 = vmatpush.bf16.msra.mxu0 %v4606
  %5082 = vmatpush.bf16.msra.mxu0 %v4598
  %5083 = vmatpush.bf16.msra.mxu0 %v4597
  %5084 = vmatpush.bf16.msra.mxu0 %v4596
  %5085 = vmatpush.bf16.msra.mxu0 %v4595
  %5086 = vmatpush.bf16.msra.mxu0 %v4594
  %5087 = vmatmul.bf16.gmra.mxu0 %v4855
  %v5088 = vpop.f32.mrf.mxu0
  %v5089 = vadd.f32 0.0, %v5088
  %v5090 = vpop.f32.mrf.mxu0
  %v5091 = vadd.f32 0.0, %v5090
  %5092 = vmatmul.bf16.gmra.mxu0 %v4858
  %v5093 = vpop.f32.mrf.mxu0
  %v5094 = vadd.f32 0.0, %v5093
  %v5095 = vpop.f32.mrf.mxu0
  %v5096 = vadd.f32 0.0, %v5095
  %5097 = vmatmul.bf16.gmra.mxu0 %v4861
  %v5098 = vpop.f32.mrf.mxu0
  %v5099 = vadd.f32 0.0, %v5098
  %v5100 = vpop.f32.mrf.mxu0
  %v5101 = vadd.f32 0.0, %v5100
  %5102 = vmatmul.bf16.gmra.mxu0 %v4864
  %v5103 = vpop.f32.mrf.mxu0
  %v5104 = vadd.f32 0.0, %v5103
  %v5105 = vpop.f32.mrf.mxu0
  %v5106 = vadd.f32 0.0, %v5105
  %5107 = vmatmul.bf16.gmra.mxu0 %v4867
  %v5108 = vpop.f32.mrf.mxu0
  %v5109 = vadd.f32 0.0, %v5108
  %v5110 = vpop.f32.mrf.mxu0
  %v5111 = vadd.f32 0.0, %v5110
  %5112 = vdwg.mxu0
  %v5113 = vadd.f32 %v5069, %v5089
  %v5114 = vadd.f32 %v5070, %v5091
  %v5115 = vadd.f32 %v5071, %v5094
  %v5116 = vadd.f32 %v5072, %v5096
  %v5117 = vadd.f32 %v5073, %v5099
  %v5118 = vadd.f32 %v5074, %v5101
  %v5119 = vadd.f32 %v5075, %v5104
  %v5120 = vadd.f32 %v5076, %v5106
  %v5121 = vadd.f32 %v5077, %v5109
  %v5122 = vadd.f32 %v5078, %v5111
  %v5123 = vmax.f32 %v4913, %v5113
  %v5124 = vmax.f32 %v4914, %v5114
  %v5125 = vmax.f32 %v4915, %v5115
  %v5126 = vmax.f32 %v4916, %v5116
  %v5127 = vmax.f32 %v4917, %v5117
  %v5128 = vmax.f32 %v4918, %v5118
  %v5129 = vmax.f32 %v4919, %v5119
  %v5130 = vmax.f32 %v4920, %v5120
  %v5131 = vmax.f32 %v4921, %v5121
  %v5132 = vmax.f32 %v4922, %v5122
  %v5133 = vld [vmem:[%s4] sm:$0x1]
  %v5135 = vperm.slane %v5133, 0
  %v5137 = vadd.f32 %v5123, %v5135
  %v5138 = vadd.f32 %v5124, %v5135
  %v5139 = vadd.f32 %v5125, %v5135
  %v5140 = vadd.f32 %v5126, %v5135
  %v5141 = vadd.f32 %v5127, %v5135
  %v5142 = vadd.f32 %v5128, %v5135
  %v5143 = vadd.f32 %v5129, %v5135
  %v5144 = vadd.f32 %v5130, %v5135
  %v5145 = vadd.f32 %v5131, %v5135
  %v5146 = vadd.f32 %v5132, %v5135
  %v5147 = vmax.f32 %v5137, 0.0
  %v5148 = vmax.f32 %v5138, 0.0
  %v5149 = vmax.f32 %v5139, 0.0
  %v5150 = vmax.f32 %v5140, 0.0
  %v5151 = vmax.f32 %v5141, 0.0
  %v5152 = vmax.f32 %v5142, 0.0
  %v5153 = vmax.f32 %v5143, 0.0
  %v5154 = vmax.f32 %v5144, 0.0
  %v5155 = vmax.f32 %v5145, 0.0
  %v5156 = vmax.f32 %v5146, 0.0
  %v5157 = vpack.c.bf16 %v5147, %v5147
  %v5158 = vpack.c.bf16 %v5148, %v5148
  %v5159 = vpack.c.bf16 %v5149, %v5149
  %v5160 = vpack.c.bf16 %v5150, %v5150
  %v5161 = vpack.c.bf16 %v5151, %v5151
  %v5162 = vpack.c.bf16 %v5152, %v5152
  %v5163 = vpack.c.bf16 %v5153, %v5153
  %v5164 = vpack.c.bf16 %v5154, %v5154
  %v5165 = vpack.c.bf16 %v5155, %v5155
  %v5166 = vpack.c.bf16 %v5156, %v5156
  %vm5167 = vcmask 650240
  %5168 = vst.msk [vmem:[#allocation3] sm:$0xf] %vm5167, %v5157
  %5169 = vst.msk [vmem:[#allocation3 + $0x4] sm:$0xf] %vm5167, %v5158
  %5170 = vst.msk [vmem:[#allocation3 + $0x8] sm:$0xf] %vm5167, %v5159
  %5171 = vst.msk [vmem:[#allocation3 + $0xc] sm:$0xf] %vm5167, %v5160
  %5172 = vst.msk [vmem:[#allocation3 + $0x10] sm:$0xf] %vm5167, %v5161
  %5173 = vst.msk [vmem:[#allocation3 + $0x14] sm:$0xf] %vm5167, %v5162
  %5174 = vst.msk [vmem:[#allocation3 + $0x18] sm:$0xf] %vm5167, %v5163
  %5175 = vst.msk [vmem:[#allocation3 + $0x1c] sm:$0xf] %vm5167, %v5164
  %5176 = vst.msk [vmem:[#allocation3 + $0x20] sm:$0xf] %vm5167, %v5165
  %5177 = vst.msk [vmem:[#allocation3 + $0x24] sm:$0xf] %vm5167, %v5166
  %v5178 = vld [vmem:[#allocation3] sm:$0xf]
  %v5179 = vld [vmem:[#allocation3 + $0x4] sm:$0xf]
  %v5180 = vld [vmem:[%s5] sm:$0xf]
  %v5181 = vld [vmem:[%s5 + $0x4] sm:$0xf]
  %v5182 = vld [vmem:[%s5 + $0x8] sm:$0xf]
  %v5183 = vld [vmem:[%s5 + $0xc] sm:$0xf]
  %v5184 = vld [vmem:[%s5 + $0x10] sm:$0xf]
  %v5185 = vld [vmem:[%s5 + $0x14] sm:$0xf]
  %v5186 = vld [vmem:[%s5 + $0x18] sm:$0xf]
  %v5187 = vld [vmem:[%s5 + $0x1c] sm:$0xf]
  %v5188 = vld [vmem:[%s5 + $0x20] sm:$0xf]
  %v5189 = vld [vmem:[%s5 + $0x24] sm:$0xf]
  %s5190 = scalar_lea.vmem [#allocation3], 8
  %v5191 = vld [vmem:[%s5190] sm:$0xf]
  %v5192 = vld [vmem:[%s5190 + $0x4] sm:$0xf]
  %s5193 = scalar_lea.vmem %s5, 40
  %v5194 = vld [vmem:[%s5193] sm:$0xf]
  %v5195 = vld [vmem:[%s5193 + $0x4] sm:$0xf]
  %v5196 = vld [vmem:[%s5193 + $0x8] sm:$0xf]
  %v5197 = vld [vmem:[%s5193 + $0xc] sm:$0xf]
  %v5198 = vld [vmem:[%s5193 + $0x10] sm:$0xf]
  %v5199 = vld [vmem:[%s5193 + $0x14] sm:$0xf]
  %v5200 = vld [vmem:[%s5193 + $0x18] sm:$0xf]
  %v5201 = vld [vmem:[%s5193 + $0x1c] sm:$0xf]
  %v5202 = vld [vmem:[%s5193 + $0x20] sm:$0xf]
  %v5203 = vld [vmem:[%s5193 + $0x24] sm:$0xf]
  %v5206 = vunpack.c.l.b16 %v5191
  %v5207 = vunpack.c.l.b16 %v5192
  %v5208 = vpack.c.b16 %v5207, %v5206
  %v5219 = vunpack.c.l.b16 %v5194
  %v5220 = vunpack.c.l.b16 %v5195
  %v5221 = vunpack.c.l.b16 %v5196
  %v5222 = vunpack.c.l.b16 %v5197
  %v5223 = vunpack.c.l.b16 %v5198
  %v5224 = vunpack.c.l.b16 %v5199
  %v5225 = vunpack.c.l.b16 %v5200
  %v5226 = vunpack.c.l.b16 %v5201
  %v5227 = vunpack.c.l.b16 %v5202
  %v5228 = vunpack.c.l.b16 %v5203
  %v5229 = vpack.c.b16 %v5220, %v5219
  %v5230 = vpack.c.b16 %v5222, %v5221
  %v5231 = vpack.c.b16 %v5224, %v5223
  %v5232 = vpack.c.b16 %v5226, %v5225
  %v5233 = vpack.c.b16 %v5228, %v5227
  %vm5239 = vcmask 654336
  %v5241 = vsel %vm5239, %v5208, 0
  %5243 = vmatpush.bf16.msra.mxu0 0
  %5244 = vmatpush.bf16.msra.mxu0 0
  %5245 = vmatpush.bf16.msra.mxu0 0
  %5246 = vmatpush.bf16.msra.mxu0 %v5233
  %5247 = vmatpush.bf16.msra.mxu0 %v5232
  %5248 = vmatpush.bf16.msra.mxu0 %v5231
  %5249 = vmatpush.bf16.msra.mxu0 %v5230
  %5250 = vmatpush.bf16.msra.mxu0 %v5229
  %5251 = vmatmul.bf16.gmra.mxu0 %v5241
  %v5252 = vpop.f32.mrf.mxu0
  %v5253 = vadd.f32 0.0, %v5252
  %v5254 = vpop.f32.mrf.mxu0
  %v5255 = vadd.f32 0.0, %v5254
  %5256 = vdwg.mxu0
  %v5259 = vunpack.c.l.b16 %v5178
  %v5260 = vunpack.c.l.b16 %v5179
  %v5261 = vpack.c.b16 %v5260, %v5259
  %v5272 = vunpack.c.l.b16 %v5180
  %v5273 = vunpack.c.l.b16 %v5181
  %v5274 = vunpack.c.l.b16 %v5182
  %v5275 = vunpack.c.l.b16 %v5183
  %v5276 = vunpack.c.l.b16 %v5184
  %v5277 = vunpack.c.l.b16 %v5185
  %v5278 = vunpack.c.l.b16 %v5186
  %v5279 = vunpack.c.l.b16 %v5187
  %v5280 = vunpack.c.l.b16 %v5188
  %v5281 = vunpack.c.l.b16 %v5189
  %v5282 = vpack.c.b16 %v5273, %v5272
  %v5283 = vpack.c.b16 %v5275, %v5274
  %v5284 = vpack.c.b16 %v5277, %v5276
  %v5285 = vpack.c.b16 %v5279, %v5278
  %v5286 = vpack.c.b16 %v5281, %v5280
  %v5293 = vsel %vm5239, %v5261, 0
  %5295 = vmatpush.bf16.msra.mxu0 0
  %5296 = vmatpush.bf16.msra.mxu0 0
  %5297 = vmatpush.bf16.msra.mxu0 0
  %5298 = vmatpush.bf16.msra.mxu0 %v5286
  %5299 = vmatpush.bf16.msra.mxu0 %v5285
  %5300 = vmatpush.bf16.msra.mxu0 %v5284
  %5301 = vmatpush.bf16.msra.mxu0 %v5283
  %5302 = vmatpush.bf16.msra.mxu0 %v5282
  %5303 = vmatmul.bf16.gmra.mxu0 %v5293
  %v5304 = vpop.f32.mrf.mxu0
  %v5305 = vadd.f32 %v5253, %v5304
  %v5306 = vpop.f32.mrf.mxu0
  %v5307 = vadd.f32 %v5255, %v5306
  %5308 = vdwg.mxu0
  %s5309 = scalar_lea.vmem [#allocation3], 16
  %v5310 = vld [vmem:[%s5309] sm:$0xf]
  %v5311 = vld [vmem:[%s5309 + $0x4] sm:$0xf]
  %s5312 = scalar_lea.vmem %s5, 80
  %v5313 = vld [vmem:[%s5312] sm:$0xf]
  %v5314 = vld [vmem:[%s5312 + $0x4] sm:$0xf]
  %v5315 = vld [vmem:[%s5312 + $0x8] sm:$0xf]
  %v5316 = vld [vmem:[%s5312 + $0xc] sm:$0xf]
  %v5317 = vld [vmem:[%s5312 + $0x10] sm:$0xf]
  %v5318 = vld [vmem:[%s5312 + $0x14] sm:$0xf]
  %v5319 = vld [vmem:[%s5312 + $0x18] sm:$0xf]
  %v5320 = vld [vmem:[%s5312 + $0x1c] sm:$0xf]
  %v5321 = vld [vmem:[%s5312 + $0x20] sm:$0xf]
  %v5322 = vld [vmem:[%s5312 + $0x24] sm:$0xf]
  %v5325 = vunpack.c.l.b16 %v5310
  %v5326 = vunpack.c.l.b16 %v5311
  %v5327 = vpack.c.b16 %v5326, %v5325
  %v5338 = vunpack.c.l.b16 %v5313
  %v5339 = vunpack.c.l.b16 %v5314
  %v5340 = vunpack.c.l.b16 %v5315
  %v5341 = vunpack.c.l.b16 %v5316
  %v5342 = vunpack.c.l.b16 %v5317
  %v5343 = vunpack.c.l.b16 %v5318
  %v5344 = vunpack.c.l.b16 %v5319
  %v5345 = vunpack.c.l.b16 %v5320
  %v5346 = vunpack.c.l.b16 %v5321
  %v5347 = vunpack.c.l.b16 %v5322
  %v5348 = vpack.c.b16 %v5339, %v5338
  %v5349 = vpack.c.b16 %v5341, %v5340
  %v5350 = vpack.c.b16 %v5343, %v5342
  %v5351 = vpack.c.b16 %v5345, %v5344
  %v5352 = vpack.c.b16 %v5347, %v5346
  %v5359 = vsel %vm5239, %v5327, 0
  %5361 = vmatpush.bf16.msra.mxu0 0
  %5362 = vmatpush.bf16.msra.mxu0 0
  %5363 = vmatpush.bf16.msra.mxu0 0
  %5364 = vmatpush.bf16.msra.mxu0 %v5352
  %5365 = vmatpush.bf16.msra.mxu0 %v5351
  %5366 = vmatpush.bf16.msra.mxu0 %v5350
  %5367 = vmatpush.bf16.msra.mxu0 %v5349
  %5368 = vmatpush.bf16.msra.mxu0 %v5348
  %5369 = vmatmul.bf16.gmra.mxu0 %v5359
  %v5370 = vpop.f32.mrf.mxu0
  %v5371 = vadd.f32 0.0, %v5370
  %v5372 = vpop.f32.mrf.mxu0
  %v5373 = vadd.f32 0.0, %v5372
  %5374 = vdwg.mxu0
  %v5375 = vadd.f32 %v5305, %v5371
  %v5376 = vadd.f32 %v5307, %v5373
  %s5377 = scalar_lea.vmem [#allocation3], 24
  %v5378 = vld [vmem:[%s5377] sm:$0xf]
  %v5379 = vld [vmem:[%s5377 + $0x4] sm:$0xf]
  %s5380 = scalar_lea.vmem %s5, 120
  %v5381 = vld [vmem:[%s5380] sm:$0xf]
  %v5382 = vld [vmem:[%s5380 + $0x4] sm:$0xf]
  %v5383 = vld [vmem:[%s5380 + $0x8] sm:$0xf]
  %v5384 = vld [vmem:[%s5380 + $0xc] sm:$0xf]
  %v5385 = vld [vmem:[%s5380 + $0x10] sm:$0xf]
  %v5386 = vld [vmem:[%s5380 + $0x14] sm:$0xf]
  %v5387 = vld [vmem:[%s5380 + $0x18] sm:$0xf]
  %v5388 = vld [vmem:[%s5380 + $0x1c] sm:$0xf]
  %v5389 = vld [vmem:[%s5380 + $0x20] sm:$0xf]
  %v5390 = vld [vmem:[%s5380 + $0x24] sm:$0xf]
  %v5393 = vunpack.c.l.b16 %v5378
  %v5394 = vunpack.c.l.b16 %v5379
  %v5395 = vpack.c.b16 %v5394, %v5393
  %v5406 = vunpack.c.l.b16 %v5381
  %v5407 = vunpack.c.l.b16 %v5382
  %v5408 = vunpack.c.l.b16 %v5383
  %v5409 = vunpack.c.l.b16 %v5384
  %v5410 = vunpack.c.l.b16 %v5385
  %v5411 = vunpack.c.l.b16 %v5386
  %v5412 = vunpack.c.l.b16 %v5387
  %v5413 = vunpack.c.l.b16 %v5388
  %v5414 = vunpack.c.l.b16 %v5389
  %v5415 = vunpack.c.l.b16 %v5390
  %v5416 = vpack.c.b16 %v5407, %v5406
  %v5417 = vpack.c.b16 %v5409, %v5408
  %v5418 = vpack.c.b16 %v5411, %v5410
  %v5419 = vpack.c.b16 %v5413, %v5412
  %v5420 = vpack.c.b16 %v5415, %v5414
  %v5427 = vsel %vm5239, %v5395, 0
  %5429 = vmatpush.bf16.msra.mxu0 0
  %5430 = vmatpush.bf16.msra.mxu0 0
  %5431 = vmatpush.bf16.msra.mxu0 0
  %5432 = vmatpush.bf16.msra.mxu0 %v5420
  %5433 = vmatpush.bf16.msra.mxu0 %v5419
  %5434 = vmatpush.bf16.msra.mxu0 %v5418
  %5435 = vmatpush.bf16.msra.mxu0 %v5417
  %5436 = vmatpush.bf16.msra.mxu0 %v5416
  %5437 = vmatmul.bf16.gmra.mxu0 %v5427
  %v5438 = vpop.f32.mrf.mxu0
  %v5439 = vadd.f32 0.0, %v5438
  %v5440 = vpop.f32.mrf.mxu0
  %v5441 = vadd.f32 0.0, %v5440
  %5442 = vdwg.mxu0
  %v5443 = vadd.f32 %v5375, %v5439
  %v5444 = vadd.f32 %v5376, %v5441
  %s5445 = scalar_lea.vmem [#allocation3], 32
  %v5446 = vld [vmem:[%s5445] sm:$0xf]
  %v5447 = vld [vmem:[%s5445 + $0x4] sm:$0xf]
  %s5448 = scalar_lea.vmem %s5, 160
  %v5449 = vld [vmem:[%s5448] sm:$0xf]
  %v5450 = vld [vmem:[%s5448 + $0x4] sm:$0xf]
  %v5451 = vld [vmem:[%s5448 + $0x8] sm:$0xf]
  %v5452 = vld [vmem:[%s5448 + $0xc] sm:$0xf]
  %v5453 = vld [vmem:[%s5448 + $0x10] sm:$0xf]
  %v5454 = vld [vmem:[%s5448 + $0x14] sm:$0xf]
  %v5455 = vld [vmem:[%s5448 + $0x18] sm:$0xf]
  %v5456 = vld [vmem:[%s5448 + $0x1c] sm:$0xf]
  %v5457 = vld [vmem:[%s5448 + $0x20] sm:$0xf]
  %v5458 = vld [vmem:[%s5448 + $0x24] sm:$0xf]
  %v5461 = vunpack.c.l.b16 %v5446
  %v5462 = vunpack.c.l.b16 %v5447
  %v5463 = vpack.c.b16 %v5462, %v5461
  %v5474 = vunpack.c.l.b16 %v5449
  %v5475 = vunpack.c.l.b16 %v5450
  %v5476 = vunpack.c.l.b16 %v5451
  %v5477 = vunpack.c.l.b16 %v5452
  %v5478 = vunpack.c.l.b16 %v5453
  %v5479 = vunpack.c.l.b16 %v5454
  %v5480 = vunpack.c.l.b16 %v5455
  %v5481 = vunpack.c.l.b16 %v5456
  %v5482 = vunpack.c.l.b16 %v5457
  %v5483 = vunpack.c.l.b16 %v5458
  %v5484 = vpack.c.b16 %v5475, %v5474
  %v5485 = vpack.c.b16 %v5477, %v5476
  %v5486 = vpack.c.b16 %v5479, %v5478
  %v5487 = vpack.c.b16 %v5481, %v5480
  %v5488 = vpack.c.b16 %v5483, %v5482
  %v5495 = vsel %vm5239, %v5463, 0
  %5497 = vmatpush.bf16.msra.mxu0 0
  %5498 = vmatpush.bf16.msra.mxu0 0
  %5499 = vmatpush.bf16.msra.mxu0 0
  %5500 = vmatpush.bf16.msra.mxu0 %v5488
  %5501 = vmatpush.bf16.msra.mxu0 %v5487
  %5502 = vmatpush.bf16.msra.mxu0 %v5486
  %5503 = vmatpush.bf16.msra.mxu0 %v5485
  %5504 = vmatpush.bf16.msra.mxu0 %v5484
  %5505 = vmatmul.bf16.gmra.mxu0 %v5495
  %v5506 = vpop.f32.mrf.mxu0
  %v5507 = vadd.f32 0.0, %v5506
  %v5508 = vpop.f32.mrf.mxu0
  %v5509 = vadd.f32 0.0, %v5508
  %5510 = vdwg.mxu0
  %v5511 = vadd.f32 %v5443, %v5507
  %v5512 = vadd.f32 %v5444, %v5509
  %v5513 = vld [vmem:[%s6] sm:$0x1]
  %v5515 = vperm.slane %v5513, 0
  %v5517 = vadd.f32 %v5511, %v5515
  %v5518 = vadd.f32 %v5512, %v5515
  %v5519 = vmax.f32 %v5517, 0.0
  %v5520 = vmax.f32 %v5518, 0.0
  %v5521 = vpack.c.bf16 %v5520, %v5519
  %v5522 = vld [vmem:[%s7] sm:$0xf]
  %v5523 = vld [vmem:[%s7 + $0x4] sm:$0xf]
  %v5524 = vld [vmem:[%s7 + $0x8] sm:$0xf]
  %v5525 = vld [vmem:[%s7 + $0xc] sm:$0xf]
  %v5526 = vld [vmem:[%s7 + $0x10] sm:$0xf]
  %v5527 = vld [vmem:[%s7 + $0x14] sm:$0xf]
  %v5528 = vld [vmem:[%s7 + $0x18] sm:$0xf]
  %v5529 = vld [vmem:[%s7 + $0x1c] sm:$0xf]
  %v5530 = vld [vmem:[%s7 + $0x20] sm:$0xf]
  %v5531 = vld [vmem:[%s7 + $0x24] sm:$0xf]
  %v5532 = vld [vmem:[%s7 + $0x28] sm:$0xf]
  %v5533 = vld [vmem:[%s7 + $0x2c] sm:$0xf]
  %v5534 = vld [vmem:[%s7 + $0x30] sm:$0xf]
  %v5535 = vld [vmem:[%s7 + $0x34] sm:$0xf]
  %v5536 = vld [vmem:[%s7 + $0x38] sm:$0xf]
  %v5537 = vld [vmem:[%s7 + $0x3c] sm:$0xf]
  %v5538 = vld [vmem:[%s8] sm:$0x1]
  %v5540 = vperm.slane %v5538, 0
  %v5558 = vunpack.c.l.b16 %v5522
  %v5559 = vunpack.c.l.b16 %v5523
  %v5560 = vunpack.c.l.b16 %v5524
  %v5561 = vunpack.c.l.b16 %v5525
  %v5562 = vunpack.c.l.b16 %v5526
  %v5563 = vunpack.c.l.b16 %v5527
  %v5564 = vunpack.c.l.b16 %v5528
  %v5565 = vunpack.c.l.b16 %v5529
  %v5566 = vunpack.c.l.b16 %v5530
  %v5567 = vunpack.c.l.b16 %v5531
  %v5568 = vunpack.c.l.b16 %v5532
  %v5569 = vunpack.c.l.b16 %v5533
  %v5570 = vunpack.c.l.b16 %v5534
  %v5571 = vunpack.c.l.b16 %v5535
  %v5572 = vunpack.c.l.b16 %v5536
  %v5573 = vunpack.c.l.b16 %v5537
  %v5574 = vpack.c.b16 %v5559, %v5558
  %v5575 = vpack.c.b16 %v5561, %v5560
  %v5576 = vpack.c.b16 %v5563, %v5562
  %v5577 = vpack.c.b16 %v5565, %v5564
  %v5578 = vpack.c.b16 %v5567, %v5566
  %v5579 = vpack.c.b16 %v5569, %v5568
  %v5580 = vpack.c.b16 %v5571, %v5570
  %v5581 = vpack.c.b16 %v5573, %v5572
  %5590 = vmatpush.bf16.msra.mxu0 %v5581
  %5591 = vmatpush.bf16.msra.mxu0 %v5580
  %5592 = vmatpush.bf16.msra.mxu0 %v5579
  %5593 = vmatpush.bf16.msra.mxu0 %v5578
  %5594 = vmatpush.bf16.msra.mxu0 %v5577
  %5595 = vmatpush.bf16.msra.mxu0 %v5576
  %5596 = vmatpush.bf16.msra.mxu0 %v5575
  %5597 = vmatpush.bf16.msra.mxu0 %v5574
  %5598 = vmatmul.bf16.gmra.mxu0 %v5521
  %v5599 = vpop.f32.mrf.mxu0
  %v5600 = vadd.f32 %v5540, %v5599
  %v5601 = vpop.f32.mrf.mxu0
  %v5602 = vadd.f32 %v5540, %v5601
  %5603 = vdwg.mxu0
  %v5604 = vmax.f32 %v5600, 0.0
  %v5605 = vmax.f32 %v5602, 0.0
  %v5606 = vpack.c.bf16 %v5605, %v5604
  %v5607 = vld [vmem:[%s9] sm:$0xf]
  %v5608 = vld [vmem:[%s9 + $0x4] sm:$0xf]
  %v5609 = vld [vmem:[%s9 + $0x8] sm:$0xf]
  %v5610 = vld [vmem:[%s9 + $0xc] sm:$0xf]
  %v5611 = vld [vmem:[%s9 + $0x10] sm:$0xf]
  %v5612 = vld [vmem:[%s9 + $0x14] sm:$0xf]
  %v5613 = vld [vmem:[%s9 + $0x18] sm:$0xf]
  %v5614 = vld [vmem:[%s9 + $0x1c] sm:$0xf]
  %v5615 = vld [vmem:[%s9 + $0x20] sm:$0xf]
  %v5616 = vld [vmem:[%s9 + $0x24] sm:$0xf]
  %v5617 = vld [vmem:[%s9 + $0x28] sm:$0xf]
  %v5618 = vld [vmem:[%s9 + $0x2c] sm:$0xf]
  %v5619 = vld [vmem:[%s9 + $0x30] sm:$0xf]
  %v5620 = vld [vmem:[%s9 + $0x34] sm:$0xf]
  %v5621 = vld [vmem:[%s9 + $0x38] sm:$0xf]
  %v5622 = vld [vmem:[%s9 + $0x3c] sm:$0xf]
  %v5623 = vld [vmem:[%s10] sm:$0x1]
  %v5625 = vperm.slane %v5623, 0
  %v5643 = vunpack.c.l.b16 %v5607
  %v5644 = vunpack.c.l.b16 %v5608
  %v5645 = vunpack.c.l.b16 %v5609
  %v5646 = vunpack.c.l.b16 %v5610
  %v5647 = vunpack.c.l.b16 %v5611
  %v5648 = vunpack.c.l.b16 %v5612
  %v5649 = vunpack.c.l.b16 %v5613
  %v5650 = vunpack.c.l.b16 %v5614
  %v5651 = vunpack.c.l.b16 %v5615
  %v5652 = vunpack.c.l.b16 %v5616
  %v5653 = vunpack.c.l.b16 %v5617
  %v5654 = vunpack.c.l.b16 %v5618
  %v5655 = vunpack.c.l.b16 %v5619
  %v5656 = vunpack.c.l.b16 %v5620
  %v5657 = vunpack.c.l.b16 %v5621
  %v5658 = vunpack.c.l.b16 %v5622
  %v5659 = vpack.c.b16 %v5644, %v5643
  %v5660 = vpack.c.b16 %v5646, %v5645
  %v5661 = vpack.c.b16 %v5648, %v5647
  %v5662 = vpack.c.b16 %v5650, %v5649
  %v5663 = vpack.c.b16 %v5652, %v5651
  %v5664 = vpack.c.b16 %v5654, %v5653
  %v5665 = vpack.c.b16 %v5656, %v5655
  %v5666 = vpack.c.b16 %v5658, %v5657
  %5675 = vmatpush.bf16.msra.mxu0 %v5666
  %5676 = vmatpush.bf16.msra.mxu0 %v5665
  %5677 = vmatpush.bf16.msra.mxu0 %v5664
  %5678 = vmatpush.bf16.msra.mxu0 %v5663
  %5679 = vmatpush.bf16.msra.mxu0 %v5662
  %5680 = vmatpush.bf16.msra.mxu0 %v5661
  %5681 = vmatpush.bf16.msra.mxu0 %v5660
  %5682 = vmatpush.bf16.msra.mxu0 %v5659
  %5683 = vmatmul.bf16.gmra.mxu0 %v5606
  %v5684 = vpop.f32.mrf.mxu0
  %v5685 = vadd.f32 %v5625, %v5684
  %v5686 = vpop.f32.mrf.mxu0
  %v5687 = vadd.f32 %v5625, %v5686
  %5688 = vdwg.mxu0
  %5689 = vmax.xlane.f32.xlu0 %v5685
  %v5690 = vpop.xlane.xlu0 %5689
  %5691 = vmax.xlane.f32.xlu0 %v5687
  %v5692 = vpop.xlane.xlu0 %5691
  %v5693 = vsub.f32 %v5685, %v5690
  %v5694 = vsub.f32 %v5687, %v5692
  %v5695 = vmul.f32 %v5693, 1.442695
  %v5696 = vpow.pop %v5695
  %v5697 = vmul.f32 %v5694, 1.442695
  %v5698 = vpow.pop %v5697
  %5699 = vadd.xlane.f32.xlu0 %v5696
  %v5700 = vpop.xlane.xlu0 %5699
  %5701 = vadd.xlane.f32.xlu0 %v5698
  %v5702 = vpop.xlane.xlu0 %5701
  %v5703 = vrcp.pop %v5700
  %v5704 = vrcp.pop %v5702
  %v5705 = vmul.f32 %v5696, %v5703
  %v5706 = vmul.f32 %v5698, %v5704
  %5707 = vst [vmem:[%s11] sm:$0xff] %v5705
  %5708 = vst [vmem:[%s11 + $0x8] sm:$0xff] %v5706
  // Predicated region
  $region46: #{lenet5_curve_forward.1} parent=0 // pred_check
    _
  $region47: #{lenet5_curve_forward.1} parent=0 // pred_check_branch
    %5710 = sbr.rel (0) target = $region49
  $region48: #{lenet5_curve_forward.1} parent=0 // pred_region
    _
  $region49: #{lenet5_curve_forward.1} parent=0 // pred_fallthru
    _
  // Predicated region
  $region50: #{lenet5_curve_forward.1} parent=0 // pred_check
    _
  $region51: #{lenet5_curve_forward.1} parent=0 // pred_check_branch
    %5712 = sbr.rel (0) target = $region53
  $region52: #{lenet5_curve_forward.1} parent=0 // pred_region
    _
  $region53: #{lenet5_curve_forward.1} parent=0 // pred_fallthru
    _

</llo_original>
